<compile_context>
chip_gen: v6e
topology: v6e:2x2x1
jax: 0.10.0
libtpu: 0.0.40
codegen_flags: <defaults>
</compile_context>

<pallas_src>
import numpy as np
import jax
import jax.numpy as jnp
from jax import lax
from jax.experimental import pallas as pl
from jax.experimental.pallas import tpu as pltpu

# ---- module hyper-parameters (mirror the PyTorch script) --------------------
X0 = 0.0
X1 = 4.0
L_DOMAIN = X1 - X0
M_FOURIER = 5                          # m
HIDDEN = 50                            # hidden_dim
INPUT_DIM = 2 * M_FOURIER + 1 + 1      # 12  ([T, 1, cos*5, sin*5])
LAYERS = 5                             # => 4 hidden Z layers
OUTPUT_DIM = 1
N_Z = LAYERS - 1

H_PAD = 56                             # hidden padded to a sublane multiple (8)
K_PAD = 16                             # input features padded 12 -> 16
MAX_TM = 2048                          # batch tile (lanes per grid step)

# Pin the MXU precision so f32 dots are real f32 dots (multi-pass bf16 on MXU).
PRECISION = lax.Precision.HIGHEST


def _round_up(a, b):
    return (a + b - 1) // b * b


# ---- kernel ------------------------------------------------------------------
def modified_mlp_kernel(x_ref, omg_ref, wcat_ref, wz_ref, bz_ref,
                        wf_ref, bf_ref, o_ref, feat_ref):
    tm = feat_ref.shape[1]

    t = x_ref[0:1, :]                                 # (1, TM)
    xs = x_ref[1:2, :]                                # (1, TM)
    arg = omg_ref[...] * xs                           # (m, TM)  == omegas ⊗ x

    # Fourier feature slab (K_PAD, TM), written row-wise (no lane concatenates).
    feat_ref[0:1, :] = t
    feat_ref[1:2, :] = jnp.ones_like(t)               # 'ones' row carries the biases
    feat_ref[2:2 + M_FOURIER, :] = jnp.cos(arg)
    feat_ref[2 + M_FOURIER:INPUT_DIM, :] = jnp.sin(arg)
    # Pad rows must be finite on every step: with the core-sharded 'parallel'
    # axis (v7x megacore) each TensorCore owns its own uninitialized scratch,
    # so a program_id==0 gate would be unsafe there.  4xTM stores are noise.
    feat_ref[INPUT_DIM:K_PAD, :] = jnp.zeros((K_PAD - INPUT_DIM, tm), jnp.float32)

    # Fused U / V / input-layer matmul: (3*H_PAD, K_PAD) @ (K_PAD, TM).
    # Biases are pre-folded into the 'ones' column of wcat.
    pre = jnp.dot(wcat_ref[...], feat_ref[...],
                  precision=PRECISION, preferred_element_type=jnp.float32)
    u = jnp.tanh(pre[0:H_PAD, :])
    v = jnp.tanh(pre[H_PAD:2 * H_PAD, :])
    h = jnp.tanh(pre[2 * H_PAD:3 * H_PAD, :])
    d = v - u                                         # loop-invariant gate delta

    # 4 gated "Z" layers (static unroll; weights stacked along axis 0).
    for i in range(N_Z):
        z = jnp.tanh(jnp.dot(wz_ref[i], h, precision=PRECISION,
                             preferred_element_type=jnp.float32) + bz_ref[i])
        h = u + z * d                                 # == (1 - z) * u + z * v

    # Final layer: wf is row-padded to 8 so the MXU output is sublane-aligned.
    out = jnp.dot(wf_ref[...], h, precision=PRECISION,
                  preferred_element_type=jnp.float32)                 # (8, TM)
    o_ref[...] = out[0:1, :] + bf_ref[...]            # lane-dense (1, TM) store


# ---- wrapper -----------------------------------------------------------------
def modified_mlp_forward(x, kparams, tm=MAX_TM):
    """x: (N, 2) float32, columns = [T, x_spatial]. kparams: see pack_params."""
    x = x.astype(jnp.float32)
    N = x.shape[0]

    n128 = _round_up(max(N, 1), 128)
    tm = _round_up(min(tm, n128), 128)                # tile no bigger than needed
    # v7x megacore: keep at least 2 grid steps so the "parallel" batch axis
    # shards across both TensorCores (no effect on single-TC v5e/v6e).
    if n128 > 128:
        tm = min(tm, _round_up(pl.cdiv(n128, 2), 128))
    n_pad = _round_up(n128, tm)

    # transpose to feature-major and pad the batch (lane) axis
    xT = jnp.zeros((2, n_pad), jnp.float32).at[:, :N].set(x.T)
    grid = (n_pad // tm,)

    full = lambda *shape: pl.BlockSpec(shape, lambda i: (0,) * len(shape))

    out = pl.pallas_call(
        modified_mlp_kernel,
        out_shape=jax.ShapeDtypeStruct((OUTPUT_DIM, n_pad), jnp.float32),
        grid_spec=pltpu.PrefetchScalarGridSpec(
            num_scalar_prefetch=0,
            grid=grid,
            in_specs=[
                pl.BlockSpec((2, tm), lambda i: (0, i)),     # x tile [T; x]
                full(M_FOURIER, 1),                          # omegas (column)
                full(3 * H_PAD, K_PAD),                      # fused U/V/input weights (biases folded)
                full(N_Z, H_PAD, H_PAD),                     # Z-layer weights (stacked)
                full(N_Z, H_PAD, 1),                         # Z-layer biases
                full(8, H_PAD),                              # final weights (row-padded)
                full(1, 1),                                  # final bias
            ],
            out_specs=pl.BlockSpec((OUTPUT_DIM, tm), lambda i: (0, i)),
            scratch_shapes=[pltpu.VMEM((K_PAD, tm), jnp.float32)],
        ),
        compiler_params=pltpu.CompilerParams(
            dimension_semantics=("parallel",)),
    )(xT, kparams["omegas"], kparams["wcat"],
      kparams["wz"], kparams["bz"], kparams["wf"], kparams["bf"])

    return out[:, :N].T                                      # back to (N, 1)


# ---- deterministic parameter init (logical, PyTorch (out, in) convention) ----
def init_params(key):
    ks = jax.random.split(key, 10)

    def lin(kw, kb, din, dout):
        w = (jax.random.normal(kw, (dout, din), jnp.float32)
             / jnp.sqrt(jnp.float32(din)))
        b = 0.01 * jax.random.normal(kb, (dout,), jnp.float32)
        return w, b

    wu, bu = lin(ks[0], ks[1], INPUT_DIM, HIDDEN)
    wv, bv = lin(ks[2], ks[3], INPUT_DIM, HIDDEN)
    win, bin_ = lin(ks[4], ks[5], INPUT_DIM, HIDDEN)
    kz = jax.random.split(ks[6], 2 * N_Z)
    wz_list, bz_list = [], []
    for i in range(N_Z):
        w, b = lin(kz[2 * i], kz[2 * i + 1], HIDDEN, HIDDEN)
        wz_list.append(w)
        bz_list.append(b)
    wf, bf = lin(ks[7], ks[8], HIDDEN, OUTPUT_DIM)

    omegas = (jnp.arange(1, M_FOURIER + 1, dtype=jnp.float32)[None, :]
              * 2.0 * np.pi / L_DOMAIN)                      # (1, m)

    return dict(omegas=omegas,
                wu=wu, bu=bu, wv=wv, bv=bv, win=win, bin=bin_,
                wz=jnp.stack(wz_list, axis=0),               # (N_Z, H, H)
                bz=jnp.stack(bz_list, axis=0),               # (N_Z, H)
                wf=wf, bf=bf)


# ---- pack logical params into the fused / padded kernel layout ---------------
def pack_params(p):
    def pad2(w, rows, cols):
        return jnp.zeros((rows, cols), jnp.float32).at[:w.shape[0], :w.shape[1]].set(w)

    def fold_bias(w, b):
        # Feature index 1 is the constant 'ones' column of the Fourier embedding,
        # so adding the bias there is exactly W @ feat + b.
        return w.at[:, 1].add(b)

    wcat = jnp.concatenate([
        pad2(fold_bias(p["wu"], p["bu"]), H_PAD, K_PAD),
        pad2(fold_bias(p["wv"], p["bv"]), H_PAD, K_PAD),
        pad2(fold_bias(p["win"], p["bin"]), H_PAD, K_PAD),
    ], axis=0)                                               # (3*H_PAD, K_PAD)

    wz = jnp.stack([pad2(p["wz"][i], H_PAD, H_PAD) for i in range(N_Z)], axis=0)
    bz = jnp.stack([pad2(p["bz"][i][:, None], H_PAD, 1) for i in range(N_Z)], axis=0)
    wf = pad2(p["wf"], 8, H_PAD)                             # rows 1..7 are zero
    bf = p["bf"].reshape(1, 1)
    omegas = p["omegas"].T                                   # (m, 1) feature-major

    return dict(omegas=omegas, wcat=wcat, wz=wz, bz=bz, wf=wf, bf=bf)


# ---- pure-JAX reference (mirrors the PyTorch forward exactly) -----------------
def reference_forward(x, p):
    def dot(a, b):
        return jnp.dot(a, b, precision=lax.Precision.HIGHEST)

    t, xs = x[:, 0:1], x[:, 1:2]
    arg = xs * p["omegas"]                                   # == xs @ omegas (rank-1)
    feat = jnp.concatenate(
        [t, jnp.ones_like(xs), jnp.cos(arg), jnp.sin(arg)], axis=1)
    u = jnp.tanh(dot(feat, p["wu"].T) + p["bu"])
    v = jnp.tanh(dot(feat, p["wv"].T) + p["bv"])
    h = jnp.tanh(dot(feat, p["win"].T) + p["bin"])
    for i in range(N_Z):
        z = jnp.tanh(dot(h, p["wz"][i].T) + p["bz"][i])
        h = (1.0 - z) * u + z * v
    return dot(h, p["wf"].T) + p["bf"]


if __name__ == "__main__":
    key = jax.random.PRNGKey(0)
    kp, kx = jax.random.split(key)
    params = init_params(kp)
    kparams = pack_params(params)

    N = 300  # small, deliberately not a multiple of the tile (exercises padding
             # and the >=2-grid-step megacore path)
    # columns: [T in [0,1], X in [X0, X1]]
    raw = jax.random.uniform(kx, (N, 2), jnp.float32)
    x = jnp.stack([raw[:, 0], X0 + raw[:, 1] * (X1 - X0)], axis=1)

    out = modified_mlp_forward(x, kparams)
    out = jax.block_until_ready(out)

    ref = reference_forward(x, params)
    np.testing.assert_allclose(np.asarray(out), np.asarray(ref),
                               rtol=2e-5, atol=2e-5)
    print("KERNEL_OK")
</pallas_src>

<mosaic_0001>
module attributes {stable_mosaic.version = 11 : i64} {
  func.func @modified_mlp_kernel(%arg0: i32, %arg1: memref<2x256xf32, #tpu.memory_space<vmem>>, %arg2: memref<5x1xf32, #tpu.memory_space<vmem>>, %arg3: memref<168x16xf32, #tpu.memory_space<vmem>>, %arg4: memref<4x56x56xf32, #tpu.memory_space<vmem>>, %arg5: memref<4x56x1xf32, #tpu.memory_space<vmem>>, %arg6: memref<8x56xf32, #tpu.memory_space<vmem>>, %arg7: memref<1x1xf32, #tpu.memory_space<vmem>>, %arg8: memref<1x256xf32, #tpu.memory_space<vmem>>, %arg9: memref<16x256xf32, #tpu.memory_space<vmem>>) attributes {dimension_semantics = [#tpu.dimension_semantics<parallel>], iteration_bounds = array<i64: 2>, scalar_prefetch = 0 : i64, scratch_operands = 1 : i64, tpu.core_type = #tpu.core_type<tc>, window_params = [{transform_indices = @transform_0, window_bounds = array<i64: 2, 256>}, {pipeline_mode = #tpu.pipeline_mode<synchronous>, transform_indices = @transform_1, window_bounds = array<i64: 5, 1>}, {pipeline_mode = #tpu.pipeline_mode<synchronous>, transform_indices = @transform_2, window_bounds = array<i64: 168, 16>}, {pipeline_mode = #tpu.pipeline_mode<synchronous>, transform_indices = @transform_3, window_bounds = array<i64: 4, 56, 56>}, {pipeline_mode = #tpu.pipeline_mode<synchronous>, transform_indices = @transform_4, window_bounds = array<i64: 4, 56, 1>}, {pipeline_mode = #tpu.pipeline_mode<synchronous>, transform_indices = @transform_5, window_bounds = array<i64: 8, 56>}, {pipeline_mode = #tpu.pipeline_mode<synchronous>, transform_indices = @transform_6, window_bounds = array<i64: 1, 1>}, {transform_indices = @transform_7, window_bounds = array<i64: 1, 256>}]} {
    %c0 = arith.constant 0 : index
    %c0_0 = arith.constant 0 : index
    %0 = vector.load %arg1[%c0, %c0_0] : memref<2x256xf32, #tpu.memory_space<vmem>>, vector<1x256xf32>
    %c1 = arith.constant 1 : index
    %c0_1 = arith.constant 0 : index
    %1 = vector.load %arg1[%c1, %c0_1] : memref<2x256xf32, #tpu.memory_space<vmem>>, vector<1x256xf32>
    %c0_2 = arith.constant 0 : index
    %c0_3 = arith.constant 0 : index
    %2 = vector.load %arg2[%c0_2, %c0_3] : memref<5x1xf32, #tpu.memory_space<vmem>>, vector<5x1xf32>
    %3 = vector.broadcast %2 : vector<5x1xf32> to vector<5x256xf32>
    %4 = vector.broadcast %1 : vector<1x256xf32> to vector<5x256xf32>
    %5 = arith.mulf %3, %4 : vector<5x256xf32>
    %c0_4 = arith.constant 0 : index
    %c0_5 = arith.constant 0 : index
    %6 = vector.load %arg9[%c0_4, %c0_5] : memref<16x256xf32, #tpu.memory_space<vmem>>, vector<1x256xf32>
    tpu.vector_store %arg9[%c0_4, %c0_5], %0 {strides = array<i32>} : memref<16x256xf32, #tpu.memory_space<vmem>>, vector<1x256xf32>,
    %cst = arith.constant 1.000000e+00 : f32
    %7 = vector.broadcast %cst : f32 to vector<1x256xf32>
    %c1_6 = arith.constant 1 : index
    %c0_7 = arith.constant 0 : index
    %8 = vector.load %arg9[%c1_6, %c0_7] : memref<16x256xf32, #tpu.memory_space<vmem>>, vector<1x256xf32>
    tpu.vector_store %arg9[%c1_6, %c0_7], %7 {strides = array<i32>} : memref<16x256xf32, #tpu.memory_space<vmem>>, vector<1x256xf32>,
    %9 = math.cos %5 : vector<5x256xf32>
    %c2 = arith.constant 2 : index
    %c0_8 = arith.constant 0 : index
    %10 = vector.load %arg9[%c2, %c0_8] : memref<16x256xf32, #tpu.memory_space<vmem>>, vector<5x256xf32>
    tpu.vector_store %arg9[%c2, %c0_8], %9 {strides = array<i32>} : memref<16x256xf32, #tpu.memory_space<vmem>>, vector<5x256xf32>,
    %11 = math.sin %5 : vector<5x256xf32>
    %c7 = arith.constant 7 : index
    %c0_9 = arith.constant 0 : index
    %12 = vector.load %arg9[%c7, %c0_9] : memref<16x256xf32, #tpu.memory_space<vmem>>, vector<5x256xf32>
    tpu.vector_store %arg9[%c7, %c0_9], %11 {strides = array<i32>} : memref<16x256xf32, #tpu.memory_space<vmem>>, vector<5x256xf32>,
    %cst_10 = arith.constant 0.000000e+00 : f32
    %13 = vector.broadcast %cst_10 : f32 to vector<4x256xf32>
    %c12 = arith.constant 12 : index
    %c0_11 = arith.constant 0 : index
    %14 = vector.load %arg9[%c12, %c0_11] : memref<16x256xf32, #tpu.memory_space<vmem>>, vector<4x256xf32>
    tpu.vector_store %arg9[%c12, %c0_11], %13 {strides = array<i32>} : memref<16x256xf32, #tpu.memory_space<vmem>>, vector<4x256xf32>,
    %c0_12 = arith.constant 0 : index
    %c0_13 = arith.constant 0 : index
    %15 = vector.load %arg3[%c0_12, %c0_13] : memref<168x16xf32, #tpu.memory_space<vmem>>, vector<168x16xf32>
    %c0_14 = arith.constant 0 : index
    %c0_15 = arith.constant 0 : index
    %16 = vector.load %arg9[%c0_14, %c0_15] : memref<16x256xf32, #tpu.memory_space<vmem>>, vector<16x256xf32>
    %cst_16 = arith.constant dense<0.000000e+00> : vector<168x256xf32>
    %17 = tpu.matmul %15, %16, %cst_16 {dimension_numbers = #tpu.dot_dimension_numbers<[1], [0], [0], [1], [0, 0, 1, 1], [], []>, precision = #tpu.contract_precision<fp32>} : vector<168x16xf32>, vector<16x256xf32>, vector<168x256xf32> -> vector<168x256xf32>
    %18 = vector.extract_strided_slice %17 {offsets = [0, 0], sizes = [56, 256], strides = [1, 1]} : vector<168x256xf32> to vector<56x256xf32>
    %19 = math.tanh %18 : vector<56x256xf32>
    %20 = vector.extract_strided_slice %17 {offsets = [56, 0], sizes = [56, 256], strides = [1, 1]} : vector<168x256xf32> to vector<56x256xf32>
    %21 = math.tanh %20 : vector<56x256xf32>
    %22 = vector.extract_strided_slice %17 {offsets = [112, 0], sizes = [56, 256], strides = [1, 1]} : vector<168x256xf32> to vector<56x256xf32>
    %23 = math.tanh %22 : vector<56x256xf32>
    %24 = arith.subf %21, %19 : vector<56x256xf32>
    %c0_17 = arith.constant 0 : index
    %c0_18 = arith.constant 0 : index
    %c0_19 = arith.constant 0 : index
    %25 = vector.load %arg4[%c0_17, %c0_18, %c0_19] : memref<4x56x56xf32, #tpu.memory_space<vmem>>, vector<1x56x56xf32>
    %26 = vector.shape_cast %25 : vector<1x56x56xf32> to vector<56x56xf32>
    %cst_20 = arith.constant dense<0.000000e+00> : vector<56x256xf32>
    %27 = tpu.matmul %26, %23, %cst_20 {dimension_numbers = #tpu.dot_dimension_numbers<[1], [0], [0], [1], [0, 0, 1, 1], [], []>, precision = #tpu.contract_precision<fp32>} : vector<56x56xf32>, vector<56x256xf32>, vector<56x256xf32> -> vector<56x256xf32>
    %c0_21 = arith.constant 0 : index
    %c0_22 = arith.constant 0 : index
    %c0_23 = arith.constant 0 : index
    %28 = vector.load %arg5[%c0_21, %c0_22, %c0_23] : memref<4x56x1xf32, #tpu.memory_space<vmem>>, vector<1x56x1xf32>
    %29 = vector.shape_cast %28 : vector<1x56x1xf32> to vector<56x1xf32>
    %30 = vector.broadcast %29 : vector<56x1xf32> to vector<56x256xf32>
    %31 = arith.addf %27, %30 : vector<56x256xf32>
    %32 = math.tanh %31 : vector<56x256xf32>
    %33 = arith.mulf %32, %24 : vector<56x256xf32>
    %34 = arith.addf %19, %33 : vector<56x256xf32>
    %c1_24 = arith.constant 1 : index
    %c0_25 = arith.constant 0 : index
    %c0_26 = arith.constant 0 : index
    %35 = vector.load %arg4[%c1_24, %c0_25, %c0_26] : memref<4x56x56xf32, #tpu.memory_space<vmem>>, vector<1x56x56xf32>
    %36 = vector.shape_cast %35 : vector<1x56x56xf32> to vector<56x56xf32>
    %cst_27 = arith.constant dense<0.000000e+00> : vector<56x256xf32>
    %37 = tpu.matmul %36, %34, %cst_27 {dimension_numbers = #tpu.dot_dimension_numbers<[1], [0], [0], [1], [0, 0, 1, 1], [], []>, precision = #tpu.contract_precision<fp32>} : vector<56x56xf32>, vector<56x256xf32>, vector<56x256xf32> -> vector<56x256xf32>
    %c1_28 = arith.constant 1 : index
    %c0_29 = arith.constant 0 : index
    %c0_30 = arith.constant 0 : index
    %38 = vector.load %arg5[%c1_28, %c0_29, %c0_30] : memref<4x56x1xf32, #tpu.memory_space<vmem>>, vector<1x56x1xf32>
    %39 = vector.shape_cast %38 : vector<1x56x1xf32> to vector<56x1xf32>
    %40 = vector.broadcast %39 : vector<56x1xf32> to vector<56x256xf32>
    %41 = arith.addf %37, %40 : vector<56x256xf32>
    %42 = math.tanh %41 : vector<56x256xf32>
    %43 = arith.mulf %42, %24 : vector<56x256xf32>
    %44 = arith.addf %19, %43 : vector<56x256xf32>
    %c2_31 = arith.constant 2 : index
    %c0_32 = arith.constant 0 : index
    %c0_33 = arith.constant 0 : index
    %45 = vector.load %arg4[%c2_31, %c0_32, %c0_33] : memref<4x56x56xf32, #tpu.memory_space<vmem>>, vector<1x56x56xf32>
    %46 = vector.shape_cast %45 : vector<1x56x56xf32> to vector<56x56xf32>
    %cst_34 = arith.constant dense<0.000000e+00> : vector<56x256xf32>
    %47 = tpu.matmul %46, %44, %cst_34 {dimension_numbers = #tpu.dot_dimension_numbers<[1], [0], [0], [1], [0, 0, 1, 1], [], []>, precision = #tpu.contract_precision<fp32>} : vector<56x56xf32>, vector<56x256xf32>, vector<56x256xf32> -> vector<56x256xf32>
    %c2_35 = arith.constant 2 : index
    %c0_36 = arith.constant 0 : index
    %c0_37 = arith.constant 0 : index
    %48 = vector.load %arg5[%c2_35, %c0_36, %c0_37] : memref<4x56x1xf32, #tpu.memory_space<vmem>>, vector<1x56x1xf32>
    %49 = vector.shape_cast %48 : vector<1x56x1xf32> to vector<56x1xf32>
    %50 = vector.broadcast %49 : vector<56x1xf32> to vector<56x256xf32>
    %51 = arith.addf %47, %50 : vector<56x256xf32>
    %52 = math.tanh %51 : vector<56x256xf32>
    %53 = arith.mulf %52, %24 : vector<56x256xf32>
    %54 = arith.addf %19, %53 : vector<56x256xf32>
    %c3 = arith.constant 3 : index
    %c0_38 = arith.constant 0 : index
    %c0_39 = arith.constant 0 : index
    %55 = vector.load %arg4[%c3, %c0_38, %c0_39] : memref<4x56x56xf32, #tpu.memory_space<vmem>>, vector<1x56x56xf32>
    %56 = vector.shape_cast %55 : vector<1x56x56xf32> to vector<56x56xf32>
    %cst_40 = arith.constant dense<0.000000e+00> : vector<56x256xf32>
    %57 = tpu.matmul %56, %54, %cst_40 {dimension_numbers = #tpu.dot_dimension_numbers<[1], [0], [0], [1], [0, 0, 1, 1], [], []>, precision = #tpu.contract_precision<fp32>} : vector<56x56xf32>, vector<56x256xf32>, vector<56x256xf32> -> vector<56x256xf32>
    %c3_41 = arith.constant 3 : index
    %c0_42 = arith.constant 0 : index
    %c0_43 = arith.constant 0 : index
    %58 = vector.load %arg5[%c3_41, %c0_42, %c0_43] : memref<4x56x1xf32, #tpu.memory_space<vmem>>, vector<1x56x1xf32>
    %59 = vector.shape_cast %58 : vector<1x56x1xf32> to vector<56x1xf32>
    %60 = vector.broadcast %59 : vector<56x1xf32> to vector<56x256xf32>
    %61 = arith.addf %57, %60 : vector<56x256xf32>
    %62 = math.tanh %61 : vector<56x256xf32>
    %63 = arith.mulf %62, %24 : vector<56x256xf32>
    %64 = arith.addf %19, %63 : vector<56x256xf32>
    %c0_44 = arith.constant 0 : index
    %c0_45 = arith.constant 0 : index
    %65 = vector.load %arg6[%c0_44, %c0_45] : memref<8x56xf32, #tpu.memory_space<vmem>>, vector<8x56xf32>
    %cst_46 = arith.constant dense<0.000000e+00> : vector<8x256xf32>
    %66 = tpu.matmul %65, %64, %cst_46 {dimension_numbers = #tpu.dot_dimension_numbers<[1], [0], [0], [1], [0, 0, 1, 1], [], []>, precision = #tpu.contract_precision<fp32>} : vector<8x56xf32>, vector<56x256xf32>, vector<8x256xf32> -> vector<8x256xf32>
    %67 = vector.extract_strided_slice %66 {offsets = [0, 0], sizes = [1, 256], strides = [1, 1]} : vector<8x256xf32> to vector<1x256xf32>
    %c0_47 = arith.constant 0 : index
    %c0_48 = arith.constant 0 : index
    %68 = vector.load %arg7[%c0_47, %c0_48] : memref<1x1xf32, #tpu.memory_space<vmem>>, vector<1x1xf32>
    %69 = vector.broadcast %68 : vector<1x1xf32> to vector<1x256xf32>
    %70 = arith.addf %67, %69 : vector<1x256xf32>
    %c0_49 = arith.constant 0 : index
    %c0_50 = arith.constant 0 : index
    %71 = vector.load %arg8[%c0_49, %c0_50] : memref<1x256xf32, #tpu.memory_space<vmem>>, vector<1x256xf32>
    tpu.vector_store %arg8[%c0_49, %c0_50], %70 {strides = array<i32>} : memref<1x256xf32, #tpu.memory_space<vmem>>, vector<1x256xf32>,
    return
  }
  func.func @transform_0(%arg0: i32) -> (i32, i32) {
    %c0_i32 = arith.constant 0 : i32
    %c0_i32_0 = arith.constant 0 : i32
    return %c0_i32, %arg0 : i32, i32
  }
  func.func @transform_1(%arg0: i32) -> (i32, i32) {
    %c0_i32 = arith.constant 0 : i32
    %c0_i32_0 = arith.constant 0 : i32
    %c0_i32_1 = arith.constant 0 : i32
    return %c0_i32, %c0_i32_0 : i32, i32
  }
  func.func @transform_2(%arg0: i32) -> (i32, i32) {
    %c0_i32 = arith.constant 0 : i32
    %c0_i32_0 = arith.constant 0 : i32
    %c0_i32_1 = arith.constant 0 : i32
    return %c0_i32, %c0_i32_0 : i32, i32
  }
  func.func @transform_3(%arg0: i32) -> (i32, i32, i32) {
    %c0_i32 = arith.constant 0 : i32
    %c0_i32_0 = arith.constant 0 : i32
    %c0_i32_1 = arith.constant 0 : i32
    %c0_i32_2 = arith.constant 0 : i32
    return %c0_i32, %c0_i32_0, %c0_i32_1 : i32, i32, i32
  }
  func.func @transform_4(%arg0: i32) -> (i32, i32, i32) {
    %c0_i32 = arith.constant 0 : i32
    %c0_i32_0 = arith.constant 0 : i32
    %c0_i32_1 = arith.constant 0 : i32
    %c0_i32_2 = arith.constant 0 : i32
    return %c0_i32, %c0_i32_0, %c0_i32_1 : i32, i32, i32
  }
  func.func @transform_5(%arg0: i32) -> (i32, i32) {
    %c0_i32 = arith.constant 0 : i32
    %c0_i32_0 = arith.constant 0 : i32
    %c0_i32_1 = arith.constant 0 : i32
    return %c0_i32, %c0_i32_0 : i32, i32
  }
  func.func @transform_6(%arg0: i32) -> (i32, i32) {
    %c0_i32 = arith.constant 0 : i32
    %c0_i32_0 = arith.constant 0 : i32
    %c0_i32_1 = arith.constant 0 : i32
    return %c0_i32, %c0_i32_0 : i32, i32
  }
  func.func @transform_7(%arg0: i32) -> (i32, i32) {
    %c0_i32 = arith.constant 0 : i32
    %c0_i32_0 = arith.constant 0 : i32
    return %c0_i32, %arg0 : i32, i32
  }
}

</mosaic_0001>

<llo_original>
// kernel: tpu_custom_call.1
$region0: #{tpu_custom_call.1}
  #allocation0 [shape = 'u32[]', space=smem, size = 0x4, offset = 0x4, fixed_abs, tag = 'smem constant byte address 0x4 - core index']
  #allocation1 [shape = 'u32[144,128]{1,0:T(1,128)}', space=vmem, size = 0x12000, scoped, tag = 'internal scratch']
  #allocation2 [shape = 'f32[16,256]{1,0:T(8,128)}', space=vmem, size = 0x4000, scoped, tag = 'scratch operand']
  #allocation3 [shape = 'f32[1,1]{1,0:T(1,128)S(1)}', space=vmem, size = 0x200, scoped, tag = 'scoped memory for tpu_custom_call.1']
  %s0 = inlined_call_operand.vmem [shape: f32[2,512], index: 0, kind: input, shape index: {}]
  %s1 = inlined_call_operand.vmem [shape: f32[5,1], index: 1, kind: input, shape index: {}]
  %s2 = inlined_call_operand.vmem [shape: f32[168,16], index: 2, kind: input, shape index: {}]
  %s3 = inlined_call_operand.vmem [shape: f32[4,56,56], index: 3, kind: input, shape index: {}]
  %s4 = inlined_call_operand.vmem [shape: f32[4,56,1], index: 4, kind: input, shape index: {}]
  %s5 = inlined_call_operand.vmem [shape: f32[8,56], index: 5, kind: input, shape index: {}]
  %s6 = inlined_call_operand.<no memory space> [shape: f32[1,1], index: 6, kind: input, shape index: {}]
  %s7 = inlined_call_operand.hbm [shape: f32[1,512], index: 7, kind: output, shape index: {}]
  %s8 = sld [smem:[#allocation0]]
  $region61: #{tpu_custom_call.1} parent=0
    _
  %s10 = ssub.s32 1, %s8
  %s11 = scalar_select 0, %s10, %s8
  %v12 = vstv %s6
  %13 = vst [vmem:[#allocation3] sm:$0x1] %v12
  $region1: #{tpu_custom_call.1} parent=0
    #allocation4 [shape = 'u8[2048]{0}', space=vmem, size = 0x800, scoped, tag = 'output window, operand 0']
    #allocation5 [shape = 's32[2]{0}', space=sflag, size = 0x8, scoped, tag = 'scoped memory for tpu_custom_call.1']
    %14 = vsyncpa [#allocation5], 0
    %s15 = scalar_lea.sflag [#allocation5], 1
    %16 = vsyncpa %s15, 0
    loop: start=0, step=1, limit=4
    $region2: #{tpu_custom_call.1} parent=1 // loop_pre_header
      _
    $region3: #{tpu_custom_call.1} parent=1 // loop_header
      %s18 = sphi 0, %s22
      %p19 = scmp.ge.s32.totalorder %s18, 4
      %s28 = sphi 0, %s30
      %s31 = sphi 0, %s28
      %s32 = sphi 0, %s31
      %s48 = sphi 0, %s32
      %s52 = sphi 0, %s52
      %s54 = sphi 0, %s52
      %s55 = sphi 0, %s54
      %s69 = sphi 0, %s55
      %s73 = sphi 0, %s73
      %s75 = sphi 0, %s73
      %s76 = sphi 0, %s75
      %s90 = sphi 0, %s76
      %s94 = sphi 0, %s94
      %s96 = sphi 0, %s94
      %s97 = sphi 0, %s96
      %s111 = sphi 0, %s97
      %s115 = sphi 0, %s115
      %s117 = sphi 0, %s115
      %s118 = sphi 0, %s117
      %s132 = sphi 0, %s118
      %s136 = sphi 0, %s136
      %s138 = sphi 0, %s136
      %s139 = sphi 0, %s138
      %s153 = sphi 0, %s139
      %s157 = sphi 0, %s157
      %s159 = sphi 0, %s157
      %s160 = sphi 0, %s159
      %s174 = sphi 0, %s160
      %s180 = sphi 0, %s182
      %s183 = sphi 0, %s180
      %s184 = sphi 0, %s183
      %s200 = sphi 0, %s184
    $region4: #{tpu_custom_call.1} parent=1 // loop_header_branch
      %21 = sbr.rel (%p19) target = $region8
    $region5: #{tpu_custom_call.1} parent=1 // loop_body
      %s23 = ssub.s32 %s18, 1
      %s24 = ssub.s32 %s18, 2
      %s25 = sadd.s32 %s18, 1
      %s26 = ssub.s32 %s18, %s25
      %p27 = scmp.eq.s32.totalorder %s26, 0
      %s29 = sadd.s32 %s28, 1
      %s30 = scalar_select %p27, %s28, %s29
      %p33 = pneg %p27
      %p34 = scmp.eq.s32.totalorder %s18, 1
      %p35 = por %p33, %p34
      %p36 = scmp.ne.s32.totalorder %s28, %s31
      %p37 = scmp.eq.s32.totalorder %s18, 0
      %p38 = por %p36, %p37
      %p39 = scmp.ne.s32.totalorder %s28, %s31
      %p40 = scmp.eq.s32.totalorder %s23, 1
      %p41 = por %p39, %p40
      %p42 = scmp.ne.s32.totalorder %s31, %s32
      %p43 = scmp.eq.s32.totalorder %s23, 0
      %p44 = por %p42, %p43
      %p45 = scmp.ne.s32.totalorder %s31, %s32
      %p46 = scmp.eq.s32.totalorder %s24, 1
      %p47 = por %p45, %p46
      %p49 = scmp.ne.s32.totalorder %s32, %s48
      %p50 = scmp.eq.s32.totalorder %s24, 0
      %p51 = por %p49, %p50
      %s53 = sadd.s32 %s52, 1
      %p56 = scmp.eq.s32.totalorder %s18, 1
      %p57 = scmp.ne.s32.totalorder %s52, %s54
      %p58 = scmp.eq.s32.totalorder %s18, 0
      %p59 = por %p57, %p58
      %p60 = scmp.ne.s32.totalorder %s52, %s54
      %p61 = scmp.eq.s32.totalorder %s23, 1
      %p62 = por %p60, %p61
      %p63 = scmp.ne.s32.totalorder %s54, %s55
      %p64 = scmp.eq.s32.totalorder %s23, 0
      %p65 = por %p63, %p64
      %p66 = scmp.ne.s32.totalorder %s54, %s55
      %p67 = scmp.eq.s32.totalorder %s24, 1
      %p68 = por %p66, %p67
      %p70 = scmp.ne.s32.totalorder %s55, %s69
      %p71 = scmp.eq.s32.totalorder %s24, 0
      %p72 = por %p70, %p71
      %s74 = sadd.s32 %s73, 1
      %p77 = scmp.eq.s32.totalorder %s18, 1
      %p78 = scmp.ne.s32.totalorder %s73, %s75
      %p79 = scmp.eq.s32.totalorder %s18, 0
      %p80 = por %p78, %p79
      %p81 = scmp.ne.s32.totalorder %s73, %s75
      %p82 = scmp.eq.s32.totalorder %s23, 1
      %p83 = por %p81, %p82
      %p84 = scmp.ne.s32.totalorder %s75, %s76
      %p85 = scmp.eq.s32.totalorder %s23, 0
      %p86 = por %p84, %p85
      %p87 = scmp.ne.s32.totalorder %s75, %s76
      %p88 = scmp.eq.s32.totalorder %s24, 1
      %p89 = por %p87, %p88
      %p91 = scmp.ne.s32.totalorder %s76, %s90
      %p92 = scmp.eq.s32.totalorder %s24, 0
      %p93 = por %p91, %p92
      %s95 = sadd.s32 %s94, 1
      %p98 = scmp.eq.s32.totalorder %s18, 1
      %p99 = scmp.ne.s32.totalorder %s94, %s96
      %p100 = scmp.eq.s32.totalorder %s18, 0
      %p101 = por %p99, %p100
      %p102 = scmp.ne.s32.totalorder %s94, %s96
      %p103 = scmp.eq.s32.totalorder %s23, 1
      %p104 = por %p102, %p103
      %p105 = scmp.ne.s32.totalorder %s96, %s97
      %p106 = scmp.eq.s32.totalorder %s23, 0
      %p107 = por %p105, %p106
      %p108 = scmp.ne.s32.totalorder %s96, %s97
      %p109 = scmp.eq.s32.totalorder %s24, 1
      %p110 = por %p108, %p109
      %p112 = scmp.ne.s32.totalorder %s97, %s111
      %p113 = scmp.eq.s32.totalorder %s24, 0
      %p114 = por %p112, %p113
      %s116 = sadd.s32 %s115, 1
      %p119 = scmp.eq.s32.totalorder %s18, 1
      %p120 = scmp.ne.s32.totalorder %s115, %s117
      %p121 = scmp.eq.s32.totalorder %s18, 0
      %p122 = por %p120, %p121
      %p123 = scmp.ne.s32.totalorder %s115, %s117
      %p124 = scmp.eq.s32.totalorder %s23, 1
      %p125 = por %p123, %p124
      %p126 = scmp.ne.s32.totalorder %s117, %s118
      %p127 = scmp.eq.s32.totalorder %s23, 0
      %p128 = por %p126, %p127
      %p129 = scmp.ne.s32.totalorder %s117, %s118
      %p130 = scmp.eq.s32.totalorder %s24, 1
      %p131 = por %p129, %p130
      %p133 = scmp.ne.s32.totalorder %s118, %s132
      %p134 = scmp.eq.s32.totalorder %s24, 0
      %p135 = por %p133, %p134
      %s137 = sadd.s32 %s136, 1
      %p140 = scmp.eq.s32.totalorder %s18, 1
      %p141 = scmp.ne.s32.totalorder %s136, %s138
      %p142 = scmp.eq.s32.totalorder %s18, 0
      %p143 = por %p141, %p142
      %p144 = scmp.ne.s32.totalorder %s136, %s138
      %p145 = scmp.eq.s32.totalorder %s23, 1
      %p146 = por %p144, %p145
      %p147 = scmp.ne.s32.totalorder %s138, %s139
      %p148 = scmp.eq.s32.totalorder %s23, 0
      %p149 = por %p147, %p148
      %p150 = scmp.ne.s32.totalorder %s138, %s139
      %p151 = scmp.eq.s32.totalorder %s24, 1
      %p152 = por %p150, %p151
      %p154 = scmp.ne.s32.totalorder %s139, %s153
      %p155 = scmp.eq.s32.totalorder %s24, 0
      %p156 = por %p154, %p155
      %s158 = sadd.s32 %s157, 1
      %p161 = scmp.eq.s32.totalorder %s18, 1
      %p162 = scmp.ne.s32.totalorder %s157, %s159
      %p163 = scmp.eq.s32.totalorder %s18, 0
      %p164 = por %p162, %p163
      %p165 = scmp.ne.s32.totalorder %s157, %s159
      %p166 = scmp.eq.s32.totalorder %s23, 1
      %p167 = por %p165, %p166
      %p168 = scmp.ne.s32.totalorder %s159, %s160
      %p169 = scmp.eq.s32.totalorder %s23, 0
      %p170 = por %p168, %p169
      %p171 = scmp.ne.s32.totalorder %s159, %s160
      %p172 = scmp.eq.s32.totalorder %s24, 1
      %p173 = por %p171, %p172
      %p175 = scmp.ne.s32.totalorder %s160, %s174
      %p176 = scmp.eq.s32.totalorder %s24, 0
      %p177 = por %p175, %p176
      %s178 = ssub.s32 %s18, %s25
      %p179 = scmp.eq.s32.totalorder %s178, 0
      %s181 = sadd.s32 %s180, 1
      %s182 = scalar_select %p179, %s180, %s181
      %p185 = pneg %p179
      %p186 = scmp.eq.s32.totalorder %s18, 1
      %p187 = por %p185, %p186
      %p188 = scmp.ne.s32.totalorder %s180, %s183
      %p189 = scmp.eq.s32.totalorder %s18, 0
      %p190 = por %p188, %p189
      %p191 = scmp.ne.s32.totalorder %s180, %s183
      %p192 = scmp.eq.s32.totalorder %s23, 1
      %p193 = por %p191, %p192
      %p194 = scmp.ne.s32.totalorder %s183, %s184
      %p195 = scmp.eq.s32.totalorder %s23, 0
      %p196 = por %p194, %p195
      %p197 = scmp.ne.s32.totalorder %s183, %s184
      %p198 = scmp.eq.s32.totalorder %s24, 1
      %p199 = por %p197, %p198
      %p201 = scmp.ne.s32.totalorder %s184, %s200
      %p202 = scmp.eq.s32.totalorder %s24, 0
      %p203 = por %p201, %p202
      %p204 = scmp.le.s32.totalorder 1, %s18
      %p205 = scmp.lt.s32.totalorder %s18, 3
      %p206 = pnand %p204, %p205
      %p207 = pneg %p206
      // Predicated region
      $region9: #{tpu_custom_call.1} parent=5 // pred_check
        _
      $region10: #{tpu_custom_call.1} parent=5 // pred_check_branch
        %209 = sbr.rel (%p206) target = $region12
      $region11: #{tpu_custom_call.1} parent=5 // pred_region
        %s210 = ssub.s32 %s18, 1
        // Predicated region
        $region13: #{tpu_custom_call.1} parent=11 // pred_check
          %p211 = pneg %p65
        $region14: #{tpu_custom_call.1} parent=11 // pred_check_branch
          %213 = sbr.rel (%p211) target = $region16
        $region15: #{tpu_custom_call.1} parent=11 // pred_region
          _
        $region16: #{tpu_custom_call.1} parent=11 // pred_fallthru
          _
        // Predicated region
        $region17: #{tpu_custom_call.1} parent=11 // pred_check
          %p214 = pneg %p86
        $region18: #{tpu_custom_call.1} parent=11 // pred_check_branch
          %216 = sbr.rel (%p214) target = $region20
        $region19: #{tpu_custom_call.1} parent=11 // pred_region
          _
        $region20: #{tpu_custom_call.1} parent=11 // pred_fallthru
          _
        // Predicated region
        $region21: #{tpu_custom_call.1} parent=11 // pred_check
          %p217 = pneg %p107
        $region22: #{tpu_custom_call.1} parent=11 // pred_check_branch
          %219 = sbr.rel (%p217) target = $region24
        $region23: #{tpu_custom_call.1} parent=11 // pred_region
          _
        $region24: #{tpu_custom_call.1} parent=11 // pred_fallthru
          _
        // Predicated region
        $region25: #{tpu_custom_call.1} parent=11 // pred_check
          %p220 = pneg %p128
        $region26: #{tpu_custom_call.1} parent=11 // pred_check_branch
          %222 = sbr.rel (%p220) target = $region28
        $region27: #{tpu_custom_call.1} parent=11 // pred_region
          _
        $region28: #{tpu_custom_call.1} parent=11 // pred_fallthru
          _
        // Predicated region
        $region29: #{tpu_custom_call.1} parent=11 // pred_check
          %p223 = pneg %p149
        $region30: #{tpu_custom_call.1} parent=11 // pred_check_branch
          %225 = sbr.rel (%p223) target = $region32
        $region31: #{tpu_custom_call.1} parent=11 // pred_region
          _
        $region32: #{tpu_custom_call.1} parent=11 // pred_fallthru
          _
        // Predicated region
        $region33: #{tpu_custom_call.1} parent=11 // pred_check
          %p226 = pneg %p170
        $region34: #{tpu_custom_call.1} parent=11 // pred_check_branch
          %228 = sbr.rel (%p226) target = $region36
        $region35: #{tpu_custom_call.1} parent=11 // pred_region
          _
        $region36: #{tpu_custom_call.1} parent=11 // pred_fallthru
          _
      $region12: #{tpu_custom_call.1} parent=5 // pred_fallthru
        _
      %p229 = scmp.lt.s32.totalorder %s18, 2
      // Predicated region
      $region37: #{tpu_custom_call.1} parent=5 // pred_check
        %p230 = pneg %p229
      $region38: #{tpu_custom_call.1} parent=5 // pred_check_branch
        %232 = sbr.rel (%p230) target = $region40
      $region39: #{tpu_custom_call.1} parent=5 // pred_region
        // Predicated region
        $region41: #{tpu_custom_call.1} parent=39 // pred_check
          %p233 = pneg %p38
        $region42: #{tpu_custom_call.1} parent=39 // pred_check_branch
          %235 = sbr.rel (%p233) target = $region44
        $region43: #{tpu_custom_call.1} parent=39 // pred_region
          %s236 = smul.u32 2, %s18
          %p237 = scmp.lt.s32.totalorder %s236, 3
          %s238 = scalar_select %p237, %s236, 3
          %s239 = smul.addr %s238, 2
          %s240 = scalar_lea.vmem %s0, %s239
          %s241 = smul.u32 2, %s18
        $region44: #{tpu_custom_call.1} parent=39 // pred_fallthru
          _
      $region40: #{tpu_custom_call.1} parent=5 // pred_fallthru
        _
      %p242 = scmp.le.s32.totalorder 1, %s18
      %p243 = scmp.lt.s32.totalorder %s18, 3
      %p244 = pnand %p242, %p243
      %p245 = pneg %p244
      // Predicated region
      $region45: #{tpu_custom_call.1} parent=5 // pred_check
        _
      $region46: #{tpu_custom_call.1} parent=5 // pred_check_branch
        %247 = sbr.rel (%p244) target = $region48
      $region47: #{tpu_custom_call.1} parent=5 // pred_region
        %s248 = ssub.s32 %s18, 1
        %s249 = smul.u32 2, %s23
        %p250 = scmp.lt.s32.totalorder %s249, 3
        %s251 = scalar_select %p250, %s249, 3
        %s252 = smul.addr %s251, 2
        %s253 = scalar_lea.vmem %s0, %s252
        %p254 = pneg %p44
        %p255 = pneg %p41
        %p256 = pneg %p65
        %p257 = pneg %p62
        %p258 = pneg %p86
        %p259 = pneg %p83
        %p260 = pneg %p107
        %p261 = pneg %p104
        %p262 = pneg %p128
        %p263 = pneg %p125
        %p264 = pneg %p149
        %p265 = pneg %p146
        %p266 = pneg %p170
        %p267 = pneg %p167
        %p268 = pneg %p196
        %p269 = pneg %p193
        %s270 = sand.u32 %s183, 1
        %s271 = scalar_lea.sflag [#allocation5], %s270
        %s272 = sand.u32 %s183, 1
        %s273 = smul.addr %s272, 2
        %s274 = scalar_lea.vmem [#allocation4], %s273
        %s275 = smul.u32 2, %s23
        %p276 = scmp.lt.s32.totalorder %s275, 3
        %s277 = scalar_select %p276, %s275, 3
        %s278 = smul.addr %s277, 2
        %s279 = scalar_lea.vmem %s0, %s278
        %s280 = smul.u32 2, %s23
        %s281 = smul.u32 2, %s23
        %v282 = vld [vmem:[%s279] ss:$2 sm:$0x3]
        %s283 = scalar_lea.vmem %s279, 1
        %v284 = vld [vmem:[%s283] ss:$2 sm:$0x3]
        %v285 = vld [vmem:[%s1] sm:$0x1f]
        %287 = vset.pattern.permute.xlu0 0
        %288 = vperm.xlu0 %287, %v285
        %v289 = vpop.permute.xlu0 %288
        %v292 = vlaneseq
        %v293 = vshrl.u32 %v292, 7
        %v294 = vsub.s32 0, %v293
        %v295 = vrot.slane %v284, %v294
        %v296 = vlaneseq
        %v297 = vshrl.u32 %v296, 7
        %v298 = vsub.s32 1, %v297
        %v299 = vrot.slane %v284, %v298
        %v302 = vmul.f32 %v289, %v295
        %v303 = vmul.f32 %v289, %v299
        %v304 = vlaneseq
        %vm305 = vcmp.ge.s32.totalorder %v304, 0
        %vm306 = vcmp.lt.s32.totalorder %v304, 256
        %vm307 = vmand %vm305, %vm306
        %308 = vst.msk [vmem:[#allocation2] ss:$8 sm:$0x3] %vm307, %v282
        %309 = vst.msk [vmem:[#allocation2] ss:$8 sm:$0x0] %vm307, %v282
        %s310 = scalar_lea.vmem [#allocation2], 1
        %311 = vst.msk [vmem:[%s310] ss:$8 sm:$0x3] %vm307, 1.0
        %312 = vst.msk [vmem:[%s310] ss:$8 sm:$0x0] %vm307, 1.0
        %v313 = vand.u32 2147483647, %v302
        %vm314 = vcmp.le.f32.partialorder %v313, 0.7853982
        %vm315 = vcmp.lt.s32.totalorder %v302, 0
        %v316 = vand.u32 %v302, 2139095040
        %v317 = vshrl.u32 %v316, 23
        %v318 = vsub.s32 %v317, 127
        %v319 = vand.u32 2147483647, %v302
        %v320 = vand.u32 %v319, 8388607
        %v321 = vor.u32 %v320, 8388608
        %v322 = vsub.s32 0, %v321
        %v323 = vadd.s32 %v318, 1
        %vm324 = vcmp.gt.s32.totalorder %v323, 0
        %v325 = vsel %vm324, %v323, 0
        %v326 = vshrl.u32 %v325, 5
        %v327 = vand.u32 %v325, 31
        %v328 = vsub.s32 32, %v327
        %v329 = vshrl.u32 683565275, %v328
        %v330 = vshll.u32 683565275, %v327
        %v331 = vshrl.u32 2475754826, %v328
        %v332 = vor.u32 %v330, %v331
        %v333 = vshll.u32 2475754826, %v327
        %v334 = vshrl.u32 2131351028, %v328
        %v335 = vor.u32 %v333, %v334
        %v336 = vshll.u32 2131351028, %v327
        %v337 = vshrl.u32 2102212464, %v328
        %v338 = vor.u32 %v336, %v337
        %v339 = vshll.u32 2102212464, %v327
        %v340 = vshrl.u32 920167782, %v328
        %v341 = vor.u32 %v339, %v340
        %v342 = vshll.u32 920167782, %v327
        %v343 = vshrl.u32 1326507024, %v328
        %v344 = vor.u32 %v342, %v343
        %vm345 = vcmp.lt.s32.totalorder %v326, 1
        %vm346 = vcmp.lt.s32.totalorder %v326, 2
        %vm347 = vcmp.lt.s32.totalorder %v326, 3
        %vm348 = vcmp.lt.s32.totalorder %v326, 4
        %v349 = vsel %vm345, %v329, %v332
        %v350 = vsel %vm348, %v338, 2102212464
        %v351 = vsel %vm347, %v335, %v350
        %v352 = vsel %vm346, %v349, %v351
        %v353 = vsel %vm345, %v332, %v335
        %v354 = vsel %vm348, %v341, 920167782
        %v355 = vsel %vm347, %v338, %v354
        %v356 = vsel %vm346, %v353, %v355
        %v357 = vsel %vm345, %v335, %v338
        %v358 = vsel %vm348, %v344, 1326507024
        %v359 = vsel %vm347, %v341, %v358
        %v360 = vsel %vm346, %v357, %v359
        %v361 = vshll.u32 %v321, 8
        %v362 = vmul.u32.u64.compose %v361, %v360
        %v363 = vextract.low.u32 %v362
        %v364 = vextract.high.u32 %v362
        %v365 = vmul.u32.u64.compose %v361, %v356
        %v366 = vextract.low.u32 %v365
        %v367 = vextract.high.u32 %v365
        %v368 = vmul.u32 %v361, %v352
        %v369 = vadd.s32 %v364, %v366
        %vm370 = vc.u32 %v364, %v366
        %v371 = vadd.s32 %v367, 1
        %v372 = vsel %vm370, %v371, %v367
        %v373 = vadd.s32 %v368, %v372
        %v374 = vadd.s32 %v373, 536870912
        %v375 = vshrl.u32 %v374, 30
        %v376 = vshll.u32 %v375, 30
        %v377 = vsub.s32 %v373, %v376
        %vm378 = vcmp.lt.s32.totalorder %v377, 0
        %v379 = vsub.s32 0, %v377
        %v380 = vsel %vm378, %v379, %v377
        %v381 = vclz %v380
        %v382 = vsub.s32 %v381, 2
        %vm383 = vcmp.gt.s32.totalorder 0, %v382
        %v384 = vsel %vm383, 0, %v382
        %v385 = vsub.s32 32, %v384
        %v386 = vshll.u32 %v377, %v384
        %v387 = vshrl.u32 %v369, %v385
        %v388 = vor.u32 %v386, %v387
        %v389 = vsub.s32 4294967266, %v384
        %v390 = vadd.s32 %v389, 127
        %v391 = vshll.u32 %v390, 23
        %v392 = vor.u32 4788187, %v391
        %v393 = vand.u32 2147483647, %v392
        %v395 = vcvt.s32.f32 %v388
        %v396 = vmul.f32 %v395, %v393
        %v397 = vxor.u32 %v396, 2147483648
        %v398 = vsel %vm315, %v397, %v396
        %v399 = vsub.s32 4, %v375
        %v400 = vsel %vm315, %v399, %v375
        %v401 = vsel %vm314, %v302, %v398
        %v402 = vsel %vm314, 0, %v400
        %v403 = vcosq.f32.pop %v401
        %v404 = vsinq.f32.pop %v401
        %vm405 = vweird.f32 %v302
        %v406 = vand.u32 %v402, 3
        %vm407 = vcmp.lt.s32.totalorder %v406, 2
        %vm408 = vcmp.eq.s32.totalorder %v406, 0
        %v409 = vxor.u32 %v404, 2147483648
        %v410 = vsel %vm408, %v403, %v409
        %vm411 = vcmp.eq.s32.totalorder %v406, 2
        %v412 = vxor.u32 %v403, 2147483648
        %v413 = vsel %vm411, %v412, %v404
        %v414 = vsel %vm407, %v410, %v413
        %v415 = vsel %vm405, nan, %v414
        %v416 = vand.u32 2147483647, %v303
        %vm417 = vcmp.le.f32.partialorder %v416, 0.7853982
        %vm418 = vcmp.lt.s32.totalorder %v303, 0
        %v419 = vand.u32 %v303, 2139095040
        %v420 = vshrl.u32 %v419, 23
        %v421 = vsub.s32 %v420, 127
        %v422 = vand.u32 2147483647, %v303
        %v423 = vand.u32 %v422, 8388607
        %v424 = vor.u32 %v423, 8388608
        %v425 = vsub.s32 0, %v424
        %v426 = vadd.s32 %v421, 1
        %vm427 = vcmp.gt.s32.totalorder %v426, 0
        %v428 = vsel %vm427, %v426, 0
        %v429 = vshrl.u32 %v428, 5
        %v430 = vand.u32 %v428, 31
        %v431 = vsub.s32 32, %v430
        %v432 = vshrl.u32 683565275, %v431
        %v433 = vshll.u32 683565275, %v430
        %v434 = vshrl.u32 2475754826, %v431
        %v435 = vor.u32 %v433, %v434
        %v436 = vshll.u32 2475754826, %v430
        %v437 = vshrl.u32 2131351028, %v431
        %v438 = vor.u32 %v436, %v437
        %v439 = vshll.u32 2131351028, %v430
        %v440 = vshrl.u32 2102212464, %v431
        %v441 = vor.u32 %v439, %v440
        %v442 = vshll.u32 2102212464, %v430
        %v443 = vshrl.u32 920167782, %v431
        %v444 = vor.u32 %v442, %v443
        %v445 = vshll.u32 920167782, %v430
        %v446 = vshrl.u32 1326507024, %v431
        %v447 = vor.u32 %v445, %v446
        %vm448 = vcmp.lt.s32.totalorder %v429, 1
        %vm449 = vcmp.lt.s32.totalorder %v429, 2
        %vm450 = vcmp.lt.s32.totalorder %v429, 3
        %vm451 = vcmp.lt.s32.totalorder %v429, 4
        %v452 = vsel %vm448, %v432, %v435
        %v453 = vsel %vm451, %v441, 2102212464
        %v454 = vsel %vm450, %v438, %v453
        %v455 = vsel %vm449, %v452, %v454
        %v456 = vsel %vm448, %v435, %v438
        %v457 = vsel %vm451, %v444, 920167782
        %v458 = vsel %vm450, %v441, %v457
        %v459 = vsel %vm449, %v456, %v458
        %v460 = vsel %vm448, %v438, %v441
        %v461 = vsel %vm451, %v447, 1326507024
        %v462 = vsel %vm450, %v444, %v461
        %v463 = vsel %vm449, %v460, %v462
        %v464 = vshll.u32 %v424, 8
        %v465 = vmul.u32.u64.compose %v464, %v463
        %v466 = vextract.low.u32 %v465
        %v467 = vextract.high.u32 %v465
        %v468 = vmul.u32.u64.compose %v464, %v459
        %v469 = vextract.low.u32 %v468
        %v470 = vextract.high.u32 %v468
        %v471 = vmul.u32 %v464, %v455
        %v472 = vadd.s32 %v467, %v469
        %vm473 = vc.u32 %v467, %v469
        %v474 = vadd.s32 %v470, 1
        %v475 = vsel %vm473, %v474, %v470
        %v476 = vadd.s32 %v471, %v475
        %v477 = vadd.s32 %v476, 536870912
        %v478 = vshrl.u32 %v477, 30
        %v479 = vshll.u32 %v478, 30
        %v480 = vsub.s32 %v476, %v479
        %vm481 = vcmp.lt.s32.totalorder %v480, 0
        %v482 = vsub.s32 0, %v480
        %v483 = vsel %vm481, %v482, %v480
        %v484 = vclz %v483
        %v485 = vsub.s32 %v484, 2
        %vm486 = vcmp.gt.s32.totalorder 0, %v485
        %v487 = vsel %vm486, 0, %v485
        %v488 = vsub.s32 32, %v487
        %v489 = vshll.u32 %v480, %v487
        %v490 = vshrl.u32 %v472, %v488
        %v491 = vor.u32 %v489, %v490
        %v492 = vsub.s32 4294967266, %v487
        %v493 = vadd.s32 %v492, 127
        %v494 = vshll.u32 %v493, 23
        %v495 = vor.u32 4788187, %v494
        %v496 = vand.u32 2147483647, %v495
        %v498 = vcvt.s32.f32 %v491
        %v499 = vmul.f32 %v498, %v496
        %v500 = vxor.u32 %v499, 2147483648
        %v501 = vsel %vm418, %v500, %v499
        %v502 = vsub.s32 4, %v478
        %v503 = vsel %vm418, %v502, %v478
        %v504 = vsel %vm417, %v303, %v501
        %v505 = vsel %vm417, 0, %v503
        %v506 = vcosq.f32.pop %v504
        %v507 = vsinq.f32.pop %v504
        %vm508 = vweird.f32 %v303
        %v509 = vand.u32 %v505, 3
        %vm510 = vcmp.lt.s32.totalorder %v509, 2
        %vm511 = vcmp.eq.s32.totalorder %v509, 0
        %v512 = vxor.u32 %v507, 2147483648
        %v513 = vsel %vm511, %v506, %v512
        %vm514 = vcmp.eq.s32.totalorder %v509, 2
        %v515 = vxor.u32 %v506, 2147483648
        %v516 = vsel %vm514, %v515, %v507
        %v517 = vsel %vm510, %v513, %v516
        %v518 = vsel %vm508, nan, %v517
        %v521 = vrot.slane %v415, 6
        %v522 = vrot.slane %v518, 6
        %525 = vst [vmem:[#allocation2] sm:$0x7c] %v521
        %526 = vst [vmem:[#allocation2 + $0x8] sm:$0x7c] %v522
        %v527 = vand.u32 2147483647, %v302
        %vm528 = vcmp.le.f32.partialorder %v527, 0.7853982
        %vm529 = vcmp.lt.s32.totalorder %v302, 0
        %v530 = vand.u32 %v302, 2139095040
        %v531 = vshrl.u32 %v530, 23
        %v532 = vsub.s32 %v531, 127
        %v533 = vand.u32 2147483647, %v302
        %v534 = vand.u32 %v533, 8388607
        %v535 = vor.u32 %v534, 8388608
        %v536 = vsub.s32 0, %v535
        %v537 = vadd.s32 %v532, 1
        %vm538 = vcmp.gt.s32.totalorder %v537, 0
        %v539 = vsel %vm538, %v537, 0
        %v540 = vshrl.u32 %v539, 5
        %v541 = vand.u32 %v539, 31
        %v542 = vsub.s32 32, %v541
        %v543 = vshrl.u32 683565275, %v542
        %v544 = vshll.u32 683565275, %v541
        %v545 = vshrl.u32 2475754826, %v542
        %v546 = vor.u32 %v544, %v545
        %v547 = vshll.u32 2475754826, %v541
        %v548 = vshrl.u32 2131351028, %v542
        %v549 = vor.u32 %v547, %v548
        %v550 = vshll.u32 2131351028, %v541
        %v551 = vshrl.u32 2102212464, %v542
        %v552 = vor.u32 %v550, %v551
        %v553 = vshll.u32 2102212464, %v541
        %v554 = vshrl.u32 920167782, %v542
        %v555 = vor.u32 %v553, %v554
        %v556 = vshll.u32 920167782, %v541
        %v557 = vshrl.u32 1326507024, %v542
        %v558 = vor.u32 %v556, %v557
        %vm559 = vcmp.lt.s32.totalorder %v540, 1
        %vm560 = vcmp.lt.s32.totalorder %v540, 2
        %vm561 = vcmp.lt.s32.totalorder %v540, 3
        %vm562 = vcmp.lt.s32.totalorder %v540, 4
        %v563 = vsel %vm559, %v543, %v546
        %v564 = vsel %vm562, %v552, 2102212464
        %v565 = vsel %vm561, %v549, %v564
        %v566 = vsel %vm560, %v563, %v565
        %v567 = vsel %vm559, %v546, %v549
        %v568 = vsel %vm562, %v555, 920167782
        %v569 = vsel %vm561, %v552, %v568
        %v570 = vsel %vm560, %v567, %v569
        %v571 = vsel %vm559, %v549, %v552
        %v572 = vsel %vm562, %v558, 1326507024
        %v573 = vsel %vm561, %v555, %v572
        %v574 = vsel %vm560, %v571, %v573
        %v575 = vshll.u32 %v535, 8
        %v576 = vmul.u32.u64.compose %v575, %v574
        %v577 = vextract.low.u32 %v576
        %v578 = vextract.high.u32 %v576
        %v579 = vmul.u32.u64.compose %v575, %v570
        %v580 = vextract.low.u32 %v579
        %v581 = vextract.high.u32 %v579
        %v582 = vmul.u32 %v575, %v566
        %v583 = vadd.s32 %v578, %v580
        %vm584 = vc.u32 %v578, %v580
        %v585 = vadd.s32 %v581, 1
        %v586 = vsel %vm584, %v585, %v581
        %v587 = vadd.s32 %v582, %v586
        %v588 = vadd.s32 %v587, 536870912
        %v589 = vshrl.u32 %v588, 30
        %v590 = vshll.u32 %v589, 30
        %v591 = vsub.s32 %v587, %v590
        %vm592 = vcmp.lt.s32.totalorder %v591, 0
        %v593 = vsub.s32 0, %v591
        %v594 = vsel %vm592, %v593, %v591
        %v595 = vclz %v594
        %v596 = vsub.s32 %v595, 2
        %vm597 = vcmp.gt.s32.totalorder 0, %v596
        %v598 = vsel %vm597, 0, %v596
        %v599 = vsub.s32 32, %v598
        %v600 = vshll.u32 %v591, %v598
        %v601 = vshrl.u32 %v583, %v599
        %v602 = vor.u32 %v600, %v601
        %v603 = vsub.s32 4294967266, %v598
        %v604 = vadd.s32 %v603, 127
        %v605 = vshll.u32 %v604, 23
        %v606 = vor.u32 4788187, %v605
        %v607 = vand.u32 2147483647, %v606
        %v609 = vcvt.s32.f32 %v602
        %v610 = vmul.f32 %v609, %v607
        %v611 = vxor.u32 %v610, 2147483648
        %v612 = vsel %vm529, %v611, %v610
        %v613 = vsub.s32 4, %v589
        %v614 = vsel %vm529, %v613, %v589
        %v615 = vsel %vm528, %v302, %v612
        %v616 = vsel %vm528, 0, %v614
        %v617 = vcosq.f32.pop %v615
        %v618 = vsinq.f32.pop %v615
        %vm619 = vweird.f32 %v302
        %v620 = vadd.s32 %v616, 3
        %v621 = vand.u32 %v620, 3
        %vm622 = vcmp.lt.s32.totalorder %v621, 2
        %vm623 = vcmp.eq.s32.totalorder %v621, 0
        %v624 = vxor.u32 %v618, 2147483648
        %v625 = vsel %vm623, %v617, %v624
        %vm626 = vcmp.eq.s32.totalorder %v621, 2
        %v627 = vxor.u32 %v617, 2147483648
        %v628 = vsel %vm626, %v627, %v618
        %v629 = vsel %vm622, %v625, %v628
        %v630 = vsel %vm619, nan, %v629
        %v631 = vand.u32 2147483647, %v303
        %vm632 = vcmp.le.f32.partialorder %v631, 0.7853982
        %vm633 = vcmp.lt.s32.totalorder %v303, 0
        %v634 = vand.u32 %v303, 2139095040
        %v635 = vshrl.u32 %v634, 23
        %v636 = vsub.s32 %v635, 127
        %v637 = vand.u32 2147483647, %v303
        %v638 = vand.u32 %v637, 8388607
        %v639 = vor.u32 %v638, 8388608
        %v640 = vsub.s32 0, %v639
        %v641 = vadd.s32 %v636, 1
        %vm642 = vcmp.gt.s32.totalorder %v641, 0
        %v643 = vsel %vm642, %v641, 0
        %v644 = vshrl.u32 %v643, 5
        %v645 = vand.u32 %v643, 31
        %v646 = vsub.s32 32, %v645
        %v647 = vshrl.u32 683565275, %v646
        %v648 = vshll.u32 683565275, %v645
        %v649 = vshrl.u32 2475754826, %v646
        %v650 = vor.u32 %v648, %v649
        %v651 = vshll.u32 2475754826, %v645
        %v652 = vshrl.u32 2131351028, %v646
        %v653 = vor.u32 %v651, %v652
        %v654 = vshll.u32 2131351028, %v645
        %v655 = vshrl.u32 2102212464, %v646
        %v656 = vor.u32 %v654, %v655
        %v657 = vshll.u32 2102212464, %v645
        %v658 = vshrl.u32 920167782, %v646
        %v659 = vor.u32 %v657, %v658
        %v660 = vshll.u32 920167782, %v645
        %v661 = vshrl.u32 1326507024, %v646
        %v662 = vor.u32 %v660, %v661
        %vm663 = vcmp.lt.s32.totalorder %v644, 1
        %vm664 = vcmp.lt.s32.totalorder %v644, 2
        %vm665 = vcmp.lt.s32.totalorder %v644, 3
        %vm666 = vcmp.lt.s32.totalorder %v644, 4
        %v667 = vsel %vm663, %v647, %v650
        %v668 = vsel %vm666, %v656, 2102212464
        %v669 = vsel %vm665, %v653, %v668
        %v670 = vsel %vm664, %v667, %v669
        %v671 = vsel %vm663, %v650, %v653
        %v672 = vsel %vm666, %v659, 920167782
        %v673 = vsel %vm665, %v656, %v672
        %v674 = vsel %vm664, %v671, %v673
        %v675 = vsel %vm663, %v653, %v656
        %v676 = vsel %vm666, %v662, 1326507024
        %v677 = vsel %vm665, %v659, %v676
        %v678 = vsel %vm664, %v675, %v677
        %v679 = vshll.u32 %v639, 8
        %v680 = vmul.u32.u64.compose %v679, %v678
        %v681 = vextract.low.u32 %v680
        %v682 = vextract.high.u32 %v680
        %v683 = vmul.u32.u64.compose %v679, %v674
        %v684 = vextract.low.u32 %v683
        %v685 = vextract.high.u32 %v683
        %v686 = vmul.u32 %v679, %v670
        %v687 = vadd.s32 %v682, %v684
        %vm688 = vc.u32 %v682, %v684
        %v689 = vadd.s32 %v685, 1
        %v690 = vsel %vm688, %v689, %v685
        %v691 = vadd.s32 %v686, %v690
        %v692 = vadd.s32 %v691, 536870912
        %v693 = vshrl.u32 %v692, 30
        %v694 = vshll.u32 %v693, 30
        %v695 = vsub.s32 %v691, %v694
        %vm696 = vcmp.lt.s32.totalorder %v695, 0
        %v697 = vsub.s32 0, %v695
        %v698 = vsel %vm696, %v697, %v695
        %v699 = vclz %v698
        %v700 = vsub.s32 %v699, 2
        %vm701 = vcmp.gt.s32.totalorder 0, %v700
        %v702 = vsel %vm701, 0, %v700
        %v703 = vsub.s32 32, %v702
        %v704 = vshll.u32 %v695, %v702
        %v705 = vshrl.u32 %v687, %v703
        %v706 = vor.u32 %v704, %v705
        %v707 = vsub.s32 4294967266, %v702
        %v708 = vadd.s32 %v707, 127
        %v709 = vshll.u32 %v708, 23
        %v710 = vor.u32 4788187, %v709
        %v711 = vand.u32 2147483647, %v710
        %v713 = vcvt.s32.f32 %v706
        %v714 = vmul.f32 %v713, %v711
        %v715 = vxor.u32 %v714, 2147483648
        %v716 = vsel %vm633, %v715, %v714
        %v717 = vsub.s32 4, %v693
        %v718 = vsel %vm633, %v717, %v693
        %v719 = vsel %vm632, %v303, %v716
        %v720 = vsel %vm632, 0, %v718
        %v721 = vcosq.f32.pop %v719
        %v722 = vsinq.f32.pop %v719
        %vm723 = vweird.f32 %v303
        %v724 = vadd.s32 %v720, 3
        %v725 = vand.u32 %v724, 3
        %vm726 = vcmp.lt.s32.totalorder %v725, 2
        %vm727 = vcmp.eq.s32.totalorder %v725, 0
        %v728 = vxor.u32 %v722, 2147483648
        %v729 = vsel %vm727, %v721, %v728
        %vm730 = vcmp.eq.s32.totalorder %v725, 2
        %v731 = vxor.u32 %v721, 2147483648
        %v732 = vsel %vm730, %v731, %v722
        %v733 = vsel %vm726, %v729, %v732
        %v734 = vsel %vm723, nan, %v733
        %v737 = vrot.slane %v630, 1
        %v738 = vrot.slane %v734, 1
        %741 = vst [vmem:[#allocation2] sm:$0x80] %v737
        %742 = vst [vmem:[#allocation2 + $0x8] sm:$0x80] %v738
        %743 = vst [vmem:[#allocation2 + $0x10] sm:$0xf] %v737
        %744 = vst [vmem:[#allocation2 + $0x18] sm:$0xf] %v738
        %745 = vst [vmem:[#allocation2 + $0x10] sm:$0xf0] 0.0
        %746 = vst [vmem:[#allocation2 + $0x18] sm:$0xf0] 0.0
        %v747 = vld [vmem:[%s2] sm:$0xff]
        %v748 = vld [vmem:[%s2 + $0x8] sm:$0xff]
        %v749 = vld [vmem:[%s2 + $0x10] sm:$0xff]
        %v750 = vld [vmem:[%s2 + $0x18] sm:$0xff]
        %v751 = vld [vmem:[%s2 + $0x20] sm:$0xff]
        %v752 = vld [vmem:[%s2 + $0x28] sm:$0xff]
        %v753 = vld [vmem:[%s2 + $0x30] sm:$0xff]
        %v754 = vld [vmem:[%s2 + $0x38] sm:$0xff]
        %v755 = vld [vmem:[%s2 + $0x40] sm:$0xff]
        %v756 = vld [vmem:[%s2 + $0x48] sm:$0xff]
        %v757 = vld [vmem:[%s2 + $0x50] sm:$0xff]
        %v758 = vld [vmem:[%s2 + $0x58] sm:$0xff]
        %v759 = vld [vmem:[%s2 + $0x60] sm:$0xff]
        %v760 = vld [vmem:[%s2 + $0x68] sm:$0xff]
        %v761 = vld [vmem:[%s2 + $0x70] sm:$0xff]
        %v762 = vld [vmem:[%s2 + $0x78] sm:$0xff]
        %v763 = vld [vmem:[%s2 + $0x80] sm:$0xff]
        %v764 = vld [vmem:[%s2 + $0x88] sm:$0xff]
        %v765 = vld [vmem:[%s2 + $0x90] sm:$0xff]
        %v766 = vld [vmem:[%s2 + $0x98] sm:$0xff]
        %v767 = vld [vmem:[%s2 + $0xa0] sm:$0xff]
        %v768 = vld [vmem:[#allocation2] sm:$0xff]
        %v769 = vld [vmem:[#allocation2 + $0x8] sm:$0xff]
        %v770 = vld [vmem:[#allocation2 + $0x10] sm:$0xff]
        %v771 = vld [vmem:[#allocation2 + $0x18] sm:$0xff]
        %vm772 = vcmask 130048
        %v774 = vsel %vm772, %v747, 0
        %v777 = vsel %vm772, %v748, 0
        %v780 = vsel %vm772, %v749, 0
        %v783 = vsel %vm772, %v750, 0
        %v786 = vsel %vm772, %v751, 0
        %v789 = vsel %vm772, %v752, 0
        %v792 = vsel %vm772, %v753, 0
        %v795 = vsel %vm772, %v754, 0
        %v798 = vsel %vm772, %v755, 0
        %v801 = vsel %vm772, %v756, 0
        %v804 = vsel %vm772, %v757, 0
        %v807 = vsel %vm772, %v758, 0
        %v810 = vsel %vm772, %v759, 0
        %v813 = vsel %vm772, %v760, 0
        %v816 = vsel %vm772, %v761, 0
        %v819 = vsel %vm772, %v762, 0
        %v822 = vsel %vm772, %v763, 0
        %v825 = vsel %vm772, %v764, 0
        %v828 = vsel %vm772, %v765, 0
        %v831 = vsel %vm772, %v766, 0
        %v834 = vsel %vm772, %v767, 0
        %836 = vmatprep.subr.mxu0 0.0
        %837 = vmatpush1.msra.mxu0 0.0
        %838 = vmatprep.subr.mxu0 0.0
        %839 = vmatpush1.msra.mxu0 0.0
        %840 = vmatprep.subr.mxu0 0.0
        %841 = vmatpush1.msra.mxu0 0.0
        %842 = vmatprep.subr.mxu0 0.0
        %843 = vmatpush1.msra.mxu0 0.0
        %844 = vmatprep.subr.mxu0 0.0
        %845 = vmatpush1.msra.mxu0 0.0
        %846 = vmatprep.subr.mxu0 0.0
        %847 = vmatpush1.msra.mxu0 0.0
        %848 = vmatprep.subr.mxu0 0.0
        %849 = vmatpush1.msra.mxu0 0.0
        %850 = vmatprep.subr.mxu0 0.0
        %851 = vmatpush1.msra.mxu0 0.0
        %852 = vmatprep.subr.mxu0 0.0
        %853 = vmatpush1.msra.mxu0 0.0
        %854 = vmatprep.subr.mxu0 0.0
        %855 = vmatpush1.msra.mxu0 0.0
        %856 = vmatprep.subr.mxu0 0.0
        %857 = vmatpush1.msra.mxu0 0.0
        %858 = vmatprep.subr.mxu0 0.0
        %859 = vmatpush1.msra.mxu0 0.0
        %860 = vmatprep.subr.mxu0 0.0
        %861 = vmatpush1.msra.mxu0 0.0
        %862 = vmatprep.subr.mxu0 0.0
        %863 = vmatpush1.msra.mxu0 0.0
        %v864 = vand.u32 %v771, 4294901760
        %865 = vmatprep.subr.mxu0 %v864
        %v866 = vand.u32 %v770, 4294901760
        %867 = vmatpush1.msra.mxu0 %v866
        %v868 = vand.u32 %v769, 4294901760
        %869 = vmatprep.subr.mxu0 %v868
        %v870 = vand.u32 %v768, 4294901760
        %871 = vmatpush1.msra.mxu0 %v870
        %872 = vmatprep.subr.mxu0 0.0
        %873 = vmatpush2.msra.mxu0 0.0
        %874 = vmatprep.subr.mxu0 0.0
        %875 = vmatpush2.msra.mxu0 0.0
        %876 = vmatprep.subr.mxu0 0.0
        %877 = vmatpush2.msra.mxu0 0.0
        %878 = vmatprep.subr.mxu0 0.0
        %879 = vmatpush2.msra.mxu0 0.0
        %880 = vmatprep.subr.mxu0 0.0
        %881 = vmatpush2.msra.mxu0 0.0
        %882 = vmatprep.subr.mxu0 0.0
        %883 = vmatpush2.msra.mxu0 0.0
        %884 = vmatprep.subr.mxu0 0.0
        %885 = vmatpush2.msra.mxu0 0.0
        %886 = vmatprep.subr.mxu0 0.0
        %887 = vmatpush2.msra.mxu0 0.0
        %888 = vmatprep.subr.mxu0 0.0
        %889 = vmatpush2.msra.mxu0 0.0
        %890 = vmatprep.subr.mxu0 0.0
        %891 = vmatpush2.msra.mxu0 0.0
        %892 = vmatprep.subr.mxu0 0.0
        %893 = vmatpush2.msra.mxu0 0.0
        %894 = vmatprep.subr.mxu0 0.0
        %895 = vmatpush2.msra.mxu0 0.0
        %896 = vmatprep.subr.mxu0 0.0
        %897 = vmatpush2.msra.mxu0 0.0
        %898 = vmatprep.subr.mxu0 0.0
        %899 = vmatpush2.msra.mxu0 0.0
        %900 = vmatprep.subr.mxu0 0.0
        %901 = vmatpush2.msra.mxu0 0.0
        %902 = vmatprep.subr.mxu0 0.0
        %903 = vmatpush2.msra.mxu0 0.0
        %904 = vmatprep.mubr.f32.mxu0 0.0
        %v905 = vand.u32 %v774, 4294901760
        %v906 = vsub.f32 %v774, %v905
        %v907 = vand.u32 %v906, 4294901760
        %v908 = vsub.f32 %v906, %v907
        %v909 = vand.u32 %v908, 4294901760
        %910 = vmatmul.mubr.f32.gmra.mxu0 %v909
        %v911 = vpop.f32.mrf.mxu0
        %v912 = vadd.f32 0.0, %v911
        %v913 = vpop.f32.mrf.mxu0
        %v914 = vadd.f32 0.0, %v913
        %915 = vmatprep.mubr.f32.mxu0 0.0
        %v916 = vand.u32 %v777, 4294901760
        %v917 = vsub.f32 %v777, %v916
        %v918 = vand.u32 %v917, 4294901760
        %v919 = vsub.f32 %v917, %v918
        %v920 = vand.u32 %v919, 4294901760
        %921 = vmatmul.mubr.f32.gmra.mxu0 %v920
        %v922 = vpop.f32.mrf.mxu0
        %v923 = vadd.f32 0.0, %v922
        %v924 = vpop.f32.mrf.mxu0
        %v925 = vadd.f32 0.0, %v924
        %926 = vmatprep.mubr.f32.mxu0 0.0
        %v927 = vand.u32 %v780, 4294901760
        %v928 = vsub.f32 %v780, %v927
        %v929 = vand.u32 %v928, 4294901760
        %v930 = vsub.f32 %v928, %v929
        %v931 = vand.u32 %v930, 4294901760
        %932 = vmatmul.mubr.f32.gmra.mxu0 %v931
        %v933 = vpop.f32.mrf.mxu0
        %v934 = vadd.f32 0.0, %v933
        %v935 = vpop.f32.mrf.mxu0
        %v936 = vadd.f32 0.0, %v935
        %937 = vmatprep.mubr.f32.mxu0 0.0
        %v938 = vand.u32 %v783, 4294901760
        %v939 = vsub.f32 %v783, %v938
        %v940 = vand.u32 %v939, 4294901760
        %v941 = vsub.f32 %v939, %v940
        %v942 = vand.u32 %v941, 4294901760
        %943 = vmatmul.mubr.f32.gmra.mxu0 %v942
        %v944 = vpop.f32.mrf.mxu0
        %v945 = vadd.f32 0.0, %v944
        %v946 = vpop.f32.mrf.mxu0
        %v947 = vadd.f32 0.0, %v946
        %948 = vmatprep.mubr.f32.mxu0 0.0
        %v949 = vand.u32 %v786, 4294901760
        %v950 = vsub.f32 %v786, %v949
        %v951 = vand.u32 %v950, 4294901760
        %v952 = vsub.f32 %v950, %v951
        %v953 = vand.u32 %v952, 4294901760
        %954 = vmatmul.mubr.f32.gmra.mxu0 %v953
        %v955 = vpop.f32.mrf.mxu0
        %v956 = vadd.f32 0.0, %v955
        %v957 = vpop.f32.mrf.mxu0
        %v958 = vadd.f32 0.0, %v957
        %959 = vmatprep.mubr.f32.mxu0 0.0
        %v960 = vand.u32 %v789, 4294901760
        %v961 = vsub.f32 %v789, %v960
        %v962 = vand.u32 %v961, 4294901760
        %v963 = vsub.f32 %v961, %v962
        %v964 = vand.u32 %v963, 4294901760
        %965 = vmatmul.mubr.f32.gmra.mxu0 %v964
        %v966 = vpop.f32.mrf.mxu0
        %v967 = vadd.f32 0.0, %v966
        %v968 = vpop.f32.mrf.mxu0
        %v969 = vadd.f32 0.0, %v968
        %970 = vmatprep.mubr.f32.mxu0 0.0
        %v971 = vand.u32 %v792, 4294901760
        %v972 = vsub.f32 %v792, %v971
        %v973 = vand.u32 %v972, 4294901760
        %v974 = vsub.f32 %v972, %v973
        %v975 = vand.u32 %v974, 4294901760
        %976 = vmatmul.mubr.f32.gmra.mxu0 %v975
        %v977 = vpop.f32.mrf.mxu0
        %v978 = vadd.f32 0.0, %v977
        %v979 = vpop.f32.mrf.mxu0
        %v980 = vadd.f32 0.0, %v979
        %981 = vmatprep.mubr.f32.mxu0 0.0
        %v982 = vand.u32 %v795, 4294901760
        %v983 = vsub.f32 %v795, %v982
        %v984 = vand.u32 %v983, 4294901760
        %v985 = vsub.f32 %v983, %v984
        %v986 = vand.u32 %v985, 4294901760
        %987 = vmatmul.mubr.f32.gmra.mxu0 %v986
        %v988 = vpop.f32.mrf.mxu0
        %v989 = vadd.f32 0.0, %v988
        %v990 = vpop.f32.mrf.mxu0
        %v991 = vadd.f32 0.0, %v990
        %992 = vmatprep.mubr.f32.mxu0 0.0
        %v993 = vand.u32 %v798, 4294901760
        %v994 = vsub.f32 %v798, %v993
        %v995 = vand.u32 %v994, 4294901760
        %v996 = vsub.f32 %v994, %v995
        %v997 = vand.u32 %v996, 4294901760
        %998 = vmatmul.mubr.f32.gmra.mxu0 %v997
        %v999 = vpop.f32.mrf.mxu0
        %v1000 = vadd.f32 0.0, %v999
        %v1001 = vpop.f32.mrf.mxu0
        %v1002 = vadd.f32 0.0, %v1001
        %1003 = vmatprep.mubr.f32.mxu0 0.0
        %v1004 = vand.u32 %v801, 4294901760
        %v1005 = vsub.f32 %v801, %v1004
        %v1006 = vand.u32 %v1005, 4294901760
        %v1007 = vsub.f32 %v1005, %v1006
        %v1008 = vand.u32 %v1007, 4294901760
        %1009 = vmatmul.mubr.f32.gmra.mxu0 %v1008
        %v1010 = vpop.f32.mrf.mxu0
        %v1011 = vadd.f32 0.0, %v1010
        %v1012 = vpop.f32.mrf.mxu0
        %v1013 = vadd.f32 0.0, %v1012
        %1014 = vmatprep.mubr.f32.mxu0 0.0
        %v1015 = vand.u32 %v804, 4294901760
        %v1016 = vsub.f32 %v804, %v1015
        %v1017 = vand.u32 %v1016, 4294901760
        %v1018 = vsub.f32 %v1016, %v1017
        %v1019 = vand.u32 %v1018, 4294901760
        %1020 = vmatmul.mubr.f32.gmra.mxu0 %v1019
        %v1021 = vpop.f32.mrf.mxu0
        %v1022 = vadd.f32 0.0, %v1021
        %v1023 = vpop.f32.mrf.mxu0
        %v1024 = vadd.f32 0.0, %v1023
        %1025 = vmatprep.mubr.f32.mxu0 0.0
        %v1026 = vand.u32 %v807, 4294901760
        %v1027 = vsub.f32 %v807, %v1026
        %v1028 = vand.u32 %v1027, 4294901760
        %v1029 = vsub.f32 %v1027, %v1028
        %v1030 = vand.u32 %v1029, 4294901760
        %1031 = vmatmul.mubr.f32.gmra.mxu0 %v1030
        %v1032 = vpop.f32.mrf.mxu0
        %v1033 = vadd.f32 0.0, %v1032
        %v1034 = vpop.f32.mrf.mxu0
        %v1035 = vadd.f32 0.0, %v1034
        %1036 = vmatprep.mubr.f32.mxu0 0.0
        %v1037 = vand.u32 %v810, 4294901760
        %v1038 = vsub.f32 %v810, %v1037
        %v1039 = vand.u32 %v1038, 4294901760
        %v1040 = vsub.f32 %v1038, %v1039
        %v1041 = vand.u32 %v1040, 4294901760
        %1042 = vmatmul.mubr.f32.gmra.mxu0 %v1041
        %v1043 = vpop.f32.mrf.mxu0
        %v1044 = vadd.f32 0.0, %v1043
        %v1045 = vpop.f32.mrf.mxu0
        %v1046 = vadd.f32 0.0, %v1045
        %1047 = vmatprep.mubr.f32.mxu0 0.0
        %v1048 = vand.u32 %v813, 4294901760
        %v1049 = vsub.f32 %v813, %v1048
        %v1050 = vand.u32 %v1049, 4294901760
        %v1051 = vsub.f32 %v1049, %v1050
        %v1052 = vand.u32 %v1051, 4294901760
        %1053 = vmatmul.mubr.f32.gmra.mxu0 %v1052
        %v1054 = vpop.f32.mrf.mxu0
        %v1055 = vadd.f32 0.0, %v1054
        %v1056 = vpop.f32.mrf.mxu0
        %v1057 = vadd.f32 0.0, %v1056
        %1058 = vmatprep.mubr.f32.mxu0 0.0
        %v1059 = vand.u32 %v816, 4294901760
        %v1060 = vsub.f32 %v816, %v1059
        %v1061 = vand.u32 %v1060, 4294901760
        %v1062 = vsub.f32 %v1060, %v1061
        %v1063 = vand.u32 %v1062, 4294901760
        %1064 = vmatmul.mubr.f32.gmra.mxu0 %v1063
        %v1065 = vpop.f32.mrf.mxu0
        %v1066 = vadd.f32 0.0, %v1065
        %v1067 = vpop.f32.mrf.mxu0
        %v1068 = vadd.f32 0.0, %v1067
        %1069 = vmatprep.mubr.f32.mxu0 0.0
        %v1070 = vand.u32 %v819, 4294901760
        %v1071 = vsub.f32 %v819, %v1070
        %v1072 = vand.u32 %v1071, 4294901760
        %v1073 = vsub.f32 %v1071, %v1072
        %v1074 = vand.u32 %v1073, 4294901760
        %1075 = vmatmul.mubr.f32.gmra.mxu0 %v1074
        %v1076 = vpop.f32.mrf.mxu0
        %v1077 = vadd.f32 0.0, %v1076
        %v1078 = vpop.f32.mrf.mxu0
        %v1079 = vadd.f32 0.0, %v1078
        %1080 = vmatprep.mubr.f32.mxu0 0.0
        %v1081 = vand.u32 %v822, 4294901760
        %v1082 = vsub.f32 %v822, %v1081
        %v1083 = vand.u32 %v1082, 4294901760
        %v1084 = vsub.f32 %v1082, %v1083
        %v1085 = vand.u32 %v1084, 4294901760
        %1086 = vmatmul.mubr.f32.gmra.mxu0 %v1085
        %v1087 = vpop.f32.mrf.mxu0
        %v1088 = vadd.f32 0.0, %v1087
        %v1089 = vpop.f32.mrf.mxu0
        %v1090 = vadd.f32 0.0, %v1089
        %1091 = vmatprep.mubr.f32.mxu0 0.0
        %v1092 = vand.u32 %v825, 4294901760
        %v1093 = vsub.f32 %v825, %v1092
        %v1094 = vand.u32 %v1093, 4294901760
        %v1095 = vsub.f32 %v1093, %v1094
        %v1096 = vand.u32 %v1095, 4294901760
        %1097 = vmatmul.mubr.f32.gmra.mxu0 %v1096
        %v1098 = vpop.f32.mrf.mxu0
        %v1099 = vadd.f32 0.0, %v1098
        %v1100 = vpop.f32.mrf.mxu0
        %v1101 = vadd.f32 0.0, %v1100
        %1102 = vmatprep.mubr.f32.mxu0 0.0
        %v1103 = vand.u32 %v828, 4294901760
        %v1104 = vsub.f32 %v828, %v1103
        %v1105 = vand.u32 %v1104, 4294901760
        %v1106 = vsub.f32 %v1104, %v1105
        %v1107 = vand.u32 %v1106, 4294901760
        %1108 = vmatmul.mubr.f32.gmra.mxu0 %v1107
        %v1109 = vpop.f32.mrf.mxu0
        %v1110 = vadd.f32 0.0, %v1109
        %v1111 = vpop.f32.mrf.mxu0
        %v1112 = vadd.f32 0.0, %v1111
        %1113 = vmatprep.mubr.f32.mxu0 0.0
        %v1114 = vand.u32 %v831, 4294901760
        %v1115 = vsub.f32 %v831, %v1114
        %v1116 = vand.u32 %v1115, 4294901760
        %v1117 = vsub.f32 %v1115, %v1116
        %v1118 = vand.u32 %v1117, 4294901760
        %1119 = vmatmul.mubr.f32.gmra.mxu0 %v1118
        %v1120 = vpop.f32.mrf.mxu0
        %v1121 = vadd.f32 0.0, %v1120
        %v1122 = vpop.f32.mrf.mxu0
        %v1123 = vadd.f32 0.0, %v1122
        %1124 = vmatprep.mubr.f32.mxu0 0.0
        %v1125 = vand.u32 %v834, 4294901760
        %v1126 = vsub.f32 %v834, %v1125
        %v1127 = vand.u32 %v1126, 4294901760
        %v1128 = vsub.f32 %v1126, %v1127
        %v1129 = vand.u32 %v1128, 4294901760
        %1130 = vmatmul.mubr.f32.gmra.mxu0 %v1129
        %v1131 = vpop.f32.mrf.mxu0
        %v1132 = vadd.f32 0.0, %v1131
        %v1133 = vpop.f32.mrf.mxu0
        %v1134 = vadd.f32 0.0, %v1133
        %1135 = vdwg.mxu0
        %1136 = vmatprep.subr.mxu0 0.0
        %1137 = vmatpush1.msra.mxu0 0.0
        %1138 = vmatprep.subr.mxu0 0.0
        %1139 = vmatpush1.msra.mxu0 0.0
        %1140 = vmatprep.subr.mxu0 0.0
        %1141 = vmatpush1.msra.mxu0 0.0
        %1142 = vmatprep.subr.mxu0 0.0
        %1143 = vmatpush1.msra.mxu0 0.0
        %1144 = vmatprep.subr.mxu0 0.0
        %1145 = vmatpush1.msra.mxu0 0.0
        %1146 = vmatprep.subr.mxu0 0.0
        %1147 = vmatpush1.msra.mxu0 0.0
        %1148 = vmatprep.subr.mxu0 0.0
        %1149 = vmatpush1.msra.mxu0 0.0
        %1150 = vmatprep.subr.mxu0 0.0
        %1151 = vmatpush1.msra.mxu0 0.0
        %1152 = vmatprep.subr.mxu0 0.0
        %1153 = vmatpush1.msra.mxu0 0.0
        %1154 = vmatprep.subr.mxu0 0.0
        %1155 = vmatpush1.msra.mxu0 0.0
        %1156 = vmatprep.subr.mxu0 0.0
        %1157 = vmatpush1.msra.mxu0 0.0
        %1158 = vmatprep.subr.mxu0 0.0
        %1159 = vmatpush1.msra.mxu0 0.0
        %1160 = vmatprep.subr.mxu0 0.0
        %1161 = vmatpush1.msra.mxu0 0.0
        %1162 = vmatprep.subr.mxu0 0.0
        %1163 = vmatpush1.msra.mxu0 0.0
        %v1164 = vand.u32 %v771, 4294901760
        %v1165 = vsub.f32 %v771, %v1164
        %v1166 = vand.u32 %v1165, 4294901760
        %v1167 = vsub.f32 %v1165, %v1166
        %v1168 = vand.u32 %v1167, 4294901760
        %1169 = vmatprep.subr.mxu0 %v1168
        %v1170 = vand.u32 %v770, 4294901760
        %v1171 = vsub.f32 %v770, %v1170
        %v1172 = vand.u32 %v1171, 4294901760
        %v1173 = vsub.f32 %v1171, %v1172
        %v1174 = vand.u32 %v1173, 4294901760
        %1175 = vmatpush1.msra.mxu0 %v1174
        %v1176 = vand.u32 %v769, 4294901760
        %v1177 = vsub.f32 %v769, %v1176
        %v1178 = vand.u32 %v1177, 4294901760
        %v1179 = vsub.f32 %v1177, %v1178
        %v1180 = vand.u32 %v1179, 4294901760
        %1181 = vmatprep.subr.mxu0 %v1180
        %v1182 = vand.u32 %v768, 4294901760
        %v1183 = vsub.f32 %v768, %v1182
        %v1184 = vand.u32 %v1183, 4294901760
        %v1185 = vsub.f32 %v1183, %v1184
        %v1186 = vand.u32 %v1185, 4294901760
        %1187 = vmatpush1.msra.mxu0 %v1186
        %1188 = vmatprep.subr.mxu0 0.0
        %1189 = vmatpush2.msra.mxu0 0.0
        %1190 = vmatprep.subr.mxu0 0.0
        %1191 = vmatpush2.msra.mxu0 0.0
        %1192 = vmatprep.subr.mxu0 0.0
        %1193 = vmatpush2.msra.mxu0 0.0
        %1194 = vmatprep.subr.mxu0 0.0
        %1195 = vmatpush2.msra.mxu0 0.0
        %1196 = vmatprep.subr.mxu0 0.0
        %1197 = vmatpush2.msra.mxu0 0.0
        %1198 = vmatprep.subr.mxu0 0.0
        %1199 = vmatpush2.msra.mxu0 0.0
        %1200 = vmatprep.subr.mxu0 0.0
        %1201 = vmatpush2.msra.mxu0 0.0
        %1202 = vmatprep.subr.mxu0 0.0
        %1203 = vmatpush2.msra.mxu0 0.0
        %1204 = vmatprep.subr.mxu0 0.0
        %1205 = vmatpush2.msra.mxu0 0.0
        %1206 = vmatprep.subr.mxu0 0.0
        %1207 = vmatpush2.msra.mxu0 0.0
        %1208 = vmatprep.subr.mxu0 0.0
        %1209 = vmatpush2.msra.mxu0 0.0
        %1210 = vmatprep.subr.mxu0 0.0
        %1211 = vmatpush2.msra.mxu0 0.0
        %1212 = vmatprep.subr.mxu0 0.0
        %1213 = vmatpush2.msra.mxu0 0.0
        %1214 = vmatprep.subr.mxu0 0.0
        %1215 = vmatpush2.msra.mxu0 0.0
        %1216 = vmatprep.subr.mxu0 0.0
        %1217 = vmatpush2.msra.mxu0 0.0
        %1218 = vmatprep.subr.mxu0 0.0
        %1219 = vmatpush2.msra.mxu0 0.0
        %1220 = vmatprep.mubr.f32.mxu0 0.0
        %v1221 = vand.u32 %v774, 4294901760
        %1222 = vmatmul.mubr.f32.gmra.mxu0 %v1221
        %v1223 = vpop.f32.mrf.mxu0
        %v1224 = vadd.f32 %v912, %v1223
        %v1225 = vpop.f32.mrf.mxu0
        %v1226 = vadd.f32 %v914, %v1225
        %1227 = vmatprep.mubr.f32.mxu0 0.0
        %v1228 = vand.u32 %v777, 4294901760
        %1229 = vmatmul.mubr.f32.gmra.mxu0 %v1228
        %v1230 = vpop.f32.mrf.mxu0
        %v1231 = vadd.f32 %v923, %v1230
        %v1232 = vpop.f32.mrf.mxu0
        %v1233 = vadd.f32 %v925, %v1232
        %1234 = vmatprep.mubr.f32.mxu0 0.0
        %v1235 = vand.u32 %v780, 4294901760
        %1236 = vmatmul.mubr.f32.gmra.mxu0 %v1235
        %v1237 = vpop.f32.mrf.mxu0
        %v1238 = vadd.f32 %v934, %v1237
        %v1239 = vpop.f32.mrf.mxu0
        %v1240 = vadd.f32 %v936, %v1239
        %1241 = vmatprep.mubr.f32.mxu0 0.0
        %v1242 = vand.u32 %v783, 4294901760
        %1243 = vmatmul.mubr.f32.gmra.mxu0 %v1242
        %v1244 = vpop.f32.mrf.mxu0
        %v1245 = vadd.f32 %v945, %v1244
        %v1246 = vpop.f32.mrf.mxu0
        %v1247 = vadd.f32 %v947, %v1246
        %1248 = vmatprep.mubr.f32.mxu0 0.0
        %v1249 = vand.u32 %v786, 4294901760
        %1250 = vmatmul.mubr.f32.gmra.mxu0 %v1249
        %v1251 = vpop.f32.mrf.mxu0
        %v1252 = vadd.f32 %v956, %v1251
        %v1253 = vpop.f32.mrf.mxu0
        %v1254 = vadd.f32 %v958, %v1253
        %1255 = vmatprep.mubr.f32.mxu0 0.0
        %v1256 = vand.u32 %v789, 4294901760
        %1257 = vmatmul.mubr.f32.gmra.mxu0 %v1256
        %v1258 = vpop.f32.mrf.mxu0
        %v1259 = vadd.f32 %v967, %v1258
        %v1260 = vpop.f32.mrf.mxu0
        %v1261 = vadd.f32 %v969, %v1260
        %1262 = vmatprep.mubr.f32.mxu0 0.0
        %v1263 = vand.u32 %v792, 4294901760
        %1264 = vmatmul.mubr.f32.gmra.mxu0 %v1263
        %v1265 = vpop.f32.mrf.mxu0
        %v1266 = vadd.f32 %v978, %v1265
        %v1267 = vpop.f32.mrf.mxu0
        %v1268 = vadd.f32 %v980, %v1267
        %1269 = vmatprep.mubr.f32.mxu0 0.0
        %v1270 = vand.u32 %v795, 4294901760
        %1271 = vmatmul.mubr.f32.gmra.mxu0 %v1270
        %v1272 = vpop.f32.mrf.mxu0
        %v1273 = vadd.f32 %v989, %v1272
        %v1274 = vpop.f32.mrf.mxu0
        %v1275 = vadd.f32 %v991, %v1274
        %1276 = vmatprep.mubr.f32.mxu0 0.0
        %v1277 = vand.u32 %v798, 4294901760
        %1278 = vmatmul.mubr.f32.gmra.mxu0 %v1277
        %v1279 = vpop.f32.mrf.mxu0
        %v1280 = vadd.f32 %v1000, %v1279
        %v1281 = vpop.f32.mrf.mxu0
        %v1282 = vadd.f32 %v1002, %v1281
        %1283 = vmatprep.mubr.f32.mxu0 0.0
        %v1284 = vand.u32 %v801, 4294901760
        %1285 = vmatmul.mubr.f32.gmra.mxu0 %v1284
        %v1286 = vpop.f32.mrf.mxu0
        %v1287 = vadd.f32 %v1011, %v1286
        %v1288 = vpop.f32.mrf.mxu0
        %v1289 = vadd.f32 %v1013, %v1288
        %1290 = vmatprep.mubr.f32.mxu0 0.0
        %v1291 = vand.u32 %v804, 4294901760
        %1292 = vmatmul.mubr.f32.gmra.mxu0 %v1291
        %v1293 = vpop.f32.mrf.mxu0
        %v1294 = vadd.f32 %v1022, %v1293
        %v1295 = vpop.f32.mrf.mxu0
        %v1296 = vadd.f32 %v1024, %v1295
        %1297 = vmatprep.mubr.f32.mxu0 0.0
        %v1298 = vand.u32 %v807, 4294901760
        %1299 = vmatmul.mubr.f32.gmra.mxu0 %v1298
        %v1300 = vpop.f32.mrf.mxu0
        %v1301 = vadd.f32 %v1033, %v1300
        %v1302 = vpop.f32.mrf.mxu0
        %v1303 = vadd.f32 %v1035, %v1302
        %1304 = vmatprep.mubr.f32.mxu0 0.0
        %v1305 = vand.u32 %v810, 4294901760
        %1306 = vmatmul.mubr.f32.gmra.mxu0 %v1305
        %v1307 = vpop.f32.mrf.mxu0
        %v1308 = vadd.f32 %v1044, %v1307
        %v1309 = vpop.f32.mrf.mxu0
        %v1310 = vadd.f32 %v1046, %v1309
        %1311 = vmatprep.mubr.f32.mxu0 0.0
        %v1312 = vand.u32 %v813, 4294901760
        %1313 = vmatmul.mubr.f32.gmra.mxu0 %v1312
        %v1314 = vpop.f32.mrf.mxu0
        %v1315 = vadd.f32 %v1055, %v1314
        %v1316 = vpop.f32.mrf.mxu0
        %v1317 = vadd.f32 %v1057, %v1316
        %1318 = vmatprep.mubr.f32.mxu0 0.0
        %v1319 = vand.u32 %v816, 4294901760
        %1320 = vmatmul.mubr.f32.gmra.mxu0 %v1319
        %v1321 = vpop.f32.mrf.mxu0
        %v1322 = vadd.f32 %v1066, %v1321
        %v1323 = vpop.f32.mrf.mxu0
        %v1324 = vadd.f32 %v1068, %v1323
        %1325 = vmatprep.mubr.f32.mxu0 0.0
        %v1326 = vand.u32 %v819, 4294901760
        %1327 = vmatmul.mubr.f32.gmra.mxu0 %v1326
        %v1328 = vpop.f32.mrf.mxu0
        %v1329 = vadd.f32 %v1077, %v1328
        %v1330 = vpop.f32.mrf.mxu0
        %v1331 = vadd.f32 %v1079, %v1330
        %1332 = vmatprep.mubr.f32.mxu0 0.0
        %v1333 = vand.u32 %v822, 4294901760
        %1334 = vmatmul.mubr.f32.gmra.mxu0 %v1333
        %v1335 = vpop.f32.mrf.mxu0
        %v1336 = vadd.f32 %v1088, %v1335
        %v1337 = vpop.f32.mrf.mxu0
        %v1338 = vadd.f32 %v1090, %v1337
        %1339 = vmatprep.mubr.f32.mxu0 0.0
        %v1340 = vand.u32 %v825, 4294901760
        %1341 = vmatmul.mubr.f32.gmra.mxu0 %v1340
        %v1342 = vpop.f32.mrf.mxu0
        %v1343 = vadd.f32 %v1099, %v1342
        %v1344 = vpop.f32.mrf.mxu0
        %v1345 = vadd.f32 %v1101, %v1344
        %1346 = vmatprep.mubr.f32.mxu0 0.0
        %v1347 = vand.u32 %v828, 4294901760
        %1348 = vmatmul.mubr.f32.gmra.mxu0 %v1347
        %v1349 = vpop.f32.mrf.mxu0
        %v1350 = vadd.f32 %v1110, %v1349
        %v1351 = vpop.f32.mrf.mxu0
        %v1352 = vadd.f32 %v1112, %v1351
        %1353 = vmatprep.mubr.f32.mxu0 0.0
        %v1354 = vand.u32 %v831, 4294901760
        %1355 = vmatmul.mubr.f32.gmra.mxu0 %v1354
        %v1356 = vpop.f32.mrf.mxu0
        %v1357 = vadd.f32 %v1121, %v1356
        %v1358 = vpop.f32.mrf.mxu0
        %v1359 = vadd.f32 %v1123, %v1358
        %1360 = vmatprep.mubr.f32.mxu0 0.0
        %v1361 = vand.u32 %v834, 4294901760
        %1362 = vmatmul.mubr.f32.gmra.mxu0 %v1361
        %v1363 = vpop.f32.mrf.mxu0
        %v1364 = vadd.f32 %v1132, %v1363
        %v1365 = vpop.f32.mrf.mxu0
        %v1366 = vadd.f32 %v1134, %v1365
        %1367 = vdwg.mxu0
        %1368 = vmatprep.subr.mxu0 0.0
        %1369 = vmatpush1.msra.mxu0 0.0
        %1370 = vmatprep.subr.mxu0 0.0
        %1371 = vmatpush1.msra.mxu0 0.0
        %1372 = vmatprep.subr.mxu0 0.0
        %1373 = vmatpush1.msra.mxu0 0.0
        %1374 = vmatprep.subr.mxu0 0.0
        %1375 = vmatpush1.msra.mxu0 0.0
        %1376 = vmatprep.subr.mxu0 0.0
        %1377 = vmatpush1.msra.mxu0 0.0
        %1378 = vmatprep.subr.mxu0 0.0
        %1379 = vmatpush1.msra.mxu0 0.0
        %1380 = vmatprep.subr.mxu0 0.0
        %1381 = vmatpush1.msra.mxu0 0.0
        %1382 = vmatprep.subr.mxu0 0.0
        %1383 = vmatpush1.msra.mxu0 0.0
        %1384 = vmatprep.subr.mxu0 0.0
        %1385 = vmatpush1.msra.mxu0 0.0
        %1386 = vmatprep.subr.mxu0 0.0
        %1387 = vmatpush1.msra.mxu0 0.0
        %1388 = vmatprep.subr.mxu0 0.0
        %1389 = vmatpush1.msra.mxu0 0.0
        %1390 = vmatprep.subr.mxu0 0.0
        %1391 = vmatpush1.msra.mxu0 0.0
        %1392 = vmatprep.subr.mxu0 0.0
        %1393 = vmatpush1.msra.mxu0 0.0
        %1394 = vmatprep.subr.mxu0 0.0
        %1395 = vmatpush1.msra.mxu0 0.0
        %v1396 = vand.u32 %v771, 4294901760
        %v1397 = vsub.f32 %v771, %v1396
        %1398 = vmatprep.subr.mxu0 %v1397
        %v1399 = vand.u32 %v770, 4294901760
        %v1400 = vsub.f32 %v770, %v1399
        %1401 = vmatpush1.msra.mxu0 %v1400
        %v1402 = vand.u32 %v769, 4294901760
        %v1403 = vsub.f32 %v769, %v1402
        %1404 = vmatprep.subr.mxu0 %v1403
        %v1405 = vand.u32 %v768, 4294901760
        %v1406 = vsub.f32 %v768, %v1405
        %1407 = vmatpush1.msra.mxu0 %v1406
        %1408 = vmatprep.subr.mxu0 0.0
        %1409 = vmatpush2.msra.mxu0 0.0
        %1410 = vmatprep.subr.mxu0 0.0
        %1411 = vmatpush2.msra.mxu0 0.0
        %1412 = vmatprep.subr.mxu0 0.0
        %1413 = vmatpush2.msra.mxu0 0.0
        %1414 = vmatprep.subr.mxu0 0.0
        %1415 = vmatpush2.msra.mxu0 0.0
        %1416 = vmatprep.subr.mxu0 0.0
        %1417 = vmatpush2.msra.mxu0 0.0
        %1418 = vmatprep.subr.mxu0 0.0
        %1419 = vmatpush2.msra.mxu0 0.0
        %1420 = vmatprep.subr.mxu0 0.0
        %1421 = vmatpush2.msra.mxu0 0.0
        %1422 = vmatprep.subr.mxu0 0.0
        %1423 = vmatpush2.msra.mxu0 0.0
        %1424 = vmatprep.subr.mxu0 0.0
        %1425 = vmatpush2.msra.mxu0 0.0
        %1426 = vmatprep.subr.mxu0 0.0
        %1427 = vmatpush2.msra.mxu0 0.0
        %1428 = vmatprep.subr.mxu0 0.0
        %1429 = vmatpush2.msra.mxu0 0.0
        %1430 = vmatprep.subr.mxu0 0.0
        %1431 = vmatpush2.msra.mxu0 0.0
        %1432 = vmatprep.subr.mxu0 0.0
        %1433 = vmatpush2.msra.mxu0 0.0
        %1434 = vmatprep.subr.mxu0 0.0
        %1435 = vmatpush2.msra.mxu0 0.0
        %1436 = vmatprep.subr.mxu0 0.0
        %1437 = vmatpush2.msra.mxu0 0.0
        %1438 = vmatprep.subr.mxu0 0.0
        %1439 = vmatpush2.msra.mxu0 0.0
        %1440 = vmatprep.mubr.f32.mxu0 0.0
        %v1441 = vand.u32 %v774, 4294901760
        %v1442 = vsub.f32 %v774, %v1441
        %1443 = vmatmul.mubr.f32.gmra.mxu0 %v1442
        %v1444 = vpop.f32.mrf.mxu0
        %v1445 = vadd.f32 %v1224, %v1444
        %v1446 = vpop.f32.mrf.mxu0
        %v1447 = vadd.f32 %v1226, %v1446
        %1448 = vmatprep.mubr.f32.mxu0 0.0
        %v1449 = vand.u32 %v777, 4294901760
        %v1450 = vsub.f32 %v777, %v1449
        %1451 = vmatmul.mubr.f32.gmra.mxu0 %v1450
        %v1452 = vpop.f32.mrf.mxu0
        %v1453 = vadd.f32 %v1231, %v1452
        %v1454 = vpop.f32.mrf.mxu0
        %v1455 = vadd.f32 %v1233, %v1454
        %1456 = vmatprep.mubr.f32.mxu0 0.0
        %v1457 = vand.u32 %v780, 4294901760
        %v1458 = vsub.f32 %v780, %v1457
        %1459 = vmatmul.mubr.f32.gmra.mxu0 %v1458
        %v1460 = vpop.f32.mrf.mxu0
        %v1461 = vadd.f32 %v1238, %v1460
        %v1462 = vpop.f32.mrf.mxu0
        %v1463 = vadd.f32 %v1240, %v1462
        %1464 = vmatprep.mubr.f32.mxu0 0.0
        %v1465 = vand.u32 %v783, 4294901760
        %v1466 = vsub.f32 %v783, %v1465
        %1467 = vmatmul.mubr.f32.gmra.mxu0 %v1466
        %v1468 = vpop.f32.mrf.mxu0
        %v1469 = vadd.f32 %v1245, %v1468
        %v1470 = vpop.f32.mrf.mxu0
        %v1471 = vadd.f32 %v1247, %v1470
        %1472 = vmatprep.mubr.f32.mxu0 0.0
        %v1473 = vand.u32 %v786, 4294901760
        %v1474 = vsub.f32 %v786, %v1473
        %1475 = vmatmul.mubr.f32.gmra.mxu0 %v1474
        %v1476 = vpop.f32.mrf.mxu0
        %v1477 = vadd.f32 %v1252, %v1476
        %v1478 = vpop.f32.mrf.mxu0
        %v1479 = vadd.f32 %v1254, %v1478
        %1480 = vmatprep.mubr.f32.mxu0 0.0
        %v1481 = vand.u32 %v789, 4294901760
        %v1482 = vsub.f32 %v789, %v1481
        %1483 = vmatmul.mubr.f32.gmra.mxu0 %v1482
        %v1484 = vpop.f32.mrf.mxu0
        %v1485 = vadd.f32 %v1259, %v1484
        %v1486 = vpop.f32.mrf.mxu0
        %v1487 = vadd.f32 %v1261, %v1486
        %1488 = vmatprep.mubr.f32.mxu0 0.0
        %v1489 = vand.u32 %v792, 4294901760
        %v1490 = vsub.f32 %v792, %v1489
        %1491 = vmatmul.mubr.f32.gmra.mxu0 %v1490
        %v1492 = vpop.f32.mrf.mxu0
        %v1493 = vadd.f32 %v1266, %v1492
        %v1494 = vpop.f32.mrf.mxu0
        %v1495 = vadd.f32 %v1268, %v1494
        %1496 = vmatprep.mubr.f32.mxu0 0.0
        %v1497 = vand.u32 %v795, 4294901760
        %v1498 = vsub.f32 %v795, %v1497
        %1499 = vmatmul.mubr.f32.gmra.mxu0 %v1498
        %v1500 = vpop.f32.mrf.mxu0
        %v1501 = vadd.f32 %v1273, %v1500
        %v1502 = vpop.f32.mrf.mxu0
        %v1503 = vadd.f32 %v1275, %v1502
        %1504 = vmatprep.mubr.f32.mxu0 0.0
        %v1505 = vand.u32 %v798, 4294901760
        %v1506 = vsub.f32 %v798, %v1505
        %1507 = vmatmul.mubr.f32.gmra.mxu0 %v1506
        %v1508 = vpop.f32.mrf.mxu0
        %v1509 = vadd.f32 %v1280, %v1508
        %v1510 = vpop.f32.mrf.mxu0
        %v1511 = vadd.f32 %v1282, %v1510
        %1512 = vmatprep.mubr.f32.mxu0 0.0
        %v1513 = vand.u32 %v801, 4294901760
        %v1514 = vsub.f32 %v801, %v1513
        %1515 = vmatmul.mubr.f32.gmra.mxu0 %v1514
        %v1516 = vpop.f32.mrf.mxu0
        %v1517 = vadd.f32 %v1287, %v1516
        %v1518 = vpop.f32.mrf.mxu0
        %v1519 = vadd.f32 %v1289, %v1518
        %1520 = vmatprep.mubr.f32.mxu0 0.0
        %v1521 = vand.u32 %v804, 4294901760
        %v1522 = vsub.f32 %v804, %v1521
        %1523 = vmatmul.mubr.f32.gmra.mxu0 %v1522
        %v1524 = vpop.f32.mrf.mxu0
        %v1525 = vadd.f32 %v1294, %v1524
        %v1526 = vpop.f32.mrf.mxu0
        %v1527 = vadd.f32 %v1296, %v1526
        %1528 = vmatprep.mubr.f32.mxu0 0.0
        %v1529 = vand.u32 %v807, 4294901760
        %v1530 = vsub.f32 %v807, %v1529
        %1531 = vmatmul.mubr.f32.gmra.mxu0 %v1530
        %v1532 = vpop.f32.mrf.mxu0
        %v1533 = vadd.f32 %v1301, %v1532
        %v1534 = vpop.f32.mrf.mxu0
        %v1535 = vadd.f32 %v1303, %v1534
        %1536 = vmatprep.mubr.f32.mxu0 0.0
        %v1537 = vand.u32 %v810, 4294901760
        %v1538 = vsub.f32 %v810, %v1537
        %1539 = vmatmul.mubr.f32.gmra.mxu0 %v1538
        %v1540 = vpop.f32.mrf.mxu0
        %v1541 = vadd.f32 %v1308, %v1540
        %v1542 = vpop.f32.mrf.mxu0
        %v1543 = vadd.f32 %v1310, %v1542
        %1544 = vmatprep.mubr.f32.mxu0 0.0
        %v1545 = vand.u32 %v813, 4294901760
        %v1546 = vsub.f32 %v813, %v1545
        %1547 = vmatmul.mubr.f32.gmra.mxu0 %v1546
        %v1548 = vpop.f32.mrf.mxu0
        %v1549 = vadd.f32 %v1315, %v1548
        %v1550 = vpop.f32.mrf.mxu0
        %v1551 = vadd.f32 %v1317, %v1550
        %1552 = vmatprep.mubr.f32.mxu0 0.0
        %v1553 = vand.u32 %v816, 4294901760
        %v1554 = vsub.f32 %v816, %v1553
        %1555 = vmatmul.mubr.f32.gmra.mxu0 %v1554
        %v1556 = vpop.f32.mrf.mxu0
        %v1557 = vadd.f32 %v1322, %v1556
        %v1558 = vpop.f32.mrf.mxu0
        %v1559 = vadd.f32 %v1324, %v1558
        %1560 = vmatprep.mubr.f32.mxu0 0.0
        %v1561 = vand.u32 %v819, 4294901760
        %v1562 = vsub.f32 %v819, %v1561
        %1563 = vmatmul.mubr.f32.gmra.mxu0 %v1562
        %v1564 = vpop.f32.mrf.mxu0
        %v1565 = vadd.f32 %v1329, %v1564
        %v1566 = vpop.f32.mrf.mxu0
        %v1567 = vadd.f32 %v1331, %v1566
        %1568 = vmatprep.mubr.f32.mxu0 0.0
        %v1569 = vand.u32 %v822, 4294901760
        %v1570 = vsub.f32 %v822, %v1569
        %1571 = vmatmul.mubr.f32.gmra.mxu0 %v1570
        %v1572 = vpop.f32.mrf.mxu0
        %v1573 = vadd.f32 %v1336, %v1572
        %v1574 = vpop.f32.mrf.mxu0
        %v1575 = vadd.f32 %v1338, %v1574
        %1576 = vmatprep.mubr.f32.mxu0 0.0
        %v1577 = vand.u32 %v825, 4294901760
        %v1578 = vsub.f32 %v825, %v1577
        %1579 = vmatmul.mubr.f32.gmra.mxu0 %v1578
        %v1580 = vpop.f32.mrf.mxu0
        %v1581 = vadd.f32 %v1343, %v1580
        %v1582 = vpop.f32.mrf.mxu0
        %v1583 = vadd.f32 %v1345, %v1582
        %1584 = vmatprep.mubr.f32.mxu0 0.0
        %v1585 = vand.u32 %v828, 4294901760
        %v1586 = vsub.f32 %v828, %v1585
        %1587 = vmatmul.mubr.f32.gmra.mxu0 %v1586
        %v1588 = vpop.f32.mrf.mxu0
        %v1589 = vadd.f32 %v1350, %v1588
        %v1590 = vpop.f32.mrf.mxu0
        %v1591 = vadd.f32 %v1352, %v1590
        %1592 = vmatprep.mubr.f32.mxu0 0.0
        %v1593 = vand.u32 %v831, 4294901760
        %v1594 = vsub.f32 %v831, %v1593
        %1595 = vmatmul.mubr.f32.gmra.mxu0 %v1594
        %v1596 = vpop.f32.mrf.mxu0
        %v1597 = vadd.f32 %v1357, %v1596
        %v1598 = vpop.f32.mrf.mxu0
        %v1599 = vadd.f32 %v1359, %v1598
        %1600 = vmatprep.mubr.f32.mxu0 0.0
        %v1601 = vand.u32 %v834, 4294901760
        %v1602 = vsub.f32 %v834, %v1601
        %1603 = vmatmul.mubr.f32.gmra.mxu0 %v1602
        %v1604 = vpop.f32.mrf.mxu0
        %v1605 = vadd.f32 %v1364, %v1604
        %v1606 = vpop.f32.mrf.mxu0
        %v1607 = vadd.f32 %v1366, %v1606
        %1608 = vdwg.mxu0
        %1609 = vmatprep.subr.mxu0 0.0
        %1610 = vmatpush1.msra.mxu0 0.0
        %1611 = vmatprep.subr.mxu0 0.0
        %1612 = vmatpush1.msra.mxu0 0.0
        %1613 = vmatprep.subr.mxu0 0.0
        %1614 = vmatpush1.msra.mxu0 0.0
        %1615 = vmatprep.subr.mxu0 0.0
        %1616 = vmatpush1.msra.mxu0 0.0
        %1617 = vmatprep.subr.mxu0 0.0
        %1618 = vmatpush1.msra.mxu0 0.0
        %1619 = vmatprep.subr.mxu0 0.0
        %1620 = vmatpush1.msra.mxu0 0.0
        %1621 = vmatprep.subr.mxu0 0.0
        %1622 = vmatpush1.msra.mxu0 0.0
        %1623 = vmatprep.subr.mxu0 0.0
        %1624 = vmatpush1.msra.mxu0 0.0
        %1625 = vmatprep.subr.mxu0 0.0
        %1626 = vmatpush1.msra.mxu0 0.0
        %1627 = vmatprep.subr.mxu0 0.0
        %1628 = vmatpush1.msra.mxu0 0.0
        %1629 = vmatprep.subr.mxu0 0.0
        %1630 = vmatpush1.msra.mxu0 0.0
        %1631 = vmatprep.subr.mxu0 0.0
        %1632 = vmatpush1.msra.mxu0 0.0
        %1633 = vmatprep.subr.mxu0 0.0
        %1634 = vmatpush1.msra.mxu0 0.0
        %1635 = vmatprep.subr.mxu0 0.0
        %1636 = vmatpush1.msra.mxu0 0.0
        %v1637 = vand.u32 %v771, 4294901760
        %1638 = vmatprep.subr.mxu0 %v1637
        %v1639 = vand.u32 %v770, 4294901760
        %1640 = vmatpush1.msra.mxu0 %v1639
        %v1641 = vand.u32 %v769, 4294901760
        %1642 = vmatprep.subr.mxu0 %v1641
        %v1643 = vand.u32 %v768, 4294901760
        %1644 = vmatpush1.msra.mxu0 %v1643
        %1645 = vmatprep.subr.mxu0 0.0
        %1646 = vmatpush2.msra.mxu0 0.0
        %1647 = vmatprep.subr.mxu0 0.0
        %1648 = vmatpush2.msra.mxu0 0.0
        %1649 = vmatprep.subr.mxu0 0.0
        %1650 = vmatpush2.msra.mxu0 0.0
        %1651 = vmatprep.subr.mxu0 0.0
        %1652 = vmatpush2.msra.mxu0 0.0
        %1653 = vmatprep.subr.mxu0 0.0
        %1654 = vmatpush2.msra.mxu0 0.0
        %1655 = vmatprep.subr.mxu0 0.0
        %1656 = vmatpush2.msra.mxu0 0.0
        %1657 = vmatprep.subr.mxu0 0.0
        %1658 = vmatpush2.msra.mxu0 0.0
        %1659 = vmatprep.subr.mxu0 0.0
        %1660 = vmatpush2.msra.mxu0 0.0
        %1661 = vmatprep.subr.mxu0 0.0
        %1662 = vmatpush2.msra.mxu0 0.0
        %1663 = vmatprep.subr.mxu0 0.0
        %1664 = vmatpush2.msra.mxu0 0.0
        %1665 = vmatprep.subr.mxu0 0.0
        %1666 = vmatpush2.msra.mxu0 0.0
        %1667 = vmatprep.subr.mxu0 0.0
        %1668 = vmatpush2.msra.mxu0 0.0
        %1669 = vmatprep.subr.mxu0 0.0
        %1670 = vmatpush2.msra.mxu0 0.0
        %1671 = vmatprep.subr.mxu0 0.0
        %1672 = vmatpush2.msra.mxu0 0.0
        %1673 = vmatprep.subr.mxu0 0.0
        %1674 = vmatpush2.msra.mxu0 0.0
        %1675 = vmatprep.subr.mxu0 0.0
        %1676 = vmatpush2.msra.mxu0 0.0
        %1677 = vmatprep.mubr.f32.mxu0 0.0
        %v1678 = vand.u32 %v774, 4294901760
        %v1679 = vsub.f32 %v774, %v1678
        %v1680 = vand.u32 %v1679, 4294901760
        %1681 = vmatmul.mubr.f32.gmra.mxu0 %v1680
        %v1682 = vpop.f32.mrf.mxu0
        %v1683 = vadd.f32 %v1445, %v1682
        %v1684 = vpop.f32.mrf.mxu0
        %v1685 = vadd.f32 %v1447, %v1684
        %1686 = vmatprep.mubr.f32.mxu0 0.0
        %v1687 = vand.u32 %v777, 4294901760
        %v1688 = vsub.f32 %v777, %v1687
        %v1689 = vand.u32 %v1688, 4294901760
        %1690 = vmatmul.mubr.f32.gmra.mxu0 %v1689
        %v1691 = vpop.f32.mrf.mxu0
        %v1692 = vadd.f32 %v1453, %v1691
        %v1693 = vpop.f32.mrf.mxu0
        %v1694 = vadd.f32 %v1455, %v1693
        %1695 = vmatprep.mubr.f32.mxu0 0.0
        %v1696 = vand.u32 %v780, 4294901760
        %v1697 = vsub.f32 %v780, %v1696
        %v1698 = vand.u32 %v1697, 4294901760
        %1699 = vmatmul.mubr.f32.gmra.mxu0 %v1698
        %v1700 = vpop.f32.mrf.mxu0
        %v1701 = vadd.f32 %v1461, %v1700
        %v1702 = vpop.f32.mrf.mxu0
        %v1703 = vadd.f32 %v1463, %v1702
        %1704 = vmatprep.mubr.f32.mxu0 0.0
        %v1705 = vand.u32 %v783, 4294901760
        %v1706 = vsub.f32 %v783, %v1705
        %v1707 = vand.u32 %v1706, 4294901760
        %1708 = vmatmul.mubr.f32.gmra.mxu0 %v1707
        %v1709 = vpop.f32.mrf.mxu0
        %v1710 = vadd.f32 %v1469, %v1709
        %v1711 = vpop.f32.mrf.mxu0
        %v1712 = vadd.f32 %v1471, %v1711
        %1713 = vmatprep.mubr.f32.mxu0 0.0
        %v1714 = vand.u32 %v786, 4294901760
        %v1715 = vsub.f32 %v786, %v1714
        %v1716 = vand.u32 %v1715, 4294901760
        %1717 = vmatmul.mubr.f32.gmra.mxu0 %v1716
        %v1718 = vpop.f32.mrf.mxu0
        %v1719 = vadd.f32 %v1477, %v1718
        %v1720 = vpop.f32.mrf.mxu0
        %v1721 = vadd.f32 %v1479, %v1720
        %1722 = vmatprep.mubr.f32.mxu0 0.0
        %v1723 = vand.u32 %v789, 4294901760
        %v1724 = vsub.f32 %v789, %v1723
        %v1725 = vand.u32 %v1724, 4294901760
        %1726 = vmatmul.mubr.f32.gmra.mxu0 %v1725
        %v1727 = vpop.f32.mrf.mxu0
        %v1728 = vadd.f32 %v1485, %v1727
        %v1729 = vpop.f32.mrf.mxu0
        %v1730 = vadd.f32 %v1487, %v1729
        %1731 = vmatprep.mubr.f32.mxu0 0.0
        %v1732 = vand.u32 %v792, 4294901760
        %v1733 = vsub.f32 %v792, %v1732
        %v1734 = vand.u32 %v1733, 4294901760
        %1735 = vmatmul.mubr.f32.gmra.mxu0 %v1734
        %v1736 = vpop.f32.mrf.mxu0
        %v1737 = vadd.f32 %v1493, %v1736
        %v1738 = vpop.f32.mrf.mxu0
        %v1739 = vadd.f32 %v1495, %v1738
        %1740 = vmatprep.mubr.f32.mxu0 0.0
        %v1741 = vand.u32 %v795, 4294901760
        %v1742 = vsub.f32 %v795, %v1741
        %v1743 = vand.u32 %v1742, 4294901760
        %1744 = vmatmul.mubr.f32.gmra.mxu0 %v1743
        %v1745 = vpop.f32.mrf.mxu0
        %v1746 = vadd.f32 %v1501, %v1745
        %v1747 = vpop.f32.mrf.mxu0
        %v1748 = vadd.f32 %v1503, %v1747
        %1749 = vmatprep.mubr.f32.mxu0 0.0
        %v1750 = vand.u32 %v798, 4294901760
        %v1751 = vsub.f32 %v798, %v1750
        %v1752 = vand.u32 %v1751, 4294901760
        %1753 = vmatmul.mubr.f32.gmra.mxu0 %v1752
        %v1754 = vpop.f32.mrf.mxu0
        %v1755 = vadd.f32 %v1509, %v1754
        %v1756 = vpop.f32.mrf.mxu0
        %v1757 = vadd.f32 %v1511, %v1756
        %1758 = vmatprep.mubr.f32.mxu0 0.0
        %v1759 = vand.u32 %v801, 4294901760
        %v1760 = vsub.f32 %v801, %v1759
        %v1761 = vand.u32 %v1760, 4294901760
        %1762 = vmatmul.mubr.f32.gmra.mxu0 %v1761
        %v1763 = vpop.f32.mrf.mxu0
        %v1764 = vadd.f32 %v1517, %v1763
        %v1765 = vpop.f32.mrf.mxu0
        %v1766 = vadd.f32 %v1519, %v1765
        %1767 = vmatprep.mubr.f32.mxu0 0.0
        %v1768 = vand.u32 %v804, 4294901760
        %v1769 = vsub.f32 %v804, %v1768
        %v1770 = vand.u32 %v1769, 4294901760
        %1771 = vmatmul.mubr.f32.gmra.mxu0 %v1770
        %v1772 = vpop.f32.mrf.mxu0
        %v1773 = vadd.f32 %v1525, %v1772
        %v1774 = vpop.f32.mrf.mxu0
        %v1775 = vadd.f32 %v1527, %v1774
        %1776 = vmatprep.mubr.f32.mxu0 0.0
        %v1777 = vand.u32 %v807, 4294901760
        %v1778 = vsub.f32 %v807, %v1777
        %v1779 = vand.u32 %v1778, 4294901760
        %1780 = vmatmul.mubr.f32.gmra.mxu0 %v1779
        %v1781 = vpop.f32.mrf.mxu0
        %v1782 = vadd.f32 %v1533, %v1781
        %v1783 = vpop.f32.mrf.mxu0
        %v1784 = vadd.f32 %v1535, %v1783
        %1785 = vmatprep.mubr.f32.mxu0 0.0
        %v1786 = vand.u32 %v810, 4294901760
        %v1787 = vsub.f32 %v810, %v1786
        %v1788 = vand.u32 %v1787, 4294901760
        %1789 = vmatmul.mubr.f32.gmra.mxu0 %v1788
        %v1790 = vpop.f32.mrf.mxu0
        %v1791 = vadd.f32 %v1541, %v1790
        %v1792 = vpop.f32.mrf.mxu0
        %v1793 = vadd.f32 %v1543, %v1792
        %1794 = vmatprep.mubr.f32.mxu0 0.0
        %v1795 = vand.u32 %v813, 4294901760
        %v1796 = vsub.f32 %v813, %v1795
        %v1797 = vand.u32 %v1796, 4294901760
        %1798 = vmatmul.mubr.f32.gmra.mxu0 %v1797
        %v1799 = vpop.f32.mrf.mxu0
        %v1800 = vadd.f32 %v1549, %v1799
        %v1801 = vpop.f32.mrf.mxu0
        %v1802 = vadd.f32 %v1551, %v1801
        %1803 = vmatprep.mubr.f32.mxu0 0.0
        %v1804 = vand.u32 %v816, 4294901760
        %v1805 = vsub.f32 %v816, %v1804
        %v1806 = vand.u32 %v1805, 4294901760
        %1807 = vmatmul.mubr.f32.gmra.mxu0 %v1806
        %v1808 = vpop.f32.mrf.mxu0
        %v1809 = vadd.f32 %v1557, %v1808
        %v1810 = vpop.f32.mrf.mxu0
        %v1811 = vadd.f32 %v1559, %v1810
        %1812 = vmatprep.mubr.f32.mxu0 0.0
        %v1813 = vand.u32 %v819, 4294901760
        %v1814 = vsub.f32 %v819, %v1813
        %v1815 = vand.u32 %v1814, 4294901760
        %1816 = vmatmul.mubr.f32.gmra.mxu0 %v1815
        %v1817 = vpop.f32.mrf.mxu0
        %v1818 = vadd.f32 %v1565, %v1817
        %v1819 = vpop.f32.mrf.mxu0
        %v1820 = vadd.f32 %v1567, %v1819
        %1821 = vmatprep.mubr.f32.mxu0 0.0
        %v1822 = vand.u32 %v822, 4294901760
        %v1823 = vsub.f32 %v822, %v1822
        %v1824 = vand.u32 %v1823, 4294901760
        %1825 = vmatmul.mubr.f32.gmra.mxu0 %v1824
        %v1826 = vpop.f32.mrf.mxu0
        %v1827 = vadd.f32 %v1573, %v1826
        %v1828 = vpop.f32.mrf.mxu0
        %v1829 = vadd.f32 %v1575, %v1828
        %1830 = vmatprep.mubr.f32.mxu0 0.0
        %v1831 = vand.u32 %v825, 4294901760
        %v1832 = vsub.f32 %v825, %v1831
        %v1833 = vand.u32 %v1832, 4294901760
        %1834 = vmatmul.mubr.f32.gmra.mxu0 %v1833
        %v1835 = vpop.f32.mrf.mxu0
        %v1836 = vadd.f32 %v1581, %v1835
        %v1837 = vpop.f32.mrf.mxu0
        %v1838 = vadd.f32 %v1583, %v1837
        %1839 = vmatprep.mubr.f32.mxu0 0.0
        %v1840 = vand.u32 %v828, 4294901760
        %v1841 = vsub.f32 %v828, %v1840
        %v1842 = vand.u32 %v1841, 4294901760
        %1843 = vmatmul.mubr.f32.gmra.mxu0 %v1842
        %v1844 = vpop.f32.mrf.mxu0
        %v1845 = vadd.f32 %v1589, %v1844
        %v1846 = vpop.f32.mrf.mxu0
        %v1847 = vadd.f32 %v1591, %v1846
        %1848 = vmatprep.mubr.f32.mxu0 0.0
        %v1849 = vand.u32 %v831, 4294901760
        %v1850 = vsub.f32 %v831, %v1849
        %v1851 = vand.u32 %v1850, 4294901760
        %1852 = vmatmul.mubr.f32.gmra.mxu0 %v1851
        %v1853 = vpop.f32.mrf.mxu0
        %v1854 = vadd.f32 %v1597, %v1853
        %v1855 = vpop.f32.mrf.mxu0
        %v1856 = vadd.f32 %v1599, %v1855
        %1857 = vmatprep.mubr.f32.mxu0 0.0
        %v1858 = vand.u32 %v834, 4294901760
        %v1859 = vsub.f32 %v834, %v1858
        %v1860 = vand.u32 %v1859, 4294901760
        %1861 = vmatmul.mubr.f32.gmra.mxu0 %v1860
        %v1862 = vpop.f32.mrf.mxu0
        %v1863 = vadd.f32 %v1605, %v1862
        %v1864 = vpop.f32.mrf.mxu0
        %v1865 = vadd.f32 %v1607, %v1864
        %1866 = vdwg.mxu0
        %1867 = vmatprep.subr.mxu0 0.0
        %1868 = vmatpush1.msra.mxu0 0.0
        %1869 = vmatprep.subr.mxu0 0.0
        %1870 = vmatpush1.msra.mxu0 0.0
        %1871 = vmatprep.subr.mxu0 0.0
        %1872 = vmatpush1.msra.mxu0 0.0
        %1873 = vmatprep.subr.mxu0 0.0
        %1874 = vmatpush1.msra.mxu0 0.0
        %1875 = vmatprep.subr.mxu0 0.0
        %1876 = vmatpush1.msra.mxu0 0.0
        %1877 = vmatprep.subr.mxu0 0.0
        %1878 = vmatpush1.msra.mxu0 0.0
        %1879 = vmatprep.subr.mxu0 0.0
        %1880 = vmatpush1.msra.mxu0 0.0
        %1881 = vmatprep.subr.mxu0 0.0
        %1882 = vmatpush1.msra.mxu0 0.0
        %1883 = vmatprep.subr.mxu0 0.0
        %1884 = vmatpush1.msra.mxu0 0.0
        %1885 = vmatprep.subr.mxu0 0.0
        %1886 = vmatpush1.msra.mxu0 0.0
        %1887 = vmatprep.subr.mxu0 0.0
        %1888 = vmatpush1.msra.mxu0 0.0
        %1889 = vmatprep.subr.mxu0 0.0
        %1890 = vmatpush1.msra.mxu0 0.0
        %1891 = vmatprep.subr.mxu0 0.0
        %1892 = vmatpush1.msra.mxu0 0.0
        %1893 = vmatprep.subr.mxu0 0.0
        %1894 = vmatpush1.msra.mxu0 0.0
        %v1895 = vand.u32 %v771, 4294901760
        %v1896 = vsub.f32 %v771, %v1895
        %v1897 = vand.u32 %v1896, 4294901760
        %1898 = vmatprep.subr.mxu0 %v1897
        %v1899 = vand.u32 %v770, 4294901760
        %v1900 = vsub.f32 %v770, %v1899
        %v1901 = vand.u32 %v1900, 4294901760
        %1902 = vmatpush1.msra.mxu0 %v1901
        %v1903 = vand.u32 %v769, 4294901760
        %v1904 = vsub.f32 %v769, %v1903
        %v1905 = vand.u32 %v1904, 4294901760
        %1906 = vmatprep.subr.mxu0 %v1905
        %v1907 = vand.u32 %v768, 4294901760
        %v1908 = vsub.f32 %v768, %v1907
        %v1909 = vand.u32 %v1908, 4294901760
        %1910 = vmatpush1.msra.mxu0 %v1909
        %1911 = vmatprep.subr.mxu0 0.0
        %1912 = vmatpush2.msra.mxu0 0.0
        %1913 = vmatprep.subr.mxu0 0.0
        %1914 = vmatpush2.msra.mxu0 0.0
        %1915 = vmatprep.subr.mxu0 0.0
        %1916 = vmatpush2.msra.mxu0 0.0
        %1917 = vmatprep.subr.mxu0 0.0
        %1918 = vmatpush2.msra.mxu0 0.0
        %1919 = vmatprep.subr.mxu0 0.0
        %1920 = vmatpush2.msra.mxu0 0.0
        %1921 = vmatprep.subr.mxu0 0.0
        %1922 = vmatpush2.msra.mxu0 0.0
        %1923 = vmatprep.subr.mxu0 0.0
        %1924 = vmatpush2.msra.mxu0 0.0
        %1925 = vmatprep.subr.mxu0 0.0
        %1926 = vmatpush2.msra.mxu0 0.0
        %1927 = vmatprep.subr.mxu0 0.0
        %1928 = vmatpush2.msra.mxu0 0.0
        %1929 = vmatprep.subr.mxu0 0.0
        %1930 = vmatpush2.msra.mxu0 0.0
        %1931 = vmatprep.subr.mxu0 0.0
        %1932 = vmatpush2.msra.mxu0 0.0
        %1933 = vmatprep.subr.mxu0 0.0
        %1934 = vmatpush2.msra.mxu0 0.0
        %1935 = vmatprep.subr.mxu0 0.0
        %1936 = vmatpush2.msra.mxu0 0.0
        %1937 = vmatprep.subr.mxu0 0.0
        %1938 = vmatpush2.msra.mxu0 0.0
        %1939 = vmatprep.subr.mxu0 0.0
        %1940 = vmatpush2.msra.mxu0 0.0
        %1941 = vmatprep.subr.mxu0 0.0
        %1942 = vmatpush2.msra.mxu0 0.0
        %1943 = vmatprep.mubr.f32.mxu0 0.0
        %v1944 = vand.u32 %v774, 4294901760
        %1945 = vmatmul.mubr.f32.gmra.mxu0 %v1944
        %v1946 = vpop.f32.mrf.mxu0
        %v1947 = vadd.f32 %v1683, %v1946
        %v1948 = vpop.f32.mrf.mxu0
        %v1949 = vadd.f32 %v1685, %v1948
        %1950 = vmatprep.mubr.f32.mxu0 0.0
        %v1951 = vand.u32 %v777, 4294901760
        %1952 = vmatmul.mubr.f32.gmra.mxu0 %v1951
        %v1953 = vpop.f32.mrf.mxu0
        %v1954 = vadd.f32 %v1692, %v1953
        %v1955 = vpop.f32.mrf.mxu0
        %v1956 = vadd.f32 %v1694, %v1955
        %1957 = vmatprep.mubr.f32.mxu0 0.0
        %v1958 = vand.u32 %v780, 4294901760
        %1959 = vmatmul.mubr.f32.gmra.mxu0 %v1958
        %v1960 = vpop.f32.mrf.mxu0
        %v1961 = vadd.f32 %v1701, %v1960
        %v1962 = vpop.f32.mrf.mxu0
        %v1963 = vadd.f32 %v1703, %v1962
        %1964 = vmatprep.mubr.f32.mxu0 0.0
        %v1965 = vand.u32 %v783, 4294901760
        %1966 = vmatmul.mubr.f32.gmra.mxu0 %v1965
        %v1967 = vpop.f32.mrf.mxu0
        %v1968 = vadd.f32 %v1710, %v1967
        %v1969 = vpop.f32.mrf.mxu0
        %v1970 = vadd.f32 %v1712, %v1969
        %1971 = vmatprep.mubr.f32.mxu0 0.0
        %v1972 = vand.u32 %v786, 4294901760
        %1973 = vmatmul.mubr.f32.gmra.mxu0 %v1972
        %v1974 = vpop.f32.mrf.mxu0
        %v1975 = vadd.f32 %v1719, %v1974
        %v1976 = vpop.f32.mrf.mxu0
        %v1977 = vadd.f32 %v1721, %v1976
        %1978 = vmatprep.mubr.f32.mxu0 0.0
        %v1979 = vand.u32 %v789, 4294901760
        %1980 = vmatmul.mubr.f32.gmra.mxu0 %v1979
        %v1981 = vpop.f32.mrf.mxu0
        %v1982 = vadd.f32 %v1728, %v1981
        %v1983 = vpop.f32.mrf.mxu0
        %v1984 = vadd.f32 %v1730, %v1983
        %1985 = vmatprep.mubr.f32.mxu0 0.0
        %v1986 = vand.u32 %v792, 4294901760
        %1987 = vmatmul.mubr.f32.gmra.mxu0 %v1986
        %v1988 = vpop.f32.mrf.mxu0
        %v1989 = vadd.f32 %v1737, %v1988
        %v1990 = vpop.f32.mrf.mxu0
        %v1991 = vadd.f32 %v1739, %v1990
        %1992 = vmatprep.mubr.f32.mxu0 0.0
        %v1993 = vand.u32 %v795, 4294901760
        %1994 = vmatmul.mubr.f32.gmra.mxu0 %v1993
        %v1995 = vpop.f32.mrf.mxu0
        %v1996 = vadd.f32 %v1746, %v1995
        %v1997 = vpop.f32.mrf.mxu0
        %v1998 = vadd.f32 %v1748, %v1997
        %1999 = vmatprep.mubr.f32.mxu0 0.0
        %v2000 = vand.u32 %v798, 4294901760
        %2001 = vmatmul.mubr.f32.gmra.mxu0 %v2000
        %v2002 = vpop.f32.mrf.mxu0
        %v2003 = vadd.f32 %v1755, %v2002
        %v2004 = vpop.f32.mrf.mxu0
        %v2005 = vadd.f32 %v1757, %v2004
        %2006 = vmatprep.mubr.f32.mxu0 0.0
        %v2007 = vand.u32 %v801, 4294901760
        %2008 = vmatmul.mubr.f32.gmra.mxu0 %v2007
        %v2009 = vpop.f32.mrf.mxu0
        %v2010 = vadd.f32 %v1764, %v2009
        %v2011 = vpop.f32.mrf.mxu0
        %v2012 = vadd.f32 %v1766, %v2011
        %2013 = vmatprep.mubr.f32.mxu0 0.0
        %v2014 = vand.u32 %v804, 4294901760
        %2015 = vmatmul.mubr.f32.gmra.mxu0 %v2014
        %v2016 = vpop.f32.mrf.mxu0
        %v2017 = vadd.f32 %v1773, %v2016
        %v2018 = vpop.f32.mrf.mxu0
        %v2019 = vadd.f32 %v1775, %v2018
        %2020 = vmatprep.mubr.f32.mxu0 0.0
        %v2021 = vand.u32 %v807, 4294901760
        %2022 = vmatmul.mubr.f32.gmra.mxu0 %v2021
        %v2023 = vpop.f32.mrf.mxu0
        %v2024 = vadd.f32 %v1782, %v2023
        %v2025 = vpop.f32.mrf.mxu0
        %v2026 = vadd.f32 %v1784, %v2025
        %2027 = vmatprep.mubr.f32.mxu0 0.0
        %v2028 = vand.u32 %v810, 4294901760
        %2029 = vmatmul.mubr.f32.gmra.mxu0 %v2028
        %v2030 = vpop.f32.mrf.mxu0
        %v2031 = vadd.f32 %v1791, %v2030
        %v2032 = vpop.f32.mrf.mxu0
        %v2033 = vadd.f32 %v1793, %v2032
        %2034 = vmatprep.mubr.f32.mxu0 0.0
        %v2035 = vand.u32 %v813, 4294901760
        %2036 = vmatmul.mubr.f32.gmra.mxu0 %v2035
        %v2037 = vpop.f32.mrf.mxu0
        %v2038 = vadd.f32 %v1800, %v2037
        %v2039 = vpop.f32.mrf.mxu0
        %v2040 = vadd.f32 %v1802, %v2039
        %2041 = vmatprep.mubr.f32.mxu0 0.0
        %v2042 = vand.u32 %v816, 4294901760
        %2043 = vmatmul.mubr.f32.gmra.mxu0 %v2042
        %v2044 = vpop.f32.mrf.mxu0
        %v2045 = vadd.f32 %v1809, %v2044
        %v2046 = vpop.f32.mrf.mxu0
        %v2047 = vadd.f32 %v1811, %v2046
        %2048 = vmatprep.mubr.f32.mxu0 0.0
        %v2049 = vand.u32 %v819, 4294901760
        %2050 = vmatmul.mubr.f32.gmra.mxu0 %v2049
        %v2051 = vpop.f32.mrf.mxu0
        %v2052 = vadd.f32 %v1818, %v2051
        %v2053 = vpop.f32.mrf.mxu0
        %v2054 = vadd.f32 %v1820, %v2053
        %2055 = vmatprep.mubr.f32.mxu0 0.0
        %v2056 = vand.u32 %v822, 4294901760
        %2057 = vmatmul.mubr.f32.gmra.mxu0 %v2056
        %v2058 = vpop.f32.mrf.mxu0
        %v2059 = vadd.f32 %v1827, %v2058
        %v2060 = vpop.f32.mrf.mxu0
        %v2061 = vadd.f32 %v1829, %v2060
        %2062 = vmatprep.mubr.f32.mxu0 0.0
        %v2063 = vand.u32 %v825, 4294901760
        %2064 = vmatmul.mubr.f32.gmra.mxu0 %v2063
        %v2065 = vpop.f32.mrf.mxu0
        %v2066 = vadd.f32 %v1836, %v2065
        %v2067 = vpop.f32.mrf.mxu0
        %v2068 = vadd.f32 %v1838, %v2067
        %2069 = vmatprep.mubr.f32.mxu0 0.0
        %v2070 = vand.u32 %v828, 4294901760
        %2071 = vmatmul.mubr.f32.gmra.mxu0 %v2070
        %v2072 = vpop.f32.mrf.mxu0
        %v2073 = vadd.f32 %v1845, %v2072
        %v2074 = vpop.f32.mrf.mxu0
        %v2075 = vadd.f32 %v1847, %v2074
        %2076 = vmatprep.mubr.f32.mxu0 0.0
        %v2077 = vand.u32 %v831, 4294901760
        %2078 = vmatmul.mubr.f32.gmra.mxu0 %v2077
        %v2079 = vpop.f32.mrf.mxu0
        %v2080 = vadd.f32 %v1854, %v2079
        %v2081 = vpop.f32.mrf.mxu0
        %v2082 = vadd.f32 %v1856, %v2081
        %2083 = vmatprep.mubr.f32.mxu0 0.0
        %v2084 = vand.u32 %v834, 4294901760
        %2085 = vmatmul.mubr.f32.gmra.mxu0 %v2084
        %v2086 = vpop.f32.mrf.mxu0
        %v2087 = vadd.f32 %v1863, %v2086
        %v2088 = vpop.f32.mrf.mxu0
        %v2089 = vadd.f32 %v1865, %v2088
        %2090 = vdwg.mxu0
        %2091 = vmatprep.subr.mxu0 0.0
        %2092 = vmatpush1.msra.mxu0 0.0
        %2093 = vmatprep.subr.mxu0 0.0
        %2094 = vmatpush1.msra.mxu0 0.0
        %2095 = vmatprep.subr.mxu0 0.0
        %2096 = vmatpush1.msra.mxu0 0.0
        %2097 = vmatprep.subr.mxu0 0.0
        %2098 = vmatpush1.msra.mxu0 0.0
        %2099 = vmatprep.subr.mxu0 0.0
        %2100 = vmatpush1.msra.mxu0 0.0
        %2101 = vmatprep.subr.mxu0 0.0
        %2102 = vmatpush1.msra.mxu0 0.0
        %2103 = vmatprep.subr.mxu0 0.0
        %2104 = vmatpush1.msra.mxu0 0.0
        %2105 = vmatprep.subr.mxu0 0.0
        %2106 = vmatpush1.msra.mxu0 0.0
        %2107 = vmatprep.subr.mxu0 0.0
        %2108 = vmatpush1.msra.mxu0 0.0
        %2109 = vmatprep.subr.mxu0 0.0
        %2110 = vmatpush1.msra.mxu0 0.0
        %2111 = vmatprep.subr.mxu0 0.0
        %2112 = vmatpush1.msra.mxu0 0.0
        %2113 = vmatprep.subr.mxu0 0.0
        %2114 = vmatpush1.msra.mxu0 0.0
        %2115 = vmatprep.subr.mxu0 0.0
        %2116 = vmatpush1.msra.mxu0 0.0
        %2117 = vmatprep.subr.mxu0 0.0
        %2118 = vmatpush1.msra.mxu0 0.0
        %v2119 = vand.u32 %v771, 4294901760
        %2120 = vmatprep.subr.mxu0 %v2119
        %v2121 = vand.u32 %v770, 4294901760
        %2122 = vmatpush1.msra.mxu0 %v2121
        %v2123 = vand.u32 %v769, 4294901760
        %2124 = vmatprep.subr.mxu0 %v2123
        %v2125 = vand.u32 %v768, 4294901760
        %2126 = vmatpush1.msra.mxu0 %v2125
        %2127 = vmatprep.subr.mxu0 0.0
        %2128 = vmatpush2.msra.mxu0 0.0
        %2129 = vmatprep.subr.mxu0 0.0
        %2130 = vmatpush2.msra.mxu0 0.0
        %2131 = vmatprep.subr.mxu0 0.0
        %2132 = vmatpush2.msra.mxu0 0.0
        %2133 = vmatprep.subr.mxu0 0.0
        %2134 = vmatpush2.msra.mxu0 0.0
        %2135 = vmatprep.subr.mxu0 0.0
        %2136 = vmatpush2.msra.mxu0 0.0
        %2137 = vmatprep.subr.mxu0 0.0
        %2138 = vmatpush2.msra.mxu0 0.0
        %2139 = vmatprep.subr.mxu0 0.0
        %2140 = vmatpush2.msra.mxu0 0.0
        %2141 = vmatprep.subr.mxu0 0.0
        %2142 = vmatpush2.msra.mxu0 0.0
        %2143 = vmatprep.subr.mxu0 0.0
        %2144 = vmatpush2.msra.mxu0 0.0
        %2145 = vmatprep.subr.mxu0 0.0
        %2146 = vmatpush2.msra.mxu0 0.0
        %2147 = vmatprep.subr.mxu0 0.0
        %2148 = vmatpush2.msra.mxu0 0.0
        %2149 = vmatprep.subr.mxu0 0.0
        %2150 = vmatpush2.msra.mxu0 0.0
        %2151 = vmatprep.subr.mxu0 0.0
        %2152 = vmatpush2.msra.mxu0 0.0
        %2153 = vmatprep.subr.mxu0 0.0
        %2154 = vmatpush2.msra.mxu0 0.0
        %2155 = vmatprep.subr.mxu0 0.0
        %2156 = vmatpush2.msra.mxu0 0.0
        %2157 = vmatprep.subr.mxu0 0.0
        %2158 = vmatpush2.msra.mxu0 0.0
        %2159 = vmatprep.mubr.f32.mxu0 0.0
        %v2160 = vand.u32 %v774, 4294901760
        %2161 = vmatmul.mubr.f32.gmra.mxu0 %v2160
        %v2162 = vpop.f32.mrf.mxu0
        %v2163 = vadd.f32 %v1947, %v2162
        %v2164 = vpop.f32.mrf.mxu0
        %v2165 = vadd.f32 %v1949, %v2164
        %2166 = vmatprep.mubr.f32.mxu0 0.0
        %v2167 = vand.u32 %v777, 4294901760
        %2168 = vmatmul.mubr.f32.gmra.mxu0 %v2167
        %v2169 = vpop.f32.mrf.mxu0
        %v2170 = vadd.f32 %v1954, %v2169
        %v2171 = vpop.f32.mrf.mxu0
        %v2172 = vadd.f32 %v1956, %v2171
        %2173 = vmatprep.mubr.f32.mxu0 0.0
        %v2174 = vand.u32 %v780, 4294901760
        %2175 = vmatmul.mubr.f32.gmra.mxu0 %v2174
        %v2176 = vpop.f32.mrf.mxu0
        %v2177 = vadd.f32 %v1961, %v2176
        %v2178 = vpop.f32.mrf.mxu0
        %v2179 = vadd.f32 %v1963, %v2178
        %2180 = vmatprep.mubr.f32.mxu0 0.0
        %v2181 = vand.u32 %v783, 4294901760
        %2182 = vmatmul.mubr.f32.gmra.mxu0 %v2181
        %v2183 = vpop.f32.mrf.mxu0
        %v2184 = vadd.f32 %v1968, %v2183
        %v2185 = vpop.f32.mrf.mxu0
        %v2186 = vadd.f32 %v1970, %v2185
        %2187 = vmatprep.mubr.f32.mxu0 0.0
        %v2188 = vand.u32 %v786, 4294901760
        %2189 = vmatmul.mubr.f32.gmra.mxu0 %v2188
        %v2190 = vpop.f32.mrf.mxu0
        %v2191 = vadd.f32 %v1975, %v2190
        %v2192 = vpop.f32.mrf.mxu0
        %v2193 = vadd.f32 %v1977, %v2192
        %2194 = vmatprep.mubr.f32.mxu0 0.0
        %v2195 = vand.u32 %v789, 4294901760
        %2196 = vmatmul.mubr.f32.gmra.mxu0 %v2195
        %v2197 = vpop.f32.mrf.mxu0
        %v2198 = vadd.f32 %v1982, %v2197
        %v2199 = vpop.f32.mrf.mxu0
        %v2200 = vadd.f32 %v1984, %v2199
        %2201 = vmatprep.mubr.f32.mxu0 0.0
        %v2202 = vand.u32 %v792, 4294901760
        %2203 = vmatmul.mubr.f32.gmra.mxu0 %v2202
        %v2204 = vpop.f32.mrf.mxu0
        %v2205 = vadd.f32 %v1989, %v2204
        %v2206 = vpop.f32.mrf.mxu0
        %v2207 = vadd.f32 %v1991, %v2206
        %2208 = vmatprep.mubr.f32.mxu0 0.0
        %v2209 = vand.u32 %v795, 4294901760
        %2210 = vmatmul.mubr.f32.gmra.mxu0 %v2209
        %v2211 = vpop.f32.mrf.mxu0
        %v2212 = vadd.f32 %v1996, %v2211
        %v2213 = vpop.f32.mrf.mxu0
        %v2214 = vadd.f32 %v1998, %v2213
        %2215 = vmatprep.mubr.f32.mxu0 0.0
        %v2216 = vand.u32 %v798, 4294901760
        %2217 = vmatmul.mubr.f32.gmra.mxu0 %v2216
        %v2218 = vpop.f32.mrf.mxu0
        %v2219 = vadd.f32 %v2003, %v2218
        %v2220 = vpop.f32.mrf.mxu0
        %v2221 = vadd.f32 %v2005, %v2220
        %2222 = vmatprep.mubr.f32.mxu0 0.0
        %v2223 = vand.u32 %v801, 4294901760
        %2224 = vmatmul.mubr.f32.gmra.mxu0 %v2223
        %v2225 = vpop.f32.mrf.mxu0
        %v2226 = vadd.f32 %v2010, %v2225
        %v2227 = vpop.f32.mrf.mxu0
        %v2228 = vadd.f32 %v2012, %v2227
        %2229 = vmatprep.mubr.f32.mxu0 0.0
        %v2230 = vand.u32 %v804, 4294901760
        %2231 = vmatmul.mubr.f32.gmra.mxu0 %v2230
        %v2232 = vpop.f32.mrf.mxu0
        %v2233 = vadd.f32 %v2017, %v2232
        %v2234 = vpop.f32.mrf.mxu0
        %v2235 = vadd.f32 %v2019, %v2234
        %2236 = vmatprep.mubr.f32.mxu0 0.0
        %v2237 = vand.u32 %v807, 4294901760
        %2238 = vmatmul.mubr.f32.gmra.mxu0 %v2237
        %v2239 = vpop.f32.mrf.mxu0
        %v2240 = vadd.f32 %v2024, %v2239
        %v2241 = vpop.f32.mrf.mxu0
        %v2242 = vadd.f32 %v2026, %v2241
        %2243 = vmatprep.mubr.f32.mxu0 0.0
        %v2244 = vand.u32 %v810, 4294901760
        %2245 = vmatmul.mubr.f32.gmra.mxu0 %v2244
        %v2246 = vpop.f32.mrf.mxu0
        %v2247 = vadd.f32 %v2031, %v2246
        %v2248 = vpop.f32.mrf.mxu0
        %v2249 = vadd.f32 %v2033, %v2248
        %2250 = vmatprep.mubr.f32.mxu0 0.0
        %v2251 = vand.u32 %v813, 4294901760
        %2252 = vmatmul.mubr.f32.gmra.mxu0 %v2251
        %v2253 = vpop.f32.mrf.mxu0
        %v2254 = vadd.f32 %v2038, %v2253
        %v2255 = vpop.f32.mrf.mxu0
        %v2256 = vadd.f32 %v2040, %v2255
        %2257 = vmatprep.mubr.f32.mxu0 0.0
        %v2258 = vand.u32 %v816, 4294901760
        %2259 = vmatmul.mubr.f32.gmra.mxu0 %v2258
        %v2260 = vpop.f32.mrf.mxu0
        %v2261 = vadd.f32 %v2045, %v2260
        %v2262 = vpop.f32.mrf.mxu0
        %v2263 = vadd.f32 %v2047, %v2262
        %2264 = vmatprep.mubr.f32.mxu0 0.0
        %v2265 = vand.u32 %v819, 4294901760
        %2266 = vmatmul.mubr.f32.gmra.mxu0 %v2265
        %v2267 = vpop.f32.mrf.mxu0
        %v2268 = vadd.f32 %v2052, %v2267
        %v2269 = vpop.f32.mrf.mxu0
        %v2270 = vadd.f32 %v2054, %v2269
        %2271 = vmatprep.mubr.f32.mxu0 0.0
        %v2272 = vand.u32 %v822, 4294901760
        %2273 = vmatmul.mubr.f32.gmra.mxu0 %v2272
        %v2274 = vpop.f32.mrf.mxu0
        %v2275 = vadd.f32 %v2059, %v2274
        %v2276 = vpop.f32.mrf.mxu0
        %v2277 = vadd.f32 %v2061, %v2276
        %2278 = vmatprep.mubr.f32.mxu0 0.0
        %v2279 = vand.u32 %v825, 4294901760
        %2280 = vmatmul.mubr.f32.gmra.mxu0 %v2279
        %v2281 = vpop.f32.mrf.mxu0
        %v2282 = vadd.f32 %v2066, %v2281
        %v2283 = vpop.f32.mrf.mxu0
        %v2284 = vadd.f32 %v2068, %v2283
        %2285 = vmatprep.mubr.f32.mxu0 0.0
        %v2286 = vand.u32 %v828, 4294901760
        %2287 = vmatmul.mubr.f32.gmra.mxu0 %v2286
        %v2288 = vpop.f32.mrf.mxu0
        %v2289 = vadd.f32 %v2073, %v2288
        %v2290 = vpop.f32.mrf.mxu0
        %v2291 = vadd.f32 %v2075, %v2290
        %2292 = vmatprep.mubr.f32.mxu0 0.0
        %v2293 = vand.u32 %v831, 4294901760
        %2294 = vmatmul.mubr.f32.gmra.mxu0 %v2293
        %v2295 = vpop.f32.mrf.mxu0
        %v2296 = vadd.f32 %v2080, %v2295
        %v2297 = vpop.f32.mrf.mxu0
        %v2298 = vadd.f32 %v2082, %v2297
        %2299 = vmatprep.mubr.f32.mxu0 0.0
        %v2300 = vand.u32 %v834, 4294901760
        %2301 = vmatmul.mubr.f32.gmra.mxu0 %v2300
        %v2302 = vpop.f32.mrf.mxu0
        %v2303 = vadd.f32 %v2087, %v2302
        %v2304 = vpop.f32.mrf.mxu0
        %v2305 = vadd.f32 %v2089, %v2304
        %2306 = vdwg.mxu0
        %v2307 = vtanh.pop %v2163
        %v2308 = vtanh.pop %v2165
        %v2309 = vtanh.pop %v2170
        %v2310 = vtanh.pop %v2172
        %v2311 = vtanh.pop %v2177
        %v2312 = vtanh.pop %v2179
        %v2313 = vtanh.pop %v2184
        %v2314 = vtanh.pop %v2186
        %v2315 = vtanh.pop %v2191
        %v2316 = vtanh.pop %v2193
        %v2317 = vtanh.pop %v2198
        %v2318 = vtanh.pop %v2200
        %v2319 = vtanh.pop %v2205
        %v2320 = vtanh.pop %v2207
        %v2321 = vtanh.pop %v2212
        %v2322 = vtanh.pop %v2214
        %v2323 = vtanh.pop %v2219
        %v2324 = vtanh.pop %v2221
        %v2325 = vtanh.pop %v2226
        %v2326 = vtanh.pop %v2228
        %v2327 = vtanh.pop %v2233
        %v2328 = vtanh.pop %v2235
        %v2329 = vtanh.pop %v2240
        %v2330 = vtanh.pop %v2242
        %v2331 = vtanh.pop %v2247
        %v2332 = vtanh.pop %v2249
        %v2333 = vtanh.pop %v2254
        %v2334 = vtanh.pop %v2256
        %v2335 = vtanh.pop %v2261
        %v2336 = vtanh.pop %v2263
        %v2337 = vtanh.pop %v2268
        %v2338 = vtanh.pop %v2270
        %v2339 = vtanh.pop %v2275
        %v2340 = vtanh.pop %v2277
        %v2341 = vtanh.pop %v2282
        %v2342 = vtanh.pop %v2284
        %v2343 = vtanh.pop %v2289
        %v2344 = vtanh.pop %v2291
        %v2345 = vtanh.pop %v2296
        %v2346 = vtanh.pop %v2298
        %v2347 = vtanh.pop %v2303
        %v2348 = vtanh.pop %v2305
        %v2349 = vsub.f32 %v2321, %v2307
        %v2350 = vsub.f32 %v2322, %v2308
        %v2351 = vsub.f32 %v2323, %v2309
        %v2352 = vsub.f32 %v2324, %v2310
        %v2353 = vsub.f32 %v2325, %v2311
        %v2354 = vsub.f32 %v2326, %v2312
        %v2355 = vsub.f32 %v2327, %v2313
        %v2356 = vsub.f32 %v2328, %v2314
        %v2357 = vsub.f32 %v2329, %v2315
        %v2358 = vsub.f32 %v2330, %v2316
        %v2359 = vsub.f32 %v2331, %v2317
        %v2360 = vsub.f32 %v2332, %v2318
        %v2361 = vsub.f32 %v2333, %v2319
        %v2362 = vsub.f32 %v2334, %v2320
        %v2363 = vld [vmem:[%s3] sm:$0xff]
        %v2364 = vld [vmem:[%s3 + $0x8] sm:$0xff]
        %v2365 = vld [vmem:[%s3 + $0x10] sm:$0xff]
        %v2366 = vld [vmem:[%s3 + $0x18] sm:$0xff]
        %v2367 = vld [vmem:[%s3 + $0x20] sm:$0xff]
        %v2368 = vld [vmem:[%s3 + $0x28] sm:$0xff]
        %v2369 = vld [vmem:[%s3 + $0x30] sm:$0xff]
        %v2370 = vld [vmem:[%s4] sm:$0xff]
        %v2371 = vld [vmem:[%s4 + $0x8] sm:$0xff]
        %v2372 = vld [vmem:[%s4 + $0x10] sm:$0xff]
        %v2373 = vld [vmem:[%s4 + $0x18] sm:$0xff]
        %v2374 = vld [vmem:[%s4 + $0x20] sm:$0xff]
        %v2375 = vld [vmem:[%s4 + $0x28] sm:$0xff]
        %v2376 = vld [vmem:[%s4 + $0x30] sm:$0xff]
        %2378 = vset.pattern.permute.xlu0 0
        %2379 = vperm.xlu0 %2378, %v2370
        %v2380 = vpop.permute.xlu0 %2379
        %2383 = vset.pattern.permute.xlu0 0
        %2384 = vperm.xlu0 %2383, %v2371
        %v2385 = vpop.permute.xlu0 %2384
        %2388 = vset.pattern.permute.xlu0 0
        %2389 = vperm.xlu0 %2388, %v2372
        %v2390 = vpop.permute.xlu0 %2389
        %2393 = vset.pattern.permute.xlu0 0
        %2394 = vperm.xlu0 %2393, %v2373
        %v2395 = vpop.permute.xlu0 %2394
        %2398 = vset.pattern.permute.xlu0 0
        %2399 = vperm.xlu0 %2398, %v2374
        %v2400 = vpop.permute.xlu0 %2399
        %2403 = vset.pattern.permute.xlu0 0
        %2404 = vperm.xlu0 %2403, %v2375
        %v2405 = vpop.permute.xlu0 %2404
        %2408 = vset.pattern.permute.xlu0 0
        %2409 = vperm.xlu0 %2408, %v2376
        %v2410 = vpop.permute.xlu0 %2409
        %vm2412 = vcmask 457728
        %v2414 = vsel %vm2412, %v2363, 0
        %v2417 = vsel %vm2412, %v2364, 0
        %v2420 = vsel %vm2412, %v2365, 0
        %v2423 = vsel %vm2412, %v2366, 0
        %v2426 = vsel %vm2412, %v2367, 0
        %v2429 = vsel %vm2412, %v2368, 0
        %v2432 = vsel %vm2412, %v2369, 0
        %2434 = vmatprep.subr.mxu0 0.0
        %2435 = vmatpush1.msra.mxu0 0.0
        %2436 = vmatprep.subr.mxu0 0.0
        %2437 = vmatpush1.msra.mxu0 0.0
        %2438 = vmatprep.subr.mxu0 0.0
        %2439 = vmatpush1.msra.mxu0 0.0
        %2440 = vmatprep.subr.mxu0 0.0
        %2441 = vmatpush1.msra.mxu0 0.0
        %2442 = vmatprep.subr.mxu0 0.0
        %2443 = vmatpush1.msra.mxu0 0.0
        %2444 = vmatprep.subr.mxu0 0.0
        %2445 = vmatpush1.msra.mxu0 0.0
        %2446 = vmatprep.subr.mxu0 0.0
        %2447 = vmatpush1.msra.mxu0 0.0
        %2448 = vmatprep.subr.mxu0 0.0
        %2449 = vmatpush1.msra.mxu0 0.0
        %2450 = vmatprep.subr.mxu0 0.0
        %2451 = vmatpush1.msra.mxu0 0.0
        %v2452 = vand.u32 %v2348, 4294901760
        %2453 = vmatprep.subr.mxu0 %v2452
        %v2454 = vand.u32 %v2347, 4294901760
        %2455 = vmatpush1.msra.mxu0 %v2454
        %v2456 = vand.u32 %v2346, 4294901760
        %2457 = vmatprep.subr.mxu0 %v2456
        %v2458 = vand.u32 %v2345, 4294901760
        %2459 = vmatpush1.msra.mxu0 %v2458
        %v2460 = vand.u32 %v2344, 4294901760
        %2461 = vmatprep.subr.mxu0 %v2460
        %v2462 = vand.u32 %v2343, 4294901760
        %2463 = vmatpush1.msra.mxu0 %v2462
        %v2464 = vand.u32 %v2342, 4294901760
        %2465 = vmatprep.subr.mxu0 %v2464
        %v2466 = vand.u32 %v2341, 4294901760
        %2467 = vmatpush1.msra.mxu0 %v2466
        %v2468 = vand.u32 %v2340, 4294901760
        %2469 = vmatprep.subr.mxu0 %v2468
        %v2470 = vand.u32 %v2339, 4294901760
        %2471 = vmatpush1.msra.mxu0 %v2470
        %v2472 = vand.u32 %v2338, 4294901760
        %2473 = vmatprep.subr.mxu0 %v2472
        %v2474 = vand.u32 %v2337, 4294901760
        %2475 = vmatpush1.msra.mxu0 %v2474
        %v2476 = vand.u32 %v2336, 4294901760
        %2477 = vmatprep.subr.mxu0 %v2476
        %v2478 = vand.u32 %v2335, 4294901760
        %2479 = vmatpush1.msra.mxu0 %v2478
        %2480 = vmatprep.subr.mxu0 0.0
        %2481 = vmatpush2.msra.mxu0 0.0
        %2482 = vmatprep.subr.mxu0 0.0
        %2483 = vmatpush2.msra.mxu0 0.0
        %2484 = vmatprep.subr.mxu0 0.0
        %2485 = vmatpush2.msra.mxu0 0.0
        %2486 = vmatprep.subr.mxu0 0.0
        %2487 = vmatpush2.msra.mxu0 0.0
        %2488 = vmatprep.subr.mxu0 0.0
        %2489 = vmatpush2.msra.mxu0 0.0
        %2490 = vmatprep.subr.mxu0 0.0
        %2491 = vmatpush2.msra.mxu0 0.0
        %2492 = vmatprep.subr.mxu0 0.0
        %2493 = vmatpush2.msra.mxu0 0.0
        %2494 = vmatprep.subr.mxu0 0.0
        %2495 = vmatpush2.msra.mxu0 0.0
        %2496 = vmatprep.subr.mxu0 0.0
        %2497 = vmatpush2.msra.mxu0 0.0
        %2498 = vmatprep.subr.mxu0 0.0
        %2499 = vmatpush2.msra.mxu0 0.0
        %2500 = vmatprep.subr.mxu0 0.0
        %2501 = vmatpush2.msra.mxu0 0.0
        %2502 = vmatprep.subr.mxu0 0.0
        %2503 = vmatpush2.msra.mxu0 0.0
        %2504 = vmatprep.subr.mxu0 0.0
        %2505 = vmatpush2.msra.mxu0 0.0
        %2506 = vmatprep.subr.mxu0 0.0
        %2507 = vmatpush2.msra.mxu0 0.0
        %2508 = vmatprep.subr.mxu0 0.0
        %2509 = vmatpush2.msra.mxu0 0.0
        %2510 = vmatprep.subr.mxu0 0.0
        %2511 = vmatpush2.msra.mxu0 0.0
        %2512 = vmatprep.mubr.f32.mxu0 0.0
        %v2513 = vand.u32 %v2414, 4294901760
        %v2514 = vsub.f32 %v2414, %v2513
        %v2515 = vand.u32 %v2514, 4294901760
        %v2516 = vsub.f32 %v2514, %v2515
        %v2517 = vand.u32 %v2516, 4294901760
        %2518 = vmatmul.mubr.f32.gmra.mxu0 %v2517
        %v2519 = vpop.f32.mrf.mxu0
        %v2520 = vadd.f32 %v2380, %v2519
        %v2521 = vpop.f32.mrf.mxu0
        %v2522 = vadd.f32 %v2380, %v2521
        %2523 = vmatprep.mubr.f32.mxu0 0.0
        %v2524 = vand.u32 %v2417, 4294901760
        %v2525 = vsub.f32 %v2417, %v2524
        %v2526 = vand.u32 %v2525, 4294901760
        %v2527 = vsub.f32 %v2525, %v2526
        %v2528 = vand.u32 %v2527, 4294901760
        %2529 = vmatmul.mubr.f32.gmra.mxu0 %v2528
        %v2530 = vpop.f32.mrf.mxu0
        %v2531 = vadd.f32 %v2385, %v2530
        %v2532 = vpop.f32.mrf.mxu0
        %v2533 = vadd.f32 %v2385, %v2532
        %2534 = vmatprep.mubr.f32.mxu0 0.0
        %v2535 = vand.u32 %v2420, 4294901760
        %v2536 = vsub.f32 %v2420, %v2535
        %v2537 = vand.u32 %v2536, 4294901760
        %v2538 = vsub.f32 %v2536, %v2537
        %v2539 = vand.u32 %v2538, 4294901760
        %2540 = vmatmul.mubr.f32.gmra.mxu0 %v2539
        %v2541 = vpop.f32.mrf.mxu0
        %v2542 = vadd.f32 %v2390, %v2541
        %v2543 = vpop.f32.mrf.mxu0
        %v2544 = vadd.f32 %v2390, %v2543
        %2545 = vmatprep.mubr.f32.mxu0 0.0
        %v2546 = vand.u32 %v2423, 4294901760
        %v2547 = vsub.f32 %v2423, %v2546
        %v2548 = vand.u32 %v2547, 4294901760
        %v2549 = vsub.f32 %v2547, %v2548
        %v2550 = vand.u32 %v2549, 4294901760
        %2551 = vmatmul.mubr.f32.gmra.mxu0 %v2550
        %v2552 = vpop.f32.mrf.mxu0
        %v2553 = vadd.f32 %v2395, %v2552
        %v2554 = vpop.f32.mrf.mxu0
        %v2555 = vadd.f32 %v2395, %v2554
        %2556 = vmatprep.mubr.f32.mxu0 0.0
        %v2557 = vand.u32 %v2426, 4294901760
        %v2558 = vsub.f32 %v2426, %v2557
        %v2559 = vand.u32 %v2558, 4294901760
        %v2560 = vsub.f32 %v2558, %v2559
        %v2561 = vand.u32 %v2560, 4294901760
        %2562 = vmatmul.mubr.f32.gmra.mxu0 %v2561
        %v2563 = vpop.f32.mrf.mxu0
        %v2564 = vadd.f32 %v2400, %v2563
        %v2565 = vpop.f32.mrf.mxu0
        %v2566 = vadd.f32 %v2400, %v2565
        %2567 = vmatprep.mubr.f32.mxu0 0.0
        %v2568 = vand.u32 %v2429, 4294901760
        %v2569 = vsub.f32 %v2429, %v2568
        %v2570 = vand.u32 %v2569, 4294901760
        %v2571 = vsub.f32 %v2569, %v2570
        %v2572 = vand.u32 %v2571, 4294901760
        %2573 = vmatmul.mubr.f32.gmra.mxu0 %v2572
        %v2574 = vpop.f32.mrf.mxu0
        %v2575 = vadd.f32 %v2405, %v2574
        %v2576 = vpop.f32.mrf.mxu0
        %v2577 = vadd.f32 %v2405, %v2576
        %2578 = vmatprep.mubr.f32.mxu0 0.0
        %v2579 = vand.u32 %v2432, 4294901760
        %v2580 = vsub.f32 %v2432, %v2579
        %v2581 = vand.u32 %v2580, 4294901760
        %v2582 = vsub.f32 %v2580, %v2581
        %v2583 = vand.u32 %v2582, 4294901760
        %2584 = vmatmul.mubr.f32.gmra.mxu0 %v2583
        %v2585 = vpop.f32.mrf.mxu0
        %v2586 = vadd.f32 %v2410, %v2585
        %v2587 = vpop.f32.mrf.mxu0
        %v2588 = vadd.f32 %v2410, %v2587
        %2589 = vdwg.mxu0
        %2590 = vmatprep.subr.mxu0 0.0
        %2591 = vmatpush1.msra.mxu0 0.0
        %2592 = vmatprep.subr.mxu0 0.0
        %2593 = vmatpush1.msra.mxu0 0.0
        %2594 = vmatprep.subr.mxu0 0.0
        %2595 = vmatpush1.msra.mxu0 0.0
        %2596 = vmatprep.subr.mxu0 0.0
        %2597 = vmatpush1.msra.mxu0 0.0
        %2598 = vmatprep.subr.mxu0 0.0
        %2599 = vmatpush1.msra.mxu0 0.0
        %2600 = vmatprep.subr.mxu0 0.0
        %2601 = vmatpush1.msra.mxu0 0.0
        %2602 = vmatprep.subr.mxu0 0.0
        %2603 = vmatpush1.msra.mxu0 0.0
        %2604 = vmatprep.subr.mxu0 0.0
        %2605 = vmatpush1.msra.mxu0 0.0
        %2606 = vmatprep.subr.mxu0 0.0
        %2607 = vmatpush1.msra.mxu0 0.0
        %v2608 = vand.u32 %v2348, 4294901760
        %v2609 = vsub.f32 %v2348, %v2608
        %v2610 = vand.u32 %v2609, 4294901760
        %v2611 = vsub.f32 %v2609, %v2610
        %v2612 = vand.u32 %v2611, 4294901760
        %2613 = vmatprep.subr.mxu0 %v2612
        %v2614 = vand.u32 %v2347, 4294901760
        %v2615 = vsub.f32 %v2347, %v2614
        %v2616 = vand.u32 %v2615, 4294901760
        %v2617 = vsub.f32 %v2615, %v2616
        %v2618 = vand.u32 %v2617, 4294901760
        %2619 = vmatpush1.msra.mxu0 %v2618
        %v2620 = vand.u32 %v2346, 4294901760
        %v2621 = vsub.f32 %v2346, %v2620
        %v2622 = vand.u32 %v2621, 4294901760
        %v2623 = vsub.f32 %v2621, %v2622
        %v2624 = vand.u32 %v2623, 4294901760
        %2625 = vmatprep.subr.mxu0 %v2624
        %v2626 = vand.u32 %v2345, 4294901760
        %v2627 = vsub.f32 %v2345, %v2626
        %v2628 = vand.u32 %v2627, 4294901760
        %v2629 = vsub.f32 %v2627, %v2628
        %v2630 = vand.u32 %v2629, 4294901760
        %2631 = vmatpush1.msra.mxu0 %v2630
        %v2632 = vand.u32 %v2344, 4294901760
        %v2633 = vsub.f32 %v2344, %v2632
        %v2634 = vand.u32 %v2633, 4294901760
        %v2635 = vsub.f32 %v2633, %v2634
        %v2636 = vand.u32 %v2635, 4294901760
        %2637 = vmatprep.subr.mxu0 %v2636
        %v2638 = vand.u32 %v2343, 4294901760
        %v2639 = vsub.f32 %v2343, %v2638
        %v2640 = vand.u32 %v2639, 4294901760
        %v2641 = vsub.f32 %v2639, %v2640
        %v2642 = vand.u32 %v2641, 4294901760
        %2643 = vmatpush1.msra.mxu0 %v2642
        %v2644 = vand.u32 %v2342, 4294901760
        %v2645 = vsub.f32 %v2342, %v2644
        %v2646 = vand.u32 %v2645, 4294901760
        %v2647 = vsub.f32 %v2645, %v2646
        %v2648 = vand.u32 %v2647, 4294901760
        %2649 = vmatprep.subr.mxu0 %v2648
        %v2650 = vand.u32 %v2341, 4294901760
        %v2651 = vsub.f32 %v2341, %v2650
        %v2652 = vand.u32 %v2651, 4294901760
        %v2653 = vsub.f32 %v2651, %v2652
        %v2654 = vand.u32 %v2653, 4294901760
        %2655 = vmatpush1.msra.mxu0 %v2654
        %v2656 = vand.u32 %v2340, 4294901760
        %v2657 = vsub.f32 %v2340, %v2656
        %v2658 = vand.u32 %v2657, 4294901760
        %v2659 = vsub.f32 %v2657, %v2658
        %v2660 = vand.u32 %v2659, 4294901760
        %2661 = vmatprep.subr.mxu0 %v2660
        %v2662 = vand.u32 %v2339, 4294901760
        %v2663 = vsub.f32 %v2339, %v2662
        %v2664 = vand.u32 %v2663, 4294901760
        %v2665 = vsub.f32 %v2663, %v2664
        %v2666 = vand.u32 %v2665, 4294901760
        %2667 = vmatpush1.msra.mxu0 %v2666
        %v2668 = vand.u32 %v2338, 4294901760
        %v2669 = vsub.f32 %v2338, %v2668
        %v2670 = vand.u32 %v2669, 4294901760
        %v2671 = vsub.f32 %v2669, %v2670
        %v2672 = vand.u32 %v2671, 4294901760
        %2673 = vmatprep.subr.mxu0 %v2672
        %v2674 = vand.u32 %v2337, 4294901760
        %v2675 = vsub.f32 %v2337, %v2674
        %v2676 = vand.u32 %v2675, 4294901760
        %v2677 = vsub.f32 %v2675, %v2676
        %v2678 = vand.u32 %v2677, 4294901760
        %2679 = vmatpush1.msra.mxu0 %v2678
        %v2680 = vand.u32 %v2336, 4294901760
        %v2681 = vsub.f32 %v2336, %v2680
        %v2682 = vand.u32 %v2681, 4294901760
        %v2683 = vsub.f32 %v2681, %v2682
        %v2684 = vand.u32 %v2683, 4294901760
        %2685 = vmatprep.subr.mxu0 %v2684
        %v2686 = vand.u32 %v2335, 4294901760
        %v2687 = vsub.f32 %v2335, %v2686
        %v2688 = vand.u32 %v2687, 4294901760
        %v2689 = vsub.f32 %v2687, %v2688
        %v2690 = vand.u32 %v2689, 4294901760
        %2691 = vmatpush1.msra.mxu0 %v2690
        %2692 = vmatprep.subr.mxu0 0.0
        %2693 = vmatpush2.msra.mxu0 0.0
        %2694 = vmatprep.subr.mxu0 0.0
        %2695 = vmatpush2.msra.mxu0 0.0
        %2696 = vmatprep.subr.mxu0 0.0
        %2697 = vmatpush2.msra.mxu0 0.0
        %2698 = vmatprep.subr.mxu0 0.0
        %2699 = vmatpush2.msra.mxu0 0.0
        %2700 = vmatprep.subr.mxu0 0.0
        %2701 = vmatpush2.msra.mxu0 0.0
        %2702 = vmatprep.subr.mxu0 0.0
        %2703 = vmatpush2.msra.mxu0 0.0
        %2704 = vmatprep.subr.mxu0 0.0
        %2705 = vmatpush2.msra.mxu0 0.0
        %2706 = vmatprep.subr.mxu0 0.0
        %2707 = vmatpush2.msra.mxu0 0.0
        %2708 = vmatprep.subr.mxu0 0.0
        %2709 = vmatpush2.msra.mxu0 0.0
        %2710 = vmatprep.subr.mxu0 0.0
        %2711 = vmatpush2.msra.mxu0 0.0
        %2712 = vmatprep.subr.mxu0 0.0
        %2713 = vmatpush2.msra.mxu0 0.0
        %2714 = vmatprep.subr.mxu0 0.0
        %2715 = vmatpush2.msra.mxu0 0.0
        %2716 = vmatprep.subr.mxu0 0.0
        %2717 = vmatpush2.msra.mxu0 0.0
        %2718 = vmatprep.subr.mxu0 0.0
        %2719 = vmatpush2.msra.mxu0 0.0
        %2720 = vmatprep.subr.mxu0 0.0
        %2721 = vmatpush2.msra.mxu0 0.0
        %2722 = vmatprep.subr.mxu0 0.0
        %2723 = vmatpush2.msra.mxu0 0.0
        %2724 = vmatprep.mubr.f32.mxu0 0.0
        %v2725 = vand.u32 %v2414, 4294901760
        %2726 = vmatmul.mubr.f32.gmra.mxu0 %v2725
        %v2727 = vpop.f32.mrf.mxu0
        %v2728 = vadd.f32 %v2520, %v2727
        %v2729 = vpop.f32.mrf.mxu0
        %v2730 = vadd.f32 %v2522, %v2729
        %2731 = vmatprep.mubr.f32.mxu0 0.0
        %v2732 = vand.u32 %v2417, 4294901760
        %2733 = vmatmul.mubr.f32.gmra.mxu0 %v2732
        %v2734 = vpop.f32.mrf.mxu0
        %v2735 = vadd.f32 %v2531, %v2734
        %v2736 = vpop.f32.mrf.mxu0
        %v2737 = vadd.f32 %v2533, %v2736
        %2738 = vmatprep.mubr.f32.mxu0 0.0
        %v2739 = vand.u32 %v2420, 4294901760
        %2740 = vmatmul.mubr.f32.gmra.mxu0 %v2739
        %v2741 = vpop.f32.mrf.mxu0
        %v2742 = vadd.f32 %v2542, %v2741
        %v2743 = vpop.f32.mrf.mxu0
        %v2744 = vadd.f32 %v2544, %v2743
        %2745 = vmatprep.mubr.f32.mxu0 0.0
        %v2746 = vand.u32 %v2423, 4294901760
        %2747 = vmatmul.mubr.f32.gmra.mxu0 %v2746
        %v2748 = vpop.f32.mrf.mxu0
        %v2749 = vadd.f32 %v2553, %v2748
        %v2750 = vpop.f32.mrf.mxu0
        %v2751 = vadd.f32 %v2555, %v2750
        %2752 = vmatprep.mubr.f32.mxu0 0.0
        %v2753 = vand.u32 %v2426, 4294901760
        %2754 = vmatmul.mubr.f32.gmra.mxu0 %v2753
        %v2755 = vpop.f32.mrf.mxu0
        %v2756 = vadd.f32 %v2564, %v2755
        %v2757 = vpop.f32.mrf.mxu0
        %v2758 = vadd.f32 %v2566, %v2757
        %2759 = vmatprep.mubr.f32.mxu0 0.0
        %v2760 = vand.u32 %v2429, 4294901760
        %2761 = vmatmul.mubr.f32.gmra.mxu0 %v2760
        %v2762 = vpop.f32.mrf.mxu0
        %v2763 = vadd.f32 %v2575, %v2762
        %v2764 = vpop.f32.mrf.mxu0
        %v2765 = vadd.f32 %v2577, %v2764
        %2766 = vmatprep.mubr.f32.mxu0 0.0
        %v2767 = vand.u32 %v2432, 4294901760
        %2768 = vmatmul.mubr.f32.gmra.mxu0 %v2767
        %v2769 = vpop.f32.mrf.mxu0
        %v2770 = vadd.f32 %v2586, %v2769
        %v2771 = vpop.f32.mrf.mxu0
        %v2772 = vadd.f32 %v2588, %v2771
        %2773 = vdwg.mxu0
        %2774 = vmatprep.subr.mxu0 0.0
        %2775 = vmatpush1.msra.mxu0 0.0
        %2776 = vmatprep.subr.mxu0 0.0
        %2777 = vmatpush1.msra.mxu0 0.0
        %2778 = vmatprep.subr.mxu0 0.0
        %2779 = vmatpush1.msra.mxu0 0.0
        %2780 = vmatprep.subr.mxu0 0.0
        %2781 = vmatpush1.msra.mxu0 0.0
        %2782 = vmatprep.subr.mxu0 0.0
        %2783 = vmatpush1.msra.mxu0 0.0
        %2784 = vmatprep.subr.mxu0 0.0
        %2785 = vmatpush1.msra.mxu0 0.0
        %2786 = vmatprep.subr.mxu0 0.0
        %2787 = vmatpush1.msra.mxu0 0.0
        %2788 = vmatprep.subr.mxu0 0.0
        %2789 = vmatpush1.msra.mxu0 0.0
        %2790 = vmatprep.subr.mxu0 0.0
        %2791 = vmatpush1.msra.mxu0 0.0
        %v2792 = vand.u32 %v2348, 4294901760
        %v2793 = vsub.f32 %v2348, %v2792
        %2794 = vmatprep.subr.mxu0 %v2793
        %v2795 = vand.u32 %v2347, 4294901760
        %v2796 = vsub.f32 %v2347, %v2795
        %2797 = vmatpush1.msra.mxu0 %v2796
        %v2798 = vand.u32 %v2346, 4294901760
        %v2799 = vsub.f32 %v2346, %v2798
        %2800 = vmatprep.subr.mxu0 %v2799
        %v2801 = vand.u32 %v2345, 4294901760
        %v2802 = vsub.f32 %v2345, %v2801
        %2803 = vmatpush1.msra.mxu0 %v2802
        %v2804 = vand.u32 %v2344, 4294901760
        %v2805 = vsub.f32 %v2344, %v2804
        %2806 = vmatprep.subr.mxu0 %v2805
        %v2807 = vand.u32 %v2343, 4294901760
        %v2808 = vsub.f32 %v2343, %v2807
        %2809 = vmatpush1.msra.mxu0 %v2808
        %v2810 = vand.u32 %v2342, 4294901760
        %v2811 = vsub.f32 %v2342, %v2810
        %2812 = vmatprep.subr.mxu0 %v2811
        %v2813 = vand.u32 %v2341, 4294901760
        %v2814 = vsub.f32 %v2341, %v2813
        %2815 = vmatpush1.msra.mxu0 %v2814
        %v2816 = vand.u32 %v2340, 4294901760
        %v2817 = vsub.f32 %v2340, %v2816
        %2818 = vmatprep.subr.mxu0 %v2817
        %v2819 = vand.u32 %v2339, 4294901760
        %v2820 = vsub.f32 %v2339, %v2819
        %2821 = vmatpush1.msra.mxu0 %v2820
        %v2822 = vand.u32 %v2338, 4294901760
        %v2823 = vsub.f32 %v2338, %v2822
        %2824 = vmatprep.subr.mxu0 %v2823
        %v2825 = vand.u32 %v2337, 4294901760
        %v2826 = vsub.f32 %v2337, %v2825
        %2827 = vmatpush1.msra.mxu0 %v2826
        %v2828 = vand.u32 %v2336, 4294901760
        %v2829 = vsub.f32 %v2336, %v2828
        %2830 = vmatprep.subr.mxu0 %v2829
        %v2831 = vand.u32 %v2335, 4294901760
        %v2832 = vsub.f32 %v2335, %v2831
        %2833 = vmatpush1.msra.mxu0 %v2832
        %2834 = vmatprep.subr.mxu0 0.0
        %2835 = vmatpush2.msra.mxu0 0.0
        %2836 = vmatprep.subr.mxu0 0.0
        %2837 = vmatpush2.msra.mxu0 0.0
        %2838 = vmatprep.subr.mxu0 0.0
        %2839 = vmatpush2.msra.mxu0 0.0
        %2840 = vmatprep.subr.mxu0 0.0
        %2841 = vmatpush2.msra.mxu0 0.0
        %2842 = vmatprep.subr.mxu0 0.0
        %2843 = vmatpush2.msra.mxu0 0.0
        %2844 = vmatprep.subr.mxu0 0.0
        %2845 = vmatpush2.msra.mxu0 0.0
        %2846 = vmatprep.subr.mxu0 0.0
        %2847 = vmatpush2.msra.mxu0 0.0
        %2848 = vmatprep.subr.mxu0 0.0
        %2849 = vmatpush2.msra.mxu0 0.0
        %2850 = vmatprep.subr.mxu0 0.0
        %2851 = vmatpush2.msra.mxu0 0.0
        %2852 = vmatprep.subr.mxu0 0.0
        %2853 = vmatpush2.msra.mxu0 0.0
        %2854 = vmatprep.subr.mxu0 0.0
        %2855 = vmatpush2.msra.mxu0 0.0
        %2856 = vmatprep.subr.mxu0 0.0
        %2857 = vmatpush2.msra.mxu0 0.0
        %2858 = vmatprep.subr.mxu0 0.0
        %2859 = vmatpush2.msra.mxu0 0.0
        %2860 = vmatprep.subr.mxu0 0.0
        %2861 = vmatpush2.msra.mxu0 0.0
        %2862 = vmatprep.subr.mxu0 0.0
        %2863 = vmatpush2.msra.mxu0 0.0
        %2864 = vmatprep.subr.mxu0 0.0
        %2865 = vmatpush2.msra.mxu0 0.0
        %2866 = vmatprep.mubr.f32.mxu0 0.0
        %v2867 = vand.u32 %v2414, 4294901760
        %v2868 = vsub.f32 %v2414, %v2867
        %2869 = vmatmul.mubr.f32.gmra.mxu0 %v2868
        %v2870 = vpop.f32.mrf.mxu0
        %v2871 = vadd.f32 %v2728, %v2870
        %v2872 = vpop.f32.mrf.mxu0
        %v2873 = vadd.f32 %v2730, %v2872
        %2874 = vmatprep.mubr.f32.mxu0 0.0
        %v2875 = vand.u32 %v2417, 4294901760
        %v2876 = vsub.f32 %v2417, %v2875
        %2877 = vmatmul.mubr.f32.gmra.mxu0 %v2876
        %v2878 = vpop.f32.mrf.mxu0
        %v2879 = vadd.f32 %v2735, %v2878
        %v2880 = vpop.f32.mrf.mxu0
        %v2881 = vadd.f32 %v2737, %v2880
        %2882 = vmatprep.mubr.f32.mxu0 0.0
        %v2883 = vand.u32 %v2420, 4294901760
        %v2884 = vsub.f32 %v2420, %v2883
        %2885 = vmatmul.mubr.f32.gmra.mxu0 %v2884
        %v2886 = vpop.f32.mrf.mxu0
        %v2887 = vadd.f32 %v2742, %v2886
        %v2888 = vpop.f32.mrf.mxu0
        %v2889 = vadd.f32 %v2744, %v2888
        %2890 = vmatprep.mubr.f32.mxu0 0.0
        %v2891 = vand.u32 %v2423, 4294901760
        %v2892 = vsub.f32 %v2423, %v2891
        %2893 = vmatmul.mubr.f32.gmra.mxu0 %v2892
        %v2894 = vpop.f32.mrf.mxu0
        %v2895 = vadd.f32 %v2749, %v2894
        %v2896 = vpop.f32.mrf.mxu0
        %v2897 = vadd.f32 %v2751, %v2896
        %2898 = vmatprep.mubr.f32.mxu0 0.0
        %v2899 = vand.u32 %v2426, 4294901760
        %v2900 = vsub.f32 %v2426, %v2899
        %2901 = vmatmul.mubr.f32.gmra.mxu0 %v2900
        %v2902 = vpop.f32.mrf.mxu0
        %v2903 = vadd.f32 %v2756, %v2902
        %v2904 = vpop.f32.mrf.mxu0
        %v2905 = vadd.f32 %v2758, %v2904
        %2906 = vmatprep.mubr.f32.mxu0 0.0
        %v2907 = vand.u32 %v2429, 4294901760
        %v2908 = vsub.f32 %v2429, %v2907
        %2909 = vmatmul.mubr.f32.gmra.mxu0 %v2908
        %v2910 = vpop.f32.mrf.mxu0
        %v2911 = vadd.f32 %v2763, %v2910
        %v2912 = vpop.f32.mrf.mxu0
        %v2913 = vadd.f32 %v2765, %v2912
        %2914 = vmatprep.mubr.f32.mxu0 0.0
        %v2915 = vand.u32 %v2432, 4294901760
        %v2916 = vsub.f32 %v2432, %v2915
        %2917 = vmatmul.mubr.f32.gmra.mxu0 %v2916
        %v2918 = vpop.f32.mrf.mxu0
        %v2919 = vadd.f32 %v2770, %v2918
        %v2920 = vpop.f32.mrf.mxu0
        %v2921 = vadd.f32 %v2772, %v2920
        %2922 = vdwg.mxu0
        %2923 = vmatprep.subr.mxu0 0.0
        %2924 = vmatpush1.msra.mxu0 0.0
        %2925 = vmatprep.subr.mxu0 0.0
        %2926 = vmatpush1.msra.mxu0 0.0
        %2927 = vmatprep.subr.mxu0 0.0
        %2928 = vmatpush1.msra.mxu0 0.0
        %2929 = vmatprep.subr.mxu0 0.0
        %2930 = vmatpush1.msra.mxu0 0.0
        %2931 = vmatprep.subr.mxu0 0.0
        %2932 = vmatpush1.msra.mxu0 0.0
        %2933 = vmatprep.subr.mxu0 0.0
        %2934 = vmatpush1.msra.mxu0 0.0
        %2935 = vmatprep.subr.mxu0 0.0
        %2936 = vmatpush1.msra.mxu0 0.0
        %2937 = vmatprep.subr.mxu0 0.0
        %2938 = vmatpush1.msra.mxu0 0.0
        %2939 = vmatprep.subr.mxu0 0.0
        %2940 = vmatpush1.msra.mxu0 0.0
        %v2941 = vand.u32 %v2348, 4294901760
        %2942 = vmatprep.subr.mxu0 %v2941
        %v2943 = vand.u32 %v2347, 4294901760
        %2944 = vmatpush1.msra.mxu0 %v2943
        %v2945 = vand.u32 %v2346, 4294901760
        %2946 = vmatprep.subr.mxu0 %v2945
        %v2947 = vand.u32 %v2345, 4294901760
        %2948 = vmatpush1.msra.mxu0 %v2947
        %v2949 = vand.u32 %v2344, 4294901760
        %2950 = vmatprep.subr.mxu0 %v2949
        %v2951 = vand.u32 %v2343, 4294901760
        %2952 = vmatpush1.msra.mxu0 %v2951
        %v2953 = vand.u32 %v2342, 4294901760
        %2954 = vmatprep.subr.mxu0 %v2953
        %v2955 = vand.u32 %v2341, 4294901760
        %2956 = vmatpush1.msra.mxu0 %v2955
        %v2957 = vand.u32 %v2340, 4294901760
        %2958 = vmatprep.subr.mxu0 %v2957
        %v2959 = vand.u32 %v2339, 4294901760
        %2960 = vmatpush1.msra.mxu0 %v2959
        %v2961 = vand.u32 %v2338, 4294901760
        %2962 = vmatprep.subr.mxu0 %v2961
        %v2963 = vand.u32 %v2337, 4294901760
        %2964 = vmatpush1.msra.mxu0 %v2963
        %v2965 = vand.u32 %v2336, 4294901760
        %2966 = vmatprep.subr.mxu0 %v2965
        %v2967 = vand.u32 %v2335, 4294901760
        %2968 = vmatpush1.msra.mxu0 %v2967
        %2969 = vmatprep.subr.mxu0 0.0
        %2970 = vmatpush2.msra.mxu0 0.0
        %2971 = vmatprep.subr.mxu0 0.0
        %2972 = vmatpush2.msra.mxu0 0.0
        %2973 = vmatprep.subr.mxu0 0.0
        %2974 = vmatpush2.msra.mxu0 0.0
        %2975 = vmatprep.subr.mxu0 0.0
        %2976 = vmatpush2.msra.mxu0 0.0
        %2977 = vmatprep.subr.mxu0 0.0
        %2978 = vmatpush2.msra.mxu0 0.0
        %2979 = vmatprep.subr.mxu0 0.0
        %2980 = vmatpush2.msra.mxu0 0.0
        %2981 = vmatprep.subr.mxu0 0.0
        %2982 = vmatpush2.msra.mxu0 0.0
        %2983 = vmatprep.subr.mxu0 0.0
        %2984 = vmatpush2.msra.mxu0 0.0
        %2985 = vmatprep.subr.mxu0 0.0
        %2986 = vmatpush2.msra.mxu0 0.0
        %2987 = vmatprep.subr.mxu0 0.0
        %2988 = vmatpush2.msra.mxu0 0.0
        %2989 = vmatprep.subr.mxu0 0.0
        %2990 = vmatpush2.msra.mxu0 0.0
        %2991 = vmatprep.subr.mxu0 0.0
        %2992 = vmatpush2.msra.mxu0 0.0
        %2993 = vmatprep.subr.mxu0 0.0
        %2994 = vmatpush2.msra.mxu0 0.0
        %2995 = vmatprep.subr.mxu0 0.0
        %2996 = vmatpush2.msra.mxu0 0.0
        %2997 = vmatprep.subr.mxu0 0.0
        %2998 = vmatpush2.msra.mxu0 0.0
        %2999 = vmatprep.subr.mxu0 0.0
        %3000 = vmatpush2.msra.mxu0 0.0
        %3001 = vmatprep.mubr.f32.mxu0 0.0
        %v3002 = vand.u32 %v2414, 4294901760
        %v3003 = vsub.f32 %v2414, %v3002
        %v3004 = vand.u32 %v3003, 4294901760
        %3005 = vmatmul.mubr.f32.gmra.mxu0 %v3004
        %v3006 = vpop.f32.mrf.mxu0
        %v3007 = vadd.f32 %v2871, %v3006
        %v3008 = vpop.f32.mrf.mxu0
        %v3009 = vadd.f32 %v2873, %v3008
        %3010 = vmatprep.mubr.f32.mxu0 0.0
        %v3011 = vand.u32 %v2417, 4294901760
        %v3012 = vsub.f32 %v2417, %v3011
        %v3013 = vand.u32 %v3012, 4294901760
        %3014 = vmatmul.mubr.f32.gmra.mxu0 %v3013
        %v3015 = vpop.f32.mrf.mxu0
        %v3016 = vadd.f32 %v2879, %v3015
        %v3017 = vpop.f32.mrf.mxu0
        %v3018 = vadd.f32 %v2881, %v3017
        %3019 = vmatprep.mubr.f32.mxu0 0.0
        %v3020 = vand.u32 %v2420, 4294901760
        %v3021 = vsub.f32 %v2420, %v3020
        %v3022 = vand.u32 %v3021, 4294901760
        %3023 = vmatmul.mubr.f32.gmra.mxu0 %v3022
        %v3024 = vpop.f32.mrf.mxu0
        %v3025 = vadd.f32 %v2887, %v3024
        %v3026 = vpop.f32.mrf.mxu0
        %v3027 = vadd.f32 %v2889, %v3026
        %3028 = vmatprep.mubr.f32.mxu0 0.0
        %v3029 = vand.u32 %v2423, 4294901760
        %v3030 = vsub.f32 %v2423, %v3029
        %v3031 = vand.u32 %v3030, 4294901760
        %3032 = vmatmul.mubr.f32.gmra.mxu0 %v3031
        %v3033 = vpop.f32.mrf.mxu0
        %v3034 = vadd.f32 %v2895, %v3033
        %v3035 = vpop.f32.mrf.mxu0
        %v3036 = vadd.f32 %v2897, %v3035
        %3037 = vmatprep.mubr.f32.mxu0 0.0
        %v3038 = vand.u32 %v2426, 4294901760
        %v3039 = vsub.f32 %v2426, %v3038
        %v3040 = vand.u32 %v3039, 4294901760
        %3041 = vmatmul.mubr.f32.gmra.mxu0 %v3040
        %v3042 = vpop.f32.mrf.mxu0
        %v3043 = vadd.f32 %v2903, %v3042
        %v3044 = vpop.f32.mrf.mxu0
        %v3045 = vadd.f32 %v2905, %v3044
        %3046 = vmatprep.mubr.f32.mxu0 0.0
        %v3047 = vand.u32 %v2429, 4294901760
        %v3048 = vsub.f32 %v2429, %v3047
        %v3049 = vand.u32 %v3048, 4294901760
        %3050 = vmatmul.mubr.f32.gmra.mxu0 %v3049
        %v3051 = vpop.f32.mrf.mxu0
        %v3052 = vadd.f32 %v2911, %v3051
        %v3053 = vpop.f32.mrf.mxu0
        %v3054 = vadd.f32 %v2913, %v3053
        %3055 = vmatprep.mubr.f32.mxu0 0.0
        %v3056 = vand.u32 %v2432, 4294901760
        %v3057 = vsub.f32 %v2432, %v3056
        %v3058 = vand.u32 %v3057, 4294901760
        %3059 = vmatmul.mubr.f32.gmra.mxu0 %v3058
        %v3060 = vpop.f32.mrf.mxu0
        %v3061 = vadd.f32 %v2919, %v3060
        %v3062 = vpop.f32.mrf.mxu0
        %v3063 = vadd.f32 %v2921, %v3062
        %3064 = vdwg.mxu0
        %3065 = vmatprep.subr.mxu0 0.0
        %3066 = vmatpush1.msra.mxu0 0.0
        %3067 = vmatprep.subr.mxu0 0.0
        %3068 = vmatpush1.msra.mxu0 0.0
        %3069 = vmatprep.subr.mxu0 0.0
        %3070 = vmatpush1.msra.mxu0 0.0
        %3071 = vmatprep.subr.mxu0 0.0
        %3072 = vmatpush1.msra.mxu0 0.0
        %3073 = vmatprep.subr.mxu0 0.0
        %3074 = vmatpush1.msra.mxu0 0.0
        %3075 = vmatprep.subr.mxu0 0.0
        %3076 = vmatpush1.msra.mxu0 0.0
        %3077 = vmatprep.subr.mxu0 0.0
        %3078 = vmatpush1.msra.mxu0 0.0
        %3079 = vmatprep.subr.mxu0 0.0
        %3080 = vmatpush1.msra.mxu0 0.0
        %3081 = vmatprep.subr.mxu0 0.0
        %3082 = vmatpush1.msra.mxu0 0.0
        %v3083 = vand.u32 %v2348, 4294901760
        %v3084 = vsub.f32 %v2348, %v3083
        %v3085 = vand.u32 %v3084, 4294901760
        %3086 = vmatprep.subr.mxu0 %v3085
        %v3087 = vand.u32 %v2347, 4294901760
        %v3088 = vsub.f32 %v2347, %v3087
        %v3089 = vand.u32 %v3088, 4294901760
        %3090 = vmatpush1.msra.mxu0 %v3089
        %v3091 = vand.u32 %v2346, 4294901760
        %v3092 = vsub.f32 %v2346, %v3091
        %v3093 = vand.u32 %v3092, 4294901760
        %3094 = vmatprep.subr.mxu0 %v3093
        %v3095 = vand.u32 %v2345, 4294901760
        %v3096 = vsub.f32 %v2345, %v3095
        %v3097 = vand.u32 %v3096, 4294901760
        %3098 = vmatpush1.msra.mxu0 %v3097
        %v3099 = vand.u32 %v2344, 4294901760
        %v3100 = vsub.f32 %v2344, %v3099
        %v3101 = vand.u32 %v3100, 4294901760
        %3102 = vmatprep.subr.mxu0 %v3101
        %v3103 = vand.u32 %v2343, 4294901760
        %v3104 = vsub.f32 %v2343, %v3103
        %v3105 = vand.u32 %v3104, 4294901760
        %3106 = vmatpush1.msra.mxu0 %v3105
        %v3107 = vand.u32 %v2342, 4294901760
        %v3108 = vsub.f32 %v2342, %v3107
        %v3109 = vand.u32 %v3108, 4294901760
        %3110 = vmatprep.subr.mxu0 %v3109
        %v3111 = vand.u32 %v2341, 4294901760
        %v3112 = vsub.f32 %v2341, %v3111
        %v3113 = vand.u32 %v3112, 4294901760
        %3114 = vmatpush1.msra.mxu0 %v3113
        %v3115 = vand.u32 %v2340, 4294901760
        %v3116 = vsub.f32 %v2340, %v3115
        %v3117 = vand.u32 %v3116, 4294901760
        %3118 = vmatprep.subr.mxu0 %v3117
        %v3119 = vand.u32 %v2339, 4294901760
        %v3120 = vsub.f32 %v2339, %v3119
        %v3121 = vand.u32 %v3120, 4294901760
        %3122 = vmatpush1.msra.mxu0 %v3121
        %v3123 = vand.u32 %v2338, 4294901760
        %v3124 = vsub.f32 %v2338, %v3123
        %v3125 = vand.u32 %v3124, 4294901760
        %3126 = vmatprep.subr.mxu0 %v3125
        %v3127 = vand.u32 %v2337, 4294901760
        %v3128 = vsub.f32 %v2337, %v3127
        %v3129 = vand.u32 %v3128, 4294901760
        %3130 = vmatpush1.msra.mxu0 %v3129
        %v3131 = vand.u32 %v2336, 4294901760
        %v3132 = vsub.f32 %v2336, %v3131
        %v3133 = vand.u32 %v3132, 4294901760
        %3134 = vmatprep.subr.mxu0 %v3133
        %v3135 = vand.u32 %v2335, 4294901760
        %v3136 = vsub.f32 %v2335, %v3135
        %v3137 = vand.u32 %v3136, 4294901760
        %3138 = vmatpush1.msra.mxu0 %v3137
        %3139 = vmatprep.subr.mxu0 0.0
        %3140 = vmatpush2.msra.mxu0 0.0
        %3141 = vmatprep.subr.mxu0 0.0
        %3142 = vmatpush2.msra.mxu0 0.0
        %3143 = vmatprep.subr.mxu0 0.0
        %3144 = vmatpush2.msra.mxu0 0.0
        %3145 = vmatprep.subr.mxu0 0.0
        %3146 = vmatpush2.msra.mxu0 0.0
        %3147 = vmatprep.subr.mxu0 0.0
        %3148 = vmatpush2.msra.mxu0 0.0
        %3149 = vmatprep.subr.mxu0 0.0
        %3150 = vmatpush2.msra.mxu0 0.0
        %3151 = vmatprep.subr.mxu0 0.0
        %3152 = vmatpush2.msra.mxu0 0.0
        %3153 = vmatprep.subr.mxu0 0.0
        %3154 = vmatpush2.msra.mxu0 0.0
        %3155 = vmatprep.subr.mxu0 0.0
        %3156 = vmatpush2.msra.mxu0 0.0
        %3157 = vmatprep.subr.mxu0 0.0
        %3158 = vmatpush2.msra.mxu0 0.0
        %3159 = vmatprep.subr.mxu0 0.0
        %3160 = vmatpush2.msra.mxu0 0.0
        %3161 = vmatprep.subr.mxu0 0.0
        %3162 = vmatpush2.msra.mxu0 0.0
        %3163 = vmatprep.subr.mxu0 0.0
        %3164 = vmatpush2.msra.mxu0 0.0
        %3165 = vmatprep.subr.mxu0 0.0
        %3166 = vmatpush2.msra.mxu0 0.0
        %3167 = vmatprep.subr.mxu0 0.0
        %3168 = vmatpush2.msra.mxu0 0.0
        %3169 = vmatprep.subr.mxu0 0.0
        %3170 = vmatpush2.msra.mxu0 0.0
        %3171 = vmatprep.mubr.f32.mxu0 0.0
        %v3172 = vand.u32 %v2414, 4294901760
        %3173 = vmatmul.mubr.f32.gmra.mxu0 %v3172
        %v3174 = vpop.f32.mrf.mxu0
        %v3175 = vadd.f32 %v3007, %v3174
        %v3176 = vpop.f32.mrf.mxu0
        %v3177 = vadd.f32 %v3009, %v3176
        %3178 = vmatprep.mubr.f32.mxu0 0.0
        %v3179 = vand.u32 %v2417, 4294901760
        %3180 = vmatmul.mubr.f32.gmra.mxu0 %v3179
        %v3181 = vpop.f32.mrf.mxu0
        %v3182 = vadd.f32 %v3016, %v3181
        %v3183 = vpop.f32.mrf.mxu0
        %v3184 = vadd.f32 %v3018, %v3183
        %3185 = vmatprep.mubr.f32.mxu0 0.0
        %v3186 = vand.u32 %v2420, 4294901760
        %3187 = vmatmul.mubr.f32.gmra.mxu0 %v3186
        %v3188 = vpop.f32.mrf.mxu0
        %v3189 = vadd.f32 %v3025, %v3188
        %v3190 = vpop.f32.mrf.mxu0
        %v3191 = vadd.f32 %v3027, %v3190
        %3192 = vmatprep.mubr.f32.mxu0 0.0
        %v3193 = vand.u32 %v2423, 4294901760
        %3194 = vmatmul.mubr.f32.gmra.mxu0 %v3193
        %v3195 = vpop.f32.mrf.mxu0
        %v3196 = vadd.f32 %v3034, %v3195
        %v3197 = vpop.f32.mrf.mxu0
        %v3198 = vadd.f32 %v3036, %v3197
        %3199 = vmatprep.mubr.f32.mxu0 0.0
        %v3200 = vand.u32 %v2426, 4294901760
        %3201 = vmatmul.mubr.f32.gmra.mxu0 %v3200
        %v3202 = vpop.f32.mrf.mxu0
        %v3203 = vadd.f32 %v3043, %v3202
        %v3204 = vpop.f32.mrf.mxu0
        %v3205 = vadd.f32 %v3045, %v3204
        %3206 = vmatprep.mubr.f32.mxu0 0.0
        %v3207 = vand.u32 %v2429, 4294901760
        %3208 = vmatmul.mubr.f32.gmra.mxu0 %v3207
        %v3209 = vpop.f32.mrf.mxu0
        %v3210 = vadd.f32 %v3052, %v3209
        %v3211 = vpop.f32.mrf.mxu0
        %v3212 = vadd.f32 %v3054, %v3211
        %3213 = vmatprep.mubr.f32.mxu0 0.0
        %v3214 = vand.u32 %v2432, 4294901760
        %3215 = vmatmul.mubr.f32.gmra.mxu0 %v3214
        %v3216 = vpop.f32.mrf.mxu0
        %v3217 = vadd.f32 %v3061, %v3216
        %v3218 = vpop.f32.mrf.mxu0
        %v3219 = vadd.f32 %v3063, %v3218
        %3220 = vdwg.mxu0
        %3221 = vmatprep.subr.mxu0 0.0
        %3222 = vmatpush1.msra.mxu0 0.0
        %3223 = vmatprep.subr.mxu0 0.0
        %3224 = vmatpush1.msra.mxu0 0.0
        %3225 = vmatprep.subr.mxu0 0.0
        %3226 = vmatpush1.msra.mxu0 0.0
        %3227 = vmatprep.subr.mxu0 0.0
        %3228 = vmatpush1.msra.mxu0 0.0
        %3229 = vmatprep.subr.mxu0 0.0
        %3230 = vmatpush1.msra.mxu0 0.0
        %3231 = vmatprep.subr.mxu0 0.0
        %3232 = vmatpush1.msra.mxu0 0.0
        %3233 = vmatprep.subr.mxu0 0.0
        %3234 = vmatpush1.msra.mxu0 0.0
        %3235 = vmatprep.subr.mxu0 0.0
        %3236 = vmatpush1.msra.mxu0 0.0
        %3237 = vmatprep.subr.mxu0 0.0
        %3238 = vmatpush1.msra.mxu0 0.0
        %v3239 = vand.u32 %v2348, 4294901760
        %3240 = vmatprep.subr.mxu0 %v3239
        %v3241 = vand.u32 %v2347, 4294901760
        %3242 = vmatpush1.msra.mxu0 %v3241
        %v3243 = vand.u32 %v2346, 4294901760
        %3244 = vmatprep.subr.mxu0 %v3243
        %v3245 = vand.u32 %v2345, 4294901760
        %3246 = vmatpush1.msra.mxu0 %v3245
        %v3247 = vand.u32 %v2344, 4294901760
        %3248 = vmatprep.subr.mxu0 %v3247
        %v3249 = vand.u32 %v2343, 4294901760
        %3250 = vmatpush1.msra.mxu0 %v3249
        %v3251 = vand.u32 %v2342, 4294901760
        %3252 = vmatprep.subr.mxu0 %v3251
        %v3253 = vand.u32 %v2341, 4294901760
        %3254 = vmatpush1.msra.mxu0 %v3253
        %v3255 = vand.u32 %v2340, 4294901760
        %3256 = vmatprep.subr.mxu0 %v3255
        %v3257 = vand.u32 %v2339, 4294901760
        %3258 = vmatpush1.msra.mxu0 %v3257
        %v3259 = vand.u32 %v2338, 4294901760
        %3260 = vmatprep.subr.mxu0 %v3259
        %v3261 = vand.u32 %v2337, 4294901760
        %3262 = vmatpush1.msra.mxu0 %v3261
        %v3263 = vand.u32 %v2336, 4294901760
        %3264 = vmatprep.subr.mxu0 %v3263
        %v3265 = vand.u32 %v2335, 4294901760
        %3266 = vmatpush1.msra.mxu0 %v3265
        %3267 = vmatprep.subr.mxu0 0.0
        %3268 = vmatpush2.msra.mxu0 0.0
        %3269 = vmatprep.subr.mxu0 0.0
        %3270 = vmatpush2.msra.mxu0 0.0
        %3271 = vmatprep.subr.mxu0 0.0
        %3272 = vmatpush2.msra.mxu0 0.0
        %3273 = vmatprep.subr.mxu0 0.0
        %3274 = vmatpush2.msra.mxu0 0.0
        %3275 = vmatprep.subr.mxu0 0.0
        %3276 = vmatpush2.msra.mxu0 0.0
        %3277 = vmatprep.subr.mxu0 0.0
        %3278 = vmatpush2.msra.mxu0 0.0
        %3279 = vmatprep.subr.mxu0 0.0
        %3280 = vmatpush2.msra.mxu0 0.0
        %3281 = vmatprep.subr.mxu0 0.0
        %3282 = vmatpush2.msra.mxu0 0.0
        %3283 = vmatprep.subr.mxu0 0.0
        %3284 = vmatpush2.msra.mxu0 0.0
        %3285 = vmatprep.subr.mxu0 0.0
        %3286 = vmatpush2.msra.mxu0 0.0
        %3287 = vmatprep.subr.mxu0 0.0
        %3288 = vmatpush2.msra.mxu0 0.0
        %3289 = vmatprep.subr.mxu0 0.0
        %3290 = vmatpush2.msra.mxu0 0.0
        %3291 = vmatprep.subr.mxu0 0.0
        %3292 = vmatpush2.msra.mxu0 0.0
        %3293 = vmatprep.subr.mxu0 0.0
        %3294 = vmatpush2.msra.mxu0 0.0
        %3295 = vmatprep.subr.mxu0 0.0
        %3296 = vmatpush2.msra.mxu0 0.0
        %3297 = vmatprep.subr.mxu0 0.0
        %3298 = vmatpush2.msra.mxu0 0.0
        %3299 = vmatprep.mubr.f32.mxu0 0.0
        %v3300 = vand.u32 %v2414, 4294901760
        %3301 = vmatmul.mubr.f32.gmra.mxu0 %v3300
        %v3302 = vpop.f32.mrf.mxu0
        %v3303 = vadd.f32 %v3175, %v3302
        %v3304 = vpop.f32.mrf.mxu0
        %v3305 = vadd.f32 %v3177, %v3304
        %3306 = vmatprep.mubr.f32.mxu0 0.0
        %v3307 = vand.u32 %v2417, 4294901760
        %3308 = vmatmul.mubr.f32.gmra.mxu0 %v3307
        %v3309 = vpop.f32.mrf.mxu0
        %v3310 = vadd.f32 %v3182, %v3309
        %v3311 = vpop.f32.mrf.mxu0
        %v3312 = vadd.f32 %v3184, %v3311
        %3313 = vmatprep.mubr.f32.mxu0 0.0
        %v3314 = vand.u32 %v2420, 4294901760
        %3315 = vmatmul.mubr.f32.gmra.mxu0 %v3314
        %v3316 = vpop.f32.mrf.mxu0
        %v3317 = vadd.f32 %v3189, %v3316
        %v3318 = vpop.f32.mrf.mxu0
        %v3319 = vadd.f32 %v3191, %v3318
        %3320 = vmatprep.mubr.f32.mxu0 0.0
        %v3321 = vand.u32 %v2423, 4294901760
        %3322 = vmatmul.mubr.f32.gmra.mxu0 %v3321
        %v3323 = vpop.f32.mrf.mxu0
        %v3324 = vadd.f32 %v3196, %v3323
        %v3325 = vpop.f32.mrf.mxu0
        %v3326 = vadd.f32 %v3198, %v3325
        %3327 = vmatprep.mubr.f32.mxu0 0.0
        %v3328 = vand.u32 %v2426, 4294901760
        %3329 = vmatmul.mubr.f32.gmra.mxu0 %v3328
        %v3330 = vpop.f32.mrf.mxu0
        %v3331 = vadd.f32 %v3203, %v3330
        %v3332 = vpop.f32.mrf.mxu0
        %v3333 = vadd.f32 %v3205, %v3332
        %3334 = vmatprep.mubr.f32.mxu0 0.0
        %v3335 = vand.u32 %v2429, 4294901760
        %3336 = vmatmul.mubr.f32.gmra.mxu0 %v3335
        %v3337 = vpop.f32.mrf.mxu0
        %v3338 = vadd.f32 %v3210, %v3337
        %v3339 = vpop.f32.mrf.mxu0
        %v3340 = vadd.f32 %v3212, %v3339
        %3341 = vmatprep.mubr.f32.mxu0 0.0
        %v3342 = vand.u32 %v2432, 4294901760
        %3343 = vmatmul.mubr.f32.gmra.mxu0 %v3342
        %v3344 = vpop.f32.mrf.mxu0
        %v3345 = vadd.f32 %v3217, %v3344
        %v3346 = vpop.f32.mrf.mxu0
        %v3347 = vadd.f32 %v3219, %v3346
        %3348 = vdwg.mxu0
        %v3349 = vtanh.pop %v3303
        %v3350 = vtanh.pop %v3305
        %v3351 = vtanh.pop %v3310
        %v3352 = vtanh.pop %v3312
        %v3353 = vtanh.pop %v3317
        %v3354 = vtanh.pop %v3319
        %v3355 = vtanh.pop %v3324
        %v3356 = vtanh.pop %v3326
        %v3357 = vtanh.pop %v3331
        %v3358 = vtanh.pop %v3333
        %v3359 = vtanh.pop %v3338
        %v3360 = vtanh.pop %v3340
        %v3361 = vtanh.pop %v3345
        %v3362 = vtanh.pop %v3347
        %v3363 = vmul.f32 %v3349, %v2349
        %v3364 = vmul.f32 %v3350, %v2350
        %v3365 = vmul.f32 %v3351, %v2351
        %v3366 = vmul.f32 %v3352, %v2352
        %v3367 = vmul.f32 %v3353, %v2353
        %v3368 = vmul.f32 %v3354, %v2354
        %v3369 = vmul.f32 %v3355, %v2355
        %v3370 = vmul.f32 %v3356, %v2356
        %v3371 = vmul.f32 %v3357, %v2357
        %v3372 = vmul.f32 %v3358, %v2358
        %v3373 = vmul.f32 %v3359, %v2359
        %v3374 = vmul.f32 %v3360, %v2360
        %v3375 = vmul.f32 %v3361, %v2361
        %v3376 = vmul.f32 %v3362, %v2362
        %v3377 = vadd.f32 %v2307, %v3363
        %v3378 = vadd.f32 %v2308, %v3364
        %v3379 = vadd.f32 %v2309, %v3365
        %v3380 = vadd.f32 %v2310, %v3366
        %v3381 = vadd.f32 %v2311, %v3367
        %v3382 = vadd.f32 %v2312, %v3368
        %v3383 = vadd.f32 %v2313, %v3369
        %v3384 = vadd.f32 %v2314, %v3370
        %v3385 = vadd.f32 %v2315, %v3371
        %v3386 = vadd.f32 %v2316, %v3372
        %v3387 = vadd.f32 %v2317, %v3373
        %v3388 = vadd.f32 %v2318, %v3374
        %v3389 = vadd.f32 %v2319, %v3375
        %v3390 = vadd.f32 %v2320, %v3376
        %s3391 = scalar_lea.vmem %s3, 56
        %v3392 = vld [vmem:[%s3391] sm:$0xff]
        %v3393 = vld [vmem:[%s3391 + $0x8] sm:$0xff]
        %v3394 = vld [vmem:[%s3391 + $0x10] sm:$0xff]
        %v3395 = vld [vmem:[%s3391 + $0x18] sm:$0xff]
        %v3396 = vld [vmem:[%s3391 + $0x20] sm:$0xff]
        %v3397 = vld [vmem:[%s3391 + $0x28] sm:$0xff]
        %v3398 = vld [vmem:[%s3391 + $0x30] sm:$0xff]
        %s3399 = scalar_lea.vmem %s4, 56
        %v3400 = vld [vmem:[%s3399] sm:$0xff]
        %v3401 = vld [vmem:[%s3399 + $0x8] sm:$0xff]
        %v3402 = vld [vmem:[%s3399 + $0x10] sm:$0xff]
        %v3403 = vld [vmem:[%s3399 + $0x18] sm:$0xff]
        %v3404 = vld [vmem:[%s3399 + $0x20] sm:$0xff]
        %v3405 = vld [vmem:[%s3399 + $0x28] sm:$0xff]
        %v3406 = vld [vmem:[%s3399 + $0x30] sm:$0xff]
        %3408 = vset.pattern.permute.xlu0 0
        %3409 = vperm.xlu0 %3408, %v3400
        %v3410 = vpop.permute.xlu0 %3409
        %3413 = vset.pattern.permute.xlu0 0
        %3414 = vperm.xlu0 %3413, %v3401
        %v3415 = vpop.permute.xlu0 %3414
        %3418 = vset.pattern.permute.xlu0 0
        %3419 = vperm.xlu0 %3418, %v3402
        %v3420 = vpop.permute.xlu0 %3419
        %3423 = vset.pattern.permute.xlu0 0
        %3424 = vperm.xlu0 %3423, %v3403
        %v3425 = vpop.permute.xlu0 %3424
        %3428 = vset.pattern.permute.xlu0 0
        %3429 = vperm.xlu0 %3428, %v3404
        %v3430 = vpop.permute.xlu0 %3429
        %3433 = vset.pattern.permute.xlu0 0
        %3434 = vperm.xlu0 %3433, %v3405
        %v3435 = vpop.permute.xlu0 %3434
        %3438 = vset.pattern.permute.xlu0 0
        %3439 = vperm.xlu0 %3438, %v3406
        %v3440 = vpop.permute.xlu0 %3439
        %v3443 = vsel %vm2412, %v3392, 0
        %v3446 = vsel %vm2412, %v3393, 0
        %v3449 = vsel %vm2412, %v3394, 0
        %v3452 = vsel %vm2412, %v3395, 0
        %v3455 = vsel %vm2412, %v3396, 0
        %v3458 = vsel %vm2412, %v3397, 0
        %v3461 = vsel %vm2412, %v3398, 0
        %3463 = vmatprep.subr.mxu0 0.0
        %3464 = vmatpush1.msra.mxu0 0.0
        %3465 = vmatprep.subr.mxu0 0.0
        %3466 = vmatpush1.msra.mxu0 0.0
        %3467 = vmatprep.subr.mxu0 0.0
        %3468 = vmatpush1.msra.mxu0 0.0
        %3469 = vmatprep.subr.mxu0 0.0
        %3470 = vmatpush1.msra.mxu0 0.0
        %3471 = vmatprep.subr.mxu0 0.0
        %3472 = vmatpush1.msra.mxu0 0.0
        %3473 = vmatprep.subr.mxu0 0.0
        %3474 = vmatpush1.msra.mxu0 0.0
        %3475 = vmatprep.subr.mxu0 0.0
        %3476 = vmatpush1.msra.mxu0 0.0
        %3477 = vmatprep.subr.mxu0 0.0
        %3478 = vmatpush1.msra.mxu0 0.0
        %3479 = vmatprep.subr.mxu0 0.0
        %3480 = vmatpush1.msra.mxu0 0.0
        %v3481 = vand.u32 %v3390, 4294901760
        %3482 = vmatprep.subr.mxu0 %v3481
        %v3483 = vand.u32 %v3389, 4294901760
        %3484 = vmatpush1.msra.mxu0 %v3483
        %v3485 = vand.u32 %v3388, 4294901760
        %3486 = vmatprep.subr.mxu0 %v3485
        %v3487 = vand.u32 %v3387, 4294901760
        %3488 = vmatpush1.msra.mxu0 %v3487
        %v3489 = vand.u32 %v3386, 4294901760
        %3490 = vmatprep.subr.mxu0 %v3489
        %v3491 = vand.u32 %v3385, 4294901760
        %3492 = vmatpush1.msra.mxu0 %v3491
        %v3493 = vand.u32 %v3384, 4294901760
        %3494 = vmatprep.subr.mxu0 %v3493
        %v3495 = vand.u32 %v3383, 4294901760
        %3496 = vmatpush1.msra.mxu0 %v3495
        %v3497 = vand.u32 %v3382, 4294901760
        %3498 = vmatprep.subr.mxu0 %v3497
        %v3499 = vand.u32 %v3381, 4294901760
        %3500 = vmatpush1.msra.mxu0 %v3499
        %v3501 = vand.u32 %v3380, 4294901760
        %3502 = vmatprep.subr.mxu0 %v3501
        %v3503 = vand.u32 %v3379, 4294901760
        %3504 = vmatpush1.msra.mxu0 %v3503
        %v3505 = vand.u32 %v3378, 4294901760
        %3506 = vmatprep.subr.mxu0 %v3505
        %v3507 = vand.u32 %v3377, 4294901760
        %3508 = vmatpush1.msra.mxu0 %v3507
        %3509 = vmatprep.subr.mxu0 0.0
        %3510 = vmatpush2.msra.mxu0 0.0
        %3511 = vmatprep.subr.mxu0 0.0
        %3512 = vmatpush2.msra.mxu0 0.0
        %3513 = vmatprep.subr.mxu0 0.0
        %3514 = vmatpush2.msra.mxu0 0.0
        %3515 = vmatprep.subr.mxu0 0.0
        %3516 = vmatpush2.msra.mxu0 0.0
        %3517 = vmatprep.subr.mxu0 0.0
        %3518 = vmatpush2.msra.mxu0 0.0
        %3519 = vmatprep.subr.mxu0 0.0
        %3520 = vmatpush2.msra.mxu0 0.0
        %3521 = vmatprep.subr.mxu0 0.0
        %3522 = vmatpush2.msra.mxu0 0.0
        %3523 = vmatprep.subr.mxu0 0.0
        %3524 = vmatpush2.msra.mxu0 0.0
        %3525 = vmatprep.subr.mxu0 0.0
        %3526 = vmatpush2.msra.mxu0 0.0
        %3527 = vmatprep.subr.mxu0 0.0
        %3528 = vmatpush2.msra.mxu0 0.0
        %3529 = vmatprep.subr.mxu0 0.0
        %3530 = vmatpush2.msra.mxu0 0.0
        %3531 = vmatprep.subr.mxu0 0.0
        %3532 = vmatpush2.msra.mxu0 0.0
        %3533 = vmatprep.subr.mxu0 0.0
        %3534 = vmatpush2.msra.mxu0 0.0
        %3535 = vmatprep.subr.mxu0 0.0
        %3536 = vmatpush2.msra.mxu0 0.0
        %3537 = vmatprep.subr.mxu0 0.0
        %3538 = vmatpush2.msra.mxu0 0.0
        %3539 = vmatprep.subr.mxu0 0.0
        %3540 = vmatpush2.msra.mxu0 0.0
        %3541 = vmatprep.mubr.f32.mxu0 0.0
        %v3542 = vand.u32 %v3443, 4294901760
        %v3543 = vsub.f32 %v3443, %v3542
        %v3544 = vand.u32 %v3543, 4294901760
        %v3545 = vsub.f32 %v3543, %v3544
        %v3546 = vand.u32 %v3545, 4294901760
        %3547 = vmatmul.mubr.f32.gmra.mxu0 %v3546
        %v3548 = vpop.f32.mrf.mxu0
        %v3549 = vadd.f32 %v3410, %v3548
        %v3550 = vpop.f32.mrf.mxu0
        %v3551 = vadd.f32 %v3410, %v3550
        %3552 = vmatprep.mubr.f32.mxu0 0.0
        %v3553 = vand.u32 %v3446, 4294901760
        %v3554 = vsub.f32 %v3446, %v3553
        %v3555 = vand.u32 %v3554, 4294901760
        %v3556 = vsub.f32 %v3554, %v3555
        %v3557 = vand.u32 %v3556, 4294901760
        %3558 = vmatmul.mubr.f32.gmra.mxu0 %v3557
        %v3559 = vpop.f32.mrf.mxu0
        %v3560 = vadd.f32 %v3415, %v3559
        %v3561 = vpop.f32.mrf.mxu0
        %v3562 = vadd.f32 %v3415, %v3561
        %3563 = vmatprep.mubr.f32.mxu0 0.0
        %v3564 = vand.u32 %v3449, 4294901760
        %v3565 = vsub.f32 %v3449, %v3564
        %v3566 = vand.u32 %v3565, 4294901760
        %v3567 = vsub.f32 %v3565, %v3566
        %v3568 = vand.u32 %v3567, 4294901760
        %3569 = vmatmul.mubr.f32.gmra.mxu0 %v3568
        %v3570 = vpop.f32.mrf.mxu0
        %v3571 = vadd.f32 %v3420, %v3570
        %v3572 = vpop.f32.mrf.mxu0
        %v3573 = vadd.f32 %v3420, %v3572
        %3574 = vmatprep.mubr.f32.mxu0 0.0
        %v3575 = vand.u32 %v3452, 4294901760
        %v3576 = vsub.f32 %v3452, %v3575
        %v3577 = vand.u32 %v3576, 4294901760
        %v3578 = vsub.f32 %v3576, %v3577
        %v3579 = vand.u32 %v3578, 4294901760
        %3580 = vmatmul.mubr.f32.gmra.mxu0 %v3579
        %v3581 = vpop.f32.mrf.mxu0
        %v3582 = vadd.f32 %v3425, %v3581
        %v3583 = vpop.f32.mrf.mxu0
        %v3584 = vadd.f32 %v3425, %v3583
        %3585 = vmatprep.mubr.f32.mxu0 0.0
        %v3586 = vand.u32 %v3455, 4294901760
        %v3587 = vsub.f32 %v3455, %v3586
        %v3588 = vand.u32 %v3587, 4294901760
        %v3589 = vsub.f32 %v3587, %v3588
        %v3590 = vand.u32 %v3589, 4294901760
        %3591 = vmatmul.mubr.f32.gmra.mxu0 %v3590
        %v3592 = vpop.f32.mrf.mxu0
        %v3593 = vadd.f32 %v3430, %v3592
        %v3594 = vpop.f32.mrf.mxu0
        %v3595 = vadd.f32 %v3430, %v3594
        %3596 = vmatprep.mubr.f32.mxu0 0.0
        %v3597 = vand.u32 %v3458, 4294901760
        %v3598 = vsub.f32 %v3458, %v3597
        %v3599 = vand.u32 %v3598, 4294901760
        %v3600 = vsub.f32 %v3598, %v3599
        %v3601 = vand.u32 %v3600, 4294901760
        %3602 = vmatmul.mubr.f32.gmra.mxu0 %v3601
        %v3603 = vpop.f32.mrf.mxu0
        %v3604 = vadd.f32 %v3435, %v3603
        %v3605 = vpop.f32.mrf.mxu0
        %v3606 = vadd.f32 %v3435, %v3605
        %3607 = vmatprep.mubr.f32.mxu0 0.0
        %v3608 = vand.u32 %v3461, 4294901760
        %v3609 = vsub.f32 %v3461, %v3608
        %v3610 = vand.u32 %v3609, 4294901760
        %v3611 = vsub.f32 %v3609, %v3610
        %v3612 = vand.u32 %v3611, 4294901760
        %3613 = vmatmul.mubr.f32.gmra.mxu0 %v3612
        %v3614 = vpop.f32.mrf.mxu0
        %v3615 = vadd.f32 %v3440, %v3614
        %v3616 = vpop.f32.mrf.mxu0
        %v3617 = vadd.f32 %v3440, %v3616
        %3618 = vdwg.mxu0
        %3619 = vmatprep.subr.mxu0 0.0
        %3620 = vmatpush1.msra.mxu0 0.0
        %3621 = vmatprep.subr.mxu0 0.0
        %3622 = vmatpush1.msra.mxu0 0.0
        %3623 = vmatprep.subr.mxu0 0.0
        %3624 = vmatpush1.msra.mxu0 0.0
        %3625 = vmatprep.subr.mxu0 0.0
        %3626 = vmatpush1.msra.mxu0 0.0
        %3627 = vmatprep.subr.mxu0 0.0
        %3628 = vmatpush1.msra.mxu0 0.0
        %3629 = vmatprep.subr.mxu0 0.0
        %3630 = vmatpush1.msra.mxu0 0.0
        %3631 = vmatprep.subr.mxu0 0.0
        %3632 = vmatpush1.msra.mxu0 0.0
        %3633 = vmatprep.subr.mxu0 0.0
        %3634 = vmatpush1.msra.mxu0 0.0
        %3635 = vmatprep.subr.mxu0 0.0
        %3636 = vmatpush1.msra.mxu0 0.0
        %v3637 = vand.u32 %v3390, 4294901760
        %v3638 = vsub.f32 %v3390, %v3637
        %v3639 = vand.u32 %v3638, 4294901760
        %v3640 = vsub.f32 %v3638, %v3639
        %v3641 = vand.u32 %v3640, 4294901760
        %3642 = vmatprep.subr.mxu0 %v3641
        %v3643 = vand.u32 %v3389, 4294901760
        %v3644 = vsub.f32 %v3389, %v3643
        %v3645 = vand.u32 %v3644, 4294901760
        %v3646 = vsub.f32 %v3644, %v3645
        %v3647 = vand.u32 %v3646, 4294901760
        %3648 = vmatpush1.msra.mxu0 %v3647
        %v3649 = vand.u32 %v3388, 4294901760
        %v3650 = vsub.f32 %v3388, %v3649
        %v3651 = vand.u32 %v3650, 4294901760
        %v3652 = vsub.f32 %v3650, %v3651
        %v3653 = vand.u32 %v3652, 4294901760
        %3654 = vmatprep.subr.mxu0 %v3653
        %v3655 = vand.u32 %v3387, 4294901760
        %v3656 = vsub.f32 %v3387, %v3655
        %v3657 = vand.u32 %v3656, 4294901760
        %v3658 = vsub.f32 %v3656, %v3657
        %v3659 = vand.u32 %v3658, 4294901760
        %3660 = vmatpush1.msra.mxu0 %v3659
        %v3661 = vand.u32 %v3386, 4294901760
        %v3662 = vsub.f32 %v3386, %v3661
        %v3663 = vand.u32 %v3662, 4294901760
        %v3664 = vsub.f32 %v3662, %v3663
        %v3665 = vand.u32 %v3664, 4294901760
        %3666 = vmatprep.subr.mxu0 %v3665
        %v3667 = vand.u32 %v3385, 4294901760
        %v3668 = vsub.f32 %v3385, %v3667
        %v3669 = vand.u32 %v3668, 4294901760
        %v3670 = vsub.f32 %v3668, %v3669
        %v3671 = vand.u32 %v3670, 4294901760
        %3672 = vmatpush1.msra.mxu0 %v3671
        %v3673 = vand.u32 %v3384, 4294901760
        %v3674 = vsub.f32 %v3384, %v3673
        %v3675 = vand.u32 %v3674, 4294901760
        %v3676 = vsub.f32 %v3674, %v3675
        %v3677 = vand.u32 %v3676, 4294901760
        %3678 = vmatprep.subr.mxu0 %v3677
        %v3679 = vand.u32 %v3383, 4294901760
        %v3680 = vsub.f32 %v3383, %v3679
        %v3681 = vand.u32 %v3680, 4294901760
        %v3682 = vsub.f32 %v3680, %v3681
        %v3683 = vand.u32 %v3682, 4294901760
        %3684 = vmatpush1.msra.mxu0 %v3683
        %v3685 = vand.u32 %v3382, 4294901760
        %v3686 = vsub.f32 %v3382, %v3685
        %v3687 = vand.u32 %v3686, 4294901760
        %v3688 = vsub.f32 %v3686, %v3687
        %v3689 = vand.u32 %v3688, 4294901760
        %3690 = vmatprep.subr.mxu0 %v3689
        %v3691 = vand.u32 %v3381, 4294901760
        %v3692 = vsub.f32 %v3381, %v3691
        %v3693 = vand.u32 %v3692, 4294901760
        %v3694 = vsub.f32 %v3692, %v3693
        %v3695 = vand.u32 %v3694, 4294901760
        %3696 = vmatpush1.msra.mxu0 %v3695
        %v3697 = vand.u32 %v3380, 4294901760
        %v3698 = vsub.f32 %v3380, %v3697
        %v3699 = vand.u32 %v3698, 4294901760
        %v3700 = vsub.f32 %v3698, %v3699
        %v3701 = vand.u32 %v3700, 4294901760
        %3702 = vmatprep.subr.mxu0 %v3701
        %v3703 = vand.u32 %v3379, 4294901760
        %v3704 = vsub.f32 %v3379, %v3703
        %v3705 = vand.u32 %v3704, 4294901760
        %v3706 = vsub.f32 %v3704, %v3705
        %v3707 = vand.u32 %v3706, 4294901760
        %3708 = vmatpush1.msra.mxu0 %v3707
        %v3709 = vand.u32 %v3378, 4294901760
        %v3710 = vsub.f32 %v3378, %v3709
        %v3711 = vand.u32 %v3710, 4294901760
        %v3712 = vsub.f32 %v3710, %v3711
        %v3713 = vand.u32 %v3712, 4294901760
        %3714 = vmatprep.subr.mxu0 %v3713
        %v3715 = vand.u32 %v3377, 4294901760
        %v3716 = vsub.f32 %v3377, %v3715
        %v3717 = vand.u32 %v3716, 4294901760
        %v3718 = vsub.f32 %v3716, %v3717
        %v3719 = vand.u32 %v3718, 4294901760
        %3720 = vmatpush1.msra.mxu0 %v3719
        %3721 = vmatprep.subr.mxu0 0.0
        %3722 = vmatpush2.msra.mxu0 0.0
        %3723 = vmatprep.subr.mxu0 0.0
        %3724 = vmatpush2.msra.mxu0 0.0
        %3725 = vmatprep.subr.mxu0 0.0
        %3726 = vmatpush2.msra.mxu0 0.0
        %3727 = vmatprep.subr.mxu0 0.0
        %3728 = vmatpush2.msra.mxu0 0.0
        %3729 = vmatprep.subr.mxu0 0.0
        %3730 = vmatpush2.msra.mxu0 0.0
        %3731 = vmatprep.subr.mxu0 0.0
        %3732 = vmatpush2.msra.mxu0 0.0
        %3733 = vmatprep.subr.mxu0 0.0
        %3734 = vmatpush2.msra.mxu0 0.0
        %3735 = vmatprep.subr.mxu0 0.0
        %3736 = vmatpush2.msra.mxu0 0.0
        %3737 = vmatprep.subr.mxu0 0.0
        %3738 = vmatpush2.msra.mxu0 0.0
        %3739 = vmatprep.subr.mxu0 0.0
        %3740 = vmatpush2.msra.mxu0 0.0
        %3741 = vmatprep.subr.mxu0 0.0
        %3742 = vmatpush2.msra.mxu0 0.0
        %3743 = vmatprep.subr.mxu0 0.0
        %3744 = vmatpush2.msra.mxu0 0.0
        %3745 = vmatprep.subr.mxu0 0.0
        %3746 = vmatpush2.msra.mxu0 0.0
        %3747 = vmatprep.subr.mxu0 0.0
        %3748 = vmatpush2.msra.mxu0 0.0
        %3749 = vmatprep.subr.mxu0 0.0
        %3750 = vmatpush2.msra.mxu0 0.0
        %3751 = vmatprep.subr.mxu0 0.0
        %3752 = vmatpush2.msra.mxu0 0.0
        %3753 = vmatprep.mubr.f32.mxu0 0.0
        %v3754 = vand.u32 %v3443, 4294901760
        %3755 = vmatmul.mubr.f32.gmra.mxu0 %v3754
        %v3756 = vpop.f32.mrf.mxu0
        %v3757 = vadd.f32 %v3549, %v3756
        %v3758 = vpop.f32.mrf.mxu0
        %v3759 = vadd.f32 %v3551, %v3758
        %3760 = vmatprep.mubr.f32.mxu0 0.0
        %v3761 = vand.u32 %v3446, 4294901760
        %3762 = vmatmul.mubr.f32.gmra.mxu0 %v3761
        %v3763 = vpop.f32.mrf.mxu0
        %v3764 = vadd.f32 %v3560, %v3763
        %v3765 = vpop.f32.mrf.mxu0
        %v3766 = vadd.f32 %v3562, %v3765
        %3767 = vmatprep.mubr.f32.mxu0 0.0
        %v3768 = vand.u32 %v3449, 4294901760
        %3769 = vmatmul.mubr.f32.gmra.mxu0 %v3768
        %v3770 = vpop.f32.mrf.mxu0
        %v3771 = vadd.f32 %v3571, %v3770
        %v3772 = vpop.f32.mrf.mxu0
        %v3773 = vadd.f32 %v3573, %v3772
        %3774 = vmatprep.mubr.f32.mxu0 0.0
        %v3775 = vand.u32 %v3452, 4294901760
        %3776 = vmatmul.mubr.f32.gmra.mxu0 %v3775
        %v3777 = vpop.f32.mrf.mxu0
        %v3778 = vadd.f32 %v3582, %v3777
        %v3779 = vpop.f32.mrf.mxu0
        %v3780 = vadd.f32 %v3584, %v3779
        %3781 = vmatprep.mubr.f32.mxu0 0.0
        %v3782 = vand.u32 %v3455, 4294901760
        %3783 = vmatmul.mubr.f32.gmra.mxu0 %v3782
        %v3784 = vpop.f32.mrf.mxu0
        %v3785 = vadd.f32 %v3593, %v3784
        %v3786 = vpop.f32.mrf.mxu0
        %v3787 = vadd.f32 %v3595, %v3786
        %3788 = vmatprep.mubr.f32.mxu0 0.0
        %v3789 = vand.u32 %v3458, 4294901760
        %3790 = vmatmul.mubr.f32.gmra.mxu0 %v3789
        %v3791 = vpop.f32.mrf.mxu0
        %v3792 = vadd.f32 %v3604, %v3791
        %v3793 = vpop.f32.mrf.mxu0
        %v3794 = vadd.f32 %v3606, %v3793
        %3795 = vmatprep.mubr.f32.mxu0 0.0
        %v3796 = vand.u32 %v3461, 4294901760
        %3797 = vmatmul.mubr.f32.gmra.mxu0 %v3796
        %v3798 = vpop.f32.mrf.mxu0
        %v3799 = vadd.f32 %v3615, %v3798
        %v3800 = vpop.f32.mrf.mxu0
        %v3801 = vadd.f32 %v3617, %v3800
        %3802 = vdwg.mxu0
        %3803 = vmatprep.subr.mxu0 0.0
        %3804 = vmatpush1.msra.mxu0 0.0
        %3805 = vmatprep.subr.mxu0 0.0
        %3806 = vmatpush1.msra.mxu0 0.0
        %3807 = vmatprep.subr.mxu0 0.0
        %3808 = vmatpush1.msra.mxu0 0.0
        %3809 = vmatprep.subr.mxu0 0.0
        %3810 = vmatpush1.msra.mxu0 0.0
        %3811 = vmatprep.subr.mxu0 0.0
        %3812 = vmatpush1.msra.mxu0 0.0
        %3813 = vmatprep.subr.mxu0 0.0
        %3814 = vmatpush1.msra.mxu0 0.0
        %3815 = vmatprep.subr.mxu0 0.0
        %3816 = vmatpush1.msra.mxu0 0.0
        %3817 = vmatprep.subr.mxu0 0.0
        %3818 = vmatpush1.msra.mxu0 0.0
        %3819 = vmatprep.subr.mxu0 0.0
        %3820 = vmatpush1.msra.mxu0 0.0
        %v3821 = vand.u32 %v3390, 4294901760
        %v3822 = vsub.f32 %v3390, %v3821
        %3823 = vmatprep.subr.mxu0 %v3822
        %v3824 = vand.u32 %v3389, 4294901760
        %v3825 = vsub.f32 %v3389, %v3824
        %3826 = vmatpush1.msra.mxu0 %v3825
        %v3827 = vand.u32 %v3388, 4294901760
        %v3828 = vsub.f32 %v3388, %v3827
        %3829 = vmatprep.subr.mxu0 %v3828
        %v3830 = vand.u32 %v3387, 4294901760
        %v3831 = vsub.f32 %v3387, %v3830
        %3832 = vmatpush1.msra.mxu0 %v3831
        %v3833 = vand.u32 %v3386, 4294901760
        %v3834 = vsub.f32 %v3386, %v3833
        %3835 = vmatprep.subr.mxu0 %v3834
        %v3836 = vand.u32 %v3385, 4294901760
        %v3837 = vsub.f32 %v3385, %v3836
        %3838 = vmatpush1.msra.mxu0 %v3837
        %v3839 = vand.u32 %v3384, 4294901760
        %v3840 = vsub.f32 %v3384, %v3839
        %3841 = vmatprep.subr.mxu0 %v3840
        %v3842 = vand.u32 %v3383, 4294901760
        %v3843 = vsub.f32 %v3383, %v3842
        %3844 = vmatpush1.msra.mxu0 %v3843
        %v3845 = vand.u32 %v3382, 4294901760
        %v3846 = vsub.f32 %v3382, %v3845
        %3847 = vmatprep.subr.mxu0 %v3846
        %v3848 = vand.u32 %v3381, 4294901760
        %v3849 = vsub.f32 %v3381, %v3848
        %3850 = vmatpush1.msra.mxu0 %v3849
        %v3851 = vand.u32 %v3380, 4294901760
        %v3852 = vsub.f32 %v3380, %v3851
        %3853 = vmatprep.subr.mxu0 %v3852
        %v3854 = vand.u32 %v3379, 4294901760
        %v3855 = vsub.f32 %v3379, %v3854
        %3856 = vmatpush1.msra.mxu0 %v3855
        %v3857 = vand.u32 %v3378, 4294901760
        %v3858 = vsub.f32 %v3378, %v3857
        %3859 = vmatprep.subr.mxu0 %v3858
        %v3860 = vand.u32 %v3377, 4294901760
        %v3861 = vsub.f32 %v3377, %v3860
        %3862 = vmatpush1.msra.mxu0 %v3861
        %3863 = vmatprep.subr.mxu0 0.0
        %3864 = vmatpush2.msra.mxu0 0.0
        %3865 = vmatprep.subr.mxu0 0.0
        %3866 = vmatpush2.msra.mxu0 0.0
        %3867 = vmatprep.subr.mxu0 0.0
        %3868 = vmatpush2.msra.mxu0 0.0
        %3869 = vmatprep.subr.mxu0 0.0
        %3870 = vmatpush2.msra.mxu0 0.0
        %3871 = vmatprep.subr.mxu0 0.0
        %3872 = vmatpush2.msra.mxu0 0.0
        %3873 = vmatprep.subr.mxu0 0.0
        %3874 = vmatpush2.msra.mxu0 0.0
        %3875 = vmatprep.subr.mxu0 0.0
        %3876 = vmatpush2.msra.mxu0 0.0
        %3877 = vmatprep.subr.mxu0 0.0
        %3878 = vmatpush2.msra.mxu0 0.0
        %3879 = vmatprep.subr.mxu0 0.0
        %3880 = vmatpush2.msra.mxu0 0.0
        %3881 = vmatprep.subr.mxu0 0.0
        %3882 = vmatpush2.msra.mxu0 0.0
        %3883 = vmatprep.subr.mxu0 0.0
        %3884 = vmatpush2.msra.mxu0 0.0
        %3885 = vmatprep.subr.mxu0 0.0
        %3886 = vmatpush2.msra.mxu0 0.0
        %3887 = vmatprep.subr.mxu0 0.0
        %3888 = vmatpush2.msra.mxu0 0.0
        %3889 = vmatprep.subr.mxu0 0.0
        %3890 = vmatpush2.msra.mxu0 0.0
        %3891 = vmatprep.subr.mxu0 0.0
        %3892 = vmatpush2.msra.mxu0 0.0
        %3893 = vmatprep.subr.mxu0 0.0
        %3894 = vmatpush2.msra.mxu0 0.0
        %3895 = vmatprep.mubr.f32.mxu0 0.0
        %v3896 = vand.u32 %v3443, 4294901760
        %v3897 = vsub.f32 %v3443, %v3896
        %3898 = vmatmul.mubr.f32.gmra.mxu0 %v3897
        %v3899 = vpop.f32.mrf.mxu0
        %v3900 = vadd.f32 %v3757, %v3899
        %v3901 = vpop.f32.mrf.mxu0
        %v3902 = vadd.f32 %v3759, %v3901
        %3903 = vmatprep.mubr.f32.mxu0 0.0
        %v3904 = vand.u32 %v3446, 4294901760
        %v3905 = vsub.f32 %v3446, %v3904
        %3906 = vmatmul.mubr.f32.gmra.mxu0 %v3905
        %v3907 = vpop.f32.mrf.mxu0
        %v3908 = vadd.f32 %v3764, %v3907
        %v3909 = vpop.f32.mrf.mxu0
        %v3910 = vadd.f32 %v3766, %v3909
        %3911 = vmatprep.mubr.f32.mxu0 0.0
        %v3912 = vand.u32 %v3449, 4294901760
        %v3913 = vsub.f32 %v3449, %v3912
        %3914 = vmatmul.mubr.f32.gmra.mxu0 %v3913
        %v3915 = vpop.f32.mrf.mxu0
        %v3916 = vadd.f32 %v3771, %v3915
        %v3917 = vpop.f32.mrf.mxu0
        %v3918 = vadd.f32 %v3773, %v3917
        %3919 = vmatprep.mubr.f32.mxu0 0.0
        %v3920 = vand.u32 %v3452, 4294901760
        %v3921 = vsub.f32 %v3452, %v3920
        %3922 = vmatmul.mubr.f32.gmra.mxu0 %v3921
        %v3923 = vpop.f32.mrf.mxu0
        %v3924 = vadd.f32 %v3778, %v3923
        %v3925 = vpop.f32.mrf.mxu0
        %v3926 = vadd.f32 %v3780, %v3925
        %3927 = vmatprep.mubr.f32.mxu0 0.0
        %v3928 = vand.u32 %v3455, 4294901760
        %v3929 = vsub.f32 %v3455, %v3928
        %3930 = vmatmul.mubr.f32.gmra.mxu0 %v3929
        %v3931 = vpop.f32.mrf.mxu0
        %v3932 = vadd.f32 %v3785, %v3931
        %v3933 = vpop.f32.mrf.mxu0
        %v3934 = vadd.f32 %v3787, %v3933
        %3935 = vmatprep.mubr.f32.mxu0 0.0
        %v3936 = vand.u32 %v3458, 4294901760
        %v3937 = vsub.f32 %v3458, %v3936
        %3938 = vmatmul.mubr.f32.gmra.mxu0 %v3937
        %v3939 = vpop.f32.mrf.mxu0
        %v3940 = vadd.f32 %v3792, %v3939
        %v3941 = vpop.f32.mrf.mxu0
        %v3942 = vadd.f32 %v3794, %v3941
        %3943 = vmatprep.mubr.f32.mxu0 0.0
        %v3944 = vand.u32 %v3461, 4294901760
        %v3945 = vsub.f32 %v3461, %v3944
        %3946 = vmatmul.mubr.f32.gmra.mxu0 %v3945
        %v3947 = vpop.f32.mrf.mxu0
        %v3948 = vadd.f32 %v3799, %v3947
        %v3949 = vpop.f32.mrf.mxu0
        %v3950 = vadd.f32 %v3801, %v3949
        %3951 = vdwg.mxu0
        %3952 = vmatprep.subr.mxu0 0.0
        %3953 = vmatpush1.msra.mxu0 0.0
        %3954 = vmatprep.subr.mxu0 0.0
        %3955 = vmatpush1.msra.mxu0 0.0
        %3956 = vmatprep.subr.mxu0 0.0
        %3957 = vmatpush1.msra.mxu0 0.0
        %3958 = vmatprep.subr.mxu0 0.0
        %3959 = vmatpush1.msra.mxu0 0.0
        %3960 = vmatprep.subr.mxu0 0.0
        %3961 = vmatpush1.msra.mxu0 0.0
        %3962 = vmatprep.subr.mxu0 0.0
        %3963 = vmatpush1.msra.mxu0 0.0
        %3964 = vmatprep.subr.mxu0 0.0
        %3965 = vmatpush1.msra.mxu0 0.0
        %3966 = vmatprep.subr.mxu0 0.0
        %3967 = vmatpush1.msra.mxu0 0.0
        %3968 = vmatprep.subr.mxu0 0.0
        %3969 = vmatpush1.msra.mxu0 0.0
        %v3970 = vand.u32 %v3390, 4294901760
        %3971 = vmatprep.subr.mxu0 %v3970
        %v3972 = vand.u32 %v3389, 4294901760
        %3973 = vmatpush1.msra.mxu0 %v3972
        %v3974 = vand.u32 %v3388, 4294901760
        %3975 = vmatprep.subr.mxu0 %v3974
        %v3976 = vand.u32 %v3387, 4294901760
        %3977 = vmatpush1.msra.mxu0 %v3976
        %v3978 = vand.u32 %v3386, 4294901760
        %3979 = vmatprep.subr.mxu0 %v3978
        %v3980 = vand.u32 %v3385, 4294901760
        %3981 = vmatpush1.msra.mxu0 %v3980
        %v3982 = vand.u32 %v3384, 4294901760
        %3983 = vmatprep.subr.mxu0 %v3982
        %v3984 = vand.u32 %v3383, 4294901760
        %3985 = vmatpush1.msra.mxu0 %v3984
        %v3986 = vand.u32 %v3382, 4294901760
        %3987 = vmatprep.subr.mxu0 %v3986
        %v3988 = vand.u32 %v3381, 4294901760
        %3989 = vmatpush1.msra.mxu0 %v3988
        %v3990 = vand.u32 %v3380, 4294901760
        %3991 = vmatprep.subr.mxu0 %v3990
        %v3992 = vand.u32 %v3379, 4294901760
        %3993 = vmatpush1.msra.mxu0 %v3992
        %v3994 = vand.u32 %v3378, 4294901760
        %3995 = vmatprep.subr.mxu0 %v3994
        %v3996 = vand.u32 %v3377, 4294901760
        %3997 = vmatpush1.msra.mxu0 %v3996
        %3998 = vmatprep.subr.mxu0 0.0
        %3999 = vmatpush2.msra.mxu0 0.0
        %4000 = vmatprep.subr.mxu0 0.0
        %4001 = vmatpush2.msra.mxu0 0.0
        %4002 = vmatprep.subr.mxu0 0.0
        %4003 = vmatpush2.msra.mxu0 0.0
        %4004 = vmatprep.subr.mxu0 0.0
        %4005 = vmatpush2.msra.mxu0 0.0
        %4006 = vmatprep.subr.mxu0 0.0
        %4007 = vmatpush2.msra.mxu0 0.0
        %4008 = vmatprep.subr.mxu0 0.0
        %4009 = vmatpush2.msra.mxu0 0.0
        %4010 = vmatprep.subr.mxu0 0.0
        %4011 = vmatpush2.msra.mxu0 0.0
        %4012 = vmatprep.subr.mxu0 0.0
        %4013 = vmatpush2.msra.mxu0 0.0
        %4014 = vmatprep.subr.mxu0 0.0
        %4015 = vmatpush2.msra.mxu0 0.0
        %4016 = vmatprep.subr.mxu0 0.0
        %4017 = vmatpush2.msra.mxu0 0.0
        %4018 = vmatprep.subr.mxu0 0.0
        %4019 = vmatpush2.msra.mxu0 0.0
        %4020 = vmatprep.subr.mxu0 0.0
        %4021 = vmatpush2.msra.mxu0 0.0
        %4022 = vmatprep.subr.mxu0 0.0
        %4023 = vmatpush2.msra.mxu0 0.0
        %4024 = vmatprep.subr.mxu0 0.0
        %4025 = vmatpush2.msra.mxu0 0.0
        %4026 = vmatprep.subr.mxu0 0.0
        %4027 = vmatpush2.msra.mxu0 0.0
        %4028 = vmatprep.subr.mxu0 0.0
        %4029 = vmatpush2.msra.mxu0 0.0
        %4030 = vmatprep.mubr.f32.mxu0 0.0
        %v4031 = vand.u32 %v3443, 4294901760
        %v4032 = vsub.f32 %v3443, %v4031
        %v4033 = vand.u32 %v4032, 4294901760
        %4034 = vmatmul.mubr.f32.gmra.mxu0 %v4033
        %v4035 = vpop.f32.mrf.mxu0
        %v4036 = vadd.f32 %v3900, %v4035
        %v4037 = vpop.f32.mrf.mxu0
        %v4038 = vadd.f32 %v3902, %v4037
        %4039 = vmatprep.mubr.f32.mxu0 0.0
        %v4040 = vand.u32 %v3446, 4294901760
        %v4041 = vsub.f32 %v3446, %v4040
        %v4042 = vand.u32 %v4041, 4294901760
        %4043 = vmatmul.mubr.f32.gmra.mxu0 %v4042
        %v4044 = vpop.f32.mrf.mxu0
        %v4045 = vadd.f32 %v3908, %v4044
        %v4046 = vpop.f32.mrf.mxu0
        %v4047 = vadd.f32 %v3910, %v4046
        %4048 = vmatprep.mubr.f32.mxu0 0.0
        %v4049 = vand.u32 %v3449, 4294901760
        %v4050 = vsub.f32 %v3449, %v4049
        %v4051 = vand.u32 %v4050, 4294901760
        %4052 = vmatmul.mubr.f32.gmra.mxu0 %v4051
        %v4053 = vpop.f32.mrf.mxu0
        %v4054 = vadd.f32 %v3916, %v4053
        %v4055 = vpop.f32.mrf.mxu0
        %v4056 = vadd.f32 %v3918, %v4055
        %4057 = vmatprep.mubr.f32.mxu0 0.0
        %v4058 = vand.u32 %v3452, 4294901760
        %v4059 = vsub.f32 %v3452, %v4058
        %v4060 = vand.u32 %v4059, 4294901760
        %4061 = vmatmul.mubr.f32.gmra.mxu0 %v4060
        %v4062 = vpop.f32.mrf.mxu0
        %v4063 = vadd.f32 %v3924, %v4062
        %v4064 = vpop.f32.mrf.mxu0
        %v4065 = vadd.f32 %v3926, %v4064
        %4066 = vmatprep.mubr.f32.mxu0 0.0
        %v4067 = vand.u32 %v3455, 4294901760
        %v4068 = vsub.f32 %v3455, %v4067
        %v4069 = vand.u32 %v4068, 4294901760
        %4070 = vmatmul.mubr.f32.gmra.mxu0 %v4069
        %v4071 = vpop.f32.mrf.mxu0
        %v4072 = vadd.f32 %v3932, %v4071
        %v4073 = vpop.f32.mrf.mxu0
        %v4074 = vadd.f32 %v3934, %v4073
        %4075 = vmatprep.mubr.f32.mxu0 0.0
        %v4076 = vand.u32 %v3458, 4294901760
        %v4077 = vsub.f32 %v3458, %v4076
        %v4078 = vand.u32 %v4077, 4294901760
        %4079 = vmatmul.mubr.f32.gmra.mxu0 %v4078
        %v4080 = vpop.f32.mrf.mxu0
        %v4081 = vadd.f32 %v3940, %v4080
        %v4082 = vpop.f32.mrf.mxu0
        %v4083 = vadd.f32 %v3942, %v4082
        %4084 = vmatprep.mubr.f32.mxu0 0.0
        %v4085 = vand.u32 %v3461, 4294901760
        %v4086 = vsub.f32 %v3461, %v4085
        %v4087 = vand.u32 %v4086, 4294901760
        %4088 = vmatmul.mubr.f32.gmra.mxu0 %v4087
        %v4089 = vpop.f32.mrf.mxu0
        %v4090 = vadd.f32 %v3948, %v4089
        %v4091 = vpop.f32.mrf.mxu0
        %v4092 = vadd.f32 %v3950, %v4091
        %4093 = vdwg.mxu0
        %4094 = vmatprep.subr.mxu0 0.0
        %4095 = vmatpush1.msra.mxu0 0.0
        %4096 = vmatprep.subr.mxu0 0.0
        %4097 = vmatpush1.msra.mxu0 0.0
        %4098 = vmatprep.subr.mxu0 0.0
        %4099 = vmatpush1.msra.mxu0 0.0
        %4100 = vmatprep.subr.mxu0 0.0
        %4101 = vmatpush1.msra.mxu0 0.0
        %4102 = vmatprep.subr.mxu0 0.0
        %4103 = vmatpush1.msra.mxu0 0.0
        %4104 = vmatprep.subr.mxu0 0.0
        %4105 = vmatpush1.msra.mxu0 0.0
        %4106 = vmatprep.subr.mxu0 0.0
        %4107 = vmatpush1.msra.mxu0 0.0
        %4108 = vmatprep.subr.mxu0 0.0
        %4109 = vmatpush1.msra.mxu0 0.0
        %4110 = vmatprep.subr.mxu0 0.0
        %4111 = vmatpush1.msra.mxu0 0.0
        %v4112 = vand.u32 %v3390, 4294901760
        %v4113 = vsub.f32 %v3390, %v4112
        %v4114 = vand.u32 %v4113, 4294901760
        %4115 = vmatprep.subr.mxu0 %v4114
        %v4116 = vand.u32 %v3389, 4294901760
        %v4117 = vsub.f32 %v3389, %v4116
        %v4118 = vand.u32 %v4117, 4294901760
        %4119 = vmatpush1.msra.mxu0 %v4118
        %v4120 = vand.u32 %v3388, 4294901760
        %v4121 = vsub.f32 %v3388, %v4120
        %v4122 = vand.u32 %v4121, 4294901760
        %4123 = vmatprep.subr.mxu0 %v4122
        %v4124 = vand.u32 %v3387, 4294901760
        %v4125 = vsub.f32 %v3387, %v4124
        %v4126 = vand.u32 %v4125, 4294901760
        %4127 = vmatpush1.msra.mxu0 %v4126
        %v4128 = vand.u32 %v3386, 4294901760
        %v4129 = vsub.f32 %v3386, %v4128
        %v4130 = vand.u32 %v4129, 4294901760
        %4131 = vmatprep.subr.mxu0 %v4130
        %v4132 = vand.u32 %v3385, 4294901760
        %v4133 = vsub.f32 %v3385, %v4132
        %v4134 = vand.u32 %v4133, 4294901760
        %4135 = vmatpush1.msra.mxu0 %v4134
        %v4136 = vand.u32 %v3384, 4294901760
        %v4137 = vsub.f32 %v3384, %v4136
        %v4138 = vand.u32 %v4137, 4294901760
        %4139 = vmatprep.subr.mxu0 %v4138
        %v4140 = vand.u32 %v3383, 4294901760
        %v4141 = vsub.f32 %v3383, %v4140
        %v4142 = vand.u32 %v4141, 4294901760
        %4143 = vmatpush1.msra.mxu0 %v4142
        %v4144 = vand.u32 %v3382, 4294901760
        %v4145 = vsub.f32 %v3382, %v4144
        %v4146 = vand.u32 %v4145, 4294901760
        %4147 = vmatprep.subr.mxu0 %v4146
        %v4148 = vand.u32 %v3381, 4294901760
        %v4149 = vsub.f32 %v3381, %v4148
        %v4150 = vand.u32 %v4149, 4294901760
        %4151 = vmatpush1.msra.mxu0 %v4150
        %v4152 = vand.u32 %v3380, 4294901760
        %v4153 = vsub.f32 %v3380, %v4152
        %v4154 = vand.u32 %v4153, 4294901760
        %4155 = vmatprep.subr.mxu0 %v4154
        %v4156 = vand.u32 %v3379, 4294901760
        %v4157 = vsub.f32 %v3379, %v4156
        %v4158 = vand.u32 %v4157, 4294901760
        %4159 = vmatpush1.msra.mxu0 %v4158
        %v4160 = vand.u32 %v3378, 4294901760
        %v4161 = vsub.f32 %v3378, %v4160
        %v4162 = vand.u32 %v4161, 4294901760
        %4163 = vmatprep.subr.mxu0 %v4162
        %v4164 = vand.u32 %v3377, 4294901760
        %v4165 = vsub.f32 %v3377, %v4164
        %v4166 = vand.u32 %v4165, 4294901760
        %4167 = vmatpush1.msra.mxu0 %v4166
        %4168 = vmatprep.subr.mxu0 0.0
        %4169 = vmatpush2.msra.mxu0 0.0
        %4170 = vmatprep.subr.mxu0 0.0
        %4171 = vmatpush2.msra.mxu0 0.0
        %4172 = vmatprep.subr.mxu0 0.0
        %4173 = vmatpush2.msra.mxu0 0.0
        %4174 = vmatprep.subr.mxu0 0.0
        %4175 = vmatpush2.msra.mxu0 0.0
        %4176 = vmatprep.subr.mxu0 0.0
        %4177 = vmatpush2.msra.mxu0 0.0
        %4178 = vmatprep.subr.mxu0 0.0
        %4179 = vmatpush2.msra.mxu0 0.0
        %4180 = vmatprep.subr.mxu0 0.0
        %4181 = vmatpush2.msra.mxu0 0.0
        %4182 = vmatprep.subr.mxu0 0.0
        %4183 = vmatpush2.msra.mxu0 0.0
        %4184 = vmatprep.subr.mxu0 0.0
        %4185 = vmatpush2.msra.mxu0 0.0
        %4186 = vmatprep.subr.mxu0 0.0
        %4187 = vmatpush2.msra.mxu0 0.0
        %4188 = vmatprep.subr.mxu0 0.0
        %4189 = vmatpush2.msra.mxu0 0.0
        %4190 = vmatprep.subr.mxu0 0.0
        %4191 = vmatpush2.msra.mxu0 0.0
        %4192 = vmatprep.subr.mxu0 0.0
        %4193 = vmatpush2.msra.mxu0 0.0
        %4194 = vmatprep.subr.mxu0 0.0
        %4195 = vmatpush2.msra.mxu0 0.0
        %4196 = vmatprep.subr.mxu0 0.0
        %4197 = vmatpush2.msra.mxu0 0.0
        %4198 = vmatprep.subr.mxu0 0.0
        %4199 = vmatpush2.msra.mxu0 0.0
        %4200 = vmatprep.mubr.f32.mxu0 0.0
        %v4201 = vand.u32 %v3443, 4294901760
        %4202 = vmatmul.mubr.f32.gmra.mxu0 %v4201
        %v4203 = vpop.f32.mrf.mxu0
        %v4204 = vadd.f32 %v4036, %v4203
        %v4205 = vpop.f32.mrf.mxu0
        %v4206 = vadd.f32 %v4038, %v4205
        %4207 = vmatprep.mubr.f32.mxu0 0.0
        %v4208 = vand.u32 %v3446, 4294901760
        %4209 = vmatmul.mubr.f32.gmra.mxu0 %v4208
        %v4210 = vpop.f32.mrf.mxu0
        %v4211 = vadd.f32 %v4045, %v4210
        %v4212 = vpop.f32.mrf.mxu0
        %v4213 = vadd.f32 %v4047, %v4212
        %4214 = vmatprep.mubr.f32.mxu0 0.0
        %v4215 = vand.u32 %v3449, 4294901760
        %4216 = vmatmul.mubr.f32.gmra.mxu0 %v4215
        %v4217 = vpop.f32.mrf.mxu0
        %v4218 = vadd.f32 %v4054, %v4217
        %v4219 = vpop.f32.mrf.mxu0
        %v4220 = vadd.f32 %v4056, %v4219
        %4221 = vmatprep.mubr.f32.mxu0 0.0
        %v4222 = vand.u32 %v3452, 4294901760
        %4223 = vmatmul.mubr.f32.gmra.mxu0 %v4222
        %v4224 = vpop.f32.mrf.mxu0
        %v4225 = vadd.f32 %v4063, %v4224
        %v4226 = vpop.f32.mrf.mxu0
        %v4227 = vadd.f32 %v4065, %v4226
        %4228 = vmatprep.mubr.f32.mxu0 0.0
        %v4229 = vand.u32 %v3455, 4294901760
        %4230 = vmatmul.mubr.f32.gmra.mxu0 %v4229
        %v4231 = vpop.f32.mrf.mxu0
        %v4232 = vadd.f32 %v4072, %v4231
        %v4233 = vpop.f32.mrf.mxu0
        %v4234 = vadd.f32 %v4074, %v4233
        %4235 = vmatprep.mubr.f32.mxu0 0.0
        %v4236 = vand.u32 %v3458, 4294901760
        %4237 = vmatmul.mubr.f32.gmra.mxu0 %v4236
        %v4238 = vpop.f32.mrf.mxu0
        %v4239 = vadd.f32 %v4081, %v4238
        %v4240 = vpop.f32.mrf.mxu0
        %v4241 = vadd.f32 %v4083, %v4240
        %4242 = vmatprep.mubr.f32.mxu0 0.0
        %v4243 = vand.u32 %v3461, 4294901760
        %4244 = vmatmul.mubr.f32.gmra.mxu0 %v4243
        %v4245 = vpop.f32.mrf.mxu0
        %v4246 = vadd.f32 %v4090, %v4245
        %v4247 = vpop.f32.mrf.mxu0
        %v4248 = vadd.f32 %v4092, %v4247
        %4249 = vdwg.mxu0
        %4250 = vmatprep.subr.mxu0 0.0
        %4251 = vmatpush1.msra.mxu0 0.0
        %4252 = vmatprep.subr.mxu0 0.0
        %4253 = vmatpush1.msra.mxu0 0.0
        %4254 = vmatprep.subr.mxu0 0.0
        %4255 = vmatpush1.msra.mxu0 0.0
        %4256 = vmatprep.subr.mxu0 0.0
        %4257 = vmatpush1.msra.mxu0 0.0
        %4258 = vmatprep.subr.mxu0 0.0
        %4259 = vmatpush1.msra.mxu0 0.0
        %4260 = vmatprep.subr.mxu0 0.0
        %4261 = vmatpush1.msra.mxu0 0.0
        %4262 = vmatprep.subr.mxu0 0.0
        %4263 = vmatpush1.msra.mxu0 0.0
        %4264 = vmatprep.subr.mxu0 0.0
        %4265 = vmatpush1.msra.mxu0 0.0
        %4266 = vmatprep.subr.mxu0 0.0
        %4267 = vmatpush1.msra.mxu0 0.0
        %v4268 = vand.u32 %v3390, 4294901760
        %4269 = vmatprep.subr.mxu0 %v4268
        %v4270 = vand.u32 %v3389, 4294901760
        %4271 = vmatpush1.msra.mxu0 %v4270
        %v4272 = vand.u32 %v3388, 4294901760
        %4273 = vmatprep.subr.mxu0 %v4272
        %v4274 = vand.u32 %v3387, 4294901760
        %4275 = vmatpush1.msra.mxu0 %v4274
        %v4276 = vand.u32 %v3386, 4294901760
        %4277 = vmatprep.subr.mxu0 %v4276
        %v4278 = vand.u32 %v3385, 4294901760
        %4279 = vmatpush1.msra.mxu0 %v4278
        %v4280 = vand.u32 %v3384, 4294901760
        %4281 = vmatprep.subr.mxu0 %v4280
        %v4282 = vand.u32 %v3383, 4294901760
        %4283 = vmatpush1.msra.mxu0 %v4282
        %v4284 = vand.u32 %v3382, 4294901760
        %4285 = vmatprep.subr.mxu0 %v4284
        %v4286 = vand.u32 %v3381, 4294901760
        %4287 = vmatpush1.msra.mxu0 %v4286
        %v4288 = vand.u32 %v3380, 4294901760
        %4289 = vmatprep.subr.mxu0 %v4288
        %v4290 = vand.u32 %v3379, 4294901760
        %4291 = vmatpush1.msra.mxu0 %v4290
        %v4292 = vand.u32 %v3378, 4294901760
        %4293 = vmatprep.subr.mxu0 %v4292
        %v4294 = vand.u32 %v3377, 4294901760
        %4295 = vmatpush1.msra.mxu0 %v4294
        %4296 = vmatprep.subr.mxu0 0.0
        %4297 = vmatpush2.msra.mxu0 0.0
        %4298 = vmatprep.subr.mxu0 0.0
        %4299 = vmatpush2.msra.mxu0 0.0
        %4300 = vmatprep.subr.mxu0 0.0
        %4301 = vmatpush2.msra.mxu0 0.0
        %4302 = vmatprep.subr.mxu0 0.0
        %4303 = vmatpush2.msra.mxu0 0.0
        %4304 = vmatprep.subr.mxu0 0.0
        %4305 = vmatpush2.msra.mxu0 0.0
        %4306 = vmatprep.subr.mxu0 0.0
        %4307 = vmatpush2.msra.mxu0 0.0
        %4308 = vmatprep.subr.mxu0 0.0
        %4309 = vmatpush2.msra.mxu0 0.0
        %4310 = vmatprep.subr.mxu0 0.0
        %4311 = vmatpush2.msra.mxu0 0.0
        %4312 = vmatprep.subr.mxu0 0.0
        %4313 = vmatpush2.msra.mxu0 0.0
        %4314 = vmatprep.subr.mxu0 0.0
        %4315 = vmatpush2.msra.mxu0 0.0
        %4316 = vmatprep.subr.mxu0 0.0
        %4317 = vmatpush2.msra.mxu0 0.0
        %4318 = vmatprep.subr.mxu0 0.0
        %4319 = vmatpush2.msra.mxu0 0.0
        %4320 = vmatprep.subr.mxu0 0.0
        %4321 = vmatpush2.msra.mxu0 0.0
        %4322 = vmatprep.subr.mxu0 0.0
        %4323 = vmatpush2.msra.mxu0 0.0
        %4324 = vmatprep.subr.mxu0 0.0
        %4325 = vmatpush2.msra.mxu0 0.0
        %4326 = vmatprep.subr.mxu0 0.0
        %4327 = vmatpush2.msra.mxu0 0.0
        %4328 = vmatprep.mubr.f32.mxu0 0.0
        %v4329 = vand.u32 %v3443, 4294901760
        %4330 = vmatmul.mubr.f32.gmra.mxu0 %v4329
        %v4331 = vpop.f32.mrf.mxu0
        %v4332 = vadd.f32 %v4204, %v4331
        %v4333 = vpop.f32.mrf.mxu0
        %v4334 = vadd.f32 %v4206, %v4333
        %4335 = vmatprep.mubr.f32.mxu0 0.0
        %v4336 = vand.u32 %v3446, 4294901760
        %4337 = vmatmul.mubr.f32.gmra.mxu0 %v4336
        %v4338 = vpop.f32.mrf.mxu0
        %v4339 = vadd.f32 %v4211, %v4338
        %v4340 = vpop.f32.mrf.mxu0
        %v4341 = vadd.f32 %v4213, %v4340
        %4342 = vmatprep.mubr.f32.mxu0 0.0
        %v4343 = vand.u32 %v3449, 4294901760
        %4344 = vmatmul.mubr.f32.gmra.mxu0 %v4343
        %v4345 = vpop.f32.mrf.mxu0
        %v4346 = vadd.f32 %v4218, %v4345
        %v4347 = vpop.f32.mrf.mxu0
        %v4348 = vadd.f32 %v4220, %v4347
        %4349 = vmatprep.mubr.f32.mxu0 0.0
        %v4350 = vand.u32 %v3452, 4294901760
        %4351 = vmatmul.mubr.f32.gmra.mxu0 %v4350
        %v4352 = vpop.f32.mrf.mxu0
        %v4353 = vadd.f32 %v4225, %v4352
        %v4354 = vpop.f32.mrf.mxu0
        %v4355 = vadd.f32 %v4227, %v4354
        %4356 = vmatprep.mubr.f32.mxu0 0.0
        %v4357 = vand.u32 %v3455, 4294901760
        %4358 = vmatmul.mubr.f32.gmra.mxu0 %v4357
        %v4359 = vpop.f32.mrf.mxu0
        %v4360 = vadd.f32 %v4232, %v4359
        %v4361 = vpop.f32.mrf.mxu0
        %v4362 = vadd.f32 %v4234, %v4361
        %4363 = vmatprep.mubr.f32.mxu0 0.0
        %v4364 = vand.u32 %v3458, 4294901760
        %4365 = vmatmul.mubr.f32.gmra.mxu0 %v4364
        %v4366 = vpop.f32.mrf.mxu0
        %v4367 = vadd.f32 %v4239, %v4366
        %v4368 = vpop.f32.mrf.mxu0
        %v4369 = vadd.f32 %v4241, %v4368
        %4370 = vmatprep.mubr.f32.mxu0 0.0
        %v4371 = vand.u32 %v3461, 4294901760
        %4372 = vmatmul.mubr.f32.gmra.mxu0 %v4371
        %v4373 = vpop.f32.mrf.mxu0
        %v4374 = vadd.f32 %v4246, %v4373
        %v4375 = vpop.f32.mrf.mxu0
        %v4376 = vadd.f32 %v4248, %v4375
        %4377 = vdwg.mxu0
        %v4378 = vtanh.pop %v4332
        %v4379 = vtanh.pop %v4334
        %v4380 = vtanh.pop %v4339
        %v4381 = vtanh.pop %v4341
        %v4382 = vtanh.pop %v4346
        %v4383 = vtanh.pop %v4348
        %v4384 = vtanh.pop %v4353
        %v4385 = vtanh.pop %v4355
        %v4386 = vtanh.pop %v4360
        %v4387 = vtanh.pop %v4362
        %v4388 = vtanh.pop %v4367
        %v4389 = vtanh.pop %v4369
        %v4390 = vtanh.pop %v4374
        %v4391 = vtanh.pop %v4376
        %v4392 = vmul.f32 %v4378, %v2349
        %v4393 = vmul.f32 %v4379, %v2350
        %v4394 = vmul.f32 %v4380, %v2351
        %v4395 = vmul.f32 %v4381, %v2352
        %v4396 = vmul.f32 %v4382, %v2353
        %v4397 = vmul.f32 %v4383, %v2354
        %v4398 = vmul.f32 %v4384, %v2355
        %v4399 = vmul.f32 %v4385, %v2356
        %v4400 = vmul.f32 %v4386, %v2357
        %v4401 = vmul.f32 %v4387, %v2358
        %v4402 = vmul.f32 %v4388, %v2359
        %v4403 = vmul.f32 %v4389, %v2360
        %v4404 = vmul.f32 %v4390, %v2361
        %v4405 = vmul.f32 %v4391, %v2362
        %v4406 = vadd.f32 %v2307, %v4392
        %v4407 = vadd.f32 %v2308, %v4393
        %v4408 = vadd.f32 %v2309, %v4394
        %v4409 = vadd.f32 %v2310, %v4395
        %v4410 = vadd.f32 %v2311, %v4396
        %v4411 = vadd.f32 %v2312, %v4397
        %v4412 = vadd.f32 %v2313, %v4398
        %v4413 = vadd.f32 %v2314, %v4399
        %v4414 = vadd.f32 %v2315, %v4400
        %v4415 = vadd.f32 %v2316, %v4401
        %v4416 = vadd.f32 %v2317, %v4402
        %v4417 = vadd.f32 %v2318, %v4403
        %v4418 = vadd.f32 %v2319, %v4404
        %v4419 = vadd.f32 %v2320, %v4405
        %s4420 = scalar_lea.vmem %s3, 112
        %v4421 = vld [vmem:[%s4420] sm:$0xff]
        %v4422 = vld [vmem:[%s4420 + $0x8] sm:$0xff]
        %v4423 = vld [vmem:[%s4420 + $0x10] sm:$0xff]
        %v4424 = vld [vmem:[%s4420 + $0x18] sm:$0xff]
        %v4425 = vld [vmem:[%s4420 + $0x20] sm:$0xff]
        %v4426 = vld [vmem:[%s4420 + $0x28] sm:$0xff]
        %v4427 = vld [vmem:[%s4420 + $0x30] sm:$0xff]
        %s4428 = scalar_lea.vmem %s4, 112
        %v4429 = vld [vmem:[%s4428] sm:$0xff]
        %v4430 = vld [vmem:[%s4428 + $0x8] sm:$0xff]
        %v4431 = vld [vmem:[%s4428 + $0x10] sm:$0xff]
        %v4432 = vld [vmem:[%s4428 + $0x18] sm:$0xff]
        %v4433 = vld [vmem:[%s4428 + $0x20] sm:$0xff]
        %v4434 = vld [vmem:[%s4428 + $0x28] sm:$0xff]
        %v4435 = vld [vmem:[%s4428 + $0x30] sm:$0xff]
        %4437 = vset.pattern.permute.xlu0 0
        %4438 = vperm.xlu0 %4437, %v4429
        %v4439 = vpop.permute.xlu0 %4438
        %4442 = vset.pattern.permute.xlu0 0
        %4443 = vperm.xlu0 %4442, %v4430
        %v4444 = vpop.permute.xlu0 %4443
        %4447 = vset.pattern.permute.xlu0 0
        %4448 = vperm.xlu0 %4447, %v4431
        %v4449 = vpop.permute.xlu0 %4448
        %4452 = vset.pattern.permute.xlu0 0
        %4453 = vperm.xlu0 %4452, %v4432
        %v4454 = vpop.permute.xlu0 %4453
        %4457 = vset.pattern.permute.xlu0 0
        %4458 = vperm.xlu0 %4457, %v4433
        %v4459 = vpop.permute.xlu0 %4458
        %4462 = vset.pattern.permute.xlu0 0
        %4463 = vperm.xlu0 %4462, %v4434
        %v4464 = vpop.permute.xlu0 %4463
        %4467 = vset.pattern.permute.xlu0 0
        %4468 = vperm.xlu0 %4467, %v4435
        %v4469 = vpop.permute.xlu0 %4468
        %v4472 = vsel %vm2412, %v4421, 0
        %v4475 = vsel %vm2412, %v4422, 0
        %v4478 = vsel %vm2412, %v4423, 0
        %v4481 = vsel %vm2412, %v4424, 0
        %v4484 = vsel %vm2412, %v4425, 0
        %v4487 = vsel %vm2412, %v4426, 0
        %v4490 = vsel %vm2412, %v4427, 0
        %4492 = vmatprep.subr.mxu0 0.0
        %4493 = vmatpush1.msra.mxu0 0.0
        %4494 = vmatprep.subr.mxu0 0.0
        %4495 = vmatpush1.msra.mxu0 0.0
        %4496 = vmatprep.subr.mxu0 0.0
        %4497 = vmatpush1.msra.mxu0 0.0
        %4498 = vmatprep.subr.mxu0 0.0
        %4499 = vmatpush1.msra.mxu0 0.0
        %4500 = vmatprep.subr.mxu0 0.0
        %4501 = vmatpush1.msra.mxu0 0.0
        %4502 = vmatprep.subr.mxu0 0.0
        %4503 = vmatpush1.msra.mxu0 0.0
        %4504 = vmatprep.subr.mxu0 0.0
        %4505 = vmatpush1.msra.mxu0 0.0
        %4506 = vmatprep.subr.mxu0 0.0
        %4507 = vmatpush1.msra.mxu0 0.0
        %4508 = vmatprep.subr.mxu0 0.0
        %4509 = vmatpush1.msra.mxu0 0.0
        %v4510 = vand.u32 %v4419, 4294901760
        %4511 = vmatprep.subr.mxu0 %v4510
        %v4512 = vand.u32 %v4418, 4294901760
        %4513 = vmatpush1.msra.mxu0 %v4512
        %v4514 = vand.u32 %v4417, 4294901760
        %4515 = vmatprep.subr.mxu0 %v4514
        %v4516 = vand.u32 %v4416, 4294901760
        %4517 = vmatpush1.msra.mxu0 %v4516
        %v4518 = vand.u32 %v4415, 4294901760
        %4519 = vmatprep.subr.mxu0 %v4518
        %v4520 = vand.u32 %v4414, 4294901760
        %4521 = vmatpush1.msra.mxu0 %v4520
        %v4522 = vand.u32 %v4413, 4294901760
        %4523 = vmatprep.subr.mxu0 %v4522
        %v4524 = vand.u32 %v4412, 4294901760
        %4525 = vmatpush1.msra.mxu0 %v4524
        %v4526 = vand.u32 %v4411, 4294901760
        %4527 = vmatprep.subr.mxu0 %v4526
        %v4528 = vand.u32 %v4410, 4294901760
        %4529 = vmatpush1.msra.mxu0 %v4528
        %v4530 = vand.u32 %v4409, 4294901760
        %4531 = vmatprep.subr.mxu0 %v4530
        %v4532 = vand.u32 %v4408, 4294901760
        %4533 = vmatpush1.msra.mxu0 %v4532
        %v4534 = vand.u32 %v4407, 4294901760
        %4535 = vmatprep.subr.mxu0 %v4534
        %v4536 = vand.u32 %v4406, 4294901760
        %4537 = vmatpush1.msra.mxu0 %v4536
        %4538 = vmatprep.subr.mxu0 0.0
        %4539 = vmatpush2.msra.mxu0 0.0
        %4540 = vmatprep.subr.mxu0 0.0
        %4541 = vmatpush2.msra.mxu0 0.0
        %4542 = vmatprep.subr.mxu0 0.0
        %4543 = vmatpush2.msra.mxu0 0.0
        %4544 = vmatprep.subr.mxu0 0.0
        %4545 = vmatpush2.msra.mxu0 0.0
        %4546 = vmatprep.subr.mxu0 0.0
        %4547 = vmatpush2.msra.mxu0 0.0
        %4548 = vmatprep.subr.mxu0 0.0
        %4549 = vmatpush2.msra.mxu0 0.0
        %4550 = vmatprep.subr.mxu0 0.0
        %4551 = vmatpush2.msra.mxu0 0.0
        %4552 = vmatprep.subr.mxu0 0.0
        %4553 = vmatpush2.msra.mxu0 0.0
        %4554 = vmatprep.subr.mxu0 0.0
        %4555 = vmatpush2.msra.mxu0 0.0
        %4556 = vmatprep.subr.mxu0 0.0
        %4557 = vmatpush2.msra.mxu0 0.0
        %4558 = vmatprep.subr.mxu0 0.0
        %4559 = vmatpush2.msra.mxu0 0.0
        %4560 = vmatprep.subr.mxu0 0.0
        %4561 = vmatpush2.msra.mxu0 0.0
        %4562 = vmatprep.subr.mxu0 0.0
        %4563 = vmatpush2.msra.mxu0 0.0
        %4564 = vmatprep.subr.mxu0 0.0
        %4565 = vmatpush2.msra.mxu0 0.0
        %4566 = vmatprep.subr.mxu0 0.0
        %4567 = vmatpush2.msra.mxu0 0.0
        %4568 = vmatprep.subr.mxu0 0.0
        %4569 = vmatpush2.msra.mxu0 0.0
        %4570 = vmatprep.mubr.f32.mxu0 0.0
        %v4571 = vand.u32 %v4472, 4294901760
        %v4572 = vsub.f32 %v4472, %v4571
        %v4573 = vand.u32 %v4572, 4294901760
        %v4574 = vsub.f32 %v4572, %v4573
        %v4575 = vand.u32 %v4574, 4294901760
        %4576 = vmatmul.mubr.f32.gmra.mxu0 %v4575
        %v4577 = vpop.f32.mrf.mxu0
        %v4578 = vadd.f32 %v4439, %v4577
        %v4579 = vpop.f32.mrf.mxu0
        %v4580 = vadd.f32 %v4439, %v4579
        %4581 = vmatprep.mubr.f32.mxu0 0.0
        %v4582 = vand.u32 %v4475, 4294901760
        %v4583 = vsub.f32 %v4475, %v4582
        %v4584 = vand.u32 %v4583, 4294901760
        %v4585 = vsub.f32 %v4583, %v4584
        %v4586 = vand.u32 %v4585, 4294901760
        %4587 = vmatmul.mubr.f32.gmra.mxu0 %v4586
        %v4588 = vpop.f32.mrf.mxu0
        %v4589 = vadd.f32 %v4444, %v4588
        %v4590 = vpop.f32.mrf.mxu0
        %v4591 = vadd.f32 %v4444, %v4590
        %4592 = vmatprep.mubr.f32.mxu0 0.0
        %v4593 = vand.u32 %v4478, 4294901760
        %v4594 = vsub.f32 %v4478, %v4593
        %v4595 = vand.u32 %v4594, 4294901760
        %v4596 = vsub.f32 %v4594, %v4595
        %v4597 = vand.u32 %v4596, 4294901760
        %4598 = vmatmul.mubr.f32.gmra.mxu0 %v4597
        %v4599 = vpop.f32.mrf.mxu0
        %v4600 = vadd.f32 %v4449, %v4599
        %v4601 = vpop.f32.mrf.mxu0
        %v4602 = vadd.f32 %v4449, %v4601
        %4603 = vmatprep.mubr.f32.mxu0 0.0
        %v4604 = vand.u32 %v4481, 4294901760
        %v4605 = vsub.f32 %v4481, %v4604
        %v4606 = vand.u32 %v4605, 4294901760
        %v4607 = vsub.f32 %v4605, %v4606
        %v4608 = vand.u32 %v4607, 4294901760
        %4609 = vmatmul.mubr.f32.gmra.mxu0 %v4608
        %v4610 = vpop.f32.mrf.mxu0
        %v4611 = vadd.f32 %v4454, %v4610
        %v4612 = vpop.f32.mrf.mxu0
        %v4613 = vadd.f32 %v4454, %v4612
        %4614 = vmatprep.mubr.f32.mxu0 0.0
        %v4615 = vand.u32 %v4484, 4294901760
        %v4616 = vsub.f32 %v4484, %v4615
        %v4617 = vand.u32 %v4616, 4294901760
        %v4618 = vsub.f32 %v4616, %v4617
        %v4619 = vand.u32 %v4618, 4294901760
        %4620 = vmatmul.mubr.f32.gmra.mxu0 %v4619
        %v4621 = vpop.f32.mrf.mxu0
        %v4622 = vadd.f32 %v4459, %v4621
        %v4623 = vpop.f32.mrf.mxu0
        %v4624 = vadd.f32 %v4459, %v4623
        %4625 = vmatprep.mubr.f32.mxu0 0.0
        %v4626 = vand.u32 %v4487, 4294901760
        %v4627 = vsub.f32 %v4487, %v4626
        %v4628 = vand.u32 %v4627, 4294901760
        %v4629 = vsub.f32 %v4627, %v4628
        %v4630 = vand.u32 %v4629, 4294901760
        %4631 = vmatmul.mubr.f32.gmra.mxu0 %v4630
        %v4632 = vpop.f32.mrf.mxu0
        %v4633 = vadd.f32 %v4464, %v4632
        %v4634 = vpop.f32.mrf.mxu0
        %v4635 = vadd.f32 %v4464, %v4634
        %4636 = vmatprep.mubr.f32.mxu0 0.0
        %v4637 = vand.u32 %v4490, 4294901760
        %v4638 = vsub.f32 %v4490, %v4637
        %v4639 = vand.u32 %v4638, 4294901760
        %v4640 = vsub.f32 %v4638, %v4639
        %v4641 = vand.u32 %v4640, 4294901760
        %4642 = vmatmul.mubr.f32.gmra.mxu0 %v4641
        %v4643 = vpop.f32.mrf.mxu0
        %v4644 = vadd.f32 %v4469, %v4643
        %v4645 = vpop.f32.mrf.mxu0
        %v4646 = vadd.f32 %v4469, %v4645
        %4647 = vdwg.mxu0
        %4648 = vmatprep.subr.mxu0 0.0
        %4649 = vmatpush1.msra.mxu0 0.0
        %4650 = vmatprep.subr.mxu0 0.0
        %4651 = vmatpush1.msra.mxu0 0.0
        %4652 = vmatprep.subr.mxu0 0.0
        %4653 = vmatpush1.msra.mxu0 0.0
        %4654 = vmatprep.subr.mxu0 0.0
        %4655 = vmatpush1.msra.mxu0 0.0
        %4656 = vmatprep.subr.mxu0 0.0
        %4657 = vmatpush1.msra.mxu0 0.0
        %4658 = vmatprep.subr.mxu0 0.0
        %4659 = vmatpush1.msra.mxu0 0.0
        %4660 = vmatprep.subr.mxu0 0.0
        %4661 = vmatpush1.msra.mxu0 0.0
        %4662 = vmatprep.subr.mxu0 0.0
        %4663 = vmatpush1.msra.mxu0 0.0
        %4664 = vmatprep.subr.mxu0 0.0
        %4665 = vmatpush1.msra.mxu0 0.0
        %v4666 = vand.u32 %v4419, 4294901760
        %v4667 = vsub.f32 %v4419, %v4666
        %v4668 = vand.u32 %v4667, 4294901760
        %v4669 = vsub.f32 %v4667, %v4668
        %v4670 = vand.u32 %v4669, 4294901760
        %4671 = vmatprep.subr.mxu0 %v4670
        %v4672 = vand.u32 %v4418, 4294901760
        %v4673 = vsub.f32 %v4418, %v4672
        %v4674 = vand.u32 %v4673, 4294901760
        %v4675 = vsub.f32 %v4673, %v4674
        %v4676 = vand.u32 %v4675, 4294901760
        %4677 = vmatpush1.msra.mxu0 %v4676
        %v4678 = vand.u32 %v4417, 4294901760
        %v4679 = vsub.f32 %v4417, %v4678
        %v4680 = vand.u32 %v4679, 4294901760
        %v4681 = vsub.f32 %v4679, %v4680
        %v4682 = vand.u32 %v4681, 4294901760
        %4683 = vmatprep.subr.mxu0 %v4682
        %v4684 = vand.u32 %v4416, 4294901760
        %v4685 = vsub.f32 %v4416, %v4684
        %v4686 = vand.u32 %v4685, 4294901760
        %v4687 = vsub.f32 %v4685, %v4686
        %v4688 = vand.u32 %v4687, 4294901760
        %4689 = vmatpush1.msra.mxu0 %v4688
        %v4690 = vand.u32 %v4415, 4294901760
        %v4691 = vsub.f32 %v4415, %v4690
        %v4692 = vand.u32 %v4691, 4294901760
        %v4693 = vsub.f32 %v4691, %v4692
        %v4694 = vand.u32 %v4693, 4294901760
        %4695 = vmatprep.subr.mxu0 %v4694
        %v4696 = vand.u32 %v4414, 4294901760
        %v4697 = vsub.f32 %v4414, %v4696
        %v4698 = vand.u32 %v4697, 4294901760
        %v4699 = vsub.f32 %v4697, %v4698
        %v4700 = vand.u32 %v4699, 4294901760
        %4701 = vmatpush1.msra.mxu0 %v4700
        %v4702 = vand.u32 %v4413, 4294901760
        %v4703 = vsub.f32 %v4413, %v4702
        %v4704 = vand.u32 %v4703, 4294901760
        %v4705 = vsub.f32 %v4703, %v4704
        %v4706 = vand.u32 %v4705, 4294901760
        %4707 = vmatprep.subr.mxu0 %v4706
        %v4708 = vand.u32 %v4412, 4294901760
        %v4709 = vsub.f32 %v4412, %v4708
        %v4710 = vand.u32 %v4709, 4294901760
        %v4711 = vsub.f32 %v4709, %v4710
        %v4712 = vand.u32 %v4711, 4294901760
        %4713 = vmatpush1.msra.mxu0 %v4712
        %v4714 = vand.u32 %v4411, 4294901760
        %v4715 = vsub.f32 %v4411, %v4714
        %v4716 = vand.u32 %v4715, 4294901760
        %v4717 = vsub.f32 %v4715, %v4716
        %v4718 = vand.u32 %v4717, 4294901760
        %4719 = vmatprep.subr.mxu0 %v4718
        %v4720 = vand.u32 %v4410, 4294901760
        %v4721 = vsub.f32 %v4410, %v4720
        %v4722 = vand.u32 %v4721, 4294901760
        %v4723 = vsub.f32 %v4721, %v4722
        %v4724 = vand.u32 %v4723, 4294901760
        %4725 = vmatpush1.msra.mxu0 %v4724
        %v4726 = vand.u32 %v4409, 4294901760
        %v4727 = vsub.f32 %v4409, %v4726
        %v4728 = vand.u32 %v4727, 4294901760
        %v4729 = vsub.f32 %v4727, %v4728
        %v4730 = vand.u32 %v4729, 4294901760
        %4731 = vmatprep.subr.mxu0 %v4730
        %v4732 = vand.u32 %v4408, 4294901760
        %v4733 = vsub.f32 %v4408, %v4732
        %v4734 = vand.u32 %v4733, 4294901760
        %v4735 = vsub.f32 %v4733, %v4734
        %v4736 = vand.u32 %v4735, 4294901760
        %4737 = vmatpush1.msra.mxu0 %v4736
        %v4738 = vand.u32 %v4407, 4294901760
        %v4739 = vsub.f32 %v4407, %v4738
        %v4740 = vand.u32 %v4739, 4294901760
        %v4741 = vsub.f32 %v4739, %v4740
        %v4742 = vand.u32 %v4741, 4294901760
        %4743 = vmatprep.subr.mxu0 %v4742
        %v4744 = vand.u32 %v4406, 4294901760
        %v4745 = vsub.f32 %v4406, %v4744
        %v4746 = vand.u32 %v4745, 4294901760
        %v4747 = vsub.f32 %v4745, %v4746
        %v4748 = vand.u32 %v4747, 4294901760
        %4749 = vmatpush1.msra.mxu0 %v4748
        %4750 = vmatprep.subr.mxu0 0.0
        %4751 = vmatpush2.msra.mxu0 0.0
        %4752 = vmatprep.subr.mxu0 0.0
        %4753 = vmatpush2.msra.mxu0 0.0
        %4754 = vmatprep.subr.mxu0 0.0
        %4755 = vmatpush2.msra.mxu0 0.0
        %4756 = vmatprep.subr.mxu0 0.0
        %4757 = vmatpush2.msra.mxu0 0.0
        %4758 = vmatprep.subr.mxu0 0.0
        %4759 = vmatpush2.msra.mxu0 0.0
        %4760 = vmatprep.subr.mxu0 0.0
        %4761 = vmatpush2.msra.mxu0 0.0
        %4762 = vmatprep.subr.mxu0 0.0
        %4763 = vmatpush2.msra.mxu0 0.0
        %4764 = vmatprep.subr.mxu0 0.0
        %4765 = vmatpush2.msra.mxu0 0.0
        %4766 = vmatprep.subr.mxu0 0.0
        %4767 = vmatpush2.msra.mxu0 0.0
        %4768 = vmatprep.subr.mxu0 0.0
        %4769 = vmatpush2.msra.mxu0 0.0
        %4770 = vmatprep.subr.mxu0 0.0
        %4771 = vmatpush2.msra.mxu0 0.0
        %4772 = vmatprep.subr.mxu0 0.0
        %4773 = vmatpush2.msra.mxu0 0.0
        %4774 = vmatprep.subr.mxu0 0.0
        %4775 = vmatpush2.msra.mxu0 0.0
        %4776 = vmatprep.subr.mxu0 0.0
        %4777 = vmatpush2.msra.mxu0 0.0
        %4778 = vmatprep.subr.mxu0 0.0
        %4779 = vmatpush2.msra.mxu0 0.0
        %4780 = vmatprep.subr.mxu0 0.0
        %4781 = vmatpush2.msra.mxu0 0.0
        %4782 = vmatprep.mubr.f32.mxu0 0.0
        %v4783 = vand.u32 %v4472, 4294901760
        %4784 = vmatmul.mubr.f32.gmra.mxu0 %v4783
        %v4785 = vpop.f32.mrf.mxu0
        %v4786 = vadd.f32 %v4578, %v4785
        %v4787 = vpop.f32.mrf.mxu0
        %v4788 = vadd.f32 %v4580, %v4787
        %4789 = vmatprep.mubr.f32.mxu0 0.0
        %v4790 = vand.u32 %v4475, 4294901760
        %4791 = vmatmul.mubr.f32.gmra.mxu0 %v4790
        %v4792 = vpop.f32.mrf.mxu0
        %v4793 = vadd.f32 %v4589, %v4792
        %v4794 = vpop.f32.mrf.mxu0
        %v4795 = vadd.f32 %v4591, %v4794
        %4796 = vmatprep.mubr.f32.mxu0 0.0
        %v4797 = vand.u32 %v4478, 4294901760
        %4798 = vmatmul.mubr.f32.gmra.mxu0 %v4797
        %v4799 = vpop.f32.mrf.mxu0
        %v4800 = vadd.f32 %v4600, %v4799
        %v4801 = vpop.f32.mrf.mxu0
        %v4802 = vadd.f32 %v4602, %v4801
        %4803 = vmatprep.mubr.f32.mxu0 0.0
        %v4804 = vand.u32 %v4481, 4294901760
        %4805 = vmatmul.mubr.f32.gmra.mxu0 %v4804
        %v4806 = vpop.f32.mrf.mxu0
        %v4807 = vadd.f32 %v4611, %v4806
        %v4808 = vpop.f32.mrf.mxu0
        %v4809 = vadd.f32 %v4613, %v4808
        %4810 = vmatprep.mubr.f32.mxu0 0.0
        %v4811 = vand.u32 %v4484, 4294901760
        %4812 = vmatmul.mubr.f32.gmra.mxu0 %v4811
        %v4813 = vpop.f32.mrf.mxu0
        %v4814 = vadd.f32 %v4622, %v4813
        %v4815 = vpop.f32.mrf.mxu0
        %v4816 = vadd.f32 %v4624, %v4815
        %4817 = vmatprep.mubr.f32.mxu0 0.0
        %v4818 = vand.u32 %v4487, 4294901760
        %4819 = vmatmul.mubr.f32.gmra.mxu0 %v4818
        %v4820 = vpop.f32.mrf.mxu0
        %v4821 = vadd.f32 %v4633, %v4820
        %v4822 = vpop.f32.mrf.mxu0
        %v4823 = vadd.f32 %v4635, %v4822
        %4824 = vmatprep.mubr.f32.mxu0 0.0
        %v4825 = vand.u32 %v4490, 4294901760
        %4826 = vmatmul.mubr.f32.gmra.mxu0 %v4825
        %v4827 = vpop.f32.mrf.mxu0
        %v4828 = vadd.f32 %v4644, %v4827
        %v4829 = vpop.f32.mrf.mxu0
        %v4830 = vadd.f32 %v4646, %v4829
        %4831 = vdwg.mxu0
        %4832 = vmatprep.subr.mxu0 0.0
        %4833 = vmatpush1.msra.mxu0 0.0
        %4834 = vmatprep.subr.mxu0 0.0
        %4835 = vmatpush1.msra.mxu0 0.0
        %4836 = vmatprep.subr.mxu0 0.0
        %4837 = vmatpush1.msra.mxu0 0.0
        %4838 = vmatprep.subr.mxu0 0.0
        %4839 = vmatpush1.msra.mxu0 0.0
        %4840 = vmatprep.subr.mxu0 0.0
        %4841 = vmatpush1.msra.mxu0 0.0
        %4842 = vmatprep.subr.mxu0 0.0
        %4843 = vmatpush1.msra.mxu0 0.0
        %4844 = vmatprep.subr.mxu0 0.0
        %4845 = vmatpush1.msra.mxu0 0.0
        %4846 = vmatprep.subr.mxu0 0.0
        %4847 = vmatpush1.msra.mxu0 0.0
        %4848 = vmatprep.subr.mxu0 0.0
        %4849 = vmatpush1.msra.mxu0 0.0
        %v4850 = vand.u32 %v4419, 4294901760
        %v4851 = vsub.f32 %v4419, %v4850
        %4852 = vmatprep.subr.mxu0 %v4851
        %v4853 = vand.u32 %v4418, 4294901760
        %v4854 = vsub.f32 %v4418, %v4853
        %4855 = vmatpush1.msra.mxu0 %v4854
        %v4856 = vand.u32 %v4417, 4294901760
        %v4857 = vsub.f32 %v4417, %v4856
        %4858 = vmatprep.subr.mxu0 %v4857
        %v4859 = vand.u32 %v4416, 4294901760
        %v4860 = vsub.f32 %v4416, %v4859
        %4861 = vmatpush1.msra.mxu0 %v4860
        %v4862 = vand.u32 %v4415, 4294901760
        %v4863 = vsub.f32 %v4415, %v4862
        %4864 = vmatprep.subr.mxu0 %v4863
        %v4865 = vand.u32 %v4414, 4294901760
        %v4866 = vsub.f32 %v4414, %v4865
        %4867 = vmatpush1.msra.mxu0 %v4866
        %v4868 = vand.u32 %v4413, 4294901760
        %v4869 = vsub.f32 %v4413, %v4868
        %4870 = vmatprep.subr.mxu0 %v4869
        %v4871 = vand.u32 %v4412, 4294901760
        %v4872 = vsub.f32 %v4412, %v4871
        %4873 = vmatpush1.msra.mxu0 %v4872
        %v4874 = vand.u32 %v4411, 4294901760
        %v4875 = vsub.f32 %v4411, %v4874
        %4876 = vmatprep.subr.mxu0 %v4875
        %v4877 = vand.u32 %v4410, 4294901760
        %v4878 = vsub.f32 %v4410, %v4877
        %4879 = vmatpush1.msra.mxu0 %v4878
        %v4880 = vand.u32 %v4409, 4294901760
        %v4881 = vsub.f32 %v4409, %v4880
        %4882 = vmatprep.subr.mxu0 %v4881
        %v4883 = vand.u32 %v4408, 4294901760
        %v4884 = vsub.f32 %v4408, %v4883
        %4885 = vmatpush1.msra.mxu0 %v4884
        %v4886 = vand.u32 %v4407, 4294901760
        %v4887 = vsub.f32 %v4407, %v4886
        %4888 = vmatprep.subr.mxu0 %v4887
        %v4889 = vand.u32 %v4406, 4294901760
        %v4890 = vsub.f32 %v4406, %v4889
        %4891 = vmatpush1.msra.mxu0 %v4890
        %4892 = vmatprep.subr.mxu0 0.0
        %4893 = vmatpush2.msra.mxu0 0.0
        %4894 = vmatprep.subr.mxu0 0.0
        %4895 = vmatpush2.msra.mxu0 0.0
        %4896 = vmatprep.subr.mxu0 0.0
        %4897 = vmatpush2.msra.mxu0 0.0
        %4898 = vmatprep.subr.mxu0 0.0
        %4899 = vmatpush2.msra.mxu0 0.0
        %4900 = vmatprep.subr.mxu0 0.0
        %4901 = vmatpush2.msra.mxu0 0.0
        %4902 = vmatprep.subr.mxu0 0.0
        %4903 = vmatpush2.msra.mxu0 0.0
        %4904 = vmatprep.subr.mxu0 0.0
        %4905 = vmatpush2.msra.mxu0 0.0
        %4906 = vmatprep.subr.mxu0 0.0
        %4907 = vmatpush2.msra.mxu0 0.0
        %4908 = vmatprep.subr.mxu0 0.0
        %4909 = vmatpush2.msra.mxu0 0.0
        %4910 = vmatprep.subr.mxu0 0.0
        %4911 = vmatpush2.msra.mxu0 0.0
        %4912 = vmatprep.subr.mxu0 0.0
        %4913 = vmatpush2.msra.mxu0 0.0
        %4914 = vmatprep.subr.mxu0 0.0
        %4915 = vmatpush2.msra.mxu0 0.0
        %4916 = vmatprep.subr.mxu0 0.0
        %4917 = vmatpush2.msra.mxu0 0.0
        %4918 = vmatprep.subr.mxu0 0.0
        %4919 = vmatpush2.msra.mxu0 0.0
        %4920 = vmatprep.subr.mxu0 0.0
        %4921 = vmatpush2.msra.mxu0 0.0
        %4922 = vmatprep.subr.mxu0 0.0
        %4923 = vmatpush2.msra.mxu0 0.0
        %4924 = vmatprep.mubr.f32.mxu0 0.0
        %v4925 = vand.u32 %v4472, 4294901760
        %v4926 = vsub.f32 %v4472, %v4925
        %4927 = vmatmul.mubr.f32.gmra.mxu0 %v4926
        %v4928 = vpop.f32.mrf.mxu0
        %v4929 = vadd.f32 %v4786, %v4928
        %v4930 = vpop.f32.mrf.mxu0
        %v4931 = vadd.f32 %v4788, %v4930
        %4932 = vmatprep.mubr.f32.mxu0 0.0
        %v4933 = vand.u32 %v4475, 4294901760
        %v4934 = vsub.f32 %v4475, %v4933
        %4935 = vmatmul.mubr.f32.gmra.mxu0 %v4934
        %v4936 = vpop.f32.mrf.mxu0
        %v4937 = vadd.f32 %v4793, %v4936
        %v4938 = vpop.f32.mrf.mxu0
        %v4939 = vadd.f32 %v4795, %v4938
        %4940 = vmatprep.mubr.f32.mxu0 0.0
        %v4941 = vand.u32 %v4478, 4294901760
        %v4942 = vsub.f32 %v4478, %v4941
        %4943 = vmatmul.mubr.f32.gmra.mxu0 %v4942
        %v4944 = vpop.f32.mrf.mxu0
        %v4945 = vadd.f32 %v4800, %v4944
        %v4946 = vpop.f32.mrf.mxu0
        %v4947 = vadd.f32 %v4802, %v4946
        %4948 = vmatprep.mubr.f32.mxu0 0.0
        %v4949 = vand.u32 %v4481, 4294901760
        %v4950 = vsub.f32 %v4481, %v4949
        %4951 = vmatmul.mubr.f32.gmra.mxu0 %v4950
        %v4952 = vpop.f32.mrf.mxu0
        %v4953 = vadd.f32 %v4807, %v4952
        %v4954 = vpop.f32.mrf.mxu0
        %v4955 = vadd.f32 %v4809, %v4954
        %4956 = vmatprep.mubr.f32.mxu0 0.0
        %v4957 = vand.u32 %v4484, 4294901760
        %v4958 = vsub.f32 %v4484, %v4957
        %4959 = vmatmul.mubr.f32.gmra.mxu0 %v4958
        %v4960 = vpop.f32.mrf.mxu0
        %v4961 = vadd.f32 %v4814, %v4960
        %v4962 = vpop.f32.mrf.mxu0
        %v4963 = vadd.f32 %v4816, %v4962
        %4964 = vmatprep.mubr.f32.mxu0 0.0
        %v4965 = vand.u32 %v4487, 4294901760
        %v4966 = vsub.f32 %v4487, %v4965
        %4967 = vmatmul.mubr.f32.gmra.mxu0 %v4966
        %v4968 = vpop.f32.mrf.mxu0
        %v4969 = vadd.f32 %v4821, %v4968
        %v4970 = vpop.f32.mrf.mxu0
        %v4971 = vadd.f32 %v4823, %v4970
        %4972 = vmatprep.mubr.f32.mxu0 0.0
        %v4973 = vand.u32 %v4490, 4294901760
        %v4974 = vsub.f32 %v4490, %v4973
        %4975 = vmatmul.mubr.f32.gmra.mxu0 %v4974
        %v4976 = vpop.f32.mrf.mxu0
        %v4977 = vadd.f32 %v4828, %v4976
        %v4978 = vpop.f32.mrf.mxu0
        %v4979 = vadd.f32 %v4830, %v4978
        %4980 = vdwg.mxu0
        %4981 = vmatprep.subr.mxu0 0.0
        %4982 = vmatpush1.msra.mxu0 0.0
        %4983 = vmatprep.subr.mxu0 0.0
        %4984 = vmatpush1.msra.mxu0 0.0
        %4985 = vmatprep.subr.mxu0 0.0
        %4986 = vmatpush1.msra.mxu0 0.0
        %4987 = vmatprep.subr.mxu0 0.0
        %4988 = vmatpush1.msra.mxu0 0.0
        %4989 = vmatprep.subr.mxu0 0.0
        %4990 = vmatpush1.msra.mxu0 0.0
        %4991 = vmatprep.subr.mxu0 0.0
        %4992 = vmatpush1.msra.mxu0 0.0
        %4993 = vmatprep.subr.mxu0 0.0
        %4994 = vmatpush1.msra.mxu0 0.0
        %4995 = vmatprep.subr.mxu0 0.0
        %4996 = vmatpush1.msra.mxu0 0.0
        %4997 = vmatprep.subr.mxu0 0.0
        %4998 = vmatpush1.msra.mxu0 0.0
        %v4999 = vand.u32 %v4419, 4294901760
        %5000 = vmatprep.subr.mxu0 %v4999
        %v5001 = vand.u32 %v4418, 4294901760
        %5002 = vmatpush1.msra.mxu0 %v5001
        %v5003 = vand.u32 %v4417, 4294901760
        %5004 = vmatprep.subr.mxu0 %v5003
        %v5005 = vand.u32 %v4416, 4294901760
        %5006 = vmatpush1.msra.mxu0 %v5005
        %v5007 = vand.u32 %v4415, 4294901760
        %5008 = vmatprep.subr.mxu0 %v5007
        %v5009 = vand.u32 %v4414, 4294901760
        %5010 = vmatpush1.msra.mxu0 %v5009
        %v5011 = vand.u32 %v4413, 4294901760
        %5012 = vmatprep.subr.mxu0 %v5011
        %v5013 = vand.u32 %v4412, 4294901760
        %5014 = vmatpush1.msra.mxu0 %v5013
        %v5015 = vand.u32 %v4411, 4294901760
        %5016 = vmatprep.subr.mxu0 %v5015
        %v5017 = vand.u32 %v4410, 4294901760
        %5018 = vmatpush1.msra.mxu0 %v5017
        %v5019 = vand.u32 %v4409, 4294901760
        %5020 = vmatprep.subr.mxu0 %v5019
        %v5021 = vand.u32 %v4408, 4294901760
        %5022 = vmatpush1.msra.mxu0 %v5021
        %v5023 = vand.u32 %v4407, 4294901760
        %5024 = vmatprep.subr.mxu0 %v5023
        %v5025 = vand.u32 %v4406, 4294901760
        %5026 = vmatpush1.msra.mxu0 %v5025
        %5027 = vmatprep.subr.mxu0 0.0
        %5028 = vmatpush2.msra.mxu0 0.0
        %5029 = vmatprep.subr.mxu0 0.0
        %5030 = vmatpush2.msra.mxu0 0.0
        %5031 = vmatprep.subr.mxu0 0.0
        %5032 = vmatpush2.msra.mxu0 0.0
        %5033 = vmatprep.subr.mxu0 0.0
        %5034 = vmatpush2.msra.mxu0 0.0
        %5035 = vmatprep.subr.mxu0 0.0
        %5036 = vmatpush2.msra.mxu0 0.0
        %5037 = vmatprep.subr.mxu0 0.0
        %5038 = vmatpush2.msra.mxu0 0.0
        %5039 = vmatprep.subr.mxu0 0.0
        %5040 = vmatpush2.msra.mxu0 0.0
        %5041 = vmatprep.subr.mxu0 0.0
        %5042 = vmatpush2.msra.mxu0 0.0
        %5043 = vmatprep.subr.mxu0 0.0
        %5044 = vmatpush2.msra.mxu0 0.0
        %5045 = vmatprep.subr.mxu0 0.0
        %5046 = vmatpush2.msra.mxu0 0.0
        %5047 = vmatprep.subr.mxu0 0.0
        %5048 = vmatpush2.msra.mxu0 0.0
        %5049 = vmatprep.subr.mxu0 0.0
        %5050 = vmatpush2.msra.mxu0 0.0
        %5051 = vmatprep.subr.mxu0 0.0
        %5052 = vmatpush2.msra.mxu0 0.0
        %5053 = vmatprep.subr.mxu0 0.0
        %5054 = vmatpush2.msra.mxu0 0.0
        %5055 = vmatprep.subr.mxu0 0.0
        %5056 = vmatpush2.msra.mxu0 0.0
        %5057 = vmatprep.subr.mxu0 0.0
        %5058 = vmatpush2.msra.mxu0 0.0
        %5059 = vmatprep.mubr.f32.mxu0 0.0
        %v5060 = vand.u32 %v4472, 4294901760
        %v5061 = vsub.f32 %v4472, %v5060
        %v5062 = vand.u32 %v5061, 4294901760
        %5063 = vmatmul.mubr.f32.gmra.mxu0 %v5062
        %v5064 = vpop.f32.mrf.mxu0
        %v5065 = vadd.f32 %v4929, %v5064
        %v5066 = vpop.f32.mrf.mxu0
        %v5067 = vadd.f32 %v4931, %v5066
        %5068 = vmatprep.mubr.f32.mxu0 0.0
        %v5069 = vand.u32 %v4475, 4294901760
        %v5070 = vsub.f32 %v4475, %v5069
        %v5071 = vand.u32 %v5070, 4294901760
        %5072 = vmatmul.mubr.f32.gmra.mxu0 %v5071
        %v5073 = vpop.f32.mrf.mxu0
        %v5074 = vadd.f32 %v4937, %v5073
        %v5075 = vpop.f32.mrf.mxu0
        %v5076 = vadd.f32 %v4939, %v5075
        %5077 = vmatprep.mubr.f32.mxu0 0.0
        %v5078 = vand.u32 %v4478, 4294901760
        %v5079 = vsub.f32 %v4478, %v5078
        %v5080 = vand.u32 %v5079, 4294901760
        %5081 = vmatmul.mubr.f32.gmra.mxu0 %v5080
        %v5082 = vpop.f32.mrf.mxu0
        %v5083 = vadd.f32 %v4945, %v5082
        %v5084 = vpop.f32.mrf.mxu0
        %v5085 = vadd.f32 %v4947, %v5084
        %5086 = vmatprep.mubr.f32.mxu0 0.0
        %v5087 = vand.u32 %v4481, 4294901760
        %v5088 = vsub.f32 %v4481, %v5087
        %v5089 = vand.u32 %v5088, 4294901760
        %5090 = vmatmul.mubr.f32.gmra.mxu0 %v5089
        %v5091 = vpop.f32.mrf.mxu0
        %v5092 = vadd.f32 %v4953, %v5091
        %v5093 = vpop.f32.mrf.mxu0
        %v5094 = vadd.f32 %v4955, %v5093
        %5095 = vmatprep.mubr.f32.mxu0 0.0
        %v5096 = vand.u32 %v4484, 4294901760
        %v5097 = vsub.f32 %v4484, %v5096
        %v5098 = vand.u32 %v5097, 4294901760
        %5099 = vmatmul.mubr.f32.gmra.mxu0 %v5098
        %v5100 = vpop.f32.mrf.mxu0
        %v5101 = vadd.f32 %v4961, %v5100
        %v5102 = vpop.f32.mrf.mxu0
        %v5103 = vadd.f32 %v4963, %v5102
        %5104 = vmatprep.mubr.f32.mxu0 0.0
        %v5105 = vand.u32 %v4487, 4294901760
        %v5106 = vsub.f32 %v4487, %v5105
        %v5107 = vand.u32 %v5106, 4294901760
        %5108 = vmatmul.mubr.f32.gmra.mxu0 %v5107
        %v5109 = vpop.f32.mrf.mxu0
        %v5110 = vadd.f32 %v4969, %v5109
        %v5111 = vpop.f32.mrf.mxu0
        %v5112 = vadd.f32 %v4971, %v5111
        %5113 = vmatprep.mubr.f32.mxu0 0.0
        %v5114 = vand.u32 %v4490, 4294901760
        %v5115 = vsub.f32 %v4490, %v5114
        %v5116 = vand.u32 %v5115, 4294901760
        %5117 = vmatmul.mubr.f32.gmra.mxu0 %v5116
        %v5118 = vpop.f32.mrf.mxu0
        %v5119 = vadd.f32 %v4977, %v5118
        %v5120 = vpop.f32.mrf.mxu0
        %v5121 = vadd.f32 %v4979, %v5120
        %5122 = vdwg.mxu0
        %5123 = vmatprep.subr.mxu0 0.0
        %5124 = vmatpush1.msra.mxu0 0.0
        %5125 = vmatprep.subr.mxu0 0.0
        %5126 = vmatpush1.msra.mxu0 0.0
        %5127 = vmatprep.subr.mxu0 0.0
        %5128 = vmatpush1.msra.mxu0 0.0
        %5129 = vmatprep.subr.mxu0 0.0
        %5130 = vmatpush1.msra.mxu0 0.0
        %5131 = vmatprep.subr.mxu0 0.0
        %5132 = vmatpush1.msra.mxu0 0.0
        %5133 = vmatprep.subr.mxu0 0.0
        %5134 = vmatpush1.msra.mxu0 0.0
        %5135 = vmatprep.subr.mxu0 0.0
        %5136 = vmatpush1.msra.mxu0 0.0
        %5137 = vmatprep.subr.mxu0 0.0
        %5138 = vmatpush1.msra.mxu0 0.0
        %5139 = vmatprep.subr.mxu0 0.0
        %5140 = vmatpush1.msra.mxu0 0.0
        %v5141 = vand.u32 %v4419, 4294901760
        %v5142 = vsub.f32 %v4419, %v5141
        %v5143 = vand.u32 %v5142, 4294901760
        %5144 = vmatprep.subr.mxu0 %v5143
        %v5145 = vand.u32 %v4418, 4294901760
        %v5146 = vsub.f32 %v4418, %v5145
        %v5147 = vand.u32 %v5146, 4294901760
        %5148 = vmatpush1.msra.mxu0 %v5147
        %v5149 = vand.u32 %v4417, 4294901760
        %v5150 = vsub.f32 %v4417, %v5149
        %v5151 = vand.u32 %v5150, 4294901760
        %5152 = vmatprep.subr.mxu0 %v5151
        %v5153 = vand.u32 %v4416, 4294901760
        %v5154 = vsub.f32 %v4416, %v5153
        %v5155 = vand.u32 %v5154, 4294901760
        %5156 = vmatpush1.msra.mxu0 %v5155
        %v5157 = vand.u32 %v4415, 4294901760
        %v5158 = vsub.f32 %v4415, %v5157
        %v5159 = vand.u32 %v5158, 4294901760
        %5160 = vmatprep.subr.mxu0 %v5159
        %v5161 = vand.u32 %v4414, 4294901760
        %v5162 = vsub.f32 %v4414, %v5161
        %v5163 = vand.u32 %v5162, 4294901760
        %5164 = vmatpush1.msra.mxu0 %v5163
        %v5165 = vand.u32 %v4413, 4294901760
        %v5166 = vsub.f32 %v4413, %v5165
        %v5167 = vand.u32 %v5166, 4294901760
        %5168 = vmatprep.subr.mxu0 %v5167
        %v5169 = vand.u32 %v4412, 4294901760
        %v5170 = vsub.f32 %v4412, %v5169
        %v5171 = vand.u32 %v5170, 4294901760
        %5172 = vmatpush1.msra.mxu0 %v5171
        %v5173 = vand.u32 %v4411, 4294901760
        %v5174 = vsub.f32 %v4411, %v5173
        %v5175 = vand.u32 %v5174, 4294901760
        %5176 = vmatprep.subr.mxu0 %v5175
        %v5177 = vand.u32 %v4410, 4294901760
        %v5178 = vsub.f32 %v4410, %v5177
        %v5179 = vand.u32 %v5178, 4294901760
        %5180 = vmatpush1.msra.mxu0 %v5179
        %v5181 = vand.u32 %v4409, 4294901760
        %v5182 = vsub.f32 %v4409, %v5181
        %v5183 = vand.u32 %v5182, 4294901760
        %5184 = vmatprep.subr.mxu0 %v5183
        %v5185 = vand.u32 %v4408, 4294901760
        %v5186 = vsub.f32 %v4408, %v5185
        %v5187 = vand.u32 %v5186, 4294901760
        %5188 = vmatpush1.msra.mxu0 %v5187
        %v5189 = vand.u32 %v4407, 4294901760
        %v5190 = vsub.f32 %v4407, %v5189
        %v5191 = vand.u32 %v5190, 4294901760
        %5192 = vmatprep.subr.mxu0 %v5191
        %v5193 = vand.u32 %v4406, 4294901760
        %v5194 = vsub.f32 %v4406, %v5193
        %v5195 = vand.u32 %v5194, 4294901760
        %5196 = vmatpush1.msra.mxu0 %v5195
        %5197 = vmatprep.subr.mxu0 0.0
        %5198 = vmatpush2.msra.mxu0 0.0
        %5199 = vmatprep.subr.mxu0 0.0
        %5200 = vmatpush2.msra.mxu0 0.0
        %5201 = vmatprep.subr.mxu0 0.0
        %5202 = vmatpush2.msra.mxu0 0.0
        %5203 = vmatprep.subr.mxu0 0.0
        %5204 = vmatpush2.msra.mxu0 0.0
        %5205 = vmatprep.subr.mxu0 0.0
        %5206 = vmatpush2.msra.mxu0 0.0
        %5207 = vmatprep.subr.mxu0 0.0
        %5208 = vmatpush2.msra.mxu0 0.0
        %5209 = vmatprep.subr.mxu0 0.0
        %5210 = vmatpush2.msra.mxu0 0.0
        %5211 = vmatprep.subr.mxu0 0.0
        %5212 = vmatpush2.msra.mxu0 0.0
        %5213 = vmatprep.subr.mxu0 0.0
        %5214 = vmatpush2.msra.mxu0 0.0
        %5215 = vmatprep.subr.mxu0 0.0
        %5216 = vmatpush2.msra.mxu0 0.0
        %5217 = vmatprep.subr.mxu0 0.0
        %5218 = vmatpush2.msra.mxu0 0.0
        %5219 = vmatprep.subr.mxu0 0.0
        %5220 = vmatpush2.msra.mxu0 0.0
        %5221 = vmatprep.subr.mxu0 0.0
        %5222 = vmatpush2.msra.mxu0 0.0
        %5223 = vmatprep.subr.mxu0 0.0
        %5224 = vmatpush2.msra.mxu0 0.0
        %5225 = vmatprep.subr.mxu0 0.0
        %5226 = vmatpush2.msra.mxu0 0.0
        %5227 = vmatprep.subr.mxu0 0.0
        %5228 = vmatpush2.msra.mxu0 0.0
        %5229 = vmatprep.mubr.f32.mxu0 0.0
        %v5230 = vand.u32 %v4472, 4294901760
        %5231 = vmatmul.mubr.f32.gmra.mxu0 %v5230
        %v5232 = vpop.f32.mrf.mxu0
        %v5233 = vadd.f32 %v5065, %v5232
        %v5234 = vpop.f32.mrf.mxu0
        %v5235 = vadd.f32 %v5067, %v5234
        %5236 = vmatprep.mubr.f32.mxu0 0.0
        %v5237 = vand.u32 %v4475, 4294901760
        %5238 = vmatmul.mubr.f32.gmra.mxu0 %v5237
        %v5239 = vpop.f32.mrf.mxu0
        %v5240 = vadd.f32 %v5074, %v5239
        %v5241 = vpop.f32.mrf.mxu0
        %v5242 = vadd.f32 %v5076, %v5241
        %5243 = vmatprep.mubr.f32.mxu0 0.0
        %v5244 = vand.u32 %v4478, 4294901760
        %5245 = vmatmul.mubr.f32.gmra.mxu0 %v5244
        %v5246 = vpop.f32.mrf.mxu0
        %v5247 = vadd.f32 %v5083, %v5246
        %v5248 = vpop.f32.mrf.mxu0
        %v5249 = vadd.f32 %v5085, %v5248
        %5250 = vmatprep.mubr.f32.mxu0 0.0
        %v5251 = vand.u32 %v4481, 4294901760
        %5252 = vmatmul.mubr.f32.gmra.mxu0 %v5251
        %v5253 = vpop.f32.mrf.mxu0
        %v5254 = vadd.f32 %v5092, %v5253
        %v5255 = vpop.f32.mrf.mxu0
        %v5256 = vadd.f32 %v5094, %v5255
        %5257 = vmatprep.mubr.f32.mxu0 0.0
        %v5258 = vand.u32 %v4484, 4294901760
        %5259 = vmatmul.mubr.f32.gmra.mxu0 %v5258
        %v5260 = vpop.f32.mrf.mxu0
        %v5261 = vadd.f32 %v5101, %v5260
        %v5262 = vpop.f32.mrf.mxu0
        %v5263 = vadd.f32 %v5103, %v5262
        %5264 = vmatprep.mubr.f32.mxu0 0.0
        %v5265 = vand.u32 %v4487, 4294901760
        %5266 = vmatmul.mubr.f32.gmra.mxu0 %v5265
        %v5267 = vpop.f32.mrf.mxu0
        %v5268 = vadd.f32 %v5110, %v5267
        %v5269 = vpop.f32.mrf.mxu0
        %v5270 = vadd.f32 %v5112, %v5269
        %5271 = vmatprep.mubr.f32.mxu0 0.0
        %v5272 = vand.u32 %v4490, 4294901760
        %5273 = vmatmul.mubr.f32.gmra.mxu0 %v5272
        %v5274 = vpop.f32.mrf.mxu0
        %v5275 = vadd.f32 %v5119, %v5274
        %v5276 = vpop.f32.mrf.mxu0
        %v5277 = vadd.f32 %v5121, %v5276
        %5278 = vdwg.mxu0
        %5279 = vmatprep.subr.mxu0 0.0
        %5280 = vmatpush1.msra.mxu0 0.0
        %5281 = vmatprep.subr.mxu0 0.0
        %5282 = vmatpush1.msra.mxu0 0.0
        %5283 = vmatprep.subr.mxu0 0.0
        %5284 = vmatpush1.msra.mxu0 0.0
        %5285 = vmatprep.subr.mxu0 0.0
        %5286 = vmatpush1.msra.mxu0 0.0
        %5287 = vmatprep.subr.mxu0 0.0
        %5288 = vmatpush1.msra.mxu0 0.0
        %5289 = vmatprep.subr.mxu0 0.0
        %5290 = vmatpush1.msra.mxu0 0.0
        %5291 = vmatprep.subr.mxu0 0.0
        %5292 = vmatpush1.msra.mxu0 0.0
        %5293 = vmatprep.subr.mxu0 0.0
        %5294 = vmatpush1.msra.mxu0 0.0
        %5295 = vmatprep.subr.mxu0 0.0
        %5296 = vmatpush1.msra.mxu0 0.0
        %v5297 = vand.u32 %v4419, 4294901760
        %5298 = vmatprep.subr.mxu0 %v5297
        %v5299 = vand.u32 %v4418, 4294901760
        %5300 = vmatpush1.msra.mxu0 %v5299
        %v5301 = vand.u32 %v4417, 4294901760
        %5302 = vmatprep.subr.mxu0 %v5301
        %v5303 = vand.u32 %v4416, 4294901760
        %5304 = vmatpush1.msra.mxu0 %v5303
        %v5305 = vand.u32 %v4415, 4294901760
        %5306 = vmatprep.subr.mxu0 %v5305
        %v5307 = vand.u32 %v4414, 4294901760
        %5308 = vmatpush1.msra.mxu0 %v5307
        %v5309 = vand.u32 %v4413, 4294901760
        %5310 = vmatprep.subr.mxu0 %v5309
        %v5311 = vand.u32 %v4412, 4294901760
        %5312 = vmatpush1.msra.mxu0 %v5311
        %v5313 = vand.u32 %v4411, 4294901760
        %5314 = vmatprep.subr.mxu0 %v5313
        %v5315 = vand.u32 %v4410, 4294901760
        %5316 = vmatpush1.msra.mxu0 %v5315
        %v5317 = vand.u32 %v4409, 4294901760
        %5318 = vmatprep.subr.mxu0 %v5317
        %v5319 = vand.u32 %v4408, 4294901760
        %5320 = vmatpush1.msra.mxu0 %v5319
        %v5321 = vand.u32 %v4407, 4294901760
        %5322 = vmatprep.subr.mxu0 %v5321
        %v5323 = vand.u32 %v4406, 4294901760
        %5324 = vmatpush1.msra.mxu0 %v5323
        %5325 = vmatprep.subr.mxu0 0.0
        %5326 = vmatpush2.msra.mxu0 0.0
        %5327 = vmatprep.subr.mxu0 0.0
        %5328 = vmatpush2.msra.mxu0 0.0
        %5329 = vmatprep.subr.mxu0 0.0
        %5330 = vmatpush2.msra.mxu0 0.0
        %5331 = vmatprep.subr.mxu0 0.0
        %5332 = vmatpush2.msra.mxu0 0.0
        %5333 = vmatprep.subr.mxu0 0.0
        %5334 = vmatpush2.msra.mxu0 0.0
        %5335 = vmatprep.subr.mxu0 0.0
        %5336 = vmatpush2.msra.mxu0 0.0
        %5337 = vmatprep.subr.mxu0 0.0
        %5338 = vmatpush2.msra.mxu0 0.0
        %5339 = vmatprep.subr.mxu0 0.0
        %5340 = vmatpush2.msra.mxu0 0.0
        %5341 = vmatprep.subr.mxu0 0.0
        %5342 = vmatpush2.msra.mxu0 0.0
        %5343 = vmatprep.subr.mxu0 0.0
        %5344 = vmatpush2.msra.mxu0 0.0
        %5345 = vmatprep.subr.mxu0 0.0
        %5346 = vmatpush2.msra.mxu0 0.0
        %5347 = vmatprep.subr.mxu0 0.0
        %5348 = vmatpush2.msra.mxu0 0.0
        %5349 = vmatprep.subr.mxu0 0.0
        %5350 = vmatpush2.msra.mxu0 0.0
        %5351 = vmatprep.subr.mxu0 0.0
        %5352 = vmatpush2.msra.mxu0 0.0
        %5353 = vmatprep.subr.mxu0 0.0
        %5354 = vmatpush2.msra.mxu0 0.0
        %5355 = vmatprep.subr.mxu0 0.0
        %5356 = vmatpush2.msra.mxu0 0.0
        %5357 = vmatprep.mubr.f32.mxu0 0.0
        %v5358 = vand.u32 %v4472, 4294901760
        %5359 = vmatmul.mubr.f32.gmra.mxu0 %v5358
        %v5360 = vpop.f32.mrf.mxu0
        %v5361 = vadd.f32 %v5233, %v5360
        %v5362 = vpop.f32.mrf.mxu0
        %v5363 = vadd.f32 %v5235, %v5362
        %5364 = vmatprep.mubr.f32.mxu0 0.0
        %v5365 = vand.u32 %v4475, 4294901760
        %5366 = vmatmul.mubr.f32.gmra.mxu0 %v5365
        %v5367 = vpop.f32.mrf.mxu0
        %v5368 = vadd.f32 %v5240, %v5367
        %v5369 = vpop.f32.mrf.mxu0
        %v5370 = vadd.f32 %v5242, %v5369
        %5371 = vmatprep.mubr.f32.mxu0 0.0
        %v5372 = vand.u32 %v4478, 4294901760
        %5373 = vmatmul.mubr.f32.gmra.mxu0 %v5372
        %v5374 = vpop.f32.mrf.mxu0
        %v5375 = vadd.f32 %v5247, %v5374
        %v5376 = vpop.f32.mrf.mxu0
        %v5377 = vadd.f32 %v5249, %v5376
        %5378 = vmatprep.mubr.f32.mxu0 0.0
        %v5379 = vand.u32 %v4481, 4294901760
        %5380 = vmatmul.mubr.f32.gmra.mxu0 %v5379
        %v5381 = vpop.f32.mrf.mxu0
        %v5382 = vadd.f32 %v5254, %v5381
        %v5383 = vpop.f32.mrf.mxu0
        %v5384 = vadd.f32 %v5256, %v5383
        %5385 = vmatprep.mubr.f32.mxu0 0.0
        %v5386 = vand.u32 %v4484, 4294901760
        %5387 = vmatmul.mubr.f32.gmra.mxu0 %v5386
        %v5388 = vpop.f32.mrf.mxu0
        %v5389 = vadd.f32 %v5261, %v5388
        %v5390 = vpop.f32.mrf.mxu0
        %v5391 = vadd.f32 %v5263, %v5390
        %5392 = vmatprep.mubr.f32.mxu0 0.0
        %v5393 = vand.u32 %v4487, 4294901760
        %5394 = vmatmul.mubr.f32.gmra.mxu0 %v5393
        %v5395 = vpop.f32.mrf.mxu0
        %v5396 = vadd.f32 %v5268, %v5395
        %v5397 = vpop.f32.mrf.mxu0
        %v5398 = vadd.f32 %v5270, %v5397
        %5399 = vmatprep.mubr.f32.mxu0 0.0
        %v5400 = vand.u32 %v4490, 4294901760
        %5401 = vmatmul.mubr.f32.gmra.mxu0 %v5400
        %v5402 = vpop.f32.mrf.mxu0
        %v5403 = vadd.f32 %v5275, %v5402
        %v5404 = vpop.f32.mrf.mxu0
        %v5405 = vadd.f32 %v5277, %v5404
        %5406 = vdwg.mxu0
        %v5407 = vtanh.pop %v5361
        %v5408 = vtanh.pop %v5363
        %v5409 = vtanh.pop %v5368
        %v5410 = vtanh.pop %v5370
        %v5411 = vtanh.pop %v5375
        %v5412 = vtanh.pop %v5377
        %v5413 = vtanh.pop %v5382
        %v5414 = vtanh.pop %v5384
        %v5415 = vtanh.pop %v5389
        %v5416 = vtanh.pop %v5391
        %v5417 = vtanh.pop %v5396
        %v5418 = vtanh.pop %v5398
        %v5419 = vtanh.pop %v5403
        %v5420 = vtanh.pop %v5405
        %v5421 = vmul.f32 %v5407, %v2349
        %v5422 = vmul.f32 %v5408, %v2350
        %v5423 = vmul.f32 %v5409, %v2351
        %v5424 = vmul.f32 %v5410, %v2352
        %v5425 = vmul.f32 %v5411, %v2353
        %v5426 = vmul.f32 %v5412, %v2354
        %v5427 = vmul.f32 %v5413, %v2355
        %v5428 = vmul.f32 %v5414, %v2356
        %v5429 = vmul.f32 %v5415, %v2357
        %v5430 = vmul.f32 %v5416, %v2358
        %v5431 = vmul.f32 %v5417, %v2359
        %v5432 = vmul.f32 %v5418, %v2360
        %v5433 = vmul.f32 %v5419, %v2361
        %v5434 = vmul.f32 %v5420, %v2362
        %v5435 = vadd.f32 %v2307, %v5421
        %v5436 = vadd.f32 %v2308, %v5422
        %v5437 = vadd.f32 %v2309, %v5423
        %v5438 = vadd.f32 %v2310, %v5424
        %v5439 = vadd.f32 %v2311, %v5425
        %v5440 = vadd.f32 %v2312, %v5426
        %v5441 = vadd.f32 %v2313, %v5427
        %v5442 = vadd.f32 %v2314, %v5428
        %v5443 = vadd.f32 %v2315, %v5429
        %v5444 = vadd.f32 %v2316, %v5430
        %v5445 = vadd.f32 %v2317, %v5431
        %v5446 = vadd.f32 %v2318, %v5432
        %v5447 = vadd.f32 %v2319, %v5433
        %v5448 = vadd.f32 %v2320, %v5434
        %s5449 = scalar_lea.vmem %s3, 168
        %v5450 = vld [vmem:[%s5449] sm:$0xff]
        %v5451 = vld [vmem:[%s5449 + $0x8] sm:$0xff]
        %v5452 = vld [vmem:[%s5449 + $0x10] sm:$0xff]
        %v5453 = vld [vmem:[%s5449 + $0x18] sm:$0xff]
        %v5454 = vld [vmem:[%s5449 + $0x20] sm:$0xff]
        %v5455 = vld [vmem:[%s5449 + $0x28] sm:$0xff]
        %v5456 = vld [vmem:[%s5449 + $0x30] sm:$0xff]
        %s5457 = scalar_lea.vmem %s4, 168
        %v5458 = vld [vmem:[%s5457] sm:$0xff]
        %v5459 = vld [vmem:[%s5457 + $0x8] sm:$0xff]
        %v5460 = vld [vmem:[%s5457 + $0x10] sm:$0xff]
        %v5461 = vld [vmem:[%s5457 + $0x18] sm:$0xff]
        %v5462 = vld [vmem:[%s5457 + $0x20] sm:$0xff]
        %v5463 = vld [vmem:[%s5457 + $0x28] sm:$0xff]
        %v5464 = vld [vmem:[%s5457 + $0x30] sm:$0xff]
        %5466 = vset.pattern.permute.xlu0 0
        %5467 = vperm.xlu0 %5466, %v5458
        %v5468 = vpop.permute.xlu0 %5467
        %5471 = vset.pattern.permute.xlu0 0
        %5472 = vperm.xlu0 %5471, %v5459
        %v5473 = vpop.permute.xlu0 %5472
        %5476 = vset.pattern.permute.xlu0 0
        %5477 = vperm.xlu0 %5476, %v5460
        %v5478 = vpop.permute.xlu0 %5477
        %5481 = vset.pattern.permute.xlu0 0
        %5482 = vperm.xlu0 %5481, %v5461
        %v5483 = vpop.permute.xlu0 %5482
        %5486 = vset.pattern.permute.xlu0 0
        %5487 = vperm.xlu0 %5486, %v5462
        %v5488 = vpop.permute.xlu0 %5487
        %5491 = vset.pattern.permute.xlu0 0
        %5492 = vperm.xlu0 %5491, %v5463
        %v5493 = vpop.permute.xlu0 %5492
        %5496 = vset.pattern.permute.xlu0 0
        %5497 = vperm.xlu0 %5496, %v5464
        %v5498 = vpop.permute.xlu0 %5497
        %v5501 = vsel %vm2412, %v5450, 0
        %v5504 = vsel %vm2412, %v5451, 0
        %v5507 = vsel %vm2412, %v5452, 0
        %v5510 = vsel %vm2412, %v5453, 0
        %v5513 = vsel %vm2412, %v5454, 0
        %v5516 = vsel %vm2412, %v5455, 0
        %v5519 = vsel %vm2412, %v5456, 0
        %5521 = vmatprep.subr.mxu0 0.0
        %5522 = vmatpush1.msra.mxu0 0.0
        %5523 = vmatprep.subr.mxu0 0.0
        %5524 = vmatpush1.msra.mxu0 0.0
        %5525 = vmatprep.subr.mxu0 0.0
        %5526 = vmatpush1.msra.mxu0 0.0
        %5527 = vmatprep.subr.mxu0 0.0
        %5528 = vmatpush1.msra.mxu0 0.0
        %5529 = vmatprep.subr.mxu0 0.0
        %5530 = vmatpush1.msra.mxu0 0.0
        %5531 = vmatprep.subr.mxu0 0.0
        %5532 = vmatpush1.msra.mxu0 0.0
        %5533 = vmatprep.subr.mxu0 0.0
        %5534 = vmatpush1.msra.mxu0 0.0
        %5535 = vmatprep.subr.mxu0 0.0
        %5536 = vmatpush1.msra.mxu0 0.0
        %5537 = vmatprep.subr.mxu0 0.0
        %5538 = vmatpush1.msra.mxu0 0.0
        %v5539 = vand.u32 %v5448, 4294901760
        %5540 = vmatprep.subr.mxu0 %v5539
        %v5541 = vand.u32 %v5447, 4294901760
        %5542 = vmatpush1.msra.mxu0 %v5541
        %v5543 = vand.u32 %v5446, 4294901760
        %5544 = vmatprep.subr.mxu0 %v5543
        %v5545 = vand.u32 %v5445, 4294901760
        %5546 = vmatpush1.msra.mxu0 %v5545
        %v5547 = vand.u32 %v5444, 4294901760
        %5548 = vmatprep.subr.mxu0 %v5547
        %v5549 = vand.u32 %v5443, 4294901760
        %5550 = vmatpush1.msra.mxu0 %v5549
        %v5551 = vand.u32 %v5442, 4294901760
        %5552 = vmatprep.subr.mxu0 %v5551
        %v5553 = vand.u32 %v5441, 4294901760
        %5554 = vmatpush1.msra.mxu0 %v5553
        %v5555 = vand.u32 %v5440, 4294901760
        %5556 = vmatprep.subr.mxu0 %v5555
        %v5557 = vand.u32 %v5439, 4294901760
        %5558 = vmatpush1.msra.mxu0 %v5557
        %v5559 = vand.u32 %v5438, 4294901760
        %5560 = vmatprep.subr.mxu0 %v5559
        %v5561 = vand.u32 %v5437, 4294901760
        %5562 = vmatpush1.msra.mxu0 %v5561
        %v5563 = vand.u32 %v5436, 4294901760
        %5564 = vmatprep.subr.mxu0 %v5563
        %v5565 = vand.u32 %v5435, 4294901760
        %5566 = vmatpush1.msra.mxu0 %v5565
        %5567 = vmatprep.subr.mxu0 0.0
        %5568 = vmatpush2.msra.mxu0 0.0
        %5569 = vmatprep.subr.mxu0 0.0
        %5570 = vmatpush2.msra.mxu0 0.0
        %5571 = vmatprep.subr.mxu0 0.0
        %5572 = vmatpush2.msra.mxu0 0.0
        %5573 = vmatprep.subr.mxu0 0.0
        %5574 = vmatpush2.msra.mxu0 0.0
        %5575 = vmatprep.subr.mxu0 0.0
        %5576 = vmatpush2.msra.mxu0 0.0
        %5577 = vmatprep.subr.mxu0 0.0
        %5578 = vmatpush2.msra.mxu0 0.0
        %5579 = vmatprep.subr.mxu0 0.0
        %5580 = vmatpush2.msra.mxu0 0.0
        %5581 = vmatprep.subr.mxu0 0.0
        %5582 = vmatpush2.msra.mxu0 0.0
        %5583 = vmatprep.subr.mxu0 0.0
        %5584 = vmatpush2.msra.mxu0 0.0
        %5585 = vmatprep.subr.mxu0 0.0
        %5586 = vmatpush2.msra.mxu0 0.0
        %5587 = vmatprep.subr.mxu0 0.0
        %5588 = vmatpush2.msra.mxu0 0.0
        %5589 = vmatprep.subr.mxu0 0.0
        %5590 = vmatpush2.msra.mxu0 0.0
        %5591 = vmatprep.subr.mxu0 0.0
        %5592 = vmatpush2.msra.mxu0 0.0
        %5593 = vmatprep.subr.mxu0 0.0
        %5594 = vmatpush2.msra.mxu0 0.0
        %5595 = vmatprep.subr.mxu0 0.0
        %5596 = vmatpush2.msra.mxu0 0.0
        %5597 = vmatprep.subr.mxu0 0.0
        %5598 = vmatpush2.msra.mxu0 0.0
        %5599 = vmatprep.mubr.f32.mxu0 0.0
        %v5600 = vand.u32 %v5501, 4294901760
        %v5601 = vsub.f32 %v5501, %v5600
        %v5602 = vand.u32 %v5601, 4294901760
        %v5603 = vsub.f32 %v5601, %v5602
        %v5604 = vand.u32 %v5603, 4294901760
        %5605 = vmatmul.mubr.f32.gmra.mxu0 %v5604
        %v5606 = vpop.f32.mrf.mxu0
        %v5607 = vadd.f32 %v5468, %v5606
        %v5608 = vpop.f32.mrf.mxu0
        %v5609 = vadd.f32 %v5468, %v5608
        %5610 = vmatprep.mubr.f32.mxu0 0.0
        %v5611 = vand.u32 %v5504, 4294901760
        %v5612 = vsub.f32 %v5504, %v5611
        %v5613 = vand.u32 %v5612, 4294901760
        %v5614 = vsub.f32 %v5612, %v5613
        %v5615 = vand.u32 %v5614, 4294901760
        %5616 = vmatmul.mubr.f32.gmra.mxu0 %v5615
        %v5617 = vpop.f32.mrf.mxu0
        %v5618 = vadd.f32 %v5473, %v5617
        %v5619 = vpop.f32.mrf.mxu0
        %v5620 = vadd.f32 %v5473, %v5619
        %5621 = vmatprep.mubr.f32.mxu0 0.0
        %v5622 = vand.u32 %v5507, 4294901760
        %v5623 = vsub.f32 %v5507, %v5622
        %v5624 = vand.u32 %v5623, 4294901760
        %v5625 = vsub.f32 %v5623, %v5624
        %v5626 = vand.u32 %v5625, 4294901760
        %5627 = vmatmul.mubr.f32.gmra.mxu0 %v5626
        %v5628 = vpop.f32.mrf.mxu0
        %v5629 = vadd.f32 %v5478, %v5628
        %v5630 = vpop.f32.mrf.mxu0
        %v5631 = vadd.f32 %v5478, %v5630
        %5632 = vmatprep.mubr.f32.mxu0 0.0
        %v5633 = vand.u32 %v5510, 4294901760
        %v5634 = vsub.f32 %v5510, %v5633
        %v5635 = vand.u32 %v5634, 4294901760
        %v5636 = vsub.f32 %v5634, %v5635
        %v5637 = vand.u32 %v5636, 4294901760
        %5638 = vmatmul.mubr.f32.gmra.mxu0 %v5637
        %v5639 = vpop.f32.mrf.mxu0
        %v5640 = vadd.f32 %v5483, %v5639
        %v5641 = vpop.f32.mrf.mxu0
        %v5642 = vadd.f32 %v5483, %v5641
        %5643 = vmatprep.mubr.f32.mxu0 0.0
        %v5644 = vand.u32 %v5513, 4294901760
        %v5645 = vsub.f32 %v5513, %v5644
        %v5646 = vand.u32 %v5645, 4294901760
        %v5647 = vsub.f32 %v5645, %v5646
        %v5648 = vand.u32 %v5647, 4294901760
        %5649 = vmatmul.mubr.f32.gmra.mxu0 %v5648
        %v5650 = vpop.f32.mrf.mxu0
        %v5651 = vadd.f32 %v5488, %v5650
        %v5652 = vpop.f32.mrf.mxu0
        %v5653 = vadd.f32 %v5488, %v5652
        %5654 = vmatprep.mubr.f32.mxu0 0.0
        %v5655 = vand.u32 %v5516, 4294901760
        %v5656 = vsub.f32 %v5516, %v5655
        %v5657 = vand.u32 %v5656, 4294901760
        %v5658 = vsub.f32 %v5656, %v5657
        %v5659 = vand.u32 %v5658, 4294901760
        %5660 = vmatmul.mubr.f32.gmra.mxu0 %v5659
        %v5661 = vpop.f32.mrf.mxu0
        %v5662 = vadd.f32 %v5493, %v5661
        %v5663 = vpop.f32.mrf.mxu0
        %v5664 = vadd.f32 %v5493, %v5663
        %5665 = vmatprep.mubr.f32.mxu0 0.0
        %v5666 = vand.u32 %v5519, 4294901760
        %v5667 = vsub.f32 %v5519, %v5666
        %v5668 = vand.u32 %v5667, 4294901760
        %v5669 = vsub.f32 %v5667, %v5668
        %v5670 = vand.u32 %v5669, 4294901760
        %5671 = vmatmul.mubr.f32.gmra.mxu0 %v5670
        %v5672 = vpop.f32.mrf.mxu0
        %v5673 = vadd.f32 %v5498, %v5672
        %v5674 = vpop.f32.mrf.mxu0
        %v5675 = vadd.f32 %v5498, %v5674
        %5676 = vdwg.mxu0
        %5677 = vmatprep.subr.mxu0 0.0
        %5678 = vmatpush1.msra.mxu0 0.0
        %5679 = vmatprep.subr.mxu0 0.0
        %5680 = vmatpush1.msra.mxu0 0.0
        %5681 = vmatprep.subr.mxu0 0.0
        %5682 = vmatpush1.msra.mxu0 0.0
        %5683 = vmatprep.subr.mxu0 0.0
        %5684 = vmatpush1.msra.mxu0 0.0
        %5685 = vmatprep.subr.mxu0 0.0
        %5686 = vmatpush1.msra.mxu0 0.0
        %5687 = vmatprep.subr.mxu0 0.0
        %5688 = vmatpush1.msra.mxu0 0.0
        %5689 = vmatprep.subr.mxu0 0.0
        %5690 = vmatpush1.msra.mxu0 0.0
        %5691 = vmatprep.subr.mxu0 0.0
        %5692 = vmatpush1.msra.mxu0 0.0
        %5693 = vmatprep.subr.mxu0 0.0
        %5694 = vmatpush1.msra.mxu0 0.0
        %v5695 = vand.u32 %v5448, 4294901760
        %v5696 = vsub.f32 %v5448, %v5695
        %v5697 = vand.u32 %v5696, 4294901760
        %v5698 = vsub.f32 %v5696, %v5697
        %v5699 = vand.u32 %v5698, 4294901760
        %5700 = vmatprep.subr.mxu0 %v5699
        %v5701 = vand.u32 %v5447, 4294901760
        %v5702 = vsub.f32 %v5447, %v5701
        %v5703 = vand.u32 %v5702, 4294901760
        %v5704 = vsub.f32 %v5702, %v5703
        %v5705 = vand.u32 %v5704, 4294901760
        %5706 = vmatpush1.msra.mxu0 %v5705
        %v5707 = vand.u32 %v5446, 4294901760
        %v5708 = vsub.f32 %v5446, %v5707
        %v5709 = vand.u32 %v5708, 4294901760
        %v5710 = vsub.f32 %v5708, %v5709
        %v5711 = vand.u32 %v5710, 4294901760
        %5712 = vmatprep.subr.mxu0 %v5711
        %v5713 = vand.u32 %v5445, 4294901760
        %v5714 = vsub.f32 %v5445, %v5713
        %v5715 = vand.u32 %v5714, 4294901760
        %v5716 = vsub.f32 %v5714, %v5715
        %v5717 = vand.u32 %v5716, 4294901760
        %5718 = vmatpush1.msra.mxu0 %v5717
        %v5719 = vand.u32 %v5444, 4294901760
        %v5720 = vsub.f32 %v5444, %v5719
        %v5721 = vand.u32 %v5720, 4294901760
        %v5722 = vsub.f32 %v5720, %v5721
        %v5723 = vand.u32 %v5722, 4294901760
        %5724 = vmatprep.subr.mxu0 %v5723
        %v5725 = vand.u32 %v5443, 4294901760
        %v5726 = vsub.f32 %v5443, %v5725
        %v5727 = vand.u32 %v5726, 4294901760
        %v5728 = vsub.f32 %v5726, %v5727
        %v5729 = vand.u32 %v5728, 4294901760
        %5730 = vmatpush1.msra.mxu0 %v5729
        %v5731 = vand.u32 %v5442, 4294901760
        %v5732 = vsub.f32 %v5442, %v5731
        %v5733 = vand.u32 %v5732, 4294901760
        %v5734 = vsub.f32 %v5732, %v5733
        %v5735 = vand.u32 %v5734, 4294901760
        %5736 = vmatprep.subr.mxu0 %v5735
        %v5737 = vand.u32 %v5441, 4294901760
        %v5738 = vsub.f32 %v5441, %v5737
        %v5739 = vand.u32 %v5738, 4294901760
        %v5740 = vsub.f32 %v5738, %v5739
        %v5741 = vand.u32 %v5740, 4294901760
        %5742 = vmatpush1.msra.mxu0 %v5741
        %v5743 = vand.u32 %v5440, 4294901760
        %v5744 = vsub.f32 %v5440, %v5743
        %v5745 = vand.u32 %v5744, 4294901760
        %v5746 = vsub.f32 %v5744, %v5745
        %v5747 = vand.u32 %v5746, 4294901760
        %5748 = vmatprep.subr.mxu0 %v5747
        %v5749 = vand.u32 %v5439, 4294901760
        %v5750 = vsub.f32 %v5439, %v5749
        %v5751 = vand.u32 %v5750, 4294901760
        %v5752 = vsub.f32 %v5750, %v5751
        %v5753 = vand.u32 %v5752, 4294901760
        %5754 = vmatpush1.msra.mxu0 %v5753
        %v5755 = vand.u32 %v5438, 4294901760
        %v5756 = vsub.f32 %v5438, %v5755
        %v5757 = vand.u32 %v5756, 4294901760
        %v5758 = vsub.f32 %v5756, %v5757
        %v5759 = vand.u32 %v5758, 4294901760
        %5760 = vmatprep.subr.mxu0 %v5759
        %v5761 = vand.u32 %v5437, 4294901760
        %v5762 = vsub.f32 %v5437, %v5761
        %v5763 = vand.u32 %v5762, 4294901760
        %v5764 = vsub.f32 %v5762, %v5763
        %v5765 = vand.u32 %v5764, 4294901760
        %5766 = vmatpush1.msra.mxu0 %v5765
        %v5767 = vand.u32 %v5436, 4294901760
        %v5768 = vsub.f32 %v5436, %v5767
        %v5769 = vand.u32 %v5768, 4294901760
        %v5770 = vsub.f32 %v5768, %v5769
        %v5771 = vand.u32 %v5770, 4294901760
        %5772 = vmatprep.subr.mxu0 %v5771
        %v5773 = vand.u32 %v5435, 4294901760
        %v5774 = vsub.f32 %v5435, %v5773
        %v5775 = vand.u32 %v5774, 4294901760
        %v5776 = vsub.f32 %v5774, %v5775
        %v5777 = vand.u32 %v5776, 4294901760
        %5778 = vmatpush1.msra.mxu0 %v5777
        %5779 = vmatprep.subr.mxu0 0.0
        %5780 = vmatpush2.msra.mxu0 0.0
        %5781 = vmatprep.subr.mxu0 0.0
        %5782 = vmatpush2.msra.mxu0 0.0
        %5783 = vmatprep.subr.mxu0 0.0
        %5784 = vmatpush2.msra.mxu0 0.0
        %5785 = vmatprep.subr.mxu0 0.0
        %5786 = vmatpush2.msra.mxu0 0.0
        %5787 = vmatprep.subr.mxu0 0.0
        %5788 = vmatpush2.msra.mxu0 0.0
        %5789 = vmatprep.subr.mxu0 0.0
        %5790 = vmatpush2.msra.mxu0 0.0
        %5791 = vmatprep.subr.mxu0 0.0
        %5792 = vmatpush2.msra.mxu0 0.0
        %5793 = vmatprep.subr.mxu0 0.0
        %5794 = vmatpush2.msra.mxu0 0.0
        %5795 = vmatprep.subr.mxu0 0.0
        %5796 = vmatpush2.msra.mxu0 0.0
        %5797 = vmatprep.subr.mxu0 0.0
        %5798 = vmatpush2.msra.mxu0 0.0
        %5799 = vmatprep.subr.mxu0 0.0
        %5800 = vmatpush2.msra.mxu0 0.0
        %5801 = vmatprep.subr.mxu0 0.0
        %5802 = vmatpush2.msra.mxu0 0.0
        %5803 = vmatprep.subr.mxu0 0.0
        %5804 = vmatpush2.msra.mxu0 0.0
        %5805 = vmatprep.subr.mxu0 0.0
        %5806 = vmatpush2.msra.mxu0 0.0
        %5807 = vmatprep.subr.mxu0 0.0
        %5808 = vmatpush2.msra.mxu0 0.0
        %5809 = vmatprep.subr.mxu0 0.0
        %5810 = vmatpush2.msra.mxu0 0.0
        %5811 = vmatprep.mubr.f32.mxu0 0.0
        %v5812 = vand.u32 %v5501, 4294901760
        %5813 = vmatmul.mubr.f32.gmra.mxu0 %v5812
        %v5814 = vpop.f32.mrf.mxu0
        %v5815 = vadd.f32 %v5607, %v5814
        %v5816 = vpop.f32.mrf.mxu0
        %v5817 = vadd.f32 %v5609, %v5816
        %5818 = vmatprep.mubr.f32.mxu0 0.0
        %v5819 = vand.u32 %v5504, 4294901760
        %5820 = vmatmul.mubr.f32.gmra.mxu0 %v5819
        %v5821 = vpop.f32.mrf.mxu0
        %v5822 = vadd.f32 %v5618, %v5821
        %v5823 = vpop.f32.mrf.mxu0
        %v5824 = vadd.f32 %v5620, %v5823
        %5825 = vmatprep.mubr.f32.mxu0 0.0
        %v5826 = vand.u32 %v5507, 4294901760
        %5827 = vmatmul.mubr.f32.gmra.mxu0 %v5826
        %v5828 = vpop.f32.mrf.mxu0
        %v5829 = vadd.f32 %v5629, %v5828
        %v5830 = vpop.f32.mrf.mxu0
        %v5831 = vadd.f32 %v5631, %v5830
        %5832 = vmatprep.mubr.f32.mxu0 0.0
        %v5833 = vand.u32 %v5510, 4294901760
        %5834 = vmatmul.mubr.f32.gmra.mxu0 %v5833
        %v5835 = vpop.f32.mrf.mxu0
        %v5836 = vadd.f32 %v5640, %v5835
        %v5837 = vpop.f32.mrf.mxu0
        %v5838 = vadd.f32 %v5642, %v5837
        %5839 = vmatprep.mubr.f32.mxu0 0.0
        %v5840 = vand.u32 %v5513, 4294901760
        %5841 = vmatmul.mubr.f32.gmra.mxu0 %v5840
        %v5842 = vpop.f32.mrf.mxu0
        %v5843 = vadd.f32 %v5651, %v5842
        %v5844 = vpop.f32.mrf.mxu0
        %v5845 = vadd.f32 %v5653, %v5844
        %5846 = vmatprep.mubr.f32.mxu0 0.0
        %v5847 = vand.u32 %v5516, 4294901760
        %5848 = vmatmul.mubr.f32.gmra.mxu0 %v5847
        %v5849 = vpop.f32.mrf.mxu0
        %v5850 = vadd.f32 %v5662, %v5849
        %v5851 = vpop.f32.mrf.mxu0
        %v5852 = vadd.f32 %v5664, %v5851
        %5853 = vmatprep.mubr.f32.mxu0 0.0
        %v5854 = vand.u32 %v5519, 4294901760
        %5855 = vmatmul.mubr.f32.gmra.mxu0 %v5854
        %v5856 = vpop.f32.mrf.mxu0
        %v5857 = vadd.f32 %v5673, %v5856
        %v5858 = vpop.f32.mrf.mxu0
        %v5859 = vadd.f32 %v5675, %v5858
        %5860 = vdwg.mxu0
        %5861 = vmatprep.subr.mxu0 0.0
        %5862 = vmatpush1.msra.mxu0 0.0
        %5863 = vmatprep.subr.mxu0 0.0
        %5864 = vmatpush1.msra.mxu0 0.0
        %5865 = vmatprep.subr.mxu0 0.0
        %5866 = vmatpush1.msra.mxu0 0.0
        %5867 = vmatprep.subr.mxu0 0.0
        %5868 = vmatpush1.msra.mxu0 0.0
        %5869 = vmatprep.subr.mxu0 0.0
        %5870 = vmatpush1.msra.mxu0 0.0
        %5871 = vmatprep.subr.mxu0 0.0
        %5872 = vmatpush1.msra.mxu0 0.0
        %5873 = vmatprep.subr.mxu0 0.0
        %5874 = vmatpush1.msra.mxu0 0.0
        %5875 = vmatprep.subr.mxu0 0.0
        %5876 = vmatpush1.msra.mxu0 0.0
        %5877 = vmatprep.subr.mxu0 0.0
        %5878 = vmatpush1.msra.mxu0 0.0
        %v5879 = vand.u32 %v5448, 4294901760
        %v5880 = vsub.f32 %v5448, %v5879
        %5881 = vmatprep.subr.mxu0 %v5880
        %v5882 = vand.u32 %v5447, 4294901760
        %v5883 = vsub.f32 %v5447, %v5882
        %5884 = vmatpush1.msra.mxu0 %v5883
        %v5885 = vand.u32 %v5446, 4294901760
        %v5886 = vsub.f32 %v5446, %v5885
        %5887 = vmatprep.subr.mxu0 %v5886
        %v5888 = vand.u32 %v5445, 4294901760
        %v5889 = vsub.f32 %v5445, %v5888
        %5890 = vmatpush1.msra.mxu0 %v5889
        %v5891 = vand.u32 %v5444, 4294901760
        %v5892 = vsub.f32 %v5444, %v5891
        %5893 = vmatprep.subr.mxu0 %v5892
        %v5894 = vand.u32 %v5443, 4294901760
        %v5895 = vsub.f32 %v5443, %v5894
        %5896 = vmatpush1.msra.mxu0 %v5895
        %v5897 = vand.u32 %v5442, 4294901760
        %v5898 = vsub.f32 %v5442, %v5897
        %5899 = vmatprep.subr.mxu0 %v5898
        %v5900 = vand.u32 %v5441, 4294901760
        %v5901 = vsub.f32 %v5441, %v5900
        %5902 = vmatpush1.msra.mxu0 %v5901
        %v5903 = vand.u32 %v5440, 4294901760
        %v5904 = vsub.f32 %v5440, %v5903
        %5905 = vmatprep.subr.mxu0 %v5904
        %v5906 = vand.u32 %v5439, 4294901760
        %v5907 = vsub.f32 %v5439, %v5906
        %5908 = vmatpush1.msra.mxu0 %v5907
        %v5909 = vand.u32 %v5438, 4294901760
        %v5910 = vsub.f32 %v5438, %v5909
        %5911 = vmatprep.subr.mxu0 %v5910
        %v5912 = vand.u32 %v5437, 4294901760
        %v5913 = vsub.f32 %v5437, %v5912
        %5914 = vmatpush1.msra.mxu0 %v5913
        %v5915 = vand.u32 %v5436, 4294901760
        %v5916 = vsub.f32 %v5436, %v5915
        %5917 = vmatprep.subr.mxu0 %v5916
        %v5918 = vand.u32 %v5435, 4294901760
        %v5919 = vsub.f32 %v5435, %v5918
        %5920 = vmatpush1.msra.mxu0 %v5919
        %5921 = vmatprep.subr.mxu0 0.0
        %5922 = vmatpush2.msra.mxu0 0.0
        %5923 = vmatprep.subr.mxu0 0.0
        %5924 = vmatpush2.msra.mxu0 0.0
        %5925 = vmatprep.subr.mxu0 0.0
        %5926 = vmatpush2.msra.mxu0 0.0
        %5927 = vmatprep.subr.mxu0 0.0
        %5928 = vmatpush2.msra.mxu0 0.0
        %5929 = vmatprep.subr.mxu0 0.0
        %5930 = vmatpush2.msra.mxu0 0.0
        %5931 = vmatprep.subr.mxu0 0.0
        %5932 = vmatpush2.msra.mxu0 0.0
        %5933 = vmatprep.subr.mxu0 0.0
        %5934 = vmatpush2.msra.mxu0 0.0
        %5935 = vmatprep.subr.mxu0 0.0
        %5936 = vmatpush2.msra.mxu0 0.0
        %5937 = vmatprep.subr.mxu0 0.0
        %5938 = vmatpush2.msra.mxu0 0.0
        %5939 = vmatprep.subr.mxu0 0.0
        %5940 = vmatpush2.msra.mxu0 0.0
        %5941 = vmatprep.subr.mxu0 0.0
        %5942 = vmatpush2.msra.mxu0 0.0
        %5943 = vmatprep.subr.mxu0 0.0
        %5944 = vmatpush2.msra.mxu0 0.0
        %5945 = vmatprep.subr.mxu0 0.0
        %5946 = vmatpush2.msra.mxu0 0.0
        %5947 = vmatprep.subr.mxu0 0.0
        %5948 = vmatpush2.msra.mxu0 0.0
        %5949 = vmatprep.subr.mxu0 0.0
        %5950 = vmatpush2.msra.mxu0 0.0
        %5951 = vmatprep.subr.mxu0 0.0
        %5952 = vmatpush2.msra.mxu0 0.0
        %5953 = vmatprep.mubr.f32.mxu0 0.0
        %v5954 = vand.u32 %v5501, 4294901760
        %v5955 = vsub.f32 %v5501, %v5954
        %5956 = vmatmul.mubr.f32.gmra.mxu0 %v5955
        %v5957 = vpop.f32.mrf.mxu0
        %v5958 = vadd.f32 %v5815, %v5957
        %v5959 = vpop.f32.mrf.mxu0
        %v5960 = vadd.f32 %v5817, %v5959
        %5961 = vmatprep.mubr.f32.mxu0 0.0
        %v5962 = vand.u32 %v5504, 4294901760
        %v5963 = vsub.f32 %v5504, %v5962
        %5964 = vmatmul.mubr.f32.gmra.mxu0 %v5963
        %v5965 = vpop.f32.mrf.mxu0
        %v5966 = vadd.f32 %v5822, %v5965
        %v5967 = vpop.f32.mrf.mxu0
        %v5968 = vadd.f32 %v5824, %v5967
        %5969 = vmatprep.mubr.f32.mxu0 0.0
        %v5970 = vand.u32 %v5507, 4294901760
        %v5971 = vsub.f32 %v5507, %v5970
        %5972 = vmatmul.mubr.f32.gmra.mxu0 %v5971
        %v5973 = vpop.f32.mrf.mxu0
        %v5974 = vadd.f32 %v5829, %v5973
        %v5975 = vpop.f32.mrf.mxu0
        %v5976 = vadd.f32 %v5831, %v5975
        %5977 = vmatprep.mubr.f32.mxu0 0.0
        %v5978 = vand.u32 %v5510, 4294901760
        %v5979 = vsub.f32 %v5510, %v5978
        %5980 = vmatmul.mubr.f32.gmra.mxu0 %v5979
        %v5981 = vpop.f32.mrf.mxu0
        %v5982 = vadd.f32 %v5836, %v5981
        %v5983 = vpop.f32.mrf.mxu0
        %v5984 = vadd.f32 %v5838, %v5983
        %5985 = vmatprep.mubr.f32.mxu0 0.0
        %v5986 = vand.u32 %v5513, 4294901760
        %v5987 = vsub.f32 %v5513, %v5986
        %5988 = vmatmul.mubr.f32.gmra.mxu0 %v5987
        %v5989 = vpop.f32.mrf.mxu0
        %v5990 = vadd.f32 %v5843, %v5989
        %v5991 = vpop.f32.mrf.mxu0
        %v5992 = vadd.f32 %v5845, %v5991
        %5993 = vmatprep.mubr.f32.mxu0 0.0
        %v5994 = vand.u32 %v5516, 4294901760
        %v5995 = vsub.f32 %v5516, %v5994
        %5996 = vmatmul.mubr.f32.gmra.mxu0 %v5995
        %v5997 = vpop.f32.mrf.mxu0
        %v5998 = vadd.f32 %v5850, %v5997
        %v5999 = vpop.f32.mrf.mxu0
        %v6000 = vadd.f32 %v5852, %v5999
        %6001 = vmatprep.mubr.f32.mxu0 0.0
        %v6002 = vand.u32 %v5519, 4294901760
        %v6003 = vsub.f32 %v5519, %v6002
        %6004 = vmatmul.mubr.f32.gmra.mxu0 %v6003
        %v6005 = vpop.f32.mrf.mxu0
        %v6006 = vadd.f32 %v5857, %v6005
        %v6007 = vpop.f32.mrf.mxu0
        %v6008 = vadd.f32 %v5859, %v6007
        %6009 = vdwg.mxu0
        %6010 = vmatprep.subr.mxu0 0.0
        %6011 = vmatpush1.msra.mxu0 0.0
        %6012 = vmatprep.subr.mxu0 0.0
        %6013 = vmatpush1.msra.mxu0 0.0
        %6014 = vmatprep.subr.mxu0 0.0
        %6015 = vmatpush1.msra.mxu0 0.0
        %6016 = vmatprep.subr.mxu0 0.0
        %6017 = vmatpush1.msra.mxu0 0.0
        %6018 = vmatprep.subr.mxu0 0.0
        %6019 = vmatpush1.msra.mxu0 0.0
        %6020 = vmatprep.subr.mxu0 0.0
        %6021 = vmatpush1.msra.mxu0 0.0
        %6022 = vmatprep.subr.mxu0 0.0
        %6023 = vmatpush1.msra.mxu0 0.0
        %6024 = vmatprep.subr.mxu0 0.0
        %6025 = vmatpush1.msra.mxu0 0.0
        %6026 = vmatprep.subr.mxu0 0.0
        %6027 = vmatpush1.msra.mxu0 0.0
        %v6028 = vand.u32 %v5448, 4294901760
        %6029 = vmatprep.subr.mxu0 %v6028
        %v6030 = vand.u32 %v5447, 4294901760
        %6031 = vmatpush1.msra.mxu0 %v6030
        %v6032 = vand.u32 %v5446, 4294901760
        %6033 = vmatprep.subr.mxu0 %v6032
        %v6034 = vand.u32 %v5445, 4294901760
        %6035 = vmatpush1.msra.mxu0 %v6034
        %v6036 = vand.u32 %v5444, 4294901760
        %6037 = vmatprep.subr.mxu0 %v6036
        %v6038 = vand.u32 %v5443, 4294901760
        %6039 = vmatpush1.msra.mxu0 %v6038
        %v6040 = vand.u32 %v5442, 4294901760
        %6041 = vmatprep.subr.mxu0 %v6040
        %v6042 = vand.u32 %v5441, 4294901760
        %6043 = vmatpush1.msra.mxu0 %v6042
        %v6044 = vand.u32 %v5440, 4294901760
        %6045 = vmatprep.subr.mxu0 %v6044
        %v6046 = vand.u32 %v5439, 4294901760
        %6047 = vmatpush1.msra.mxu0 %v6046
        %v6048 = vand.u32 %v5438, 4294901760
        %6049 = vmatprep.subr.mxu0 %v6048
        %v6050 = vand.u32 %v5437, 4294901760
        %6051 = vmatpush1.msra.mxu0 %v6050
        %v6052 = vand.u32 %v5436, 4294901760
        %6053 = vmatprep.subr.mxu0 %v6052
        %v6054 = vand.u32 %v5435, 4294901760
        %6055 = vmatpush1.msra.mxu0 %v6054
        %6056 = vmatprep.subr.mxu0 0.0
        %6057 = vmatpush2.msra.mxu0 0.0
        %6058 = vmatprep.subr.mxu0 0.0
        %6059 = vmatpush2.msra.mxu0 0.0
        %6060 = vmatprep.subr.mxu0 0.0
        %6061 = vmatpush2.msra.mxu0 0.0
        %6062 = vmatprep.subr.mxu0 0.0
        %6063 = vmatpush2.msra.mxu0 0.0
        %6064 = vmatprep.subr.mxu0 0.0
        %6065 = vmatpush2.msra.mxu0 0.0
        %6066 = vmatprep.subr.mxu0 0.0
        %6067 = vmatpush2.msra.mxu0 0.0
        %6068 = vmatprep.subr.mxu0 0.0
        %6069 = vmatpush2.msra.mxu0 0.0
        %6070 = vmatprep.subr.mxu0 0.0
        %6071 = vmatpush2.msra.mxu0 0.0
        %6072 = vmatprep.subr.mxu0 0.0
        %6073 = vmatpush2.msra.mxu0 0.0
        %6074 = vmatprep.subr.mxu0 0.0
        %6075 = vmatpush2.msra.mxu0 0.0
        %6076 = vmatprep.subr.mxu0 0.0
        %6077 = vmatpush2.msra.mxu0 0.0
        %6078 = vmatprep.subr.mxu0 0.0
        %6079 = vmatpush2.msra.mxu0 0.0
        %6080 = vmatprep.subr.mxu0 0.0
        %6081 = vmatpush2.msra.mxu0 0.0
        %6082 = vmatprep.subr.mxu0 0.0
        %6083 = vmatpush2.msra.mxu0 0.0
        %6084 = vmatprep.subr.mxu0 0.0
        %6085 = vmatpush2.msra.mxu0 0.0
        %6086 = vmatprep.subr.mxu0 0.0
        %6087 = vmatpush2.msra.mxu0 0.0
        %6088 = vmatprep.mubr.f32.mxu0 0.0
        %v6089 = vand.u32 %v5501, 4294901760
        %v6090 = vsub.f32 %v5501, %v6089
        %v6091 = vand.u32 %v6090, 4294901760
        %6092 = vmatmul.mubr.f32.gmra.mxu0 %v6091
        %v6093 = vpop.f32.mrf.mxu0
        %v6094 = vadd.f32 %v5958, %v6093
        %v6095 = vpop.f32.mrf.mxu0
        %v6096 = vadd.f32 %v5960, %v6095
        %6097 = vmatprep.mubr.f32.mxu0 0.0
        %v6098 = vand.u32 %v5504, 4294901760
        %v6099 = vsub.f32 %v5504, %v6098
        %v6100 = vand.u32 %v6099, 4294901760
        %6101 = vmatmul.mubr.f32.gmra.mxu0 %v6100
        %v6102 = vpop.f32.mrf.mxu0
        %v6103 = vadd.f32 %v5966, %v6102
        %v6104 = vpop.f32.mrf.mxu0
        %v6105 = vadd.f32 %v5968, %v6104
        %6106 = vmatprep.mubr.f32.mxu0 0.0
        %v6107 = vand.u32 %v5507, 4294901760
        %v6108 = vsub.f32 %v5507, %v6107
        %v6109 = vand.u32 %v6108, 4294901760
        %6110 = vmatmul.mubr.f32.gmra.mxu0 %v6109
        %v6111 = vpop.f32.mrf.mxu0
        %v6112 = vadd.f32 %v5974, %v6111
        %v6113 = vpop.f32.mrf.mxu0
        %v6114 = vadd.f32 %v5976, %v6113
        %6115 = vmatprep.mubr.f32.mxu0 0.0
        %v6116 = vand.u32 %v5510, 4294901760
        %v6117 = vsub.f32 %v5510, %v6116
        %v6118 = vand.u32 %v6117, 4294901760
        %6119 = vmatmul.mubr.f32.gmra.mxu0 %v6118
        %v6120 = vpop.f32.mrf.mxu0
        %v6121 = vadd.f32 %v5982, %v6120
        %v6122 = vpop.f32.mrf.mxu0
        %v6123 = vadd.f32 %v5984, %v6122
        %6124 = vmatprep.mubr.f32.mxu0 0.0
        %v6125 = vand.u32 %v5513, 4294901760
        %v6126 = vsub.f32 %v5513, %v6125
        %v6127 = vand.u32 %v6126, 4294901760
        %6128 = vmatmul.mubr.f32.gmra.mxu0 %v6127
        %v6129 = vpop.f32.mrf.mxu0
        %v6130 = vadd.f32 %v5990, %v6129
        %v6131 = vpop.f32.mrf.mxu0
        %v6132 = vadd.f32 %v5992, %v6131
        %6133 = vmatprep.mubr.f32.mxu0 0.0
        %v6134 = vand.u32 %v5516, 4294901760
        %v6135 = vsub.f32 %v5516, %v6134
        %v6136 = vand.u32 %v6135, 4294901760
        %6137 = vmatmul.mubr.f32.gmra.mxu0 %v6136
        %v6138 = vpop.f32.mrf.mxu0
        %v6139 = vadd.f32 %v5998, %v6138
        %v6140 = vpop.f32.mrf.mxu0
        %v6141 = vadd.f32 %v6000, %v6140
        %6142 = vmatprep.mubr.f32.mxu0 0.0
        %v6143 = vand.u32 %v5519, 4294901760
        %v6144 = vsub.f32 %v5519, %v6143
        %v6145 = vand.u32 %v6144, 4294901760
        %6146 = vmatmul.mubr.f32.gmra.mxu0 %v6145
        %v6147 = vpop.f32.mrf.mxu0
        %v6148 = vadd.f32 %v6006, %v6147
        %v6149 = vpop.f32.mrf.mxu0
        %v6150 = vadd.f32 %v6008, %v6149
        %6151 = vdwg.mxu0
        %6152 = vmatprep.subr.mxu0 0.0
        %6153 = vmatpush1.msra.mxu0 0.0
        %6154 = vmatprep.subr.mxu0 0.0
        %6155 = vmatpush1.msra.mxu0 0.0
        %6156 = vmatprep.subr.mxu0 0.0
        %6157 = vmatpush1.msra.mxu0 0.0
        %6158 = vmatprep.subr.mxu0 0.0
        %6159 = vmatpush1.msra.mxu0 0.0
        %6160 = vmatprep.subr.mxu0 0.0
        %6161 = vmatpush1.msra.mxu0 0.0
        %6162 = vmatprep.subr.mxu0 0.0
        %6163 = vmatpush1.msra.mxu0 0.0
        %6164 = vmatprep.subr.mxu0 0.0
        %6165 = vmatpush1.msra.mxu0 0.0
        %6166 = vmatprep.subr.mxu0 0.0
        %6167 = vmatpush1.msra.mxu0 0.0
        %6168 = vmatprep.subr.mxu0 0.0
        %6169 = vmatpush1.msra.mxu0 0.0
        %v6170 = vand.u32 %v5448, 4294901760
        %v6171 = vsub.f32 %v5448, %v6170
        %v6172 = vand.u32 %v6171, 4294901760
        %6173 = vmatprep.subr.mxu0 %v6172
        %v6174 = vand.u32 %v5447, 4294901760
        %v6175 = vsub.f32 %v5447, %v6174
        %v6176 = vand.u32 %v6175, 4294901760
        %6177 = vmatpush1.msra.mxu0 %v6176
        %v6178 = vand.u32 %v5446, 4294901760
        %v6179 = vsub.f32 %v5446, %v6178
        %v6180 = vand.u32 %v6179, 4294901760
        %6181 = vmatprep.subr.mxu0 %v6180
        %v6182 = vand.u32 %v5445, 4294901760
        %v6183 = vsub.f32 %v5445, %v6182
        %v6184 = vand.u32 %v6183, 4294901760
        %6185 = vmatpush1.msra.mxu0 %v6184
        %v6186 = vand.u32 %v5444, 4294901760
        %v6187 = vsub.f32 %v5444, %v6186
        %v6188 = vand.u32 %v6187, 4294901760
        %6189 = vmatprep.subr.mxu0 %v6188
        %v6190 = vand.u32 %v5443, 4294901760
        %v6191 = vsub.f32 %v5443, %v6190
        %v6192 = vand.u32 %v6191, 4294901760
        %6193 = vmatpush1.msra.mxu0 %v6192
        %v6194 = vand.u32 %v5442, 4294901760
        %v6195 = vsub.f32 %v5442, %v6194
        %v6196 = vand.u32 %v6195, 4294901760
        %6197 = vmatprep.subr.mxu0 %v6196
        %v6198 = vand.u32 %v5441, 4294901760
        %v6199 = vsub.f32 %v5441, %v6198
        %v6200 = vand.u32 %v6199, 4294901760
        %6201 = vmatpush1.msra.mxu0 %v6200
        %v6202 = vand.u32 %v5440, 4294901760
        %v6203 = vsub.f32 %v5440, %v6202
        %v6204 = vand.u32 %v6203, 4294901760
        %6205 = vmatprep.subr.mxu0 %v6204
        %v6206 = vand.u32 %v5439, 4294901760
        %v6207 = vsub.f32 %v5439, %v6206
        %v6208 = vand.u32 %v6207, 4294901760
        %6209 = vmatpush1.msra.mxu0 %v6208
        %v6210 = vand.u32 %v5438, 4294901760
        %v6211 = vsub.f32 %v5438, %v6210
        %v6212 = vand.u32 %v6211, 4294901760
        %6213 = vmatprep.subr.mxu0 %v6212
        %v6214 = vand.u32 %v5437, 4294901760
        %v6215 = vsub.f32 %v5437, %v6214
        %v6216 = vand.u32 %v6215, 4294901760
        %6217 = vmatpush1.msra.mxu0 %v6216
        %v6218 = vand.u32 %v5436, 4294901760
        %v6219 = vsub.f32 %v5436, %v6218
        %v6220 = vand.u32 %v6219, 4294901760
        %6221 = vmatprep.subr.mxu0 %v6220
        %v6222 = vand.u32 %v5435, 4294901760
        %v6223 = vsub.f32 %v5435, %v6222
        %v6224 = vand.u32 %v6223, 4294901760
        %6225 = vmatpush1.msra.mxu0 %v6224
        %6226 = vmatprep.subr.mxu0 0.0
        %6227 = vmatpush2.msra.mxu0 0.0
        %6228 = vmatprep.subr.mxu0 0.0
        %6229 = vmatpush2.msra.mxu0 0.0
        %6230 = vmatprep.subr.mxu0 0.0
        %6231 = vmatpush2.msra.mxu0 0.0
        %6232 = vmatprep.subr.mxu0 0.0
        %6233 = vmatpush2.msra.mxu0 0.0
        %6234 = vmatprep.subr.mxu0 0.0
        %6235 = vmatpush2.msra.mxu0 0.0
        %6236 = vmatprep.subr.mxu0 0.0
        %6237 = vmatpush2.msra.mxu0 0.0
        %6238 = vmatprep.subr.mxu0 0.0
        %6239 = vmatpush2.msra.mxu0 0.0
        %6240 = vmatprep.subr.mxu0 0.0
        %6241 = vmatpush2.msra.mxu0 0.0
        %6242 = vmatprep.subr.mxu0 0.0
        %6243 = vmatpush2.msra.mxu0 0.0
        %6244 = vmatprep.subr.mxu0 0.0
        %6245 = vmatpush2.msra.mxu0 0.0
        %6246 = vmatprep.subr.mxu0 0.0
        %6247 = vmatpush2.msra.mxu0 0.0
        %6248 = vmatprep.subr.mxu0 0.0
        %6249 = vmatpush2.msra.mxu0 0.0
        %6250 = vmatprep.subr.mxu0 0.0
        %6251 = vmatpush2.msra.mxu0 0.0
        %6252 = vmatprep.subr.mxu0 0.0
        %6253 = vmatpush2.msra.mxu0 0.0
        %6254 = vmatprep.subr.mxu0 0.0
        %6255 = vmatpush2.msra.mxu0 0.0
        %6256 = vmatprep.subr.mxu0 0.0
        %6257 = vmatpush2.msra.mxu0 0.0
        %6258 = vmatprep.mubr.f32.mxu0 0.0
        %v6259 = vand.u32 %v5501, 4294901760
        %6260 = vmatmul.mubr.f32.gmra.mxu0 %v6259
        %v6261 = vpop.f32.mrf.mxu0
        %v6262 = vadd.f32 %v6094, %v6261
        %v6263 = vpop.f32.mrf.mxu0
        %v6264 = vadd.f32 %v6096, %v6263
        %6265 = vmatprep.mubr.f32.mxu0 0.0
        %v6266 = vand.u32 %v5504, 4294901760
        %6267 = vmatmul.mubr.f32.gmra.mxu0 %v6266
        %v6268 = vpop.f32.mrf.mxu0
        %v6269 = vadd.f32 %v6103, %v6268
        %v6270 = vpop.f32.mrf.mxu0
        %v6271 = vadd.f32 %v6105, %v6270
        %6272 = vmatprep.mubr.f32.mxu0 0.0
        %v6273 = vand.u32 %v5507, 4294901760
        %6274 = vmatmul.mubr.f32.gmra.mxu0 %v6273
        %v6275 = vpop.f32.mrf.mxu0
        %v6276 = vadd.f32 %v6112, %v6275
        %v6277 = vpop.f32.mrf.mxu0
        %v6278 = vadd.f32 %v6114, %v6277
        %6279 = vmatprep.mubr.f32.mxu0 0.0
        %v6280 = vand.u32 %v5510, 4294901760
        %6281 = vmatmul.mubr.f32.gmra.mxu0 %v6280
        %v6282 = vpop.f32.mrf.mxu0
        %v6283 = vadd.f32 %v6121, %v6282
        %v6284 = vpop.f32.mrf.mxu0
        %v6285 = vadd.f32 %v6123, %v6284
        %6286 = vmatprep.mubr.f32.mxu0 0.0
        %v6287 = vand.u32 %v5513, 4294901760
        %6288 = vmatmul.mubr.f32.gmra.mxu0 %v6287
        %v6289 = vpop.f32.mrf.mxu0
        %v6290 = vadd.f32 %v6130, %v6289
        %v6291 = vpop.f32.mrf.mxu0
        %v6292 = vadd.f32 %v6132, %v6291
        %6293 = vmatprep.mubr.f32.mxu0 0.0
        %v6294 = vand.u32 %v5516, 4294901760
        %6295 = vmatmul.mubr.f32.gmra.mxu0 %v6294
        %v6296 = vpop.f32.mrf.mxu0
        %v6297 = vadd.f32 %v6139, %v6296
        %v6298 = vpop.f32.mrf.mxu0
        %v6299 = vadd.f32 %v6141, %v6298
        %6300 = vmatprep.mubr.f32.mxu0 0.0
        %v6301 = vand.u32 %v5519, 4294901760
        %6302 = vmatmul.mubr.f32.gmra.mxu0 %v6301
        %v6303 = vpop.f32.mrf.mxu0
        %v6304 = vadd.f32 %v6148, %v6303
        %v6305 = vpop.f32.mrf.mxu0
        %v6306 = vadd.f32 %v6150, %v6305
        %6307 = vdwg.mxu0
        %6308 = vmatprep.subr.mxu0 0.0
        %6309 = vmatpush1.msra.mxu0 0.0
        %6310 = vmatprep.subr.mxu0 0.0
        %6311 = vmatpush1.msra.mxu0 0.0
        %6312 = vmatprep.subr.mxu0 0.0
        %6313 = vmatpush1.msra.mxu0 0.0
        %6314 = vmatprep.subr.mxu0 0.0
        %6315 = vmatpush1.msra.mxu0 0.0
        %6316 = vmatprep.subr.mxu0 0.0
        %6317 = vmatpush1.msra.mxu0 0.0
        %6318 = vmatprep.subr.mxu0 0.0
        %6319 = vmatpush1.msra.mxu0 0.0
        %6320 = vmatprep.subr.mxu0 0.0
        %6321 = vmatpush1.msra.mxu0 0.0
        %6322 = vmatprep.subr.mxu0 0.0
        %6323 = vmatpush1.msra.mxu0 0.0
        %6324 = vmatprep.subr.mxu0 0.0
        %6325 = vmatpush1.msra.mxu0 0.0
        %v6326 = vand.u32 %v5448, 4294901760
        %6327 = vmatprep.subr.mxu0 %v6326
        %v6328 = vand.u32 %v5447, 4294901760
        %6329 = vmatpush1.msra.mxu0 %v6328
        %v6330 = vand.u32 %v5446, 4294901760
        %6331 = vmatprep.subr.mxu0 %v6330
        %v6332 = vand.u32 %v5445, 4294901760
        %6333 = vmatpush1.msra.mxu0 %v6332
        %v6334 = vand.u32 %v5444, 4294901760
        %6335 = vmatprep.subr.mxu0 %v6334
        %v6336 = vand.u32 %v5443, 4294901760
        %6337 = vmatpush1.msra.mxu0 %v6336
        %v6338 = vand.u32 %v5442, 4294901760
        %6339 = vmatprep.subr.mxu0 %v6338
        %v6340 = vand.u32 %v5441, 4294901760
        %6341 = vmatpush1.msra.mxu0 %v6340
        %v6342 = vand.u32 %v5440, 4294901760
        %6343 = vmatprep.subr.mxu0 %v6342
        %v6344 = vand.u32 %v5439, 4294901760
        %6345 = vmatpush1.msra.mxu0 %v6344
        %v6346 = vand.u32 %v5438, 4294901760
        %6347 = vmatprep.subr.mxu0 %v6346
        %v6348 = vand.u32 %v5437, 4294901760
        %6349 = vmatpush1.msra.mxu0 %v6348
        %v6350 = vand.u32 %v5436, 4294901760
        %6351 = vmatprep.subr.mxu0 %v6350
        %v6352 = vand.u32 %v5435, 4294901760
        %6353 = vmatpush1.msra.mxu0 %v6352
        %6354 = vmatprep.subr.mxu0 0.0
        %6355 = vmatpush2.msra.mxu0 0.0
        %6356 = vmatprep.subr.mxu0 0.0
        %6357 = vmatpush2.msra.mxu0 0.0
        %6358 = vmatprep.subr.mxu0 0.0
        %6359 = vmatpush2.msra.mxu0 0.0
        %6360 = vmatprep.subr.mxu0 0.0
        %6361 = vmatpush2.msra.mxu0 0.0
        %6362 = vmatprep.subr.mxu0 0.0
        %6363 = vmatpush2.msra.mxu0 0.0
        %6364 = vmatprep.subr.mxu0 0.0
        %6365 = vmatpush2.msra.mxu0 0.0
        %6366 = vmatprep.subr.mxu0 0.0
        %6367 = vmatpush2.msra.mxu0 0.0
        %6368 = vmatprep.subr.mxu0 0.0
        %6369 = vmatpush2.msra.mxu0 0.0
        %6370 = vmatprep.subr.mxu0 0.0
        %6371 = vmatpush2.msra.mxu0 0.0
        %6372 = vmatprep.subr.mxu0 0.0
        %6373 = vmatpush2.msra.mxu0 0.0
        %6374 = vmatprep.subr.mxu0 0.0
        %6375 = vmatpush2.msra.mxu0 0.0
        %6376 = vmatprep.subr.mxu0 0.0
        %6377 = vmatpush2.msra.mxu0 0.0
        %6378 = vmatprep.subr.mxu0 0.0
        %6379 = vmatpush2.msra.mxu0 0.0
        %6380 = vmatprep.subr.mxu0 0.0
        %6381 = vmatpush2.msra.mxu0 0.0
        %6382 = vmatprep.subr.mxu0 0.0
        %6383 = vmatpush2.msra.mxu0 0.0
        %6384 = vmatprep.subr.mxu0 0.0
        %6385 = vmatpush2.msra.mxu0 0.0
        %6386 = vmatprep.mubr.f32.mxu0 0.0
        %v6387 = vand.u32 %v5501, 4294901760
        %6388 = vmatmul.mubr.f32.gmra.mxu0 %v6387
        %v6389 = vpop.f32.mrf.mxu0
        %v6390 = vadd.f32 %v6262, %v6389
        %v6391 = vpop.f32.mrf.mxu0
        %v6392 = vadd.f32 %v6264, %v6391
        %6393 = vmatprep.mubr.f32.mxu0 0.0
        %v6394 = vand.u32 %v5504, 4294901760
        %6395 = vmatmul.mubr.f32.gmra.mxu0 %v6394
        %v6396 = vpop.f32.mrf.mxu0
        %v6397 = vadd.f32 %v6269, %v6396
        %v6398 = vpop.f32.mrf.mxu0
        %v6399 = vadd.f32 %v6271, %v6398
        %6400 = vmatprep.mubr.f32.mxu0 0.0
        %v6401 = vand.u32 %v5507, 4294901760
        %6402 = vmatmul.mubr.f32.gmra.mxu0 %v6401
        %v6403 = vpop.f32.mrf.mxu0
        %v6404 = vadd.f32 %v6276, %v6403
        %v6405 = vpop.f32.mrf.mxu0
        %v6406 = vadd.f32 %v6278, %v6405
        %6407 = vmatprep.mubr.f32.mxu0 0.0
        %v6408 = vand.u32 %v5510, 4294901760
        %6409 = vmatmul.mubr.f32.gmra.mxu0 %v6408
        %v6410 = vpop.f32.mrf.mxu0
        %v6411 = vadd.f32 %v6283, %v6410
        %v6412 = vpop.f32.mrf.mxu0
        %v6413 = vadd.f32 %v6285, %v6412
        %6414 = vmatprep.mubr.f32.mxu0 0.0
        %v6415 = vand.u32 %v5513, 4294901760
        %6416 = vmatmul.mubr.f32.gmra.mxu0 %v6415
        %v6417 = vpop.f32.mrf.mxu0
        %v6418 = vadd.f32 %v6290, %v6417
        %v6419 = vpop.f32.mrf.mxu0
        %v6420 = vadd.f32 %v6292, %v6419
        %6421 = vmatprep.mubr.f32.mxu0 0.0
        %v6422 = vand.u32 %v5516, 4294901760
        %6423 = vmatmul.mubr.f32.gmra.mxu0 %v6422
        %v6424 = vpop.f32.mrf.mxu0
        %v6425 = vadd.f32 %v6297, %v6424
        %v6426 = vpop.f32.mrf.mxu0
        %v6427 = vadd.f32 %v6299, %v6426
        %6428 = vmatprep.mubr.f32.mxu0 0.0
        %v6429 = vand.u32 %v5519, 4294901760
        %6430 = vmatmul.mubr.f32.gmra.mxu0 %v6429
        %v6431 = vpop.f32.mrf.mxu0
        %v6432 = vadd.f32 %v6304, %v6431
        %v6433 = vpop.f32.mrf.mxu0
        %v6434 = vadd.f32 %v6306, %v6433
        %6435 = vdwg.mxu0
        %v6436 = vtanh.pop %v6390
        %v6437 = vtanh.pop %v6392
        %v6438 = vtanh.pop %v6397
        %v6439 = vtanh.pop %v6399
        %v6440 = vtanh.pop %v6404
        %v6441 = vtanh.pop %v6406
        %v6442 = vtanh.pop %v6411
        %v6443 = vtanh.pop %v6413
        %v6444 = vtanh.pop %v6418
        %v6445 = vtanh.pop %v6420
        %v6446 = vtanh.pop %v6425
        %v6447 = vtanh.pop %v6427
        %v6448 = vtanh.pop %v6432
        %v6449 = vtanh.pop %v6434
        %v6450 = vmul.f32 %v6436, %v2349
        %v6451 = vmul.f32 %v6437, %v2350
        %v6452 = vmul.f32 %v6438, %v2351
        %v6453 = vmul.f32 %v6439, %v2352
        %v6454 = vmul.f32 %v6440, %v2353
        %v6455 = vmul.f32 %v6441, %v2354
        %v6456 = vmul.f32 %v6442, %v2355
        %v6457 = vmul.f32 %v6443, %v2356
        %v6458 = vmul.f32 %v6444, %v2357
        %v6459 = vmul.f32 %v6445, %v2358
        %v6460 = vmul.f32 %v6446, %v2359
        %v6461 = vmul.f32 %v6447, %v2360
        %v6462 = vmul.f32 %v6448, %v2361
        %v6463 = vmul.f32 %v6449, %v2362
        %v6464 = vadd.f32 %v2307, %v6450
        %v6465 = vadd.f32 %v2308, %v6451
        %v6466 = vadd.f32 %v2309, %v6452
        %v6467 = vadd.f32 %v2310, %v6453
        %v6468 = vadd.f32 %v2311, %v6454
        %v6469 = vadd.f32 %v2312, %v6455
        %v6470 = vadd.f32 %v2313, %v6456
        %v6471 = vadd.f32 %v2314, %v6457
        %v6472 = vadd.f32 %v2315, %v6458
        %v6473 = vadd.f32 %v2316, %v6459
        %v6474 = vadd.f32 %v2317, %v6460
        %v6475 = vadd.f32 %v2318, %v6461
        %v6476 = vadd.f32 %v2319, %v6462
        %v6477 = vadd.f32 %v2320, %v6463
        %v6478 = vld [vmem:[%s5] sm:$0xff]
        %v6480 = vsel %vm2412, %v6478, 0
        %6482 = vmatprep.subr.mxu0 0.0
        %6483 = vmatpush1.msra.mxu0 0.0
        %6484 = vmatprep.subr.mxu0 0.0
        %6485 = vmatpush1.msra.mxu0 0.0
        %6486 = vmatprep.subr.mxu0 0.0
        %6487 = vmatpush1.msra.mxu0 0.0
        %6488 = vmatprep.subr.mxu0 0.0
        %6489 = vmatpush1.msra.mxu0 0.0
        %6490 = vmatprep.subr.mxu0 0.0
        %6491 = vmatpush1.msra.mxu0 0.0
        %6492 = vmatprep.subr.mxu0 0.0
        %6493 = vmatpush1.msra.mxu0 0.0
        %6494 = vmatprep.subr.mxu0 0.0
        %6495 = vmatpush1.msra.mxu0 0.0
        %6496 = vmatprep.subr.mxu0 0.0
        %6497 = vmatpush1.msra.mxu0 0.0
        %6498 = vmatprep.subr.mxu0 0.0
        %6499 = vmatpush1.msra.mxu0 0.0
        %v6500 = vand.u32 %v6477, 4294901760
        %6501 = vmatprep.subr.mxu0 %v6500
        %v6502 = vand.u32 %v6476, 4294901760
        %6503 = vmatpush1.msra.mxu0 %v6502
        %v6504 = vand.u32 %v6475, 4294901760
        %6505 = vmatprep.subr.mxu0 %v6504
        %v6506 = vand.u32 %v6474, 4294901760
        %6507 = vmatpush1.msra.mxu0 %v6506
        %v6508 = vand.u32 %v6473, 4294901760
        %6509 = vmatprep.subr.mxu0 %v6508
        %v6510 = vand.u32 %v6472, 4294901760
        %6511 = vmatpush1.msra.mxu0 %v6510
        %v6512 = vand.u32 %v6471, 4294901760
        %6513 = vmatprep.subr.mxu0 %v6512
        %v6514 = vand.u32 %v6470, 4294901760
        %6515 = vmatpush1.msra.mxu0 %v6514
        %v6516 = vand.u32 %v6469, 4294901760
        %6517 = vmatprep.subr.mxu0 %v6516
        %v6518 = vand.u32 %v6468, 4294901760
        %6519 = vmatpush1.msra.mxu0 %v6518
        %v6520 = vand.u32 %v6467, 4294901760
        %6521 = vmatprep.subr.mxu0 %v6520
        %v6522 = vand.u32 %v6466, 4294901760
        %6523 = vmatpush1.msra.mxu0 %v6522
        %v6524 = vand.u32 %v6465, 4294901760
        %6525 = vmatprep.subr.mxu0 %v6524
        %v6526 = vand.u32 %v6464, 4294901760
        %6527 = vmatpush1.msra.mxu0 %v6526
        %6528 = vmatprep.subr.mxu0 0.0
        %6529 = vmatpush2.msra.mxu0 0.0
        %6530 = vmatprep.subr.mxu0 0.0
        %6531 = vmatpush2.msra.mxu0 0.0
        %6532 = vmatprep.subr.mxu0 0.0
        %6533 = vmatpush2.msra.mxu0 0.0
        %6534 = vmatprep.subr.mxu0 0.0
        %6535 = vmatpush2.msra.mxu0 0.0
        %6536 = vmatprep.subr.mxu0 0.0
        %6537 = vmatpush2.msra.mxu0 0.0
        %6538 = vmatprep.subr.mxu0 0.0
        %6539 = vmatpush2.msra.mxu0 0.0
        %6540 = vmatprep.subr.mxu0 0.0
        %6541 = vmatpush2.msra.mxu0 0.0
        %6542 = vmatprep.subr.mxu0 0.0
        %6543 = vmatpush2.msra.mxu0 0.0
        %6544 = vmatprep.subr.mxu0 0.0
        %6545 = vmatpush2.msra.mxu0 0.0
        %6546 = vmatprep.subr.mxu0 0.0
        %6547 = vmatpush2.msra.mxu0 0.0
        %6548 = vmatprep.subr.mxu0 0.0
        %6549 = vmatpush2.msra.mxu0 0.0
        %6550 = vmatprep.subr.mxu0 0.0
        %6551 = vmatpush2.msra.mxu0 0.0
        %6552 = vmatprep.subr.mxu0 0.0
        %6553 = vmatpush2.msra.mxu0 0.0
        %6554 = vmatprep.subr.mxu0 0.0
        %6555 = vmatpush2.msra.mxu0 0.0
        %6556 = vmatprep.subr.mxu0 0.0
        %6557 = vmatpush2.msra.mxu0 0.0
        %6558 = vmatprep.subr.mxu0 0.0
        %6559 = vmatpush2.msra.mxu0 0.0
        %6560 = vmatprep.mubr.f32.mxu0 0.0
        %v6561 = vand.u32 %v6480, 4294901760
        %v6562 = vsub.f32 %v6480, %v6561
        %v6563 = vand.u32 %v6562, 4294901760
        %v6564 = vsub.f32 %v6562, %v6563
        %v6565 = vand.u32 %v6564, 4294901760
        %6566 = vmatmul.mubr.f32.gmra.mxu0 %v6565
        %v6567 = vpop.f32.mrf.mxu0
        %v6568 = vadd.f32 0.0, %v6567
        %v6569 = vpop.f32.mrf.mxu0
        %v6570 = vadd.f32 0.0, %v6569
        %6571 = vdwg.mxu0
        %6572 = vmatprep.subr.mxu0 0.0
        %6573 = vmatpush1.msra.mxu0 0.0
        %6574 = vmatprep.subr.mxu0 0.0
        %6575 = vmatpush1.msra.mxu0 0.0
        %6576 = vmatprep.subr.mxu0 0.0
        %6577 = vmatpush1.msra.mxu0 0.0
        %6578 = vmatprep.subr.mxu0 0.0
        %6579 = vmatpush1.msra.mxu0 0.0
        %6580 = vmatprep.subr.mxu0 0.0
        %6581 = vmatpush1.msra.mxu0 0.0
        %6582 = vmatprep.subr.mxu0 0.0
        %6583 = vmatpush1.msra.mxu0 0.0
        %6584 = vmatprep.subr.mxu0 0.0
        %6585 = vmatpush1.msra.mxu0 0.0
        %6586 = vmatprep.subr.mxu0 0.0
        %6587 = vmatpush1.msra.mxu0 0.0
        %6588 = vmatprep.subr.mxu0 0.0
        %6589 = vmatpush1.msra.mxu0 0.0
        %v6590 = vand.u32 %v6477, 4294901760
        %v6591 = vsub.f32 %v6477, %v6590
        %v6592 = vand.u32 %v6591, 4294901760
        %v6593 = vsub.f32 %v6591, %v6592
        %v6594 = vand.u32 %v6593, 4294901760
        %6595 = vmatprep.subr.mxu0 %v6594
        %v6596 = vand.u32 %v6476, 4294901760
        %v6597 = vsub.f32 %v6476, %v6596
        %v6598 = vand.u32 %v6597, 4294901760
        %v6599 = vsub.f32 %v6597, %v6598
        %v6600 = vand.u32 %v6599, 4294901760
        %6601 = vmatpush1.msra.mxu0 %v6600
        %v6602 = vand.u32 %v6475, 4294901760
        %v6603 = vsub.f32 %v6475, %v6602
        %v6604 = vand.u32 %v6603, 4294901760
        %v6605 = vsub.f32 %v6603, %v6604
        %v6606 = vand.u32 %v6605, 4294901760
        %6607 = vmatprep.subr.mxu0 %v6606
        %v6608 = vand.u32 %v6474, 4294901760
        %v6609 = vsub.f32 %v6474, %v6608
        %v6610 = vand.u32 %v6609, 4294901760
        %v6611 = vsub.f32 %v6609, %v6610
        %v6612 = vand.u32 %v6611, 4294901760
        %6613 = vmatpush1.msra.mxu0 %v6612
        %v6614 = vand.u32 %v6473, 4294901760
        %v6615 = vsub.f32 %v6473, %v6614
        %v6616 = vand.u32 %v6615, 4294901760
        %v6617 = vsub.f32 %v6615, %v6616
        %v6618 = vand.u32 %v6617, 4294901760
        %6619 = vmatprep.subr.mxu0 %v6618
        %v6620 = vand.u32 %v6472, 4294901760
        %v6621 = vsub.f32 %v6472, %v6620
        %v6622 = vand.u32 %v6621, 4294901760
        %v6623 = vsub.f32 %v6621, %v6622
        %v6624 = vand.u32 %v6623, 4294901760
        %6625 = vmatpush1.msra.mxu0 %v6624
        %v6626 = vand.u32 %v6471, 4294901760
        %v6627 = vsub.f32 %v6471, %v6626
        %v6628 = vand.u32 %v6627, 4294901760
        %v6629 = vsub.f32 %v6627, %v6628
        %v6630 = vand.u32 %v6629, 4294901760
        %6631 = vmatprep.subr.mxu0 %v6630
        %v6632 = vand.u32 %v6470, 4294901760
        %v6633 = vsub.f32 %v6470, %v6632
        %v6634 = vand.u32 %v6633, 4294901760
        %v6635 = vsub.f32 %v6633, %v6634
        %v6636 = vand.u32 %v6635, 4294901760
        %6637 = vmatpush1.msra.mxu0 %v6636
        %v6638 = vand.u32 %v6469, 4294901760
        %v6639 = vsub.f32 %v6469, %v6638
        %v6640 = vand.u32 %v6639, 4294901760
        %v6641 = vsub.f32 %v6639, %v6640
        %v6642 = vand.u32 %v6641, 4294901760
        %6643 = vmatprep.subr.mxu0 %v6642
        %v6644 = vand.u32 %v6468, 4294901760
        %v6645 = vsub.f32 %v6468, %v6644
        %v6646 = vand.u32 %v6645, 4294901760
        %v6647 = vsub.f32 %v6645, %v6646
        %v6648 = vand.u32 %v6647, 4294901760
        %6649 = vmatpush1.msra.mxu0 %v6648
        %v6650 = vand.u32 %v6467, 4294901760
        %v6651 = vsub.f32 %v6467, %v6650
        %v6652 = vand.u32 %v6651, 4294901760
        %v6653 = vsub.f32 %v6651, %v6652
        %v6654 = vand.u32 %v6653, 4294901760
        %6655 = vmatprep.subr.mxu0 %v6654
        %v6656 = vand.u32 %v6466, 4294901760
        %v6657 = vsub.f32 %v6466, %v6656
        %v6658 = vand.u32 %v6657, 4294901760
        %v6659 = vsub.f32 %v6657, %v6658
        %v6660 = vand.u32 %v6659, 4294901760
        %6661 = vmatpush1.msra.mxu0 %v6660
        %v6662 = vand.u32 %v6465, 4294901760
        %v6663 = vsub.f32 %v6465, %v6662
        %v6664 = vand.u32 %v6663, 4294901760
        %v6665 = vsub.f32 %v6663, %v6664
        %v6666 = vand.u32 %v6665, 4294901760
        %6667 = vmatprep.subr.mxu0 %v6666
        %v6668 = vand.u32 %v6464, 4294901760
        %v6669 = vsub.f32 %v6464, %v6668
        %v6670 = vand.u32 %v6669, 4294901760
        %v6671 = vsub.f32 %v6669, %v6670
        %v6672 = vand.u32 %v6671, 4294901760
        %6673 = vmatpush1.msra.mxu0 %v6672
        %6674 = vmatprep.subr.mxu0 0.0
        %6675 = vmatpush2.msra.mxu0 0.0
        %6676 = vmatprep.subr.mxu0 0.0
        %6677 = vmatpush2.msra.mxu0 0.0
        %6678 = vmatprep.subr.mxu0 0.0
        %6679 = vmatpush2.msra.mxu0 0.0
        %6680 = vmatprep.subr.mxu0 0.0
        %6681 = vmatpush2.msra.mxu0 0.0
        %6682 = vmatprep.subr.mxu0 0.0
        %6683 = vmatpush2.msra.mxu0 0.0
        %6684 = vmatprep.subr.mxu0 0.0
        %6685 = vmatpush2.msra.mxu0 0.0
        %6686 = vmatprep.subr.mxu0 0.0
        %6687 = vmatpush2.msra.mxu0 0.0
        %6688 = vmatprep.subr.mxu0 0.0
        %6689 = vmatpush2.msra.mxu0 0.0
        %6690 = vmatprep.subr.mxu0 0.0
        %6691 = vmatpush2.msra.mxu0 0.0
        %6692 = vmatprep.subr.mxu0 0.0
        %6693 = vmatpush2.msra.mxu0 0.0
        %6694 = vmatprep.subr.mxu0 0.0
        %6695 = vmatpush2.msra.mxu0 0.0
        %6696 = vmatprep.subr.mxu0 0.0
        %6697 = vmatpush2.msra.mxu0 0.0
        %6698 = vmatprep.subr.mxu0 0.0
        %6699 = vmatpush2.msra.mxu0 0.0
        %6700 = vmatprep.subr.mxu0 0.0
        %6701 = vmatpush2.msra.mxu0 0.0
        %6702 = vmatprep.subr.mxu0 0.0
        %6703 = vmatpush2.msra.mxu0 0.0
        %6704 = vmatprep.subr.mxu0 0.0
        %6705 = vmatpush2.msra.mxu0 0.0
        %6706 = vmatprep.mubr.f32.mxu0 0.0
        %v6707 = vand.u32 %v6480, 4294901760
        %6708 = vmatmul.mubr.f32.gmra.mxu0 %v6707
        %v6709 = vpop.f32.mrf.mxu0
        %v6710 = vadd.f32 %v6568, %v6709
        %v6711 = vpop.f32.mrf.mxu0
        %v6712 = vadd.f32 %v6570, %v6711
        %6713 = vdwg.mxu0
        %6714 = vmatprep.subr.mxu0 0.0
        %6715 = vmatpush1.msra.mxu0 0.0
        %6716 = vmatprep.subr.mxu0 0.0
        %6717 = vmatpush1.msra.mxu0 0.0
        %6718 = vmatprep.subr.mxu0 0.0
        %6719 = vmatpush1.msra.mxu0 0.0
        %6720 = vmatprep.subr.mxu0 0.0
        %6721 = vmatpush1.msra.mxu0 0.0
        %6722 = vmatprep.subr.mxu0 0.0
        %6723 = vmatpush1.msra.mxu0 0.0
        %6724 = vmatprep.subr.mxu0 0.0
        %6725 = vmatpush1.msra.mxu0 0.0
        %6726 = vmatprep.subr.mxu0 0.0
        %6727 = vmatpush1.msra.mxu0 0.0
        %6728 = vmatprep.subr.mxu0 0.0
        %6729 = vmatpush1.msra.mxu0 0.0
        %6730 = vmatprep.subr.mxu0 0.0
        %6731 = vmatpush1.msra.mxu0 0.0
        %v6732 = vand.u32 %v6477, 4294901760
        %v6733 = vsub.f32 %v6477, %v6732
        %6734 = vmatprep.subr.mxu0 %v6733
        %v6735 = vand.u32 %v6476, 4294901760
        %v6736 = vsub.f32 %v6476, %v6735
        %6737 = vmatpush1.msra.mxu0 %v6736
        %v6738 = vand.u32 %v6475, 4294901760
        %v6739 = vsub.f32 %v6475, %v6738
        %6740 = vmatprep.subr.mxu0 %v6739
        %v6741 = vand.u32 %v6474, 4294901760
        %v6742 = vsub.f32 %v6474, %v6741
        %6743 = vmatpush1.msra.mxu0 %v6742
        %v6744 = vand.u32 %v6473, 4294901760
        %v6745 = vsub.f32 %v6473, %v6744
        %6746 = vmatprep.subr.mxu0 %v6745
        %v6747 = vand.u32 %v6472, 4294901760
        %v6748 = vsub.f32 %v6472, %v6747
        %6749 = vmatpush1.msra.mxu0 %v6748
        %v6750 = vand.u32 %v6471, 4294901760
        %v6751 = vsub.f32 %v6471, %v6750
        %6752 = vmatprep.subr.mxu0 %v6751
        %v6753 = vand.u32 %v6470, 4294901760
        %v6754 = vsub.f32 %v6470, %v6753
        %6755 = vmatpush1.msra.mxu0 %v6754
        %v6756 = vand.u32 %v6469, 4294901760
        %v6757 = vsub.f32 %v6469, %v6756
        %6758 = vmatprep.subr.mxu0 %v6757
        %v6759 = vand.u32 %v6468, 4294901760
        %v6760 = vsub.f32 %v6468, %v6759
        %6761 = vmatpush1.msra.mxu0 %v6760
        %v6762 = vand.u32 %v6467, 4294901760
        %v6763 = vsub.f32 %v6467, %v6762
        %6764 = vmatprep.subr.mxu0 %v6763
        %v6765 = vand.u32 %v6466, 4294901760
        %v6766 = vsub.f32 %v6466, %v6765
        %6767 = vmatpush1.msra.mxu0 %v6766
        %v6768 = vand.u32 %v6465, 4294901760
        %v6769 = vsub.f32 %v6465, %v6768
        %6770 = vmatprep.subr.mxu0 %v6769
        %v6771 = vand.u32 %v6464, 4294901760
        %v6772 = vsub.f32 %v6464, %v6771
        %6773 = vmatpush1.msra.mxu0 %v6772
        %6774 = vmatprep.subr.mxu0 0.0
        %6775 = vmatpush2.msra.mxu0 0.0
        %6776 = vmatprep.subr.mxu0 0.0
        %6777 = vmatpush2.msra.mxu0 0.0
        %6778 = vmatprep.subr.mxu0 0.0
        %6779 = vmatpush2.msra.mxu0 0.0
        %6780 = vmatprep.subr.mxu0 0.0
        %6781 = vmatpush2.msra.mxu0 0.0
        %6782 = vmatprep.subr.mxu0 0.0
        %6783 = vmatpush2.msra.mxu0 0.0
        %6784 = vmatprep.subr.mxu0 0.0
        %6785 = vmatpush2.msra.mxu0 0.0
        %6786 = vmatprep.subr.mxu0 0.0
        %6787 = vmatpush2.msra.mxu0 0.0
        %6788 = vmatprep.subr.mxu0 0.0
        %6789 = vmatpush2.msra.mxu0 0.0
        %6790 = vmatprep.subr.mxu0 0.0
        %6791 = vmatpush2.msra.mxu0 0.0
        %6792 = vmatprep.subr.mxu0 0.0
        %6793 = vmatpush2.msra.mxu0 0.0
        %6794 = vmatprep.subr.mxu0 0.0
        %6795 = vmatpush2.msra.mxu0 0.0
        %6796 = vmatprep.subr.mxu0 0.0
        %6797 = vmatpush2.msra.mxu0 0.0
        %6798 = vmatprep.subr.mxu0 0.0
        %6799 = vmatpush2.msra.mxu0 0.0
        %6800 = vmatprep.subr.mxu0 0.0
        %6801 = vmatpush2.msra.mxu0 0.0
        %6802 = vmatprep.subr.mxu0 0.0
        %6803 = vmatpush2.msra.mxu0 0.0
        %6804 = vmatprep.subr.mxu0 0.0
        %6805 = vmatpush2.msra.mxu0 0.0
        %6806 = vmatprep.mubr.f32.mxu0 0.0
        %v6807 = vand.u32 %v6480, 4294901760
        %v6808 = vsub.f32 %v6480, %v6807
        %6809 = vmatmul.mubr.f32.gmra.mxu0 %v6808
        %v6810 = vpop.f32.mrf.mxu0
        %v6811 = vadd.f32 %v6710, %v6810
        %v6812 = vpop.f32.mrf.mxu0
        %v6813 = vadd.f32 %v6712, %v6812
        %6814 = vdwg.mxu0
        %6815 = vmatprep.subr.mxu0 0.0
        %6816 = vmatpush1.msra.mxu0 0.0
        %6817 = vmatprep.subr.mxu0 0.0
        %6818 = vmatpush1.msra.mxu0 0.0
        %6819 = vmatprep.subr.mxu0 0.0
        %6820 = vmatpush1.msra.mxu0 0.0
        %6821 = vmatprep.subr.mxu0 0.0
        %6822 = vmatpush1.msra.mxu0 0.0
        %6823 = vmatprep.subr.mxu0 0.0
        %6824 = vmatpush1.msra.mxu0 0.0
        %6825 = vmatprep.subr.mxu0 0.0
        %6826 = vmatpush1.msra.mxu0 0.0
        %6827 = vmatprep.subr.mxu0 0.0
        %6828 = vmatpush1.msra.mxu0 0.0
        %6829 = vmatprep.subr.mxu0 0.0
        %6830 = vmatpush1.msra.mxu0 0.0
        %6831 = vmatprep.subr.mxu0 0.0
        %6832 = vmatpush1.msra.mxu0 0.0
        %v6833 = vand.u32 %v6477, 4294901760
        %6834 = vmatprep.subr.mxu0 %v6833
        %v6835 = vand.u32 %v6476, 4294901760
        %6836 = vmatpush1.msra.mxu0 %v6835
        %v6837 = vand.u32 %v6475, 4294901760
        %6838 = vmatprep.subr.mxu0 %v6837
        %v6839 = vand.u32 %v6474, 4294901760
        %6840 = vmatpush1.msra.mxu0 %v6839
        %v6841 = vand.u32 %v6473, 4294901760
        %6842 = vmatprep.subr.mxu0 %v6841
        %v6843 = vand.u32 %v6472, 4294901760
        %6844 = vmatpush1.msra.mxu0 %v6843
        %v6845 = vand.u32 %v6471, 4294901760
        %6846 = vmatprep.subr.mxu0 %v6845
        %v6847 = vand.u32 %v6470, 4294901760
        %6848 = vmatpush1.msra.mxu0 %v6847
        %v6849 = vand.u32 %v6469, 4294901760
        %6850 = vmatprep.subr.mxu0 %v6849
        %v6851 = vand.u32 %v6468, 4294901760
        %6852 = vmatpush1.msra.mxu0 %v6851
        %v6853 = vand.u32 %v6467, 4294901760
        %6854 = vmatprep.subr.mxu0 %v6853
        %v6855 = vand.u32 %v6466, 4294901760
        %6856 = vmatpush1.msra.mxu0 %v6855
        %v6857 = vand.u32 %v6465, 4294901760
        %6858 = vmatprep.subr.mxu0 %v6857
        %v6859 = vand.u32 %v6464, 4294901760
        %6860 = vmatpush1.msra.mxu0 %v6859
        %6861 = vmatprep.subr.mxu0 0.0
        %6862 = vmatpush2.msra.mxu0 0.0
        %6863 = vmatprep.subr.mxu0 0.0
        %6864 = vmatpush2.msra.mxu0 0.0
        %6865 = vmatprep.subr.mxu0 0.0
        %6866 = vmatpush2.msra.mxu0 0.0
        %6867 = vmatprep.subr.mxu0 0.0
        %6868 = vmatpush2.msra.mxu0 0.0
        %6869 = vmatprep.subr.mxu0 0.0
        %6870 = vmatpush2.msra.mxu0 0.0
        %6871 = vmatprep.subr.mxu0 0.0
        %6872 = vmatpush2.msra.mxu0 0.0
        %6873 = vmatprep.subr.mxu0 0.0
        %6874 = vmatpush2.msra.mxu0 0.0
        %6875 = vmatprep.subr.mxu0 0.0
        %6876 = vmatpush2.msra.mxu0 0.0
        %6877 = vmatprep.subr.mxu0 0.0
        %6878 = vmatpush2.msra.mxu0 0.0
        %6879 = vmatprep.subr.mxu0 0.0
        %6880 = vmatpush2.msra.mxu0 0.0
        %6881 = vmatprep.subr.mxu0 0.0
        %6882 = vmatpush2.msra.mxu0 0.0
        %6883 = vmatprep.subr.mxu0 0.0
        %6884 = vmatpush2.msra.mxu0 0.0
        %6885 = vmatprep.subr.mxu0 0.0
        %6886 = vmatpush2.msra.mxu0 0.0
        %6887 = vmatprep.subr.mxu0 0.0
        %6888 = vmatpush2.msra.mxu0 0.0
        %6889 = vmatprep.subr.mxu0 0.0
        %6890 = vmatpush2.msra.mxu0 0.0
        %6891 = vmatprep.subr.mxu0 0.0
        %6892 = vmatpush2.msra.mxu0 0.0
        %6893 = vmatprep.mubr.f32.mxu0 0.0
        %v6894 = vand.u32 %v6480, 4294901760
        %v6895 = vsub.f32 %v6480, %v6894
        %v6896 = vand.u32 %v6895, 4294901760
        %6897 = vmatmul.mubr.f32.gmra.mxu0 %v6896
        %v6898 = vpop.f32.mrf.mxu0
        %v6899 = vadd.f32 %v6811, %v6898
        %v6900 = vpop.f32.mrf.mxu0
        %v6901 = vadd.f32 %v6813, %v6900
        %6902 = vdwg.mxu0
        %6903 = vmatprep.subr.mxu0 0.0
        %6904 = vmatpush1.msra.mxu0 0.0
        %6905 = vmatprep.subr.mxu0 0.0
        %6906 = vmatpush1.msra.mxu0 0.0
        %6907 = vmatprep.subr.mxu0 0.0
        %6908 = vmatpush1.msra.mxu0 0.0
        %6909 = vmatprep.subr.mxu0 0.0
        %6910 = vmatpush1.msra.mxu0 0.0
        %6911 = vmatprep.subr.mxu0 0.0
        %6912 = vmatpush1.msra.mxu0 0.0
        %6913 = vmatprep.subr.mxu0 0.0
        %6914 = vmatpush1.msra.mxu0 0.0
        %6915 = vmatprep.subr.mxu0 0.0
        %6916 = vmatpush1.msra.mxu0 0.0
        %6917 = vmatprep.subr.mxu0 0.0
        %6918 = vmatpush1.msra.mxu0 0.0
        %6919 = vmatprep.subr.mxu0 0.0
        %6920 = vmatpush1.msra.mxu0 0.0
        %v6921 = vand.u32 %v6477, 4294901760
        %v6922 = vsub.f32 %v6477, %v6921
        %v6923 = vand.u32 %v6922, 4294901760
        %6924 = vmatprep.subr.mxu0 %v6923
        %v6925 = vand.u32 %v6476, 4294901760
        %v6926 = vsub.f32 %v6476, %v6925
        %v6927 = vand.u32 %v6926, 4294901760
        %6928 = vmatpush1.msra.mxu0 %v6927
        %v6929 = vand.u32 %v6475, 4294901760
        %v6930 = vsub.f32 %v6475, %v6929
        %v6931 = vand.u32 %v6930, 4294901760
        %6932 = vmatprep.subr.mxu0 %v6931
        %v6933 = vand.u32 %v6474, 4294901760
        %v6934 = vsub.f32 %v6474, %v6933
        %v6935 = vand.u32 %v6934, 4294901760
        %6936 = vmatpush1.msra.mxu0 %v6935
        %v6937 = vand.u32 %v6473, 4294901760
        %v6938 = vsub.f32 %v6473, %v6937
        %v6939 = vand.u32 %v6938, 4294901760
        %6940 = vmatprep.subr.mxu0 %v6939
        %v6941 = vand.u32 %v6472, 4294901760
        %v6942 = vsub.f32 %v6472, %v6941
        %v6943 = vand.u32 %v6942, 4294901760
        %6944 = vmatpush1.msra.mxu0 %v6943
        %v6945 = vand.u32 %v6471, 4294901760
        %v6946 = vsub.f32 %v6471, %v6945
        %v6947 = vand.u32 %v6946, 4294901760
        %6948 = vmatprep.subr.mxu0 %v6947
        %v6949 = vand.u32 %v6470, 4294901760
        %v6950 = vsub.f32 %v6470, %v6949
        %v6951 = vand.u32 %v6950, 4294901760
        %6952 = vmatpush1.msra.mxu0 %v6951
        %v6953 = vand.u32 %v6469, 4294901760
        %v6954 = vsub.f32 %v6469, %v6953
        %v6955 = vand.u32 %v6954, 4294901760
        %6956 = vmatprep.subr.mxu0 %v6955
        %v6957 = vand.u32 %v6468, 4294901760
        %v6958 = vsub.f32 %v6468, %v6957
        %v6959 = vand.u32 %v6958, 4294901760
        %6960 = vmatpush1.msra.mxu0 %v6959
        %v6961 = vand.u32 %v6467, 4294901760
        %v6962 = vsub.f32 %v6467, %v6961
        %v6963 = vand.u32 %v6962, 4294901760
        %6964 = vmatprep.subr.mxu0 %v6963
        %v6965 = vand.u32 %v6466, 4294901760
        %v6966 = vsub.f32 %v6466, %v6965
        %v6967 = vand.u32 %v6966, 4294901760
        %6968 = vmatpush1.msra.mxu0 %v6967
        %v6969 = vand.u32 %v6465, 4294901760
        %v6970 = vsub.f32 %v6465, %v6969
        %v6971 = vand.u32 %v6970, 4294901760
        %6972 = vmatprep.subr.mxu0 %v6971
        %v6973 = vand.u32 %v6464, 4294901760
        %v6974 = vsub.f32 %v6464, %v6973
        %v6975 = vand.u32 %v6974, 4294901760
        %6976 = vmatpush1.msra.mxu0 %v6975
        %6977 = vmatprep.subr.mxu0 0.0
        %6978 = vmatpush2.msra.mxu0 0.0
        %6979 = vmatprep.subr.mxu0 0.0
        %6980 = vmatpush2.msra.mxu0 0.0
        %6981 = vmatprep.subr.mxu0 0.0
        %6982 = vmatpush2.msra.mxu0 0.0
        %6983 = vmatprep.subr.mxu0 0.0
        %6984 = vmatpush2.msra.mxu0 0.0
        %6985 = vmatprep.subr.mxu0 0.0
        %6986 = vmatpush2.msra.mxu0 0.0
        %6987 = vmatprep.subr.mxu0 0.0
        %6988 = vmatpush2.msra.mxu0 0.0
        %6989 = vmatprep.subr.mxu0 0.0
        %6990 = vmatpush2.msra.mxu0 0.0
        %6991 = vmatprep.subr.mxu0 0.0
        %6992 = vmatpush2.msra.mxu0 0.0
        %6993 = vmatprep.subr.mxu0 0.0
        %6994 = vmatpush2.msra.mxu0 0.0
        %6995 = vmatprep.subr.mxu0 0.0
        %6996 = vmatpush2.msra.mxu0 0.0
        %6997 = vmatprep.subr.mxu0 0.0
        %6998 = vmatpush2.msra.mxu0 0.0
        %6999 = vmatprep.subr.mxu0 0.0
        %7000 = vmatpush2.msra.mxu0 0.0
        %7001 = vmatprep.subr.mxu0 0.0
        %7002 = vmatpush2.msra.mxu0 0.0
        %7003 = vmatprep.subr.mxu0 0.0
        %7004 = vmatpush2.msra.mxu0 0.0
        %7005 = vmatprep.subr.mxu0 0.0
        %7006 = vmatpush2.msra.mxu0 0.0
        %7007 = vmatprep.subr.mxu0 0.0
        %7008 = vmatpush2.msra.mxu0 0.0
        %7009 = vmatprep.mubr.f32.mxu0 0.0
        %v7010 = vand.u32 %v6480, 4294901760
        %7011 = vmatmul.mubr.f32.gmra.mxu0 %v7010
        %v7012 = vpop.f32.mrf.mxu0
        %v7013 = vadd.f32 %v6899, %v7012
        %v7014 = vpop.f32.mrf.mxu0
        %v7015 = vadd.f32 %v6901, %v7014
        %7016 = vdwg.mxu0
        %7017 = vmatprep.subr.mxu0 0.0
        %7018 = vmatpush1.msra.mxu0 0.0
        %7019 = vmatprep.subr.mxu0 0.0
        %7020 = vmatpush1.msra.mxu0 0.0
        %7021 = vmatprep.subr.mxu0 0.0
        %7022 = vmatpush1.msra.mxu0 0.0
        %7023 = vmatprep.subr.mxu0 0.0
        %7024 = vmatpush1.msra.mxu0 0.0
        %7025 = vmatprep.subr.mxu0 0.0
        %7026 = vmatpush1.msra.mxu0 0.0
        %7027 = vmatprep.subr.mxu0 0.0
        %7028 = vmatpush1.msra.mxu0 0.0
        %7029 = vmatprep.subr.mxu0 0.0
        %7030 = vmatpush1.msra.mxu0 0.0
        %7031 = vmatprep.subr.mxu0 0.0
        %7032 = vmatpush1.msra.mxu0 0.0
        %7033 = vmatprep.subr.mxu0 0.0
        %7034 = vmatpush1.msra.mxu0 0.0
        %v7035 = vand.u32 %v6477, 4294901760
        %7036 = vmatprep.subr.mxu0 %v7035
        %v7037 = vand.u32 %v6476, 4294901760
        %7038 = vmatpush1.msra.mxu0 %v7037
        %v7039 = vand.u32 %v6475, 4294901760
        %7040 = vmatprep.subr.mxu0 %v7039
        %v7041 = vand.u32 %v6474, 4294901760
        %7042 = vmatpush1.msra.mxu0 %v7041
        %v7043 = vand.u32 %v6473, 4294901760
        %7044 = vmatprep.subr.mxu0 %v7043
        %v7045 = vand.u32 %v6472, 4294901760
        %7046 = vmatpush1.msra.mxu0 %v7045
        %v7047 = vand.u32 %v6471, 4294901760
        %7048 = vmatprep.subr.mxu0 %v7047
        %v7049 = vand.u32 %v6470, 4294901760
        %7050 = vmatpush1.msra.mxu0 %v7049
        %v7051 = vand.u32 %v6469, 4294901760
        %7052 = vmatprep.subr.mxu0 %v7051
        %v7053 = vand.u32 %v6468, 4294901760
        %7054 = vmatpush1.msra.mxu0 %v7053
        %v7055 = vand.u32 %v6467, 4294901760
        %7056 = vmatprep.subr.mxu0 %v7055
        %v7057 = vand.u32 %v6466, 4294901760
        %7058 = vmatpush1.msra.mxu0 %v7057
        %v7059 = vand.u32 %v6465, 4294901760
        %7060 = vmatprep.subr.mxu0 %v7059
        %v7061 = vand.u32 %v6464, 4294901760
        %7062 = vmatpush1.msra.mxu0 %v7061
        %7063 = vmatprep.subr.mxu0 0.0
        %7064 = vmatpush2.msra.mxu0 0.0
        %7065 = vmatprep.subr.mxu0 0.0
        %7066 = vmatpush2.msra.mxu0 0.0
        %7067 = vmatprep.subr.mxu0 0.0
        %7068 = vmatpush2.msra.mxu0 0.0
        %7069 = vmatprep.subr.mxu0 0.0
        %7070 = vmatpush2.msra.mxu0 0.0
        %7071 = vmatprep.subr.mxu0 0.0
        %7072 = vmatpush2.msra.mxu0 0.0
        %7073 = vmatprep.subr.mxu0 0.0
        %7074 = vmatpush2.msra.mxu0 0.0
        %7075 = vmatprep.subr.mxu0 0.0
        %7076 = vmatpush2.msra.mxu0 0.0
        %7077 = vmatprep.subr.mxu0 0.0
        %7078 = vmatpush2.msra.mxu0 0.0
        %7079 = vmatprep.subr.mxu0 0.0
        %7080 = vmatpush2.msra.mxu0 0.0
        %7081 = vmatprep.subr.mxu0 0.0
        %7082 = vmatpush2.msra.mxu0 0.0
        %7083 = vmatprep.subr.mxu0 0.0
        %7084 = vmatpush2.msra.mxu0 0.0
        %7085 = vmatprep.subr.mxu0 0.0
        %7086 = vmatpush2.msra.mxu0 0.0
        %7087 = vmatprep.subr.mxu0 0.0
        %7088 = vmatpush2.msra.mxu0 0.0
        %7089 = vmatprep.subr.mxu0 0.0
        %7090 = vmatpush2.msra.mxu0 0.0
        %7091 = vmatprep.subr.mxu0 0.0
        %7092 = vmatpush2.msra.mxu0 0.0
        %7093 = vmatprep.subr.mxu0 0.0
        %7094 = vmatpush2.msra.mxu0 0.0
        %7095 = vmatprep.mubr.f32.mxu0 0.0
        %v7096 = vand.u32 %v6480, 4294901760
        %7097 = vmatmul.mubr.f32.gmra.mxu0 %v7096
        %v7098 = vpop.f32.mrf.mxu0
        %v7099 = vadd.f32 %v7013, %v7098
        %v7100 = vpop.f32.mrf.mxu0
        %v7101 = vadd.f32 %v7015, %v7100
        %7102 = vdwg.mxu0
        %v7103 = vld [vmem:[#allocation3] sm:$0x1]
        %7105 = vset.pattern.permute.xlu0 0
        %7106 = vperm.xlu0 %7105, %v7103
        %v7107 = vpop.permute.xlu0 %7106
        %v7109 = vlaneseq
        %v7110 = vshrl.u32 %v7109, 7
        %v7111 = vsub.s32 0, %v7110
        %v7112 = vrot.slane %v7107, %v7111
        %v7113 = vadd.f32 %v7099, %v7112
        %v7114 = vadd.f32 %v7101, %v7112
        %v7117 = vcombine.low %v7113, %v7114
        %v7119 = vunpack.c.l.s4 1966171168
        %v7120 = vunpack.c.0.s8 %v7119
        %v7121 = vlaneseq
        %v7122 = vshrl.u32 %v7121, 7
        %v7123 = vsub.s32 %v7120, %v7122
        %v7124 = vrot.slane %v7117, %v7123
        %v7126 = vunpack.c.l.s4 1966171168
        %v7127 = vunpack.c.0.s8 %v7126
        %v7128 = vlaneseq
        %v7129 = vshrl.u32 %v7128, 7
        %v7130 = vsub.s32 %v7127, %v7129
        %v7131 = vrot.slane %v7124, %v7130
        %7133 = vst.msk [vmem:[%s274] sm:$0x3] %vm307, %v7131
        %s7134 = sand.u32 %s183, 1
        %s7135 = scalar_lea.sflag [#allocation5], %s7134
        %s7136 = sand.u32 %s183, 1
        %s7137 = smul.addr %s7136, 2
        %s7138 = scalar_lea.vmem [#allocation4], %s7137
        // Predicated region
        $region49: #{tpu_custom_call.1} parent=47 // pred_check
          %p7139 = pneg %p193
        $region50: #{tpu_custom_call.1} parent=47 // pred_check_branch
          %7141 = sbr.rel (%p7139) target = $region52
        $region51: #{tpu_custom_call.1} parent=47 // pred_region
          %s7142 = smul.u32 2, %s23
          %s7144 = ssub.s32 32, 32
          %7145 = vsyncadd %s7135, %s7144
          %s7146 = smul.addr %s7142, 16
          %s7147 = scalar_lea.hbm %s7, %s7146
          %s7149 = sshll.u32 %s7138, 4
          %s7150 = int_to_ptr.vmem [resolvable:$true] %s7149
          %7152 = dma.vmem_to_hbm [thread:$0]  %s7150, 32, %s7147, %s7135
        $region52: #{tpu_custom_call.1} parent=47 // pred_fallthru
          _
      $region48: #{tpu_custom_call.1} parent=5 // pred_fallthru
        _
      %p7153 = scmp.le.s32.totalorder 2, %s18
      // Predicated region
      $region53: #{tpu_custom_call.1} parent=5 // pred_check
        %p7154 = pneg %p7153
      $region54: #{tpu_custom_call.1} parent=5 // pred_check_branch
        %7156 = sbr.rel (%p7154) target = $region56
      $region55: #{tpu_custom_call.1} parent=5 // pred_region
        %s7157 = ssub.s32 %s18, 2
        // Predicated region
        $region57: #{tpu_custom_call.1} parent=55 // pred_check
          %p7158 = pneg %p199
        $region58: #{tpu_custom_call.1} parent=55 // pred_check_branch
          %7160 = sbr.rel (%p7158) target = $region60
        $region59: #{tpu_custom_call.1} parent=55 // pred_region
          %s7161 = sand.u32 %s184, 1
          %s7162 = scalar_lea.sflag [#allocation5], %s7161
          %s7163 = sand.u32 %s184, 1
          %s7164 = smul.addr %s7163, 2
          %s7165 = scalar_lea.vmem [#allocation4], %s7164
          %7166 = dma.done %s7162, 32
        $region60: #{tpu_custom_call.1} parent=55 // pred_fallthru
          _
      $region56: #{tpu_custom_call.1} parent=5 // pred_fallthru
        _
    $region6: #{tpu_custom_call.1} parent=1 // loop_footer
      %s22 = sadd.s32 1, %s18
    $region7: #{tpu_custom_call.1} parent=1 // loop_footer_branch
      %17 = sbr.rel target = $region3
    $region8: #{tpu_custom_call.1} parent=1 // loop_exit
      _
    %7167 = vsyncpa [#allocation5], 1
    %s7168 = scalar_lea.sflag [#allocation5], 1
    %7169 = vsyncpa %s7168, 1

</llo_original>
